<compile_context>
chip_gen: v6e
topology: v6e:2x2x1
jax: 0.10.0
libtpu: 0.0.40
codegen_flags: <defaults>
</compile_context>

<pallas_src>
import functools

import jax
import jax.numpy as jnp
from jax.experimental import pallas as pl
from jax.experimental.pallas import tpu as pltpu

DIM = 3                        # Attention(dim=3, head=3)
HEAD = 3
HEAD_DIM = DIM // HEAD         # = 1
SCALE = float(HEAD_DIM) ** -0.5
NF_FEATS = 1000                # MyNfnet forces the NFNet head to 1000 features
LANE = 128
BATCH_TILE = 8                 # batch elements per grid step (multiple of 8)


def _round_up(x, m):
    return (x + m - 1) // m * m


# ---------------------------------------------------------------------------
# Fused kernel: one grid step == BATCH_TILE batch elements.
#   ROI attention (q/kv/proj, head_dim=1) + ROI-corrected global average pool
#   + stand-in backbone linear + batched MyNfnet.fc.
# ---------------------------------------------------------------------------
def fused_roi_nfnet_kernel(roi_rows_ref,   # (C, TB, N)   ROI, tokens on lanes
                           roi_cols_ref,   # (TB, N, C)   ROI, tokens on sublanes
                           imgsum_ref,     # (TB, C)      full-image channel sums
                           wqkv_ref,       # (27,)  SMEM  fused [q|k|v] weight (row-major)
                           bqkv_ref,       # (9,)   SMEM
                           wp_ref,         # (9,)   SMEM  proj weight (row-major)
                           bp_ref,         # (3,)   SMEM
                           wb_t_ref,       # (3, 1000)    stand-in backbone linear
                           bb_ref,         # (1, 1000)
                           wfc_ref,        # (1000, NCP)  bf16  MyNfnet.fc (padded)
                           bfc_ref,        # (1, NCP)
                           out_ref,        # (TB, NCP)
                           o_scratch,      # (HEAD*TB, N) VMEM  per-head attn outputs
                           *, inv_hw):
    _, tb, n = roi_rows_ref.shape

    # ----- batched, lane-dense projections: q/k/v rows are (TB, N) -----------
    x_rows = [roi_rows_ref[c] for c in range(DIM)]               # 3 x (TB, N)

    def affine_rows(r):                                          # row r of fused [q|k|v]
        acc = bqkv_ref[r] + wqkv_ref[3 * r + 0] * x_rows[0]
        acc = acc + wqkv_ref[3 * r + 1] * x_rows[1]
        acc = acc + wqkv_ref[3 * r + 2] * x_rows[2]
        return acc                                               # (TB, N)

    q_all = [affine_rows(h) * SCALE for h in range(HEAD)]        # scale folded into q
    k_all = [affine_rows(DIM + h) for h in range(HEAD)]
    v_all = [affine_rows(2 * DIM + h) for h in range(HEAD)]

    # Closed-form softmax row max for head_dim == 1 (batched, 1 lane-reduce/head):
    #   max_j q_i * k_j = q_i * kmax  if q_i >= 0  else  q_i * kmin
    m_all = []
    for h in range(HEAD):
        kmax = jnp.max(k_all[h], axis=-1, keepdims=True)         # (TB, 1)
        kmin = jnp.min(k_all[h], axis=-1, keepdims=True)         # (TB, 1)
        m_all.append(q_all[h] * jnp.where(q_all[h] >= 0.0, kmax, kmin))   # (TB, N)

    row0 = jax.lax.broadcasted_iota(jnp.int32, (2, n), 0) == 0   # selector for [v ; 1]

    # ----- per-element attention core (rank-1 scores, N x N exp) -------------
    for b in range(tb):
        xb_cols = roi_cols_ref[b]                                # (N, C)
        x_cols = [xb_cols[:, c:c + 1] for c in range(DIM)]       # 3 x (N, 1)
        for h in range(HEAD):
            q_b = q_all[h][b:b + 1, :]                           # (1, N)
            v_b = v_all[h][b:b + 1, :]                           # (1, N)
            m_b = m_all[h][b:b + 1, :]                           # (1, N)
            # k for this head/element in column layout (the single per-head
            # column required by the transposed score construction).
            r = DIM + h
            k_col = (bqkv_ref[r]
                     + wqkv_ref[3 * r + 0] * x_cols[0]
                     + wqkv_ref[3 * r + 1] * x_cols[1]
                     + wqkv_ref[3 * r + 2] * x_cols[2])          # (N, 1)
            # e_T[j, i] = exp(k_j * q_i - m_i)   (i on lanes, j on sublanes)
            e_t = jnp.exp(k_col * q_b - m_b)                     # (N, N)
            # softmax numerator & denominator with ONE small MXU dot:
            #   [v ; 1] (2, N) @ e_T (N, N) -> (2, N) = [num_i ; den_i]
            vm = jnp.where(row0, v_b, 1.0)                       # (2, N)
            nd = jnp.dot(vm, e_t, preferred_element_type=jnp.float32)
            o_row = nd[0:1, :] * pl.reciprocal(nd[1:2, :], approx=True)   # (1, N)
            o_scratch[h * tb + b:h * tb + b + 1, :] = o_row

    # ----- batched epilogue: proj folded into the ROI-corrected global pool --
    #   sum_i y_c[b,i]      = N*bp[c] + sum_h wp[c,h] * sum_i o_h[b,i]   (linearity)
    #   sum(updated x)[b,c] = sum(x)[b,c] - sum(old ROI)[b,c] + sum_i y_c[b,i]
    osum = [jnp.sum(o_scratch[h * tb:(h + 1) * tb, :], axis=-1, keepdims=True)
            for h in range(HEAD)]                                # 3 x (TB, 1)
    feats = bb_ref[...]                                          # (1, 1000) -> broadcasts
    for c in range(DIM):
        old_c = jnp.sum(x_rows[c], axis=-1, keepdims=True)       # (TB, 1)
        new_c = (float(n) * bp_ref[c]
                 + wp_ref[3 * c + 0] * osum[0]
                 + wp_ref[3 * c + 1] * osum[1]
                 + wp_ref[3 * c + 2] * osum[2])                  # (TB, 1)
        pooled_c = (imgsum_ref[:, c:c + 1] - old_c + new_c) * inv_hw      # (TB, 1)
        feats = feats + pooled_c * wb_t_ref[c:c + 1, :]          # (TB, 1000)

    # MyNfnet.fc: batched bf16 MXU dot, f32 accumulation, lane-dense padded out.
    logits = (jnp.dot(feats.astype(jnp.bfloat16), wfc_ref[...],
                      preferred_element_type=jnp.float32) + bfc_ref[...])
    out_ref[...] = logits


def _pallas_forward(roi_rows, roi_cols, img_sums, attn_p, nf_p, *, hw, tb):
    c, bp_, n = roi_rows.shape
    ncp = nf_p['wfc_t'].shape[1]

    kernel = functools.partial(fused_roi_nfnet_kernel, inv_hw=1.0 / float(hw))
    grid_spec = pltpu.PrefetchScalarGridSpec(
        num_scalar_prefetch=0,
        grid=(bp_ // tb,),
        in_specs=[
            pl.BlockSpec((c, tb, n), lambda i: (0, i, 0)),       # ROI rows
            pl.BlockSpec((tb, n, c), lambda i: (i, 0, 0)),       # ROI cols
            pl.BlockSpec((tb, c), lambda i: (i, 0)),             # image channel sums
            pl.BlockSpec(memory_space=pltpu.MemorySpace.SMEM),   # w_qkv (27,)
            pl.BlockSpec(memory_space=pltpu.MemorySpace.SMEM),   # b_qkv (9,)
            pl.BlockSpec(memory_space=pltpu.MemorySpace.SMEM),   # w_proj (9,)
            pl.BlockSpec(memory_space=pltpu.MemorySpace.SMEM),   # b_proj (3,)
            pl.BlockSpec(memory_space=pltpu.MemorySpace.VMEM),   # wb_t   (grid-invariant,
            pl.BlockSpec(memory_space=pltpu.MemorySpace.VMEM),   # bb      whole-array VMEM:
            pl.BlockSpec(memory_space=pltpu.MemorySpace.VMEM),   # wfc_t   no pipeline, no
            pl.BlockSpec(memory_space=pltpu.MemorySpace.VMEM),   # bfc     double-buffering)
        ],
        out_specs=pl.BlockSpec((tb, ncp), lambda i: (i, 0)),
        scratch_shapes=[pltpu.VMEM((HEAD * tb, n), jnp.float32)],
    )
    out = pl.pallas_call(
        kernel,
        out_shape=jax.ShapeDtypeStruct((bp_, ncp), jnp.float32),
        grid_spec=grid_spec,
        compiler_params=pltpu.CompilerParams(
            dimension_semantics=("parallel",),        # batch tiles -> both TCs on v7x
            vmem_limit_bytes=32 * 1024 * 1024),
    )(roi_rows, roi_cols, img_sums,
      attn_p['w_qkv'], attn_p['b_qkv'], attn_p['w_proj'], attn_p['b_proj'],
      nf_p['wb_t'], nf_p['bb'], nf_p['wfc_t'], nf_p['bfc'])
    return out                                                    # (BP, NCP)


# ---------------------------------------------------------------------------
# Full RoiAttentionNFnet.forward
# ---------------------------------------------------------------------------
@functools.partial(jax.jit,
                   static_argnames=("roi_h", "roi_w", "num_classes", "batch_tile"))
def roi_attention_nfnet_forward(x, roi_x, roi_y, params, *,
                                roi_h, roi_w, num_classes, batch_tile=BATCH_TILE):
    """x: (B, 3, H, W) f32.  roi_x / roi_y: (B,) int32 top-left corners.
    All ROIs share a static (roi_h, roi_w) size so the whole batch runs in one
    batch-tiled kernel.  Returns the logits (B, num_classes) — the value the
    PyTorch forward returns (the in-place ROI update of x is folded into the
    pooled-sum correction inside the kernel)."""
    b, c, h, w = x.shape
    assert c == DIM, "Attention is hard-wired to dim=3 channels"

    zero = jnp.zeros((), jnp.int32)

    def take_roi(img, sx, sy):
        return jax.lax.dynamic_slice(
            img, (zero, sx.astype(jnp.int32), sy.astype(jnp.int32)),
            (c, roi_h, roi_w))

    x_roi = jax.vmap(take_roi)(x, roi_x, roi_y)               # (B, C, rh, rw)
    n = roi_h * roi_w
    roi_bcn = x_roi.reshape(b, c, n)

    # Full-image channel sums hoisted out of the kernel (no padded image stream).
    img_sums = jnp.sum(x, axis=(2, 3))                        # (B, C)

    # Pad the batch to a multiple of the batch tile (padded rows are discarded).
    tb = batch_tile
    bp_ = _round_up(max(b, 1), tb)
    pad = bp_ - b
    if pad:
        roi_bcn = jnp.pad(roi_bcn, ((0, pad), (0, 0), (0, 0)))
        img_sums = jnp.pad(img_sums, ((0, pad), (0, 0)))

    roi_rows = jnp.transpose(roi_bcn, (1, 0, 2))              # (C, BP, N) tokens on lanes
    roi_cols = jnp.transpose(roi_bcn, (0, 2, 1))              # (BP, N, C) tokens on sublanes

    logits_padded = _pallas_forward(roi_rows, roi_cols, img_sums,
                                    params['attn'], params['nfnet'],
                                    hw=h * w, tb=tb)
    return logits_padded[:b, :num_classes]


# ---------------------------------------------------------------------------
# Deterministic parameter initialization (shapes from the module __init__).
# ---------------------------------------------------------------------------
def init_params(key, num_classes):
    ks = jax.random.split(key, 5)

    def lin(k, out_dim, in_dim, w_scale=0.02, b_scale=0.01):
        kw, kb = jax.random.split(k)
        w = jax.random.normal(kw, (out_dim, in_dim), jnp.float32) * w_scale
        bv = jax.random.normal(kb, (out_dim,), jnp.float32) * b_scale
        return w, bv

    wq, bq = lin(ks[0], DIM, DIM)                  # Attention.q
    wkv, bkv = lin(ks[1], 2 * DIM, DIM)            # Attention.kv (rows: k0..2, v0..2)
    wp, bp = lin(ks[2], DIM, DIM)                  # Attention.proj
    wb, bb = lin(ks[3], NF_FEATS, DIM)             # stand-in backbone feature linear
    wfc, bfc = lin(ks[4], num_classes, NF_FEATS)   # MyNfnet.fc

    # fc weight as bf16 (f32 accumulation in the kernel); output padded to a
    # 128-lane-dense slab, logits sliced outside.
    ncp = _round_up(num_classes, LANE)
    wfc_t = jnp.zeros((NF_FEATS, ncp), jnp.bfloat16).at[:, :num_classes].set(
        wfc.T.astype(jnp.bfloat16))
    bfc_p = jnp.zeros((1, ncp), jnp.float32).at[:, :num_classes].set(bfc[None, :])

    return {
        'attn': {
            'w_qkv': jnp.concatenate([wq, wkv], axis=0).reshape(-1),   # (27,) flat
            'b_qkv': jnp.concatenate([bq, bkv], axis=0),               # (9,)
            'w_proj': wp.reshape(-1),                                  # (9,)  flat
            'b_proj': bp,                                              # (3,)
        },
        'nfnet': {
            'wb_t': wb.T,                                  # (3, 1000)
            'bb': bb.reshape(1, -1),                       # (1, 1000)
            'wfc_t': wfc_t,                                # (1000, 128) bf16
            'bfc': bfc_p,                                  # (1, 128)
        },
    }


if __name__ == "__main__":
    key = jax.random.PRNGKey(0)
    kx, kp = jax.random.split(key)

    B, C, H, W = 2, 3, 16, 16        # channels fixed at 3 by Attention(dim=3)
    num_classes = 4

    x = jax.random.normal(kx, (B, C, H, W), jnp.float32)
    # per-image ROIs: top-left (row, col) + a shared static 8x8 window size
    rois = {'x': [2, 4], 'y': [3, 1], 'height': [8, 8], 'width': [8, 8]}

    roi_h, roi_w = int(rois['height'][0]), int(rois['width'][0])
    assert all(int(v) == roi_h for v in rois['height'])
    assert all(int(v) == roi_w for v in rois['width'])
    roi_x = jnp.asarray(rois['x'], jnp.int32)
    roi_y = jnp.asarray(rois['y'], jnp.int32)

    params = init_params(kp, num_classes)

    logits = roi_attention_nfnet_forward(
        x, roi_x, roi_y, params,
        roi_h=roi_h, roi_w=roi_w, num_classes=num_classes)
    jax.block_until_ready(logits)
    assert logits.shape == (B, num_classes)
    assert bool(jnp.all(jnp.isfinite(logits)))
    print("KERNEL_OK")
</pallas_src>

<mosaic_0001>
module attributes {stable_mosaic.version = 11 : i64} {
  func.func @fused_roi_nfnet_kernel(%arg0: i32, %arg1: memref<3x8x64xf32, #tpu.memory_space<vmem>>, %arg2: memref<8x64x3xf32, #tpu.memory_space<vmem>>, %arg3: memref<8x3xf32, #tpu.memory_space<vmem>>, %arg4: memref<27xf32, #tpu.memory_space<smem>>, %arg5: memref<9xf32, #tpu.memory_space<smem>>, %arg6: memref<9xf32, #tpu.memory_space<smem>>, %arg7: memref<3xf32, #tpu.memory_space<smem>>, %arg8: memref<3x1000xf32, #tpu.memory_space<vmem>>, %arg9: memref<1x1000xf32, #tpu.memory_space<vmem>>, %arg10: memref<1000x128xbf16, #tpu.memory_space<vmem>>, %arg11: memref<1x128xf32, #tpu.memory_space<vmem>>, %arg12: memref<8x128xf32, #tpu.memory_space<vmem>>, %arg13: memref<24x64xf32, #tpu.memory_space<vmem>>) attributes {dimension_semantics = [#tpu.dimension_semantics<parallel>], iteration_bounds = array<i64: 1>, scalar_prefetch = 0 : i64, scratch_operands = 1 : i64, tpu.core_type = #tpu.core_type<tc>, window_params = [{transform_indices = @transform_0, window_bounds = array<i64: 3, 8, 64>}, {transform_indices = @transform_1, window_bounds = array<i64: 8, 64, 3>}, {transform_indices = @transform_2, window_bounds = array<i64: 8, 3>}, {transform_indices = @transform_3, window_bounds = array<i64: 27>}, {transform_indices = @transform_4, window_bounds = array<i64: 9>}, {transform_indices = @transform_5, window_bounds = array<i64: 9>}, {transform_indices = @transform_6, window_bounds = array<i64: 3>}, {pipeline_mode = #tpu.pipeline_mode<synchronous>, transform_indices = @transform_7, window_bounds = array<i64: 3, 1000>}, {pipeline_mode = #tpu.pipeline_mode<synchronous>, transform_indices = @transform_8, window_bounds = array<i64: 1, 1000>}, {pipeline_mode = #tpu.pipeline_mode<synchronous>, transform_indices = @transform_9, window_bounds = array<i64: 1000, 128>}, {pipeline_mode = #tpu.pipeline_mode<synchronous>, transform_indices = @transform_10, window_bounds = array<i64: 1, 128>}, {transform_indices = @transform_11, window_bounds = array<i64: 8, 128>}]} {
    %c0 = arith.constant 0 : index
    %c0_0 = arith.constant 0 : index
    %c0_1 = arith.constant 0 : index
    %0 = vector.load %arg1[%c0, %c0_0, %c0_1] : memref<3x8x64xf32, #tpu.memory_space<vmem>>, vector<1x8x64xf32>
    %1 = vector.shape_cast %0 : vector<1x8x64xf32> to vector<8x64xf32>
    %c1 = arith.constant 1 : index
    %c0_2 = arith.constant 0 : index
    %c0_3 = arith.constant 0 : index
    %2 = vector.load %arg1[%c1, %c0_2, %c0_3] : memref<3x8x64xf32, #tpu.memory_space<vmem>>, vector<1x8x64xf32>
    %3 = vector.shape_cast %2 : vector<1x8x64xf32> to vector<8x64xf32>
    %c2 = arith.constant 2 : index
    %c0_4 = arith.constant 0 : index
    %c0_5 = arith.constant 0 : index
    %4 = vector.load %arg1[%c2, %c0_4, %c0_5] : memref<3x8x64xf32, #tpu.memory_space<vmem>>, vector<1x8x64xf32>
    %5 = vector.shape_cast %4 : vector<1x8x64xf32> to vector<8x64xf32>
    %c0_6 = arith.constant 0 : index
    %6 = memref.load %arg5[%c0_6] : memref<9xf32, #tpu.memory_space<smem>>
    %c0_7 = arith.constant 0 : index
    %7 = memref.load %arg4[%c0_7] : memref<27xf32, #tpu.memory_space<smem>>
    %8 = vector.broadcast %7 : f32 to vector<8x64xf32>
    %9 = arith.mulf %8, %1 : vector<8x64xf32>
    %10 = vector.broadcast %6 : f32 to vector<8x64xf32>
    %11 = arith.addf %10, %9 : vector<8x64xf32>
    %c1_8 = arith.constant 1 : index
    %12 = memref.load %arg4[%c1_8] : memref<27xf32, #tpu.memory_space<smem>>
    %13 = vector.broadcast %12 : f32 to vector<8x64xf32>
    %14 = arith.mulf %13, %3 : vector<8x64xf32>
    %15 = arith.addf %11, %14 : vector<8x64xf32>
    %c2_9 = arith.constant 2 : index
    %16 = memref.load %arg4[%c2_9] : memref<27xf32, #tpu.memory_space<smem>>
    %17 = vector.broadcast %16 : f32 to vector<8x64xf32>
    %18 = arith.mulf %17, %5 : vector<8x64xf32>
    %19 = arith.addf %15, %18 : vector<8x64xf32>
    %cst = arith.constant 1.000000e+00 : f32
    %20 = vector.broadcast %cst : f32 to vector<8x64xf32>
    %21 = arith.mulf %19, %20 : vector<8x64xf32>
    %c1_10 = arith.constant 1 : index
    %22 = memref.load %arg5[%c1_10] : memref<9xf32, #tpu.memory_space<smem>>
    %c3 = arith.constant 3 : index
    %23 = memref.load %arg4[%c3] : memref<27xf32, #tpu.memory_space<smem>>
    %24 = vector.broadcast %23 : f32 to vector<8x64xf32>
    %25 = arith.mulf %24, %1 : vector<8x64xf32>
    %26 = vector.broadcast %22 : f32 to vector<8x64xf32>
    %27 = arith.addf %26, %25 : vector<8x64xf32>
    %c4 = arith.constant 4 : index
    %28 = memref.load %arg4[%c4] : memref<27xf32, #tpu.memory_space<smem>>
    %29 = vector.broadcast %28 : f32 to vector<8x64xf32>
    %30 = arith.mulf %29, %3 : vector<8x64xf32>
    %31 = arith.addf %27, %30 : vector<8x64xf32>
    %c5 = arith.constant 5 : index
    %32 = memref.load %arg4[%c5] : memref<27xf32, #tpu.memory_space<smem>>
    %33 = vector.broadcast %32 : f32 to vector<8x64xf32>
    %34 = arith.mulf %33, %5 : vector<8x64xf32>
    %35 = arith.addf %31, %34 : vector<8x64xf32>
    %cst_11 = arith.constant 1.000000e+00 : f32
    %36 = vector.broadcast %cst_11 : f32 to vector<8x64xf32>
    %37 = arith.mulf %35, %36 : vector<8x64xf32>
    %c2_12 = arith.constant 2 : index
    %38 = memref.load %arg5[%c2_12] : memref<9xf32, #tpu.memory_space<smem>>
    %c6 = arith.constant 6 : index
    %39 = memref.load %arg4[%c6] : memref<27xf32, #tpu.memory_space<smem>>
    %40 = vector.broadcast %39 : f32 to vector<8x64xf32>
    %41 = arith.mulf %40, %1 : vector<8x64xf32>
    %42 = vector.broadcast %38 : f32 to vector<8x64xf32>
    %43 = arith.addf %42, %41 : vector<8x64xf32>
    %c7 = arith.constant 7 : index
    %44 = memref.load %arg4[%c7] : memref<27xf32, #tpu.memory_space<smem>>
    %45 = vector.broadcast %44 : f32 to vector<8x64xf32>
    %46 = arith.mulf %45, %3 : vector<8x64xf32>
    %47 = arith.addf %43, %46 : vector<8x64xf32>
    %c8 = arith.constant 8 : index
    %48 = memref.load %arg4[%c8] : memref<27xf32, #tpu.memory_space<smem>>
    %49 = vector.broadcast %48 : f32 to vector<8x64xf32>
    %50 = arith.mulf %49, %5 : vector<8x64xf32>
    %51 = arith.addf %47, %50 : vector<8x64xf32>
    %cst_13 = arith.constant 1.000000e+00 : f32
    %52 = vector.broadcast %cst_13 : f32 to vector<8x64xf32>
    %53 = arith.mulf %51, %52 : vector<8x64xf32>
    %c3_14 = arith.constant 3 : index
    %54 = memref.load %arg5[%c3_14] : memref<9xf32, #tpu.memory_space<smem>>
    %c9 = arith.constant 9 : index
    %55 = memref.load %arg4[%c9] : memref<27xf32, #tpu.memory_space<smem>>
    %56 = vector.broadcast %55 : f32 to vector<8x64xf32>
    %57 = arith.mulf %56, %1 : vector<8x64xf32>
    %58 = vector.broadcast %54 : f32 to vector<8x64xf32>
    %59 = arith.addf %58, %57 : vector<8x64xf32>
    %c10 = arith.constant 10 : index
    %60 = memref.load %arg4[%c10] : memref<27xf32, #tpu.memory_space<smem>>
    %61 = vector.broadcast %60 : f32 to vector<8x64xf32>
    %62 = arith.mulf %61, %3 : vector<8x64xf32>
    %63 = arith.addf %59, %62 : vector<8x64xf32>
    %c11 = arith.constant 11 : index
    %64 = memref.load %arg4[%c11] : memref<27xf32, #tpu.memory_space<smem>>
    %65 = vector.broadcast %64 : f32 to vector<8x64xf32>
    %66 = arith.mulf %65, %5 : vector<8x64xf32>
    %67 = arith.addf %63, %66 : vector<8x64xf32>
    %c4_15 = arith.constant 4 : index
    %68 = memref.load %arg5[%c4_15] : memref<9xf32, #tpu.memory_space<smem>>
    %c12 = arith.constant 12 : index
    %69 = memref.load %arg4[%c12] : memref<27xf32, #tpu.memory_space<smem>>
    %70 = vector.broadcast %69 : f32 to vector<8x64xf32>
    %71 = arith.mulf %70, %1 : vector<8x64xf32>
    %72 = vector.broadcast %68 : f32 to vector<8x64xf32>
    %73 = arith.addf %72, %71 : vector<8x64xf32>
    %c13 = arith.constant 13 : index
    %74 = memref.load %arg4[%c13] : memref<27xf32, #tpu.memory_space<smem>>
    %75 = vector.broadcast %74 : f32 to vector<8x64xf32>
    %76 = arith.mulf %75, %3 : vector<8x64xf32>
    %77 = arith.addf %73, %76 : vector<8x64xf32>
    %c14 = arith.constant 14 : index
    %78 = memref.load %arg4[%c14] : memref<27xf32, #tpu.memory_space<smem>>
    %79 = vector.broadcast %78 : f32 to vector<8x64xf32>
    %80 = arith.mulf %79, %5 : vector<8x64xf32>
    %81 = arith.addf %77, %80 : vector<8x64xf32>
    %c5_16 = arith.constant 5 : index
    %82 = memref.load %arg5[%c5_16] : memref<9xf32, #tpu.memory_space<smem>>
    %c15 = arith.constant 15 : index
    %83 = memref.load %arg4[%c15] : memref<27xf32, #tpu.memory_space<smem>>
    %84 = vector.broadcast %83 : f32 to vector<8x64xf32>
    %85 = arith.mulf %84, %1 : vector<8x64xf32>
    %86 = vector.broadcast %82 : f32 to vector<8x64xf32>
    %87 = arith.addf %86, %85 : vector<8x64xf32>
    %c16 = arith.constant 16 : index
    %88 = memref.load %arg4[%c16] : memref<27xf32, #tpu.memory_space<smem>>
    %89 = vector.broadcast %88 : f32 to vector<8x64xf32>
    %90 = arith.mulf %89, %3 : vector<8x64xf32>
    %91 = arith.addf %87, %90 : vector<8x64xf32>
    %c17 = arith.constant 17 : index
    %92 = memref.load %arg4[%c17] : memref<27xf32, #tpu.memory_space<smem>>
    %93 = vector.broadcast %92 : f32 to vector<8x64xf32>
    %94 = arith.mulf %93, %5 : vector<8x64xf32>
    %95 = arith.addf %91, %94 : vector<8x64xf32>
    %c6_17 = arith.constant 6 : index
    %96 = memref.load %arg5[%c6_17] : memref<9xf32, #tpu.memory_space<smem>>
    %c18 = arith.constant 18 : index
    %97 = memref.load %arg4[%c18] : memref<27xf32, #tpu.memory_space<smem>>
    %98 = vector.broadcast %97 : f32 to vector<8x64xf32>
    %99 = arith.mulf %98, %1 : vector<8x64xf32>
    %100 = vector.broadcast %96 : f32 to vector<8x64xf32>
    %101 = arith.addf %100, %99 : vector<8x64xf32>
    %c19 = arith.constant 19 : index
    %102 = memref.load %arg4[%c19] : memref<27xf32, #tpu.memory_space<smem>>
    %103 = vector.broadcast %102 : f32 to vector<8x64xf32>
    %104 = arith.mulf %103, %3 : vector<8x64xf32>
    %105 = arith.addf %101, %104 : vector<8x64xf32>
    %c20 = arith.constant 20 : index
    %106 = memref.load %arg4[%c20] : memref<27xf32, #tpu.memory_space<smem>>
    %107 = vector.broadcast %106 : f32 to vector<8x64xf32>
    %108 = arith.mulf %107, %5 : vector<8x64xf32>
    %109 = arith.addf %105, %108 : vector<8x64xf32>
    %c7_18 = arith.constant 7 : index
    %110 = memref.load %arg5[%c7_18] : memref<9xf32, #tpu.memory_space<smem>>
    %c21 = arith.constant 21 : index
    %111 = memref.load %arg4[%c21] : memref<27xf32, #tpu.memory_space<smem>>
    %112 = vector.broadcast %111 : f32 to vector<8x64xf32>
    %113 = arith.mulf %112, %1 : vector<8x64xf32>
    %114 = vector.broadcast %110 : f32 to vector<8x64xf32>
    %115 = arith.addf %114, %113 : vector<8x64xf32>
    %c22 = arith.constant 22 : index
    %116 = memref.load %arg4[%c22] : memref<27xf32, #tpu.memory_space<smem>>
    %117 = vector.broadcast %116 : f32 to vector<8x64xf32>
    %118 = arith.mulf %117, %3 : vector<8x64xf32>
    %119 = arith.addf %115, %118 : vector<8x64xf32>
    %c23 = arith.constant 23 : index
    %120 = memref.load %arg4[%c23] : memref<27xf32, #tpu.memory_space<smem>>
    %121 = vector.broadcast %120 : f32 to vector<8x64xf32>
    %122 = arith.mulf %121, %5 : vector<8x64xf32>
    %123 = arith.addf %119, %122 : vector<8x64xf32>
    %c8_19 = arith.constant 8 : index
    %124 = memref.load %arg5[%c8_19] : memref<9xf32, #tpu.memory_space<smem>>
    %c24 = arith.constant 24 : index
    %125 = memref.load %arg4[%c24] : memref<27xf32, #tpu.memory_space<smem>>
    %126 = vector.broadcast %125 : f32 to vector<8x64xf32>
    %127 = arith.mulf %126, %1 : vector<8x64xf32>
    %128 = vector.broadcast %124 : f32 to vector<8x64xf32>
    %129 = arith.addf %128, %127 : vector<8x64xf32>
    %c25 = arith.constant 25 : index
    %130 = memref.load %arg4[%c25] : memref<27xf32, #tpu.memory_space<smem>>
    %131 = vector.broadcast %130 : f32 to vector<8x64xf32>
    %132 = arith.mulf %131, %3 : vector<8x64xf32>
    %133 = arith.addf %129, %132 : vector<8x64xf32>
    %c26 = arith.constant 26 : index
    %134 = memref.load %arg4[%c26] : memref<27xf32, #tpu.memory_space<smem>>
    %135 = vector.broadcast %134 : f32 to vector<8x64xf32>
    %136 = arith.mulf %135, %5 : vector<8x64xf32>
    %137 = arith.addf %133, %136 : vector<8x64xf32>
    %cst_20 = arith.constant dense<0xFF800000> : vector<8xf32>
    %138 = vector.multi_reduction <maximumf>, %67, %cst_20 [1] : vector<8x64xf32> to vector<8xf32>
    %139 = vector.shape_cast %138 : vector<8xf32> to vector<8x1xf32>
    %cst_21 = arith.constant dense<0x7F800000> : vector<8xf32>
    %140 = vector.multi_reduction <minimumf>, %67, %cst_21 [1] : vector<8x64xf32> to vector<8xf32>
    %141 = vector.shape_cast %140 : vector<8xf32> to vector<8x1xf32>
    %cst_22 = arith.constant 0.000000e+00 : f32
    %142 = vector.broadcast %cst_22 : f32 to vector<8x64xf32>
    %143 = arith.cmpf oge, %21, %142 : vector<8x64xf32>
    %144 = vector.shape_cast %139 : vector<8x1xf32> to vector<8x1xf32>
    %145 = vector.broadcast %144 : vector<8x1xf32> to vector<8x64xf32>
    %146 = vector.shape_cast %141 : vector<8x1xf32> to vector<8x1xf32>
    %147 = vector.broadcast %146 : vector<8x1xf32> to vector<8x64xf32>
    %148 = arith.select %143, %145, %147 : vector<8x64xi1>, vector<8x64xf32>
    %149 = arith.mulf %21, %148 : vector<8x64xf32>
    %cst_23 = arith.constant dense<0xFF800000> : vector<8xf32>
    %150 = vector.multi_reduction <maximumf>, %81, %cst_23 [1] : vector<8x64xf32> to vector<8xf32>
    %151 = vector.shape_cast %150 : vector<8xf32> to vector<8x1xf32>
    %cst_24 = arith.constant dense<0x7F800000> : vector<8xf32>
    %152 = vector.multi_reduction <minimumf>, %81, %cst_24 [1] : vector<8x64xf32> to vector<8xf32>
    %153 = vector.shape_cast %152 : vector<8xf32> to vector<8x1xf32>
    %cst_25 = arith.constant 0.000000e+00 : f32
    %154 = vector.broadcast %cst_25 : f32 to vector<8x64xf32>
    %155 = arith.cmpf oge, %37, %154 : vector<8x64xf32>
    %156 = vector.shape_cast %151 : vector<8x1xf32> to vector<8x1xf32>
    %157 = vector.broadcast %156 : vector<8x1xf32> to vector<8x64xf32>
    %158 = vector.shape_cast %153 : vector<8x1xf32> to vector<8x1xf32>
    %159 = vector.broadcast %158 : vector<8x1xf32> to vector<8x64xf32>
    %160 = arith.select %155, %157, %159 : vector<8x64xi1>, vector<8x64xf32>
    %161 = arith.mulf %37, %160 : vector<8x64xf32>
    %cst_26 = arith.constant dense<0xFF800000> : vector<8xf32>
    %162 = vector.multi_reduction <maximumf>, %95, %cst_26 [1] : vector<8x64xf32> to vector<8xf32>
    %163 = vector.shape_cast %162 : vector<8xf32> to vector<8x1xf32>
    %cst_27 = arith.constant dense<0x7F800000> : vector<8xf32>
    %164 = vector.multi_reduction <minimumf>, %95, %cst_27 [1] : vector<8x64xf32> to vector<8xf32>
    %165 = vector.shape_cast %164 : vector<8xf32> to vector<8x1xf32>
    %cst_28 = arith.constant 0.000000e+00 : f32
    %166 = vector.broadcast %cst_28 : f32 to vector<8x64xf32>
    %167 = arith.cmpf oge, %53, %166 : vector<8x64xf32>
    %168 = vector.shape_cast %163 : vector<8x1xf32> to vector<8x1xf32>
    %169 = vector.broadcast %168 : vector<8x1xf32> to vector<8x64xf32>
    %170 = vector.shape_cast %165 : vector<8x1xf32> to vector<8x1xf32>
    %171 = vector.broadcast %170 : vector<8x1xf32> to vector<8x64xf32>
    %172 = arith.select %167, %169, %171 : vector<8x64xi1>, vector<8x64xf32>
    %173 = arith.mulf %53, %172 : vector<8x64xf32>
    %174 = tpu.iota {dimensions = array<i32: 0>} : vector<2x64xi32>
    %c0_i32 = arith.constant 0 : i32
    %175 = vector.broadcast %c0_i32 : i32 to vector<2x64xi32>
    %176 = arith.cmpi eq, %174, %175 : vector<2x64xi32>
    %c0_29 = arith.constant 0 : index
    %c0_30 = arith.constant 0 : index
    %c0_31 = arith.constant 0 : index
    %177 = vector.load %arg2[%c0_29, %c0_30, %c0_31] : memref<8x64x3xf32, #tpu.memory_space<vmem>>, vector<1x64x3xf32>
    %178 = vector.shape_cast %177 : vector<1x64x3xf32> to vector<64x3xf32>
    %179 = vector.extract_strided_slice %178 {offsets = [0, 0], sizes = [64, 1], strides = [1, 1]} : vector<64x3xf32> to vector<64x1xf32>
    %180 = vector.extract_strided_slice %178 {offsets = [0, 1], sizes = [64, 1], strides = [1, 1]} : vector<64x3xf32> to vector<64x1xf32>
    %181 = vector.extract_strided_slice %178 {offsets = [0, 2], sizes = [64, 1], strides = [1, 1]} : vector<64x3xf32> to vector<64x1xf32>
    %182 = vector.extract_strided_slice %21 {offsets = [0, 0], sizes = [1, 64], strides = [1, 1]} : vector<8x64xf32> to vector<1x64xf32>
    %183 = vector.extract_strided_slice %109 {offsets = [0, 0], sizes = [1, 64], strides = [1, 1]} : vector<8x64xf32> to vector<1x64xf32>
    %184 = vector.extract_strided_slice %149 {offsets = [0, 0], sizes = [1, 64], strides = [1, 1]} : vector<8x64xf32> to vector<1x64xf32>
    %c3_32 = arith.constant 3 : index
    %185 = memref.load %arg5[%c3_32] : memref<9xf32, #tpu.memory_space<smem>>
    %c9_33 = arith.constant 9 : index
    %186 = memref.load %arg4[%c9_33] : memref<27xf32, #tpu.memory_space<smem>>
    %187 = vector.broadcast %186 : f32 to vector<64x1xf32>
    %188 = arith.mulf %187, %179 : vector<64x1xf32>
    %189 = vector.broadcast %185 : f32 to vector<64x1xf32>
    %190 = arith.addf %189, %188 : vector<64x1xf32>
    %c10_34 = arith.constant 10 : index
    %191 = memref.load %arg4[%c10_34] : memref<27xf32, #tpu.memory_space<smem>>
    %192 = vector.broadcast %191 : f32 to vector<64x1xf32>
    %193 = arith.mulf %192, %180 : vector<64x1xf32>
    %194 = arith.addf %190, %193 : vector<64x1xf32>
    %c11_35 = arith.constant 11 : index
    %195 = memref.load %arg4[%c11_35] : memref<27xf32, #tpu.memory_space<smem>>
    %196 = vector.broadcast %195 : f32 to vector<64x1xf32>
    %197 = arith.mulf %196, %181 : vector<64x1xf32>
    %198 = arith.addf %194, %197 : vector<64x1xf32>
    %199 = vector.broadcast %198 : vector<64x1xf32> to vector<64x64xf32>
    %200 = vector.broadcast %182 : vector<1x64xf32> to vector<64x64xf32>
    %201 = arith.mulf %199, %200 : vector<64x64xf32>
    %202 = vector.broadcast %184 : vector<1x64xf32> to vector<64x64xf32>
    %203 = arith.subf %201, %202 : vector<64x64xf32>
    %204 = math.exp %203 : vector<64x64xf32>
    %cst_36 = arith.constant 1.000000e+00 : f32
    %205 = vector.shape_cast %183 : vector<1x64xf32> to vector<1x64xf32>
    %206 = vector.broadcast %205 : vector<1x64xf32> to vector<2x64xf32>
    %207 = vector.broadcast %cst_36 : f32 to vector<2x64xf32>
    %208 = arith.select %176, %206, %207 : vector<2x64xi1>, vector<2x64xf32>
    %cst_37 = arith.constant dense<0.000000e+00> : vector<2x64xf32>
    %209 = tpu.matmul %208, %204, %cst_37 {dimension_numbers = #tpu.dot_dimension_numbers<[1], [0], [0], [1], [0, 0, 1, 1], [], []>} : vector<2x64xf32>, vector<64x64xf32>, vector<2x64xf32> -> vector<2x64xf32>
    %210 = vector.extract_strided_slice %209 {offsets = [0, 0], sizes = [1, 64], strides = [1, 1]} : vector<2x64xf32> to vector<1x64xf32>
    %211 = vector.extract_strided_slice %209 {offsets = [1, 0], sizes = [1, 64], strides = [1, 1]} : vector<2x64xf32> to vector<1x64xf32>
    %212 = tpu.reciprocal %211 {approx = true} : vector<1x64xf32> -> vector<1x64xf32>
    %213 = arith.mulf %210, %212 : vector<1x64xf32>
    %c0_38 = arith.constant 0 : index
    %c0_39 = arith.constant 0 : index
    %214 = vector.load %arg13[%c0_38, %c0_39] : memref<24x64xf32, #tpu.memory_space<vmem>>, vector<1x64xf32>
    tpu.vector_store %arg13[%c0_38, %c0_39], %213 {strides = array<i32>} : memref<24x64xf32, #tpu.memory_space<vmem>>, vector<1x64xf32>,
    %215 = vector.extract_strided_slice %37 {offsets = [0, 0], sizes = [1, 64], strides = [1, 1]} : vector<8x64xf32> to vector<1x64xf32>
    %216 = vector.extract_strided_slice %123 {offsets = [0, 0], sizes = [1, 64], strides = [1, 1]} : vector<8x64xf32> to vector<1x64xf32>
    %217 = vector.extract_strided_slice %161 {offsets = [0, 0], sizes = [1, 64], strides = [1, 1]} : vector<8x64xf32> to vector<1x64xf32>
    %c4_40 = arith.constant 4 : index
    %218 = memref.load %arg5[%c4_40] : memref<9xf32, #tpu.memory_space<smem>>
    %c12_41 = arith.constant 12 : index
    %219 = memref.load %arg4[%c12_41] : memref<27xf32, #tpu.memory_space<smem>>
    %220 = vector.broadcast %219 : f32 to vector<64x1xf32>
    %221 = arith.mulf %220, %179 : vector<64x1xf32>
    %222 = vector.broadcast %218 : f32 to vector<64x1xf32>
    %223 = arith.addf %222, %221 : vector<64x1xf32>
    %c13_42 = arith.constant 13 : index
    %224 = memref.load %arg4[%c13_42] : memref<27xf32, #tpu.memory_space<smem>>
    %225 = vector.broadcast %224 : f32 to vector<64x1xf32>
    %226 = arith.mulf %225, %180 : vector<64x1xf32>
    %227 = arith.addf %223, %226 : vector<64x1xf32>
    %c14_43 = arith.constant 14 : index
    %228 = memref.load %arg4[%c14_43] : memref<27xf32, #tpu.memory_space<smem>>
    %229 = vector.broadcast %228 : f32 to vector<64x1xf32>
    %230 = arith.mulf %229, %181 : vector<64x1xf32>
    %231 = arith.addf %227, %230 : vector<64x1xf32>
    %232 = vector.broadcast %231 : vector<64x1xf32> to vector<64x64xf32>
    %233 = vector.broadcast %215 : vector<1x64xf32> to vector<64x64xf32>
    %234 = arith.mulf %232, %233 : vector<64x64xf32>
    %235 = vector.broadcast %217 : vector<1x64xf32> to vector<64x64xf32>
    %236 = arith.subf %234, %235 : vector<64x64xf32>
    %237 = math.exp %236 : vector<64x64xf32>
    %cst_44 = arith.constant 1.000000e+00 : f32
    %238 = vector.shape_cast %216 : vector<1x64xf32> to vector<1x64xf32>
    %239 = vector.broadcast %238 : vector<1x64xf32> to vector<2x64xf32>
    %240 = vector.broadcast %cst_44 : f32 to vector<2x64xf32>
    %241 = arith.select %176, %239, %240 : vector<2x64xi1>, vector<2x64xf32>
    %cst_45 = arith.constant dense<0.000000e+00> : vector<2x64xf32>
    %242 = tpu.matmul %241, %237, %cst_45 {dimension_numbers = #tpu.dot_dimension_numbers<[1], [0], [0], [1], [0, 0, 1, 1], [], []>} : vector<2x64xf32>, vector<64x64xf32>, vector<2x64xf32> -> vector<2x64xf32>
    %243 = vector.extract_strided_slice %242 {offsets = [0, 0], sizes = [1, 64], strides = [1, 1]} : vector<2x64xf32> to vector<1x64xf32>
    %244 = vector.extract_strided_slice %242 {offsets = [1, 0], sizes = [1, 64], strides = [1, 1]} : vector<2x64xf32> to vector<1x64xf32>
    %245 = tpu.reciprocal %244 {approx = true} : vector<1x64xf32> -> vector<1x64xf32>
    %246 = arith.mulf %243, %245 : vector<1x64xf32>
    %c8_46 = arith.constant 8 : index
    %c0_47 = arith.constant 0 : index
    %247 = vector.load %arg13[%c8_46, %c0_47] : memref<24x64xf32, #tpu.memory_space<vmem>>, vector<1x64xf32>
    tpu.vector_store %arg13[%c8_46, %c0_47], %246 {strides = array<i32>} : memref<24x64xf32, #tpu.memory_space<vmem>>, vector<1x64xf32>,
    %248 = vector.extract_strided_slice %53 {offsets = [0, 0], sizes = [1, 64], strides = [1, 1]} : vector<8x64xf32> to vector<1x64xf32>
    %249 = vector.extract_strided_slice %137 {offsets = [0, 0], sizes = [1, 64], strides = [1, 1]} : vector<8x64xf32> to vector<1x64xf32>
    %250 = vector.extract_strided_slice %173 {offsets = [0, 0], sizes = [1, 64], strides = [1, 1]} : vector<8x64xf32> to vector<1x64xf32>
    %c5_48 = arith.constant 5 : index
    %251 = memref.load %arg5[%c5_48] : memref<9xf32, #tpu.memory_space<smem>>
    %c15_49 = arith.constant 15 : index
    %252 = memref.load %arg4[%c15_49] : memref<27xf32, #tpu.memory_space<smem>>
    %253 = vector.broadcast %252 : f32 to vector<64x1xf32>
    %254 = arith.mulf %253, %179 : vector<64x1xf32>
    %255 = vector.broadcast %251 : f32 to vector<64x1xf32>
    %256 = arith.addf %255, %254 : vector<64x1xf32>
    %c16_50 = arith.constant 16 : index
    %257 = memref.load %arg4[%c16_50] : memref<27xf32, #tpu.memory_space<smem>>
    %258 = vector.broadcast %257 : f32 to vector<64x1xf32>
    %259 = arith.mulf %258, %180 : vector<64x1xf32>
    %260 = arith.addf %256, %259 : vector<64x1xf32>
    %c17_51 = arith.constant 17 : index
    %261 = memref.load %arg4[%c17_51] : memref<27xf32, #tpu.memory_space<smem>>
    %262 = vector.broadcast %261 : f32 to vector<64x1xf32>
    %263 = arith.mulf %262, %181 : vector<64x1xf32>
    %264 = arith.addf %260, %263 : vector<64x1xf32>
    %265 = vector.broadcast %264 : vector<64x1xf32> to vector<64x64xf32>
    %266 = vector.broadcast %248 : vector<1x64xf32> to vector<64x64xf32>
    %267 = arith.mulf %265, %266 : vector<64x64xf32>
    %268 = vector.broadcast %250 : vector<1x64xf32> to vector<64x64xf32>
    %269 = arith.subf %267, %268 : vector<64x64xf32>
    %270 = math.exp %269 : vector<64x64xf32>
    %cst_52 = arith.constant 1.000000e+00 : f32
    %271 = vector.shape_cast %249 : vector<1x64xf32> to vector<1x64xf32>
    %272 = vector.broadcast %271 : vector<1x64xf32> to vector<2x64xf32>
    %273 = vector.broadcast %cst_52 : f32 to vector<2x64xf32>
    %274 = arith.select %176, %272, %273 : vector<2x64xi1>, vector<2x64xf32>
    %cst_53 = arith.constant dense<0.000000e+00> : vector<2x64xf32>
    %275 = tpu.matmul %274, %270, %cst_53 {dimension_numbers = #tpu.dot_dimension_numbers<[1], [0], [0], [1], [0, 0, 1, 1], [], []>} : vector<2x64xf32>, vector<64x64xf32>, vector<2x64xf32> -> vector<2x64xf32>
    %276 = vector.extract_strided_slice %275 {offsets = [0, 0], sizes = [1, 64], strides = [1, 1]} : vector<2x64xf32> to vector<1x64xf32>
    %277 = vector.extract_strided_slice %275 {offsets = [1, 0], sizes = [1, 64], strides = [1, 1]} : vector<2x64xf32> to vector<1x64xf32>
    %278 = tpu.reciprocal %277 {approx = true} : vector<1x64xf32> -> vector<1x64xf32>
    %279 = arith.mulf %276, %278 : vector<1x64xf32>
    %c16_54 = arith.constant 16 : index
    %c0_55 = arith.constant 0 : index
    %280 = vector.load %arg13[%c16_54, %c0_55] : memref<24x64xf32, #tpu.memory_space<vmem>>, vector<1x64xf32>
    tpu.vector_store %arg13[%c16_54, %c0_55], %279 {strides = array<i32>} : memref<24x64xf32, #tpu.memory_space<vmem>>, vector<1x64xf32>,
    %c1_56 = arith.constant 1 : index
    %c0_57 = arith.constant 0 : index
    %c0_58 = arith.constant 0 : index
    %281 = vector.load %arg2[%c1_56, %c0_57, %c0_58] : memref<8x64x3xf32, #tpu.memory_space<vmem>>, vector<1x64x3xf32>
    %282 = vector.shape_cast %281 : vector<1x64x3xf32> to vector<64x3xf32>
    %283 = vector.extract_strided_slice %282 {offsets = [0, 0], sizes = [64, 1], strides = [1, 1]} : vector<64x3xf32> to vector<64x1xf32>
    %284 = vector.extract_strided_slice %282 {offsets = [0, 1], sizes = [64, 1], strides = [1, 1]} : vector<64x3xf32> to vector<64x1xf32>
    %285 = vector.extract_strided_slice %282 {offsets = [0, 2], sizes = [64, 1], strides = [1, 1]} : vector<64x3xf32> to vector<64x1xf32>
    %286 = vector.extract_strided_slice %21 {offsets = [1, 0], sizes = [1, 64], strides = [1, 1]} : vector<8x64xf32> to vector<1x64xf32>
    %287 = vector.extract_strided_slice %109 {offsets = [1, 0], sizes = [1, 64], strides = [1, 1]} : vector<8x64xf32> to vector<1x64xf32>
    %288 = vector.extract_strided_slice %149 {offsets = [1, 0], sizes = [1, 64], strides = [1, 1]} : vector<8x64xf32> to vector<1x64xf32>
    %c3_59 = arith.constant 3 : index
    %289 = memref.load %arg5[%c3_59] : memref<9xf32, #tpu.memory_space<smem>>
    %c9_60 = arith.constant 9 : index
    %290 = memref.load %arg4[%c9_60] : memref<27xf32, #tpu.memory_space<smem>>
    %291 = vector.broadcast %290 : f32 to vector<64x1xf32>
    %292 = arith.mulf %291, %283 : vector<64x1xf32>
    %293 = vector.broadcast %289 : f32 to vector<64x1xf32>
    %294 = arith.addf %293, %292 : vector<64x1xf32>
    %c10_61 = arith.constant 10 : index
    %295 = memref.load %arg4[%c10_61] : memref<27xf32, #tpu.memory_space<smem>>
    %296 = vector.broadcast %295 : f32 to vector<64x1xf32>
    %297 = arith.mulf %296, %284 : vector<64x1xf32>
    %298 = arith.addf %294, %297 : vector<64x1xf32>
    %c11_62 = arith.constant 11 : index
    %299 = memref.load %arg4[%c11_62] : memref<27xf32, #tpu.memory_space<smem>>
    %300 = vector.broadcast %299 : f32 to vector<64x1xf32>
    %301 = arith.mulf %300, %285 : vector<64x1xf32>
    %302 = arith.addf %298, %301 : vector<64x1xf32>
    %303 = vector.broadcast %302 : vector<64x1xf32> to vector<64x64xf32>
    %304 = vector.broadcast %286 : vector<1x64xf32> to vector<64x64xf32>
    %305 = arith.mulf %303, %304 : vector<64x64xf32>
    %306 = vector.broadcast %288 : vector<1x64xf32> to vector<64x64xf32>
    %307 = arith.subf %305, %306 : vector<64x64xf32>
    %308 = math.exp %307 : vector<64x64xf32>
    %cst_63 = arith.constant 1.000000e+00 : f32
    %309 = vector.shape_cast %287 : vector<1x64xf32> to vector<1x64xf32>
    %310 = vector.broadcast %309 : vector<1x64xf32> to vector<2x64xf32>
    %311 = vector.broadcast %cst_63 : f32 to vector<2x64xf32>
    %312 = arith.select %176, %310, %311 : vector<2x64xi1>, vector<2x64xf32>
    %cst_64 = arith.constant dense<0.000000e+00> : vector<2x64xf32>
    %313 = tpu.matmul %312, %308, %cst_64 {dimension_numbers = #tpu.dot_dimension_numbers<[1], [0], [0], [1], [0, 0, 1, 1], [], []>} : vector<2x64xf32>, vector<64x64xf32>, vector<2x64xf32> -> vector<2x64xf32>
    %314 = vector.extract_strided_slice %313 {offsets = [0, 0], sizes = [1, 64], strides = [1, 1]} : vector<2x64xf32> to vector<1x64xf32>
    %315 = vector.extract_strided_slice %313 {offsets = [1, 0], sizes = [1, 64], strides = [1, 1]} : vector<2x64xf32> to vector<1x64xf32>
    %316 = tpu.reciprocal %315 {approx = true} : vector<1x64xf32> -> vector<1x64xf32>
    %317 = arith.mulf %314, %316 : vector<1x64xf32>
    %c1_65 = arith.constant 1 : index
    %c0_66 = arith.constant 0 : index
    %318 = vector.load %arg13[%c1_65, %c0_66] : memref<24x64xf32, #tpu.memory_space<vmem>>, vector<1x64xf32>
    tpu.vector_store %arg13[%c1_65, %c0_66], %317 {strides = array<i32>} : memref<24x64xf32, #tpu.memory_space<vmem>>, vector<1x64xf32>,
    %319 = vector.extract_strided_slice %37 {offsets = [1, 0], sizes = [1, 64], strides = [1, 1]} : vector<8x64xf32> to vector<1x64xf32>
    %320 = vector.extract_strided_slice %123 {offsets = [1, 0], sizes = [1, 64], strides = [1, 1]} : vector<8x64xf32> to vector<1x64xf32>
    %321 = vector.extract_strided_slice %161 {offsets = [1, 0], sizes = [1, 64], strides = [1, 1]} : vector<8x64xf32> to vector<1x64xf32>
    %c4_67 = arith.constant 4 : index
    %322 = memref.load %arg5[%c4_67] : memref<9xf32, #tpu.memory_space<smem>>
    %c12_68 = arith.constant 12 : index
    %323 = memref.load %arg4[%c12_68] : memref<27xf32, #tpu.memory_space<smem>>
    %324 = vector.broadcast %323 : f32 to vector<64x1xf32>
    %325 = arith.mulf %324, %283 : vector<64x1xf32>
    %326 = vector.broadcast %322 : f32 to vector<64x1xf32>
    %327 = arith.addf %326, %325 : vector<64x1xf32>
    %c13_69 = arith.constant 13 : index
    %328 = memref.load %arg4[%c13_69] : memref<27xf32, #tpu.memory_space<smem>>
    %329 = vector.broadcast %328 : f32 to vector<64x1xf32>
    %330 = arith.mulf %329, %284 : vector<64x1xf32>
    %331 = arith.addf %327, %330 : vector<64x1xf32>
    %c14_70 = arith.constant 14 : index
    %332 = memref.load %arg4[%c14_70] : memref<27xf32, #tpu.memory_space<smem>>
    %333 = vector.broadcast %332 : f32 to vector<64x1xf32>
    %334 = arith.mulf %333, %285 : vector<64x1xf32>
    %335 = arith.addf %331, %334 : vector<64x1xf32>
    %336 = vector.broadcast %335 : vector<64x1xf32> to vector<64x64xf32>
    %337 = vector.broadcast %319 : vector<1x64xf32> to vector<64x64xf32>
    %338 = arith.mulf %336, %337 : vector<64x64xf32>
    %339 = vector.broadcast %321 : vector<1x64xf32> to vector<64x64xf32>
    %340 = arith.subf %338, %339 : vector<64x64xf32>
    %341 = math.exp %340 : vector<64x64xf32>
    %cst_71 = arith.constant 1.000000e+00 : f32
    %342 = vector.shape_cast %320 : vector<1x64xf32> to vector<1x64xf32>
    %343 = vector.broadcast %342 : vector<1x64xf32> to vector<2x64xf32>
    %344 = vector.broadcast %cst_71 : f32 to vector<2x64xf32>
    %345 = arith.select %176, %343, %344 : vector<2x64xi1>, vector<2x64xf32>
    %cst_72 = arith.constant dense<0.000000e+00> : vector<2x64xf32>
    %346 = tpu.matmul %345, %341, %cst_72 {dimension_numbers = #tpu.dot_dimension_numbers<[1], [0], [0], [1], [0, 0, 1, 1], [], []>} : vector<2x64xf32>, vector<64x64xf32>, vector<2x64xf32> -> vector<2x64xf32>
    %347 = vector.extract_strided_slice %346 {offsets = [0, 0], sizes = [1, 64], strides = [1, 1]} : vector<2x64xf32> to vector<1x64xf32>
    %348 = vector.extract_strided_slice %346 {offsets = [1, 0], sizes = [1, 64], strides = [1, 1]} : vector<2x64xf32> to vector<1x64xf32>
    %349 = tpu.reciprocal %348 {approx = true} : vector<1x64xf32> -> vector<1x64xf32>
    %350 = arith.mulf %347, %349 : vector<1x64xf32>
    %c9_73 = arith.constant 9 : index
    %c0_74 = arith.constant 0 : index
    %351 = vector.load %arg13[%c9_73, %c0_74] : memref<24x64xf32, #tpu.memory_space<vmem>>, vector<1x64xf32>
    tpu.vector_store %arg13[%c9_73, %c0_74], %350 {strides = array<i32>} : memref<24x64xf32, #tpu.memory_space<vmem>>, vector<1x64xf32>,
    %352 = vector.extract_strided_slice %53 {offsets = [1, 0], sizes = [1, 64], strides = [1, 1]} : vector<8x64xf32> to vector<1x64xf32>
    %353 = vector.extract_strided_slice %137 {offsets = [1, 0], sizes = [1, 64], strides = [1, 1]} : vector<8x64xf32> to vector<1x64xf32>
    %354 = vector.extract_strided_slice %173 {offsets = [1, 0], sizes = [1, 64], strides = [1, 1]} : vector<8x64xf32> to vector<1x64xf32>
    %c5_75 = arith.constant 5 : index
    %355 = memref.load %arg5[%c5_75] : memref<9xf32, #tpu.memory_space<smem>>
    %c15_76 = arith.constant 15 : index
    %356 = memref.load %arg4[%c15_76] : memref<27xf32, #tpu.memory_space<smem>>
    %357 = vector.broadcast %356 : f32 to vector<64x1xf32>
    %358 = arith.mulf %357, %283 : vector<64x1xf32>
    %359 = vector.broadcast %355 : f32 to vector<64x1xf32>
    %360 = arith.addf %359, %358 : vector<64x1xf32>
    %c16_77 = arith.constant 16 : index
    %361 = memref.load %arg4[%c16_77] : memref<27xf32, #tpu.memory_space<smem>>
    %362 = vector.broadcast %361 : f32 to vector<64x1xf32>
    %363 = arith.mulf %362, %284 : vector<64x1xf32>
    %364 = arith.addf %360, %363 : vector<64x1xf32>
    %c17_78 = arith.constant 17 : index
    %365 = memref.load %arg4[%c17_78] : memref<27xf32, #tpu.memory_space<smem>>
    %366 = vector.broadcast %365 : f32 to vector<64x1xf32>
    %367 = arith.mulf %366, %285 : vector<64x1xf32>
    %368 = arith.addf %364, %367 : vector<64x1xf32>
    %369 = vector.broadcast %368 : vector<64x1xf32> to vector<64x64xf32>
    %370 = vector.broadcast %352 : vector<1x64xf32> to vector<64x64xf32>
    %371 = arith.mulf %369, %370 : vector<64x64xf32>
    %372 = vector.broadcast %354 : vector<1x64xf32> to vector<64x64xf32>
    %373 = arith.subf %371, %372 : vector<64x64xf32>
    %374 = math.exp %373 : vector<64x64xf32>
    %cst_79 = arith.constant 1.000000e+00 : f32
    %375 = vector.shape_cast %353 : vector<1x64xf32> to vector<1x64xf32>
    %376 = vector.broadcast %375 : vector<1x64xf32> to vector<2x64xf32>
    %377 = vector.broadcast %cst_79 : f32 to vector<2x64xf32>
    %378 = arith.select %176, %376, %377 : vector<2x64xi1>, vector<2x64xf32>
    %cst_80 = arith.constant dense<0.000000e+00> : vector<2x64xf32>
    %379 = tpu.matmul %378, %374, %cst_80 {dimension_numbers = #tpu.dot_dimension_numbers<[1], [0], [0], [1], [0, 0, 1, 1], [], []>} : vector<2x64xf32>, vector<64x64xf32>, vector<2x64xf32> -> vector<2x64xf32>
    %380 = vector.extract_strided_slice %379 {offsets = [0, 0], sizes = [1, 64], strides = [1, 1]} : vector<2x64xf32> to vector<1x64xf32>
    %381 = vector.extract_strided_slice %379 {offsets = [1, 0], sizes = [1, 64], strides = [1, 1]} : vector<2x64xf32> to vector<1x64xf32>
    %382 = tpu.reciprocal %381 {approx = true} : vector<1x64xf32> -> vector<1x64xf32>
    %383 = arith.mulf %380, %382 : vector<1x64xf32>
    %c17_81 = arith.constant 17 : index
    %c0_82 = arith.constant 0 : index
    %384 = vector.load %arg13[%c17_81, %c0_82] : memref<24x64xf32, #tpu.memory_space<vmem>>, vector<1x64xf32>
    tpu.vector_store %arg13[%c17_81, %c0_82], %383 {strides = array<i32>} : memref<24x64xf32, #tpu.memory_space<vmem>>, vector<1x64xf32>,
    %c2_83 = arith.constant 2 : index
    %c0_84 = arith.constant 0 : index
    %c0_85 = arith.constant 0 : index
    %385 = vector.load %arg2[%c2_83, %c0_84, %c0_85] : memref<8x64x3xf32, #tpu.memory_space<vmem>>, vector<1x64x3xf32>
    %386 = vector.shape_cast %385 : vector<1x64x3xf32> to vector<64x3xf32>
    %387 = vector.extract_strided_slice %386 {offsets = [0, 0], sizes = [64, 1], strides = [1, 1]} : vector<64x3xf32> to vector<64x1xf32>
    %388 = vector.extract_strided_slice %386 {offsets = [0, 1], sizes = [64, 1], strides = [1, 1]} : vector<64x3xf32> to vector<64x1xf32>
    %389 = vector.extract_strided_slice %386 {offsets = [0, 2], sizes = [64, 1], strides = [1, 1]} : vector<64x3xf32> to vector<64x1xf32>
    %390 = vector.extract_strided_slice %21 {offsets = [2, 0], sizes = [1, 64], strides = [1, 1]} : vector<8x64xf32> to vector<1x64xf32>
    %391 = vector.extract_strided_slice %109 {offsets = [2, 0], sizes = [1, 64], strides = [1, 1]} : vector<8x64xf32> to vector<1x64xf32>
    %392 = vector.extract_strided_slice %149 {offsets = [2, 0], sizes = [1, 64], strides = [1, 1]} : vector<8x64xf32> to vector<1x64xf32>
    %c3_86 = arith.constant 3 : index
    %393 = memref.load %arg5[%c3_86] : memref<9xf32, #tpu.memory_space<smem>>
    %c9_87 = arith.constant 9 : index
    %394 = memref.load %arg4[%c9_87] : memref<27xf32, #tpu.memory_space<smem>>
    %395 = vector.broadcast %394 : f32 to vector<64x1xf32>
    %396 = arith.mulf %395, %387 : vector<64x1xf32>
    %397 = vector.broadcast %393 : f32 to vector<64x1xf32>
    %398 = arith.addf %397, %396 : vector<64x1xf32>
    %c10_88 = arith.constant 10 : index
    %399 = memref.load %arg4[%c10_88] : memref<27xf32, #tpu.memory_space<smem>>
    %400 = vector.broadcast %399 : f32 to vector<64x1xf32>
    %401 = arith.mulf %400, %388 : vector<64x1xf32>
    %402 = arith.addf %398, %401 : vector<64x1xf32>
    %c11_89 = arith.constant 11 : index
    %403 = memref.load %arg4[%c11_89] : memref<27xf32, #tpu.memory_space<smem>>
    %404 = vector.broadcast %403 : f32 to vector<64x1xf32>
    %405 = arith.mulf %404, %389 : vector<64x1xf32>
    %406 = arith.addf %402, %405 : vector<64x1xf32>
    %407 = vector.broadcast %406 : vector<64x1xf32> to vector<64x64xf32>
    %408 = vector.broadcast %390 : vector<1x64xf32> to vector<64x64xf32>
    %409 = arith.mulf %407, %408 : vector<64x64xf32>
    %410 = vector.broadcast %392 : vector<1x64xf32> to vector<64x64xf32>
    %411 = arith.subf %409, %410 : vector<64x64xf32>
    %412 = math.exp %411 : vector<64x64xf32>
    %cst_90 = arith.constant 1.000000e+00 : f32
    %413 = vector.shape_cast %391 : vector<1x64xf32> to vector<1x64xf32>
    %414 = vector.broadcast %413 : vector<1x64xf32> to vector<2x64xf32>
    %415 = vector.broadcast %cst_90 : f32 to vector<2x64xf32>
    %416 = arith.select %176, %414, %415 : vector<2x64xi1>, vector<2x64xf32>
    %cst_91 = arith.constant dense<0.000000e+00> : vector<2x64xf32>
    %417 = tpu.matmul %416, %412, %cst_91 {dimension_numbers = #tpu.dot_dimension_numbers<[1], [0], [0], [1], [0, 0, 1, 1], [], []>} : vector<2x64xf32>, vector<64x64xf32>, vector<2x64xf32> -> vector<2x64xf32>
    %418 = vector.extract_strided_slice %417 {offsets = [0, 0], sizes = [1, 64], strides = [1, 1]} : vector<2x64xf32> to vector<1x64xf32>
    %419 = vector.extract_strided_slice %417 {offsets = [1, 0], sizes = [1, 64], strides = [1, 1]} : vector<2x64xf32> to vector<1x64xf32>
    %420 = tpu.reciprocal %419 {approx = true} : vector<1x64xf32> -> vector<1x64xf32>
    %421 = arith.mulf %418, %420 : vector<1x64xf32>
    %c2_92 = arith.constant 2 : index
    %c0_93 = arith.constant 0 : index
    %422 = vector.load %arg13[%c2_92, %c0_93] : memref<24x64xf32, #tpu.memory_space<vmem>>, vector<1x64xf32>
    tpu.vector_store %arg13[%c2_92, %c0_93], %421 {strides = array<i32>} : memref<24x64xf32, #tpu.memory_space<vmem>>, vector<1x64xf32>,
    %423 = vector.extract_strided_slice %37 {offsets = [2, 0], sizes = [1, 64], strides = [1, 1]} : vector<8x64xf32> to vector<1x64xf32>
    %424 = vector.extract_strided_slice %123 {offsets = [2, 0], sizes = [1, 64], strides = [1, 1]} : vector<8x64xf32> to vector<1x64xf32>
    %425 = vector.extract_strided_slice %161 {offsets = [2, 0], sizes = [1, 64], strides = [1, 1]} : vector<8x64xf32> to vector<1x64xf32>
    %c4_94 = arith.constant 4 : index
    %426 = memref.load %arg5[%c4_94] : memref<9xf32, #tpu.memory_space<smem>>
    %c12_95 = arith.constant 12 : index
    %427 = memref.load %arg4[%c12_95] : memref<27xf32, #tpu.memory_space<smem>>
    %428 = vector.broadcast %427 : f32 to vector<64x1xf32>
    %429 = arith.mulf %428, %387 : vector<64x1xf32>
    %430 = vector.broadcast %426 : f32 to vector<64x1xf32>
    %431 = arith.addf %430, %429 : vector<64x1xf32>
    %c13_96 = arith.constant 13 : index
    %432 = memref.load %arg4[%c13_96] : memref<27xf32, #tpu.memory_space<smem>>
    %433 = vector.broadcast %432 : f32 to vector<64x1xf32>
    %434 = arith.mulf %433, %388 : vector<64x1xf32>
    %435 = arith.addf %431, %434 : vector<64x1xf32>
    %c14_97 = arith.constant 14 : index
    %436 = memref.load %arg4[%c14_97] : memref<27xf32, #tpu.memory_space<smem>>
    %437 = vector.broadcast %436 : f32 to vector<64x1xf32>
    %438 = arith.mulf %437, %389 : vector<64x1xf32>
    %439 = arith.addf %435, %438 : vector<64x1xf32>
    %440 = vector.broadcast %439 : vector<64x1xf32> to vector<64x64xf32>
    %441 = vector.broadcast %423 : vector<1x64xf32> to vector<64x64xf32>
    %442 = arith.mulf %440, %441 : vector<64x64xf32>
    %443 = vector.broadcast %425 : vector<1x64xf32> to vector<64x64xf32>
    %444 = arith.subf %442, %443 : vector<64x64xf32>
    %445 = math.exp %444 : vector<64x64xf32>
    %cst_98 = arith.constant 1.000000e+00 : f32
    %446 = vector.shape_cast %424 : vector<1x64xf32> to vector<1x64xf32>
    %447 = vector.broadcast %446 : vector<1x64xf32> to vector<2x64xf32>
    %448 = vector.broadcast %cst_98 : f32 to vector<2x64xf32>
    %449 = arith.select %176, %447, %448 : vector<2x64xi1>, vector<2x64xf32>
    %cst_99 = arith.constant dense<0.000000e+00> : vector<2x64xf32>
    %450 = tpu.matmul %449, %445, %cst_99 {dimension_numbers = #tpu.dot_dimension_numbers<[1], [0], [0], [1], [0, 0, 1, 1], [], []>} : vector<2x64xf32>, vector<64x64xf32>, vector<2x64xf32> -> vector<2x64xf32>
    %451 = vector.extract_strided_slice %450 {offsets = [0, 0], sizes = [1, 64], strides = [1, 1]} : vector<2x64xf32> to vector<1x64xf32>
    %452 = vector.extract_strided_slice %450 {offsets = [1, 0], sizes = [1, 64], strides = [1, 1]} : vector<2x64xf32> to vector<1x64xf32>
    %453 = tpu.reciprocal %452 {approx = true} : vector<1x64xf32> -> vector<1x64xf32>
    %454 = arith.mulf %451, %453 : vector<1x64xf32>
    %c10_100 = arith.constant 10 : index
    %c0_101 = arith.constant 0 : index
    %455 = vector.load %arg13[%c10_100, %c0_101] : memref<24x64xf32, #tpu.memory_space<vmem>>, vector<1x64xf32>
    tpu.vector_store %arg13[%c10_100, %c0_101], %454 {strides = array<i32>} : memref<24x64xf32, #tpu.memory_space<vmem>>, vector<1x64xf32>,
    %456 = vector.extract_strided_slice %53 {offsets = [2, 0], sizes = [1, 64], strides = [1, 1]} : vector<8x64xf32> to vector<1x64xf32>
    %457 = vector.extract_strided_slice %137 {offsets = [2, 0], sizes = [1, 64], strides = [1, 1]} : vector<8x64xf32> to vector<1x64xf32>
    %458 = vector.extract_strided_slice %173 {offsets = [2, 0], sizes = [1, 64], strides = [1, 1]} : vector<8x64xf32> to vector<1x64xf32>
    %c5_102 = arith.constant 5 : index
    %459 = memref.load %arg5[%c5_102] : memref<9xf32, #tpu.memory_space<smem>>
    %c15_103 = arith.constant 15 : index
    %460 = memref.load %arg4[%c15_103] : memref<27xf32, #tpu.memory_space<smem>>
    %461 = vector.broadcast %460 : f32 to vector<64x1xf32>
    %462 = arith.mulf %461, %387 : vector<64x1xf32>
    %463 = vector.broadcast %459 : f32 to vector<64x1xf32>
    %464 = arith.addf %463, %462 : vector<64x1xf32>
    %c16_104 = arith.constant 16 : index
    %465 = memref.load %arg4[%c16_104] : memref<27xf32, #tpu.memory_space<smem>>
    %466 = vector.broadcast %465 : f32 to vector<64x1xf32>
    %467 = arith.mulf %466, %388 : vector<64x1xf32>
    %468 = arith.addf %464, %467 : vector<64x1xf32>
    %c17_105 = arith.constant 17 : index
    %469 = memref.load %arg4[%c17_105] : memref<27xf32, #tpu.memory_space<smem>>
    %470 = vector.broadcast %469 : f32 to vector<64x1xf32>
    %471 = arith.mulf %470, %389 : vector<64x1xf32>
    %472 = arith.addf %468, %471 : vector<64x1xf32>
    %473 = vector.broadcast %472 : vector<64x1xf32> to vector<64x64xf32>
    %474 = vector.broadcast %456 : vector<1x64xf32> to vector<64x64xf32>
    %475 = arith.mulf %473, %474 : vector<64x64xf32>
    %476 = vector.broadcast %458 : vector<1x64xf32> to vector<64x64xf32>
    %477 = arith.subf %475, %476 : vector<64x64xf32>
    %478 = math.exp %477 : vector<64x64xf32>
    %cst_106 = arith.constant 1.000000e+00 : f32
    %479 = vector.shape_cast %457 : vector<1x64xf32> to vector<1x64xf32>
    %480 = vector.broadcast %479 : vector<1x64xf32> to vector<2x64xf32>
    %481 = vector.broadcast %cst_106 : f32 to vector<2x64xf32>
    %482 = arith.select %176, %480, %481 : vector<2x64xi1>, vector<2x64xf32>
    %cst_107 = arith.constant dense<0.000000e+00> : vector<2x64xf32>
    %483 = tpu.matmul %482, %478, %cst_107 {dimension_numbers = #tpu.dot_dimension_numbers<[1], [0], [0], [1], [0, 0, 1, 1], [], []>} : vector<2x64xf32>, vector<64x64xf32>, vector<2x64xf32> -> vector<2x64xf32>
    %484 = vector.extract_strided_slice %483 {offsets = [0, 0], sizes = [1, 64], strides = [1, 1]} : vector<2x64xf32> to vector<1x64xf32>
    %485 = vector.extract_strided_slice %483 {offsets = [1, 0], sizes = [1, 64], strides = [1, 1]} : vector<2x64xf32> to vector<1x64xf32>
    %486 = tpu.reciprocal %485 {approx = true} : vector<1x64xf32> -> vector<1x64xf32>
    %487 = arith.mulf %484, %486 : vector<1x64xf32>
    %c18_108 = arith.constant 18 : index
    %c0_109 = arith.constant 0 : index
    %488 = vector.load %arg13[%c18_108, %c0_109] : memref<24x64xf32, #tpu.memory_space<vmem>>, vector<1x64xf32>
    tpu.vector_store %arg13[%c18_108, %c0_109], %487 {strides = array<i32>} : memref<24x64xf32, #tpu.memory_space<vmem>>, vector<1x64xf32>,
    %c3_110 = arith.constant 3 : index
    %c0_111 = arith.constant 0 : index
    %c0_112 = arith.constant 0 : index
    %489 = vector.load %arg2[%c3_110, %c0_111, %c0_112] : memref<8x64x3xf32, #tpu.memory_space<vmem>>, vector<1x64x3xf32>
    %490 = vector.shape_cast %489 : vector<1x64x3xf32> to vector<64x3xf32>
    %491 = vector.extract_strided_slice %490 {offsets = [0, 0], sizes = [64, 1], strides = [1, 1]} : vector<64x3xf32> to vector<64x1xf32>
    %492 = vector.extract_strided_slice %490 {offsets = [0, 1], sizes = [64, 1], strides = [1, 1]} : vector<64x3xf32> to vector<64x1xf32>
    %493 = vector.extract_strided_slice %490 {offsets = [0, 2], sizes = [64, 1], strides = [1, 1]} : vector<64x3xf32> to vector<64x1xf32>
    %494 = vector.extract_strided_slice %21 {offsets = [3, 0], sizes = [1, 64], strides = [1, 1]} : vector<8x64xf32> to vector<1x64xf32>
    %495 = vector.extract_strided_slice %109 {offsets = [3, 0], sizes = [1, 64], strides = [1, 1]} : vector<8x64xf32> to vector<1x64xf32>
    %496 = vector.extract_strided_slice %149 {offsets = [3, 0], sizes = [1, 64], strides = [1, 1]} : vector<8x64xf32> to vector<1x64xf32>
    %c3_113 = arith.constant 3 : index
    %497 = memref.load %arg5[%c3_113] : memref<9xf32, #tpu.memory_space<smem>>
    %c9_114 = arith.constant 9 : index
    %498 = memref.load %arg4[%c9_114] : memref<27xf32, #tpu.memory_space<smem>>
    %499 = vector.broadcast %498 : f32 to vector<64x1xf32>
    %500 = arith.mulf %499, %491 : vector<64x1xf32>
    %501 = vector.broadcast %497 : f32 to vector<64x1xf32>
    %502 = arith.addf %501, %500 : vector<64x1xf32>
    %c10_115 = arith.constant 10 : index
    %503 = memref.load %arg4[%c10_115] : memref<27xf32, #tpu.memory_space<smem>>
    %504 = vector.broadcast %503 : f32 to vector<64x1xf32>
    %505 = arith.mulf %504, %492 : vector<64x1xf32>
    %506 = arith.addf %502, %505 : vector<64x1xf32>
    %c11_116 = arith.constant 11 : index
    %507 = memref.load %arg4[%c11_116] : memref<27xf32, #tpu.memory_space<smem>>
    %508 = vector.broadcast %507 : f32 to vector<64x1xf32>
    %509 = arith.mulf %508, %493 : vector<64x1xf32>
    %510 = arith.addf %506, %509 : vector<64x1xf32>
    %511 = vector.broadcast %510 : vector<64x1xf32> to vector<64x64xf32>
    %512 = vector.broadcast %494 : vector<1x64xf32> to vector<64x64xf32>
    %513 = arith.mulf %511, %512 : vector<64x64xf32>
    %514 = vector.broadcast %496 : vector<1x64xf32> to vector<64x64xf32>
    %515 = arith.subf %513, %514 : vector<64x64xf32>
    %516 = math.exp %515 : vector<64x64xf32>
    %cst_117 = arith.constant 1.000000e+00 : f32
    %517 = vector.shape_cast %495 : vector<1x64xf32> to vector<1x64xf32>
    %518 = vector.broadcast %517 : vector<1x64xf32> to vector<2x64xf32>
    %519 = vector.broadcast %cst_117 : f32 to vector<2x64xf32>
    %520 = arith.select %176, %518, %519 : vector<2x64xi1>, vector<2x64xf32>
    %cst_118 = arith.constant dense<0.000000e+00> : vector<2x64xf32>
    %521 = tpu.matmul %520, %516, %cst_118 {dimension_numbers = #tpu.dot_dimension_numbers<[1], [0], [0], [1], [0, 0, 1, 1], [], []>} : vector<2x64xf32>, vector<64x64xf32>, vector<2x64xf32> -> vector<2x64xf32>
    %522 = vector.extract_strided_slice %521 {offsets = [0, 0], sizes = [1, 64], strides = [1, 1]} : vector<2x64xf32> to vector<1x64xf32>
    %523 = vector.extract_strided_slice %521 {offsets = [1, 0], sizes = [1, 64], strides = [1, 1]} : vector<2x64xf32> to vector<1x64xf32>
    %524 = tpu.reciprocal %523 {approx = true} : vector<1x64xf32> -> vector<1x64xf32>
    %525 = arith.mulf %522, %524 : vector<1x64xf32>
    %c3_119 = arith.constant 3 : index
    %c0_120 = arith.constant 0 : index
    %526 = vector.load %arg13[%c3_119, %c0_120] : memref<24x64xf32, #tpu.memory_space<vmem>>, vector<1x64xf32>
    tpu.vector_store %arg13[%c3_119, %c0_120], %525 {strides = array<i32>} : memref<24x64xf32, #tpu.memory_space<vmem>>, vector<1x64xf32>,
    %527 = vector.extract_strided_slice %37 {offsets = [3, 0], sizes = [1, 64], strides = [1, 1]} : vector<8x64xf32> to vector<1x64xf32>
    %528 = vector.extract_strided_slice %123 {offsets = [3, 0], sizes = [1, 64], strides = [1, 1]} : vector<8x64xf32> to vector<1x64xf32>
    %529 = vector.extract_strided_slice %161 {offsets = [3, 0], sizes = [1, 64], strides = [1, 1]} : vector<8x64xf32> to vector<1x64xf32>
    %c4_121 = arith.constant 4 : index
    %530 = memref.load %arg5[%c4_121] : memref<9xf32, #tpu.memory_space<smem>>
    %c12_122 = arith.constant 12 : index
    %531 = memref.load %arg4[%c12_122] : memref<27xf32, #tpu.memory_space<smem>>
    %532 = vector.broadcast %531 : f32 to vector<64x1xf32>
    %533 = arith.mulf %532, %491 : vector<64x1xf32>
    %534 = vector.broadcast %530 : f32 to vector<64x1xf32>
    %535 = arith.addf %534, %533 : vector<64x1xf32>
    %c13_123 = arith.constant 13 : index
    %536 = memref.load %arg4[%c13_123] : memref<27xf32, #tpu.memory_space<smem>>
    %537 = vector.broadcast %536 : f32 to vector<64x1xf32>
    %538 = arith.mulf %537, %492 : vector<64x1xf32>
    %539 = arith.addf %535, %538 : vector<64x1xf32>
    %c14_124 = arith.constant 14 : index
    %540 = memref.load %arg4[%c14_124] : memref<27xf32, #tpu.memory_space<smem>>
    %541 = vector.broadcast %540 : f32 to vector<64x1xf32>
    %542 = arith.mulf %541, %493 : vector<64x1xf32>
    %543 = arith.addf %539, %542 : vector<64x1xf32>
    %544 = vector.broadcast %543 : vector<64x1xf32> to vector<64x64xf32>
    %545 = vector.broadcast %527 : vector<1x64xf32> to vector<64x64xf32>
    %546 = arith.mulf %544, %545 : vector<64x64xf32>
    %547 = vector.broadcast %529 : vector<1x64xf32> to vector<64x64xf32>
    %548 = arith.subf %546, %547 : vector<64x64xf32>
    %549 = math.exp %548 : vector<64x64xf32>
    %cst_125 = arith.constant 1.000000e+00 : f32
    %550 = vector.shape_cast %528 : vector<1x64xf32> to vector<1x64xf32>
    %551 = vector.broadcast %550 : vector<1x64xf32> to vector<2x64xf32>
    %552 = vector.broadcast %cst_125 : f32 to vector<2x64xf32>
    %553 = arith.select %176, %551, %552 : vector<2x64xi1>, vector<2x64xf32>
    %cst_126 = arith.constant dense<0.000000e+00> : vector<2x64xf32>
    %554 = tpu.matmul %553, %549, %cst_126 {dimension_numbers = #tpu.dot_dimension_numbers<[1], [0], [0], [1], [0, 0, 1, 1], [], []>} : vector<2x64xf32>, vector<64x64xf32>, vector<2x64xf32> -> vector<2x64xf32>
    %555 = vector.extract_strided_slice %554 {offsets = [0, 0], sizes = [1, 64], strides = [1, 1]} : vector<2x64xf32> to vector<1x64xf32>
    %556 = vector.extract_strided_slice %554 {offsets = [1, 0], sizes = [1, 64], strides = [1, 1]} : vector<2x64xf32> to vector<1x64xf32>
    %557 = tpu.reciprocal %556 {approx = true} : vector<1x64xf32> -> vector<1x64xf32>
    %558 = arith.mulf %555, %557 : vector<1x64xf32>
    %c11_127 = arith.constant 11 : index
    %c0_128 = arith.constant 0 : index
    %559 = vector.load %arg13[%c11_127, %c0_128] : memref<24x64xf32, #tpu.memory_space<vmem>>, vector<1x64xf32>
    tpu.vector_store %arg13[%c11_127, %c0_128], %558 {strides = array<i32>} : memref<24x64xf32, #tpu.memory_space<vmem>>, vector<1x64xf32>,
    %560 = vector.extract_strided_slice %53 {offsets = [3, 0], sizes = [1, 64], strides = [1, 1]} : vector<8x64xf32> to vector<1x64xf32>
    %561 = vector.extract_strided_slice %137 {offsets = [3, 0], sizes = [1, 64], strides = [1, 1]} : vector<8x64xf32> to vector<1x64xf32>
    %562 = vector.extract_strided_slice %173 {offsets = [3, 0], sizes = [1, 64], strides = [1, 1]} : vector<8x64xf32> to vector<1x64xf32>
    %c5_129 = arith.constant 5 : index
    %563 = memref.load %arg5[%c5_129] : memref<9xf32, #tpu.memory_space<smem>>
    %c15_130 = arith.constant 15 : index
    %564 = memref.load %arg4[%c15_130] : memref<27xf32, #tpu.memory_space<smem>>
    %565 = vector.broadcast %564 : f32 to vector<64x1xf32>
    %566 = arith.mulf %565, %491 : vector<64x1xf32>
    %567 = vector.broadcast %563 : f32 to vector<64x1xf32>
    %568 = arith.addf %567, %566 : vector<64x1xf32>
    %c16_131 = arith.constant 16 : index
    %569 = memref.load %arg4[%c16_131] : memref<27xf32, #tpu.memory_space<smem>>
    %570 = vector.broadcast %569 : f32 to vector<64x1xf32>
    %571 = arith.mulf %570, %492 : vector<64x1xf32>
    %572 = arith.addf %568, %571 : vector<64x1xf32>
    %c17_132 = arith.constant 17 : index
    %573 = memref.load %arg4[%c17_132] : memref<27xf32, #tpu.memory_space<smem>>
    %574 = vector.broadcast %573 : f32 to vector<64x1xf32>
    %575 = arith.mulf %574, %493 : vector<64x1xf32>
    %576 = arith.addf %572, %575 : vector<64x1xf32>
    %577 = vector.broadcast %576 : vector<64x1xf32> to vector<64x64xf32>
    %578 = vector.broadcast %560 : vector<1x64xf32> to vector<64x64xf32>
    %579 = arith.mulf %577, %578 : vector<64x64xf32>
    %580 = vector.broadcast %562 : vector<1x64xf32> to vector<64x64xf32>
    %581 = arith.subf %579, %580 : vector<64x64xf32>
    %582 = math.exp %581 : vector<64x64xf32>
    %cst_133 = arith.constant 1.000000e+00 : f32
    %583 = vector.shape_cast %561 : vector<1x64xf32> to vector<1x64xf32>
    %584 = vector.broadcast %583 : vector<1x64xf32> to vector<2x64xf32>
    %585 = vector.broadcast %cst_133 : f32 to vector<2x64xf32>
    %586 = arith.select %176, %584, %585 : vector<2x64xi1>, vector<2x64xf32>
    %cst_134 = arith.constant dense<0.000000e+00> : vector<2x64xf32>
    %587 = tpu.matmul %586, %582, %cst_134 {dimension_numbers = #tpu.dot_dimension_numbers<[1], [0], [0], [1], [0, 0, 1, 1], [], []>} : vector<2x64xf32>, vector<64x64xf32>, vector<2x64xf32> -> vector<2x64xf32>
    %588 = vector.extract_strided_slice %587 {offsets = [0, 0], sizes = [1, 64], strides = [1, 1]} : vector<2x64xf32> to vector<1x64xf32>
    %589 = vector.extract_strided_slice %587 {offsets = [1, 0], sizes = [1, 64], strides = [1, 1]} : vector<2x64xf32> to vector<1x64xf32>
    %590 = tpu.reciprocal %589 {approx = true} : vector<1x64xf32> -> vector<1x64xf32>
    %591 = arith.mulf %588, %590 : vector<1x64xf32>
    %c19_135 = arith.constant 19 : index
    %c0_136 = arith.constant 0 : index
    %592 = vector.load %arg13[%c19_135, %c0_136] : memref<24x64xf32, #tpu.memory_space<vmem>>, vector<1x64xf32>
    tpu.vector_store %arg13[%c19_135, %c0_136], %591 {strides = array<i32>} : memref<24x64xf32, #tpu.memory_space<vmem>>, vector<1x64xf32>,
    %c4_137 = arith.constant 4 : index
    %c0_138 = arith.constant 0 : index
    %c0_139 = arith.constant 0 : index
    %593 = vector.load %arg2[%c4_137, %c0_138, %c0_139] : memref<8x64x3xf32, #tpu.memory_space<vmem>>, vector<1x64x3xf32>
    %594 = vector.shape_cast %593 : vector<1x64x3xf32> to vector<64x3xf32>
    %595 = vector.extract_strided_slice %594 {offsets = [0, 0], sizes = [64, 1], strides = [1, 1]} : vector<64x3xf32> to vector<64x1xf32>
    %596 = vector.extract_strided_slice %594 {offsets = [0, 1], sizes = [64, 1], strides = [1, 1]} : vector<64x3xf32> to vector<64x1xf32>
    %597 = vector.extract_strided_slice %594 {offsets = [0, 2], sizes = [64, 1], strides = [1, 1]} : vector<64x3xf32> to vector<64x1xf32>
    %598 = vector.extract_strided_slice %21 {offsets = [4, 0], sizes = [1, 64], strides = [1, 1]} : vector<8x64xf32> to vector<1x64xf32>
    %599 = vector.extract_strided_slice %109 {offsets = [4, 0], sizes = [1, 64], strides = [1, 1]} : vector<8x64xf32> to vector<1x64xf32>
    %600 = vector.extract_strided_slice %149 {offsets = [4, 0], sizes = [1, 64], strides = [1, 1]} : vector<8x64xf32> to vector<1x64xf32>
    %c3_140 = arith.constant 3 : index
    %601 = memref.load %arg5[%c3_140] : memref<9xf32, #tpu.memory_space<smem>>
    %c9_141 = arith.constant 9 : index
    %602 = memref.load %arg4[%c9_141] : memref<27xf32, #tpu.memory_space<smem>>
    %603 = vector.broadcast %602 : f32 to vector<64x1xf32>
    %604 = arith.mulf %603, %595 : vector<64x1xf32>
    %605 = vector.broadcast %601 : f32 to vector<64x1xf32>
    %606 = arith.addf %605, %604 : vector<64x1xf32>
    %c10_142 = arith.constant 10 : index
    %607 = memref.load %arg4[%c10_142] : memref<27xf32, #tpu.memory_space<smem>>
    %608 = vector.broadcast %607 : f32 to vector<64x1xf32>
    %609 = arith.mulf %608, %596 : vector<64x1xf32>
    %610 = arith.addf %606, %609 : vector<64x1xf32>
    %c11_143 = arith.constant 11 : index
    %611 = memref.load %arg4[%c11_143] : memref<27xf32, #tpu.memory_space<smem>>
    %612 = vector.broadcast %611 : f32 to vector<64x1xf32>
    %613 = arith.mulf %612, %597 : vector<64x1xf32>
    %614 = arith.addf %610, %613 : vector<64x1xf32>
    %615 = vector.broadcast %614 : vector<64x1xf32> to vector<64x64xf32>
    %616 = vector.broadcast %598 : vector<1x64xf32> to vector<64x64xf32>
    %617 = arith.mulf %615, %616 : vector<64x64xf32>
    %618 = vector.broadcast %600 : vector<1x64xf32> to vector<64x64xf32>
    %619 = arith.subf %617, %618 : vector<64x64xf32>
    %620 = math.exp %619 : vector<64x64xf32>
    %cst_144 = arith.constant 1.000000e+00 : f32
    %621 = vector.shape_cast %599 : vector<1x64xf32> to vector<1x64xf32>
    %622 = vector.broadcast %621 : vector<1x64xf32> to vector<2x64xf32>
    %623 = vector.broadcast %cst_144 : f32 to vector<2x64xf32>
    %624 = arith.select %176, %622, %623 : vector<2x64xi1>, vector<2x64xf32>
    %cst_145 = arith.constant dense<0.000000e+00> : vector<2x64xf32>
    %625 = tpu.matmul %624, %620, %cst_145 {dimension_numbers = #tpu.dot_dimension_numbers<[1], [0], [0], [1], [0, 0, 1, 1], [], []>} : vector<2x64xf32>, vector<64x64xf32>, vector<2x64xf32> -> vector<2x64xf32>
    %626 = vector.extract_strided_slice %625 {offsets = [0, 0], sizes = [1, 64], strides = [1, 1]} : vector<2x64xf32> to vector<1x64xf32>
    %627 = vector.extract_strided_slice %625 {offsets = [1, 0], sizes = [1, 64], strides = [1, 1]} : vector<2x64xf32> to vector<1x64xf32>
    %628 = tpu.reciprocal %627 {approx = true} : vector<1x64xf32> -> vector<1x64xf32>
    %629 = arith.mulf %626, %628 : vector<1x64xf32>
    %c4_146 = arith.constant 4 : index
    %c0_147 = arith.constant 0 : index
    %630 = vector.load %arg13[%c4_146, %c0_147] : memref<24x64xf32, #tpu.memory_space<vmem>>, vector<1x64xf32>
    tpu.vector_store %arg13[%c4_146, %c0_147], %629 {strides = array<i32>} : memref<24x64xf32, #tpu.memory_space<vmem>>, vector<1x64xf32>,
    %631 = vector.extract_strided_slice %37 {offsets = [4, 0], sizes = [1, 64], strides = [1, 1]} : vector<8x64xf32> to vector<1x64xf32>
    %632 = vector.extract_strided_slice %123 {offsets = [4, 0], sizes = [1, 64], strides = [1, 1]} : vector<8x64xf32> to vector<1x64xf32>
    %633 = vector.extract_strided_slice %161 {offsets = [4, 0], sizes = [1, 64], strides = [1, 1]} : vector<8x64xf32> to vector<1x64xf32>
    %c4_148 = arith.constant 4 : index
    %634 = memref.load %arg5[%c4_148] : memref<9xf32, #tpu.memory_space<smem>>
    %c12_149 = arith.constant 12 : index
    %635 = memref.load %arg4[%c12_149] : memref<27xf32, #tpu.memory_space<smem>>
    %636 = vector.broadcast %635 : f32 to vector<64x1xf32>
    %637 = arith.mulf %636, %595 : vector<64x1xf32>
    %638 = vector.broadcast %634 : f32 to vector<64x1xf32>
    %639 = arith.addf %638, %637 : vector<64x1xf32>
    %c13_150 = arith.constant 13 : index
    %640 = memref.load %arg4[%c13_150] : memref<27xf32, #tpu.memory_space<smem>>
    %641 = vector.broadcast %640 : f32 to vector<64x1xf32>
    %642 = arith.mulf %641, %596 : vector<64x1xf32>
    %643 = arith.addf %639, %642 : vector<64x1xf32>
    %c14_151 = arith.constant 14 : index
    %644 = memref.load %arg4[%c14_151] : memref<27xf32, #tpu.memory_space<smem>>
    %645 = vector.broadcast %644 : f32 to vector<64x1xf32>
    %646 = arith.mulf %645, %597 : vector<64x1xf32>
    %647 = arith.addf %643, %646 : vector<64x1xf32>
    %648 = vector.broadcast %647 : vector<64x1xf32> to vector<64x64xf32>
    %649 = vector.broadcast %631 : vector<1x64xf32> to vector<64x64xf32>
    %650 = arith.mulf %648, %649 : vector<64x64xf32>
    %651 = vector.broadcast %633 : vector<1x64xf32> to vector<64x64xf32>
    %652 = arith.subf %650, %651 : vector<64x64xf32>
    %653 = math.exp %652 : vector<64x64xf32>
    %cst_152 = arith.constant 1.000000e+00 : f32
    %654 = vector.shape_cast %632 : vector<1x64xf32> to vector<1x64xf32>
    %655 = vector.broadcast %654 : vector<1x64xf32> to vector<2x64xf32>
    %656 = vector.broadcast %cst_152 : f32 to vector<2x64xf32>
    %657 = arith.select %176, %655, %656 : vector<2x64xi1>, vector<2x64xf32>
    %cst_153 = arith.constant dense<0.000000e+00> : vector<2x64xf32>
    %658 = tpu.matmul %657, %653, %cst_153 {dimension_numbers = #tpu.dot_dimension_numbers<[1], [0], [0], [1], [0, 0, 1, 1], [], []>} : vector<2x64xf32>, vector<64x64xf32>, vector<2x64xf32> -> vector<2x64xf32>
    %659 = vector.extract_strided_slice %658 {offsets = [0, 0], sizes = [1, 64], strides = [1, 1]} : vector<2x64xf32> to vector<1x64xf32>
    %660 = vector.extract_strided_slice %658 {offsets = [1, 0], sizes = [1, 64], strides = [1, 1]} : vector<2x64xf32> to vector<1x64xf32>
    %661 = tpu.reciprocal %660 {approx = true} : vector<1x64xf32> -> vector<1x64xf32>
    %662 = arith.mulf %659, %661 : vector<1x64xf32>
    %c12_154 = arith.constant 12 : index
    %c0_155 = arith.constant 0 : index
    %663 = vector.load %arg13[%c12_154, %c0_155] : memref<24x64xf32, #tpu.memory_space<vmem>>, vector<1x64xf32>
    tpu.vector_store %arg13[%c12_154, %c0_155], %662 {strides = array<i32>} : memref<24x64xf32, #tpu.memory_space<vmem>>, vector<1x64xf32>,
    %664 = vector.extract_strided_slice %53 {offsets = [4, 0], sizes = [1, 64], strides = [1, 1]} : vector<8x64xf32> to vector<1x64xf32>
    %665 = vector.extract_strided_slice %137 {offsets = [4, 0], sizes = [1, 64], strides = [1, 1]} : vector<8x64xf32> to vector<1x64xf32>
    %666 = vector.extract_strided_slice %173 {offsets = [4, 0], sizes = [1, 64], strides = [1, 1]} : vector<8x64xf32> to vector<1x64xf32>
    %c5_156 = arith.constant 5 : index
    %667 = memref.load %arg5[%c5_156] : memref<9xf32, #tpu.memory_space<smem>>
    %c15_157 = arith.constant 15 : index
    %668 = memref.load %arg4[%c15_157] : memref<27xf32, #tpu.memory_space<smem>>
    %669 = vector.broadcast %668 : f32 to vector<64x1xf32>
    %670 = arith.mulf %669, %595 : vector<64x1xf32>
    %671 = vector.broadcast %667 : f32 to vector<64x1xf32>
    %672 = arith.addf %671, %670 : vector<64x1xf32>
    %c16_158 = arith.constant 16 : index
    %673 = memref.load %arg4[%c16_158] : memref<27xf32, #tpu.memory_space<smem>>
    %674 = vector.broadcast %673 : f32 to vector<64x1xf32>
    %675 = arith.mulf %674, %596 : vector<64x1xf32>
    %676 = arith.addf %672, %675 : vector<64x1xf32>
    %c17_159 = arith.constant 17 : index
    %677 = memref.load %arg4[%c17_159] : memref<27xf32, #tpu.memory_space<smem>>
    %678 = vector.broadcast %677 : f32 to vector<64x1xf32>
    %679 = arith.mulf %678, %597 : vector<64x1xf32>
    %680 = arith.addf %676, %679 : vector<64x1xf32>
    %681 = vector.broadcast %680 : vector<64x1xf32> to vector<64x64xf32>
    %682 = vector.broadcast %664 : vector<1x64xf32> to vector<64x64xf32>
    %683 = arith.mulf %681, %682 : vector<64x64xf32>
    %684 = vector.broadcast %666 : vector<1x64xf32> to vector<64x64xf32>
    %685 = arith.subf %683, %684 : vector<64x64xf32>
    %686 = math.exp %685 : vector<64x64xf32>
    %cst_160 = arith.constant 1.000000e+00 : f32
    %687 = vector.shape_cast %665 : vector<1x64xf32> to vector<1x64xf32>
    %688 = vector.broadcast %687 : vector<1x64xf32> to vector<2x64xf32>
    %689 = vector.broadcast %cst_160 : f32 to vector<2x64xf32>
    %690 = arith.select %176, %688, %689 : vector<2x64xi1>, vector<2x64xf32>
    %cst_161 = arith.constant dense<0.000000e+00> : vector<2x64xf32>
    %691 = tpu.matmul %690, %686, %cst_161 {dimension_numbers = #tpu.dot_dimension_numbers<[1], [0], [0], [1], [0, 0, 1, 1], [], []>} : vector<2x64xf32>, vector<64x64xf32>, vector<2x64xf32> -> vector<2x64xf32>
    %692 = vector.extract_strided_slice %691 {offsets = [0, 0], sizes = [1, 64], strides = [1, 1]} : vector<2x64xf32> to vector<1x64xf32>
    %693 = vector.extract_strided_slice %691 {offsets = [1, 0], sizes = [1, 64], strides = [1, 1]} : vector<2x64xf32> to vector<1x64xf32>
    %694 = tpu.reciprocal %693 {approx = true} : vector<1x64xf32> -> vector<1x64xf32>
    %695 = arith.mulf %692, %694 : vector<1x64xf32>
    %c20_162 = arith.constant 20 : index
    %c0_163 = arith.constant 0 : index
    %696 = vector.load %arg13[%c20_162, %c0_163] : memref<24x64xf32, #tpu.memory_space<vmem>>, vector<1x64xf32>
    tpu.vector_store %arg13[%c20_162, %c0_163], %695 {strides = array<i32>} : memref<24x64xf32, #tpu.memory_space<vmem>>, vector<1x64xf32>,
    %c5_164 = arith.constant 5 : index
    %c0_165 = arith.constant 0 : index
    %c0_166 = arith.constant 0 : index
    %697 = vector.load %arg2[%c5_164, %c0_165, %c0_166] : memref<8x64x3xf32, #tpu.memory_space<vmem>>, vector<1x64x3xf32>
    %698 = vector.shape_cast %697 : vector<1x64x3xf32> to vector<64x3xf32>
    %699 = vector.extract_strided_slice %698 {offsets = [0, 0], sizes = [64, 1], strides = [1, 1]} : vector<64x3xf32> to vector<64x1xf32>
    %700 = vector.extract_strided_slice %698 {offsets = [0, 1], sizes = [64, 1], strides = [1, 1]} : vector<64x3xf32> to vector<64x1xf32>
    %701 = vector.extract_strided_slice %698 {offsets = [0, 2], sizes = [64, 1], strides = [1, 1]} : vector<64x3xf32> to vector<64x1xf32>
    %702 = vector.extract_strided_slice %21 {offsets = [5, 0], sizes = [1, 64], strides = [1, 1]} : vector<8x64xf32> to vector<1x64xf32>
    %703 = vector.extract_strided_slice %109 {offsets = [5, 0], sizes = [1, 64], strides = [1, 1]} : vector<8x64xf32> to vector<1x64xf32>
    %704 = vector.extract_strided_slice %149 {offsets = [5, 0], sizes = [1, 64], strides = [1, 1]} : vector<8x64xf32> to vector<1x64xf32>
    %c3_167 = arith.constant 3 : index
    %705 = memref.load %arg5[%c3_167] : memref<9xf32, #tpu.memory_space<smem>>
    %c9_168 = arith.constant 9 : index
    %706 = memref.load %arg4[%c9_168] : memref<27xf32, #tpu.memory_space<smem>>
    %707 = vector.broadcast %706 : f32 to vector<64x1xf32>
    %708 = arith.mulf %707, %699 : vector<64x1xf32>
    %709 = vector.broadcast %705 : f32 to vector<64x1xf32>
    %710 = arith.addf %709, %708 : vector<64x1xf32>
    %c10_169 = arith.constant 10 : index
    %711 = memref.load %arg4[%c10_169] : memref<27xf32, #tpu.memory_space<smem>>
    %712 = vector.broadcast %711 : f32 to vector<64x1xf32>
    %713 = arith.mulf %712, %700 : vector<64x1xf32>
    %714 = arith.addf %710, %713 : vector<64x1xf32>
    %c11_170 = arith.constant 11 : index
    %715 = memref.load %arg4[%c11_170] : memref<27xf32, #tpu.memory_space<smem>>
    %716 = vector.broadcast %715 : f32 to vector<64x1xf32>
    %717 = arith.mulf %716, %701 : vector<64x1xf32>
    %718 = arith.addf %714, %717 : vector<64x1xf32>
    %719 = vector.broadcast %718 : vector<64x1xf32> to vector<64x64xf32>
    %720 = vector.broadcast %702 : vector<1x64xf32> to vector<64x64xf32>
    %721 = arith.mulf %719, %720 : vector<64x64xf32>
    %722 = vector.broadcast %704 : vector<1x64xf32> to vector<64x64xf32>
    %723 = arith.subf %721, %722 : vector<64x64xf32>
    %724 = math.exp %723 : vector<64x64xf32>
    %cst_171 = arith.constant 1.000000e+00 : f32
    %725 = vector.shape_cast %703 : vector<1x64xf32> to vector<1x64xf32>
    %726 = vector.broadcast %725 : vector<1x64xf32> to vector<2x64xf32>
    %727 = vector.broadcast %cst_171 : f32 to vector<2x64xf32>
    %728 = arith.select %176, %726, %727 : vector<2x64xi1>, vector<2x64xf32>
    %cst_172 = arith.constant dense<0.000000e+00> : vector<2x64xf32>
    %729 = tpu.matmul %728, %724, %cst_172 {dimension_numbers = #tpu.dot_dimension_numbers<[1], [0], [0], [1], [0, 0, 1, 1], [], []>} : vector<2x64xf32>, vector<64x64xf32>, vector<2x64xf32> -> vector<2x64xf32>
    %730 = vector.extract_strided_slice %729 {offsets = [0, 0], sizes = [1, 64], strides = [1, 1]} : vector<2x64xf32> to vector<1x64xf32>
    %731 = vector.extract_strided_slice %729 {offsets = [1, 0], sizes = [1, 64], strides = [1, 1]} : vector<2x64xf32> to vector<1x64xf32>
    %732 = tpu.reciprocal %731 {approx = true} : vector<1x64xf32> -> vector<1x64xf32>
    %733 = arith.mulf %730, %732 : vector<1x64xf32>
    %c5_173 = arith.constant 5 : index
    %c0_174 = arith.constant 0 : index
    %734 = vector.load %arg13[%c5_173, %c0_174] : memref<24x64xf32, #tpu.memory_space<vmem>>, vector<1x64xf32>
    tpu.vector_store %arg13[%c5_173, %c0_174], %733 {strides = array<i32>} : memref<24x64xf32, #tpu.memory_space<vmem>>, vector<1x64xf32>,
    %735 = vector.extract_strided_slice %37 {offsets = [5, 0], sizes = [1, 64], strides = [1, 1]} : vector<8x64xf32> to vector<1x64xf32>
    %736 = vector.extract_strided_slice %123 {offsets = [5, 0], sizes = [1, 64], strides = [1, 1]} : vector<8x64xf32> to vector<1x64xf32>
    %737 = vector.extract_strided_slice %161 {offsets = [5, 0], sizes = [1, 64], strides = [1, 1]} : vector<8x64xf32> to vector<1x64xf32>
    %c4_175 = arith.constant 4 : index
    %738 = memref.load %arg5[%c4_175] : memref<9xf32, #tpu.memory_space<smem>>
    %c12_176 = arith.constant 12 : index
    %739 = memref.load %arg4[%c12_176] : memref<27xf32, #tpu.memory_space<smem>>
    %740 = vector.broadcast %739 : f32 to vector<64x1xf32>
    %741 = arith.mulf %740, %699 : vector<64x1xf32>
    %742 = vector.broadcast %738 : f32 to vector<64x1xf32>
    %743 = arith.addf %742, %741 : vector<64x1xf32>
    %c13_177 = arith.constant 13 : index
    %744 = memref.load %arg4[%c13_177] : memref<27xf32, #tpu.memory_space<smem>>
    %745 = vector.broadcast %744 : f32 to vector<64x1xf32>
    %746 = arith.mulf %745, %700 : vector<64x1xf32>
    %747 = arith.addf %743, %746 : vector<64x1xf32>
    %c14_178 = arith.constant 14 : index
    %748 = memref.load %arg4[%c14_178] : memref<27xf32, #tpu.memory_space<smem>>
    %749 = vector.broadcast %748 : f32 to vector<64x1xf32>
    %750 = arith.mulf %749, %701 : vector<64x1xf32>
    %751 = arith.addf %747, %750 : vector<64x1xf32>
    %752 = vector.broadcast %751 : vector<64x1xf32> to vector<64x64xf32>
    %753 = vector.broadcast %735 : vector<1x64xf32> to vector<64x64xf32>
    %754 = arith.mulf %752, %753 : vector<64x64xf32>
    %755 = vector.broadcast %737 : vector<1x64xf32> to vector<64x64xf32>
    %756 = arith.subf %754, %755 : vector<64x64xf32>
    %757 = math.exp %756 : vector<64x64xf32>
    %cst_179 = arith.constant 1.000000e+00 : f32
    %758 = vector.shape_cast %736 : vector<1x64xf32> to vector<1x64xf32>
    %759 = vector.broadcast %758 : vector<1x64xf32> to vector<2x64xf32>
    %760 = vector.broadcast %cst_179 : f32 to vector<2x64xf32>
    %761 = arith.select %176, %759, %760 : vector<2x64xi1>, vector<2x64xf32>
    %cst_180 = arith.constant dense<0.000000e+00> : vector<2x64xf32>
    %762 = tpu.matmul %761, %757, %cst_180 {dimension_numbers = #tpu.dot_dimension_numbers<[1], [0], [0], [1], [0, 0, 1, 1], [], []>} : vector<2x64xf32>, vector<64x64xf32>, vector<2x64xf32> -> vector<2x64xf32>
    %763 = vector.extract_strided_slice %762 {offsets = [0, 0], sizes = [1, 64], strides = [1, 1]} : vector<2x64xf32> to vector<1x64xf32>
    %764 = vector.extract_strided_slice %762 {offsets = [1, 0], sizes = [1, 64], strides = [1, 1]} : vector<2x64xf32> to vector<1x64xf32>
    %765 = tpu.reciprocal %764 {approx = true} : vector<1x64xf32> -> vector<1x64xf32>
    %766 = arith.mulf %763, %765 : vector<1x64xf32>
    %c13_181 = arith.constant 13 : index
    %c0_182 = arith.constant 0 : index
    %767 = vector.load %arg13[%c13_181, %c0_182] : memref<24x64xf32, #tpu.memory_space<vmem>>, vector<1x64xf32>
    tpu.vector_store %arg13[%c13_181, %c0_182], %766 {strides = array<i32>} : memref<24x64xf32, #tpu.memory_space<vmem>>, vector<1x64xf32>,
    %768 = vector.extract_strided_slice %53 {offsets = [5, 0], sizes = [1, 64], strides = [1, 1]} : vector<8x64xf32> to vector<1x64xf32>
    %769 = vector.extract_strided_slice %137 {offsets = [5, 0], sizes = [1, 64], strides = [1, 1]} : vector<8x64xf32> to vector<1x64xf32>
    %770 = vector.extract_strided_slice %173 {offsets = [5, 0], sizes = [1, 64], strides = [1, 1]} : vector<8x64xf32> to vector<1x64xf32>
    %c5_183 = arith.constant 5 : index
    %771 = memref.load %arg5[%c5_183] : memref<9xf32, #tpu.memory_space<smem>>
    %c15_184 = arith.constant 15 : index
    %772 = memref.load %arg4[%c15_184] : memref<27xf32, #tpu.memory_space<smem>>
    %773 = vector.broadcast %772 : f32 to vector<64x1xf32>
    %774 = arith.mulf %773, %699 : vector<64x1xf32>
    %775 = vector.broadcast %771 : f32 to vector<64x1xf32>
    %776 = arith.addf %775, %774 : vector<64x1xf32>
    %c16_185 = arith.constant 16 : index
    %777 = memref.load %arg4[%c16_185] : memref<27xf32, #tpu.memory_space<smem>>
    %778 = vector.broadcast %777 : f32 to vector<64x1xf32>
    %779 = arith.mulf %778, %700 : vector<64x1xf32>
    %780 = arith.addf %776, %779 : vector<64x1xf32>
    %c17_186 = arith.constant 17 : index
    %781 = memref.load %arg4[%c17_186] : memref<27xf32, #tpu.memory_space<smem>>
    %782 = vector.broadcast %781 : f32 to vector<64x1xf32>
    %783 = arith.mulf %782, %701 : vector<64x1xf32>
    %784 = arith.addf %780, %783 : vector<64x1xf32>
    %785 = vector.broadcast %784 : vector<64x1xf32> to vector<64x64xf32>
    %786 = vector.broadcast %768 : vector<1x64xf32> to vector<64x64xf32>
    %787 = arith.mulf %785, %786 : vector<64x64xf32>
    %788 = vector.broadcast %770 : vector<1x64xf32> to vector<64x64xf32>
    %789 = arith.subf %787, %788 : vector<64x64xf32>
    %790 = math.exp %789 : vector<64x64xf32>
    %cst_187 = arith.constant 1.000000e+00 : f32
    %791 = vector.shape_cast %769 : vector<1x64xf32> to vector<1x64xf32>
    %792 = vector.broadcast %791 : vector<1x64xf32> to vector<2x64xf32>
    %793 = vector.broadcast %cst_187 : f32 to vector<2x64xf32>
    %794 = arith.select %176, %792, %793 : vector<2x64xi1>, vector<2x64xf32>
    %cst_188 = arith.constant dense<0.000000e+00> : vector<2x64xf32>
    %795 = tpu.matmul %794, %790, %cst_188 {dimension_numbers = #tpu.dot_dimension_numbers<[1], [0], [0], [1], [0, 0, 1, 1], [], []>} : vector<2x64xf32>, vector<64x64xf32>, vector<2x64xf32> -> vector<2x64xf32>
    %796 = vector.extract_strided_slice %795 {offsets = [0, 0], sizes = [1, 64], strides = [1, 1]} : vector<2x64xf32> to vector<1x64xf32>
    %797 = vector.extract_strided_slice %795 {offsets = [1, 0], sizes = [1, 64], strides = [1, 1]} : vector<2x64xf32> to vector<1x64xf32>
    %798 = tpu.reciprocal %797 {approx = true} : vector<1x64xf32> -> vector<1x64xf32>
    %799 = arith.mulf %796, %798 : vector<1x64xf32>
    %c21_189 = arith.constant 21 : index
    %c0_190 = arith.constant 0 : index
    %800 = vector.load %arg13[%c21_189, %c0_190] : memref<24x64xf32, #tpu.memory_space<vmem>>, vector<1x64xf32>
    tpu.vector_store %arg13[%c21_189, %c0_190], %799 {strides = array<i32>} : memref<24x64xf32, #tpu.memory_space<vmem>>, vector<1x64xf32>,
    %c6_191 = arith.constant 6 : index
    %c0_192 = arith.constant 0 : index
    %c0_193 = arith.constant 0 : index
    %801 = vector.load %arg2[%c6_191, %c0_192, %c0_193] : memref<8x64x3xf32, #tpu.memory_space<vmem>>, vector<1x64x3xf32>
    %802 = vector.shape_cast %801 : vector<1x64x3xf32> to vector<64x3xf32>
    %803 = vector.extract_strided_slice %802 {offsets = [0, 0], sizes = [64, 1], strides = [1, 1]} : vector<64x3xf32> to vector<64x1xf32>
    %804 = vector.extract_strided_slice %802 {offsets = [0, 1], sizes = [64, 1], strides = [1, 1]} : vector<64x3xf32> to vector<64x1xf32>
    %805 = vector.extract_strided_slice %802 {offsets = [0, 2], sizes = [64, 1], strides = [1, 1]} : vector<64x3xf32> to vector<64x1xf32>
    %806 = vector.extract_strided_slice %21 {offsets = [6, 0], sizes = [1, 64], strides = [1, 1]} : vector<8x64xf32> to vector<1x64xf32>
    %807 = vector.extract_strided_slice %109 {offsets = [6, 0], sizes = [1, 64], strides = [1, 1]} : vector<8x64xf32> to vector<1x64xf32>
    %808 = vector.extract_strided_slice %149 {offsets = [6, 0], sizes = [1, 64], strides = [1, 1]} : vector<8x64xf32> to vector<1x64xf32>
    %c3_194 = arith.constant 3 : index
    %809 = memref.load %arg5[%c3_194] : memref<9xf32, #tpu.memory_space<smem>>
    %c9_195 = arith.constant 9 : index
    %810 = memref.load %arg4[%c9_195] : memref<27xf32, #tpu.memory_space<smem>>
    %811 = vector.broadcast %810 : f32 to vector<64x1xf32>
    %812 = arith.mulf %811, %803 : vector<64x1xf32>
    %813 = vector.broadcast %809 : f32 to vector<64x1xf32>
    %814 = arith.addf %813, %812 : vector<64x1xf32>
    %c10_196 = arith.constant 10 : index
    %815 = memref.load %arg4[%c10_196] : memref<27xf32, #tpu.memory_space<smem>>
    %816 = vector.broadcast %815 : f32 to vector<64x1xf32>
    %817 = arith.mulf %816, %804 : vector<64x1xf32>
    %818 = arith.addf %814, %817 : vector<64x1xf32>
    %c11_197 = arith.constant 11 : index
    %819 = memref.load %arg4[%c11_197] : memref<27xf32, #tpu.memory_space<smem>>
    %820 = vector.broadcast %819 : f32 to vector<64x1xf32>
    %821 = arith.mulf %820, %805 : vector<64x1xf32>
    %822 = arith.addf %818, %821 : vector<64x1xf32>
    %823 = vector.broadcast %822 : vector<64x1xf32> to vector<64x64xf32>
    %824 = vector.broadcast %806 : vector<1x64xf32> to vector<64x64xf32>
    %825 = arith.mulf %823, %824 : vector<64x64xf32>
    %826 = vector.broadcast %808 : vector<1x64xf32> to vector<64x64xf32>
    %827 = arith.subf %825, %826 : vector<64x64xf32>
    %828 = math.exp %827 : vector<64x64xf32>
    %cst_198 = arith.constant 1.000000e+00 : f32
    %829 = vector.shape_cast %807 : vector<1x64xf32> to vector<1x64xf32>
    %830 = vector.broadcast %829 : vector<1x64xf32> to vector<2x64xf32>
    %831 = vector.broadcast %cst_198 : f32 to vector<2x64xf32>
    %832 = arith.select %176, %830, %831 : vector<2x64xi1>, vector<2x64xf32>
    %cst_199 = arith.constant dense<0.000000e+00> : vector<2x64xf32>
    %833 = tpu.matmul %832, %828, %cst_199 {dimension_numbers = #tpu.dot_dimension_numbers<[1], [0], [0], [1], [0, 0, 1, 1], [], []>} : vector<2x64xf32>, vector<64x64xf32>, vector<2x64xf32> -> vector<2x64xf32>
    %834 = vector.extract_strided_slice %833 {offsets = [0, 0], sizes = [1, 64], strides = [1, 1]} : vector<2x64xf32> to vector<1x64xf32>
    %835 = vector.extract_strided_slice %833 {offsets = [1, 0], sizes = [1, 64], strides = [1, 1]} : vector<2x64xf32> to vector<1x64xf32>
    %836 = tpu.reciprocal %835 {approx = true} : vector<1x64xf32> -> vector<1x64xf32>
    %837 = arith.mulf %834, %836 : vector<1x64xf32>
    %c6_200 = arith.constant 6 : index
    %c0_201 = arith.constant 0 : index
    %838 = vector.load %arg13[%c6_200, %c0_201] : memref<24x64xf32, #tpu.memory_space<vmem>>, vector<1x64xf32>
    tpu.vector_store %arg13[%c6_200, %c0_201], %837 {strides = array<i32>} : memref<24x64xf32, #tpu.memory_space<vmem>>, vector<1x64xf32>,
    %839 = vector.extract_strided_slice %37 {offsets = [6, 0], sizes = [1, 64], strides = [1, 1]} : vector<8x64xf32> to vector<1x64xf32>
    %840 = vector.extract_strided_slice %123 {offsets = [6, 0], sizes = [1, 64], strides = [1, 1]} : vector<8x64xf32> to vector<1x64xf32>
    %841 = vector.extract_strided_slice %161 {offsets = [6, 0], sizes = [1, 64], strides = [1, 1]} : vector<8x64xf32> to vector<1x64xf32>
    %c4_202 = arith.constant 4 : index
    %842 = memref.load %arg5[%c4_202] : memref<9xf32, #tpu.memory_space<smem>>
    %c12_203 = arith.constant 12 : index
    %843 = memref.load %arg4[%c12_203] : memref<27xf32, #tpu.memory_space<smem>>
    %844 = vector.broadcast %843 : f32 to vector<64x1xf32>
    %845 = arith.mulf %844, %803 : vector<64x1xf32>
    %846 = vector.broadcast %842 : f32 to vector<64x1xf32>
    %847 = arith.addf %846, %845 : vector<64x1xf32>
    %c13_204 = arith.constant 13 : index
    %848 = memref.load %arg4[%c13_204] : memref<27xf32, #tpu.memory_space<smem>>
    %849 = vector.broadcast %848 : f32 to vector<64x1xf32>
    %850 = arith.mulf %849, %804 : vector<64x1xf32>
    %851 = arith.addf %847, %850 : vector<64x1xf32>
    %c14_205 = arith.constant 14 : index
    %852 = memref.load %arg4[%c14_205] : memref<27xf32, #tpu.memory_space<smem>>
    %853 = vector.broadcast %852 : f32 to vector<64x1xf32>
    %854 = arith.mulf %853, %805 : vector<64x1xf32>
    %855 = arith.addf %851, %854 : vector<64x1xf32>
    %856 = vector.broadcast %855 : vector<64x1xf32> to vector<64x64xf32>
    %857 = vector.broadcast %839 : vector<1x64xf32> to vector<64x64xf32>
    %858 = arith.mulf %856, %857 : vector<64x64xf32>
    %859 = vector.broadcast %841 : vector<1x64xf32> to vector<64x64xf32>
    %860 = arith.subf %858, %859 : vector<64x64xf32>
    %861 = math.exp %860 : vector<64x64xf32>
    %cst_206 = arith.constant 1.000000e+00 : f32
    %862 = vector.shape_cast %840 : vector<1x64xf32> to vector<1x64xf32>
    %863 = vector.broadcast %862 : vector<1x64xf32> to vector<2x64xf32>
    %864 = vector.broadcast %cst_206 : f32 to vector<2x64xf32>
    %865 = arith.select %176, %863, %864 : vector<2x64xi1>, vector<2x64xf32>
    %cst_207 = arith.constant dense<0.000000e+00> : vector<2x64xf32>
    %866 = tpu.matmul %865, %861, %cst_207 {dimension_numbers = #tpu.dot_dimension_numbers<[1], [0], [0], [1], [0, 0, 1, 1], [], []>} : vector<2x64xf32>, vector<64x64xf32>, vector<2x64xf32> -> vector<2x64xf32>
    %867 = vector.extract_strided_slice %866 {offsets = [0, 0], sizes = [1, 64], strides = [1, 1]} : vector<2x64xf32> to vector<1x64xf32>
    %868 = vector.extract_strided_slice %866 {offsets = [1, 0], sizes = [1, 64], strides = [1, 1]} : vector<2x64xf32> to vector<1x64xf32>
    %869 = tpu.reciprocal %868 {approx = true} : vector<1x64xf32> -> vector<1x64xf32>
    %870 = arith.mulf %867, %869 : vector<1x64xf32>
    %c14_208 = arith.constant 14 : index
    %c0_209 = arith.constant 0 : index
    %871 = vector.load %arg13[%c14_208, %c0_209] : memref<24x64xf32, #tpu.memory_space<vmem>>, vector<1x64xf32>
    tpu.vector_store %arg13[%c14_208, %c0_209], %870 {strides = array<i32>} : memref<24x64xf32, #tpu.memory_space<vmem>>, vector<1x64xf32>,
    %872 = vector.extract_strided_slice %53 {offsets = [6, 0], sizes = [1, 64], strides = [1, 1]} : vector<8x64xf32> to vector<1x64xf32>
    %873 = vector.extract_strided_slice %137 {offsets = [6, 0], sizes = [1, 64], strides = [1, 1]} : vector<8x64xf32> to vector<1x64xf32>
    %874 = vector.extract_strided_slice %173 {offsets = [6, 0], sizes = [1, 64], strides = [1, 1]} : vector<8x64xf32> to vector<1x64xf32>
    %c5_210 = arith.constant 5 : index
    %875 = memref.load %arg5[%c5_210] : memref<9xf32, #tpu.memory_space<smem>>
    %c15_211 = arith.constant 15 : index
    %876 = memref.load %arg4[%c15_211] : memref<27xf32, #tpu.memory_space<smem>>
    %877 = vector.broadcast %876 : f32 to vector<64x1xf32>
    %878 = arith.mulf %877, %803 : vector<64x1xf32>
    %879 = vector.broadcast %875 : f32 to vector<64x1xf32>
    %880 = arith.addf %879, %878 : vector<64x1xf32>
    %c16_212 = arith.constant 16 : index
    %881 = memref.load %arg4[%c16_212] : memref<27xf32, #tpu.memory_space<smem>>
    %882 = vector.broadcast %881 : f32 to vector<64x1xf32>
    %883 = arith.mulf %882, %804 : vector<64x1xf32>
    %884 = arith.addf %880, %883 : vector<64x1xf32>
    %c17_213 = arith.constant 17 : index
    %885 = memref.load %arg4[%c17_213] : memref<27xf32, #tpu.memory_space<smem>>
    %886 = vector.broadcast %885 : f32 to vector<64x1xf32>
    %887 = arith.mulf %886, %805 : vector<64x1xf32>
    %888 = arith.addf %884, %887 : vector<64x1xf32>
    %889 = vector.broadcast %888 : vector<64x1xf32> to vector<64x64xf32>
    %890 = vector.broadcast %872 : vector<1x64xf32> to vector<64x64xf32>
    %891 = arith.mulf %889, %890 : vector<64x64xf32>
    %892 = vector.broadcast %874 : vector<1x64xf32> to vector<64x64xf32>
    %893 = arith.subf %891, %892 : vector<64x64xf32>
    %894 = math.exp %893 : vector<64x64xf32>
    %cst_214 = arith.constant 1.000000e+00 : f32
    %895 = vector.shape_cast %873 : vector<1x64xf32> to vector<1x64xf32>
    %896 = vector.broadcast %895 : vector<1x64xf32> to vector<2x64xf32>
    %897 = vector.broadcast %cst_214 : f32 to vector<2x64xf32>
    %898 = arith.select %176, %896, %897 : vector<2x64xi1>, vector<2x64xf32>
    %cst_215 = arith.constant dense<0.000000e+00> : vector<2x64xf32>
    %899 = tpu.matmul %898, %894, %cst_215 {dimension_numbers = #tpu.dot_dimension_numbers<[1], [0], [0], [1], [0, 0, 1, 1], [], []>} : vector<2x64xf32>, vector<64x64xf32>, vector<2x64xf32> -> vector<2x64xf32>
    %900 = vector.extract_strided_slice %899 {offsets = [0, 0], sizes = [1, 64], strides = [1, 1]} : vector<2x64xf32> to vector<1x64xf32>
    %901 = vector.extract_strided_slice %899 {offsets = [1, 0], sizes = [1, 64], strides = [1, 1]} : vector<2x64xf32> to vector<1x64xf32>
    %902 = tpu.reciprocal %901 {approx = true} : vector<1x64xf32> -> vector<1x64xf32>
    %903 = arith.mulf %900, %902 : vector<1x64xf32>
    %c22_216 = arith.constant 22 : index
    %c0_217 = arith.constant 0 : index
    %904 = vector.load %arg13[%c22_216, %c0_217] : memref<24x64xf32, #tpu.memory_space<vmem>>, vector<1x64xf32>
    tpu.vector_store %arg13[%c22_216, %c0_217], %903 {strides = array<i32>} : memref<24x64xf32, #tpu.memory_space<vmem>>, vector<1x64xf32>,
    %c7_218 = arith.constant 7 : index
    %c0_219 = arith.constant 0 : index
    %c0_220 = arith.constant 0 : index
    %905 = vector.load %arg2[%c7_218, %c0_219, %c0_220] : memref<8x64x3xf32, #tpu.memory_space<vmem>>, vector<1x64x3xf32>
    %906 = vector.shape_cast %905 : vector<1x64x3xf32> to vector<64x3xf32>
    %907 = vector.extract_strided_slice %906 {offsets = [0, 0], sizes = [64, 1], strides = [1, 1]} : vector<64x3xf32> to vector<64x1xf32>
    %908 = vector.extract_strided_slice %906 {offsets = [0, 1], sizes = [64, 1], strides = [1, 1]} : vector<64x3xf32> to vector<64x1xf32>
    %909 = vector.extract_strided_slice %906 {offsets = [0, 2], sizes = [64, 1], strides = [1, 1]} : vector<64x3xf32> to vector<64x1xf32>
    %910 = vector.extract_strided_slice %21 {offsets = [7, 0], sizes = [1, 64], strides = [1, 1]} : vector<8x64xf32> to vector<1x64xf32>
    %911 = vector.extract_strided_slice %109 {offsets = [7, 0], sizes = [1, 64], strides = [1, 1]} : vector<8x64xf32> to vector<1x64xf32>
    %912 = vector.extract_strided_slice %149 {offsets = [7, 0], sizes = [1, 64], strides = [1, 1]} : vector<8x64xf32> to vector<1x64xf32>
    %c3_221 = arith.constant 3 : index
    %913 = memref.load %arg5[%c3_221] : memref<9xf32, #tpu.memory_space<smem>>
    %c9_222 = arith.constant 9 : index
    %914 = memref.load %arg4[%c9_222] : memref<27xf32, #tpu.memory_space<smem>>
    %915 = vector.broadcast %914 : f32 to vector<64x1xf32>
    %916 = arith.mulf %915, %907 : vector<64x1xf32>
    %917 = vector.broadcast %913 : f32 to vector<64x1xf32>
    %918 = arith.addf %917, %916 : vector<64x1xf32>
    %c10_223 = arith.constant 10 : index
    %919 = memref.load %arg4[%c10_223] : memref<27xf32, #tpu.memory_space<smem>>
    %920 = vector.broadcast %919 : f32 to vector<64x1xf32>
    %921 = arith.mulf %920, %908 : vector<64x1xf32>
    %922 = arith.addf %918, %921 : vector<64x1xf32>
    %c11_224 = arith.constant 11 : index
    %923 = memref.load %arg4[%c11_224] : memref<27xf32, #tpu.memory_space<smem>>
    %924 = vector.broadcast %923 : f32 to vector<64x1xf32>
    %925 = arith.mulf %924, %909 : vector<64x1xf32>
    %926 = arith.addf %922, %925 : vector<64x1xf32>
    %927 = vector.broadcast %926 : vector<64x1xf32> to vector<64x64xf32>
    %928 = vector.broadcast %910 : vector<1x64xf32> to vector<64x64xf32>
    %929 = arith.mulf %927, %928 : vector<64x64xf32>
    %930 = vector.broadcast %912 : vector<1x64xf32> to vector<64x64xf32>
    %931 = arith.subf %929, %930 : vector<64x64xf32>
    %932 = math.exp %931 : vector<64x64xf32>
    %cst_225 = arith.constant 1.000000e+00 : f32
    %933 = vector.shape_cast %911 : vector<1x64xf32> to vector<1x64xf32>
    %934 = vector.broadcast %933 : vector<1x64xf32> to vector<2x64xf32>
    %935 = vector.broadcast %cst_225 : f32 to vector<2x64xf32>
    %936 = arith.select %176, %934, %935 : vector<2x64xi1>, vector<2x64xf32>
    %cst_226 = arith.constant dense<0.000000e+00> : vector<2x64xf32>
    %937 = tpu.matmul %936, %932, %cst_226 {dimension_numbers = #tpu.dot_dimension_numbers<[1], [0], [0], [1], [0, 0, 1, 1], [], []>} : vector<2x64xf32>, vector<64x64xf32>, vector<2x64xf32> -> vector<2x64xf32>
    %938 = vector.extract_strided_slice %937 {offsets = [0, 0], sizes = [1, 64], strides = [1, 1]} : vector<2x64xf32> to vector<1x64xf32>
    %939 = vector.extract_strided_slice %937 {offsets = [1, 0], sizes = [1, 64], strides = [1, 1]} : vector<2x64xf32> to vector<1x64xf32>
    %940 = tpu.reciprocal %939 {approx = true} : vector<1x64xf32> -> vector<1x64xf32>
    %941 = arith.mulf %938, %940 : vector<1x64xf32>
    %c7_227 = arith.constant 7 : index
    %c0_228 = arith.constant 0 : index
    %942 = vector.load %arg13[%c7_227, %c0_228] : memref<24x64xf32, #tpu.memory_space<vmem>>, vector<1x64xf32>
    tpu.vector_store %arg13[%c7_227, %c0_228], %941 {strides = array<i32>} : memref<24x64xf32, #tpu.memory_space<vmem>>, vector<1x64xf32>,
    %943 = vector.extract_strided_slice %37 {offsets = [7, 0], sizes = [1, 64], strides = [1, 1]} : vector<8x64xf32> to vector<1x64xf32>
    %944 = vector.extract_strided_slice %123 {offsets = [7, 0], sizes = [1, 64], strides = [1, 1]} : vector<8x64xf32> to vector<1x64xf32>
    %945 = vector.extract_strided_slice %161 {offsets = [7, 0], sizes = [1, 64], strides = [1, 1]} : vector<8x64xf32> to vector<1x64xf32>
    %c4_229 = arith.constant 4 : index
    %946 = memref.load %arg5[%c4_229] : memref<9xf32, #tpu.memory_space<smem>>
    %c12_230 = arith.constant 12 : index
    %947 = memref.load %arg4[%c12_230] : memref<27xf32, #tpu.memory_space<smem>>
    %948 = vector.broadcast %947 : f32 to vector<64x1xf32>
    %949 = arith.mulf %948, %907 : vector<64x1xf32>
    %950 = vector.broadcast %946 : f32 to vector<64x1xf32>
    %951 = arith.addf %950, %949 : vector<64x1xf32>
    %c13_231 = arith.constant 13 : index
    %952 = memref.load %arg4[%c13_231] : memref<27xf32, #tpu.memory_space<smem>>
    %953 = vector.broadcast %952 : f32 to vector<64x1xf32>
    %954 = arith.mulf %953, %908 : vector<64x1xf32>
    %955 = arith.addf %951, %954 : vector<64x1xf32>
    %c14_232 = arith.constant 14 : index
    %956 = memref.load %arg4[%c14_232] : memref<27xf32, #tpu.memory_space<smem>>
    %957 = vector.broadcast %956 : f32 to vector<64x1xf32>
    %958 = arith.mulf %957, %909 : vector<64x1xf32>
    %959 = arith.addf %955, %958 : vector<64x1xf32>
    %960 = vector.broadcast %959 : vector<64x1xf32> to vector<64x64xf32>
    %961 = vector.broadcast %943 : vector<1x64xf32> to vector<64x64xf32>
    %962 = arith.mulf %960, %961 : vector<64x64xf32>
    %963 = vector.broadcast %945 : vector<1x64xf32> to vector<64x64xf32>
    %964 = arith.subf %962, %963 : vector<64x64xf32>
    %965 = math.exp %964 : vector<64x64xf32>
    %cst_233 = arith.constant 1.000000e+00 : f32
    %966 = vector.shape_cast %944 : vector<1x64xf32> to vector<1x64xf32>
    %967 = vector.broadcast %966 : vector<1x64xf32> to vector<2x64xf32>
    %968 = vector.broadcast %cst_233 : f32 to vector<2x64xf32>
    %969 = arith.select %176, %967, %968 : vector<2x64xi1>, vector<2x64xf32>
    %cst_234 = arith.constant dense<0.000000e+00> : vector<2x64xf32>
    %970 = tpu.matmul %969, %965, %cst_234 {dimension_numbers = #tpu.dot_dimension_numbers<[1], [0], [0], [1], [0, 0, 1, 1], [], []>} : vector<2x64xf32>, vector<64x64xf32>, vector<2x64xf32> -> vector<2x64xf32>
    %971 = vector.extract_strided_slice %970 {offsets = [0, 0], sizes = [1, 64], strides = [1, 1]} : vector<2x64xf32> to vector<1x64xf32>
    %972 = vector.extract_strided_slice %970 {offsets = [1, 0], sizes = [1, 64], strides = [1, 1]} : vector<2x64xf32> to vector<1x64xf32>
    %973 = tpu.reciprocal %972 {approx = true} : vector<1x64xf32> -> vector<1x64xf32>
    %974 = arith.mulf %971, %973 : vector<1x64xf32>
    %c15_235 = arith.constant 15 : index
    %c0_236 = arith.constant 0 : index
    %975 = vector.load %arg13[%c15_235, %c0_236] : memref<24x64xf32, #tpu.memory_space<vmem>>, vector<1x64xf32>
    tpu.vector_store %arg13[%c15_235, %c0_236], %974 {strides = array<i32>} : memref<24x64xf32, #tpu.memory_space<vmem>>, vector<1x64xf32>,
    %976 = vector.extract_strided_slice %53 {offsets = [7, 0], sizes = [1, 64], strides = [1, 1]} : vector<8x64xf32> to vector<1x64xf32>
    %977 = vector.extract_strided_slice %137 {offsets = [7, 0], sizes = [1, 64], strides = [1, 1]} : vector<8x64xf32> to vector<1x64xf32>
    %978 = vector.extract_strided_slice %173 {offsets = [7, 0], sizes = [1, 64], strides = [1, 1]} : vector<8x64xf32> to vector<1x64xf32>
    %c5_237 = arith.constant 5 : index
    %979 = memref.load %arg5[%c5_237] : memref<9xf32, #tpu.memory_space<smem>>
    %c15_238 = arith.constant 15 : index
    %980 = memref.load %arg4[%c15_238] : memref<27xf32, #tpu.memory_space<smem>>
    %981 = vector.broadcast %980 : f32 to vector<64x1xf32>
    %982 = arith.mulf %981, %907 : vector<64x1xf32>
    %983 = vector.broadcast %979 : f32 to vector<64x1xf32>
    %984 = arith.addf %983, %982 : vector<64x1xf32>
    %c16_239 = arith.constant 16 : index
    %985 = memref.load %arg4[%c16_239] : memref<27xf32, #tpu.memory_space<smem>>
    %986 = vector.broadcast %985 : f32 to vector<64x1xf32>
    %987 = arith.mulf %986, %908 : vector<64x1xf32>
    %988 = arith.addf %984, %987 : vector<64x1xf32>
    %c17_240 = arith.constant 17 : index
    %989 = memref.load %arg4[%c17_240] : memref<27xf32, #tpu.memory_space<smem>>
    %990 = vector.broadcast %989 : f32 to vector<64x1xf32>
    %991 = arith.mulf %990, %909 : vector<64x1xf32>
    %992 = arith.addf %988, %991 : vector<64x1xf32>
    %993 = vector.broadcast %992 : vector<64x1xf32> to vector<64x64xf32>
    %994 = vector.broadcast %976 : vector<1x64xf32> to vector<64x64xf32>
    %995 = arith.mulf %993, %994 : vector<64x64xf32>
    %996 = vector.broadcast %978 : vector<1x64xf32> to vector<64x64xf32>
    %997 = arith.subf %995, %996 : vector<64x64xf32>
    %998 = math.exp %997 : vector<64x64xf32>
    %cst_241 = arith.constant 1.000000e+00 : f32
    %999 = vector.shape_cast %977 : vector<1x64xf32> to vector<1x64xf32>
    %1000 = vector.broadcast %999 : vector<1x64xf32> to vector<2x64xf32>
    %1001 = vector.broadcast %cst_241 : f32 to vector<2x64xf32>
    %1002 = arith.select %176, %1000, %1001 : vector<2x64xi1>, vector<2x64xf32>
    %cst_242 = arith.constant dense<0.000000e+00> : vector<2x64xf32>
    %1003 = tpu.matmul %1002, %998, %cst_242 {dimension_numbers = #tpu.dot_dimension_numbers<[1], [0], [0], [1], [0, 0, 1, 1], [], []>} : vector<2x64xf32>, vector<64x64xf32>, vector<2x64xf32> -> vector<2x64xf32>
    %1004 = vector.extract_strided_slice %1003 {offsets = [0, 0], sizes = [1, 64], strides = [1, 1]} : vector<2x64xf32> to vector<1x64xf32>
    %1005 = vector.extract_strided_slice %1003 {offsets = [1, 0], sizes = [1, 64], strides = [1, 1]} : vector<2x64xf32> to vector<1x64xf32>
    %1006 = tpu.reciprocal %1005 {approx = true} : vector<1x64xf32> -> vector<1x64xf32>
    %1007 = arith.mulf %1004, %1006 : vector<1x64xf32>
    %c23_243 = arith.constant 23 : index
    %c0_244 = arith.constant 0 : index
    %1008 = vector.load %arg13[%c23_243, %c0_244] : memref<24x64xf32, #tpu.memory_space<vmem>>, vector<1x64xf32>
    tpu.vector_store %arg13[%c23_243, %c0_244], %1007 {strides = array<i32>} : memref<24x64xf32, #tpu.memory_space<vmem>>, vector<1x64xf32>,
    %c0_245 = arith.constant 0 : index
    %c0_246 = arith.constant 0 : index
    %1009 = vector.load %arg13[%c0_245, %c0_246] : memref<24x64xf32, #tpu.memory_space<vmem>>, vector<8x64xf32>
    %cst_247 = arith.constant dense<0.000000e+00> : vector<8xf32>
    %1010 = vector.multi_reduction <add>, %1009, %cst_247 [1] : vector<8x64xf32> to vector<8xf32>
    %1011 = vector.shape_cast %1010 : vector<8xf32> to vector<8x1xf32>
    %c8_248 = arith.constant 8 : index
    %c0_249 = arith.constant 0 : index
    %1012 = vector.load %arg13[%c8_248, %c0_249] : memref<24x64xf32, #tpu.memory_space<vmem>>, vector<8x64xf32>
    %cst_250 = arith.constant dense<0.000000e+00> : vector<8xf32>
    %1013 = vector.multi_reduction <add>, %1012, %cst_250 [1] : vector<8x64xf32> to vector<8xf32>
    %1014 = vector.shape_cast %1013 : vector<8xf32> to vector<8x1xf32>
    %c16_251 = arith.constant 16 : index
    %c0_252 = arith.constant 0 : index
    %1015 = vector.load %arg13[%c16_251, %c0_252] : memref<24x64xf32, #tpu.memory_space<vmem>>, vector<8x64xf32>
    %cst_253 = arith.constant dense<0.000000e+00> : vector<8xf32>
    %1016 = vector.multi_reduction <add>, %1015, %cst_253 [1] : vector<8x64xf32> to vector<8xf32>
    %1017 = vector.shape_cast %1016 : vector<8xf32> to vector<8x1xf32>
    %c0_254 = arith.constant 0 : index
    %c0_255 = arith.constant 0 : index
    %1018 = vector.load %arg9[%c0_254, %c0_255] : memref<1x1000xf32, #tpu.memory_space<vmem>>, vector<1x1000xf32>
    %cst_256 = arith.constant dense<0.000000e+00> : vector<8xf32>
    %1019 = vector.multi_reduction <add>, %1, %cst_256 [1] : vector<8x64xf32> to vector<8xf32>
    %1020 = vector.shape_cast %1019 : vector<8xf32> to vector<8x1xf32>
    %c0_257 = arith.constant 0 : index
    %1021 = memref.load %arg7[%c0_257] : memref<3xf32, #tpu.memory_space<smem>>
    %cst_258 = arith.constant 6.400000e+01 : f32
    %1022 = arith.mulf %cst_258, %1021 : f32
    %c0_259 = arith.constant 0 : index
    %1023 = memref.load %arg6[%c0_259] : memref<9xf32, #tpu.memory_space<smem>>
    %1024 = vector.broadcast %1023 : f32 to vector<8x1xf32>
    %1025 = arith.mulf %1024, %1011 : vector<8x1xf32>
    %1026 = vector.broadcast %1022 : f32 to vector<8x1xf32>
    %1027 = arith.addf %1026, %1025 : vector<8x1xf32>
    %c1_260 = arith.constant 1 : index
    %1028 = memref.load %arg6[%c1_260] : memref<9xf32, #tpu.memory_space<smem>>
    %1029 = vector.broadcast %1028 : f32 to vector<8x1xf32>
    %1030 = arith.mulf %1029, %1014 : vector<8x1xf32>
    %1031 = arith.addf %1027, %1030 : vector<8x1xf32>
    %c2_261 = arith.constant 2 : index
    %1032 = memref.load %arg6[%c2_261] : memref<9xf32, #tpu.memory_space<smem>>
    %1033 = vector.broadcast %1032 : f32 to vector<8x1xf32>
    %1034 = arith.mulf %1033, %1017 : vector<8x1xf32>
    %1035 = arith.addf %1031, %1034 : vector<8x1xf32>
    %c0_262 = arith.constant 0 : index
    %c0_263 = arith.constant 0 : index
    %1036 = vector.load %arg3[%c0_262, %c0_263] : memref<8x3xf32, #tpu.memory_space<vmem>>, vector<8x1xf32>
    %1037 = arith.subf %1036, %1020 : vector<8x1xf32>
    %1038 = arith.addf %1037, %1035 : vector<8x1xf32>
    %cst_264 = arith.constant 3.906250e-03 : f32
    %1039 = vector.broadcast %cst_264 : f32 to vector<8x1xf32>
    %1040 = arith.mulf %1038, %1039 : vector<8x1xf32>
    %c0_265 = arith.constant 0 : index
    %c0_266 = arith.constant 0 : index
    %1041 = vector.load %arg8[%c0_265, %c0_266] : memref<3x1000xf32, #tpu.memory_space<vmem>>, vector<1x1000xf32>
    %1042 = vector.broadcast %1040 : vector<8x1xf32> to vector<8x1000xf32>
    %1043 = vector.broadcast %1041 : vector<1x1000xf32> to vector<8x1000xf32>
    %1044 = arith.mulf %1042, %1043 : vector<8x1000xf32>
    %1045 = vector.broadcast %1018 : vector<1x1000xf32> to vector<8x1000xf32>
    %1046 = arith.addf %1045, %1044 : vector<8x1000xf32>
    %cst_267 = arith.constant dense<0.000000e+00> : vector<8xf32>
    %1047 = vector.multi_reduction <add>, %3, %cst_267 [1] : vector<8x64xf32> to vector<8xf32>
    %1048 = vector.shape_cast %1047 : vector<8xf32> to vector<8x1xf32>
    %c1_268 = arith.constant 1 : index
    %1049 = memref.load %arg7[%c1_268] : memref<3xf32, #tpu.memory_space<smem>>
    %cst_269 = arith.constant 6.400000e+01 : f32
    %1050 = arith.mulf %cst_269, %1049 : f32
    %c3_270 = arith.constant 3 : index
    %1051 = memref.load %arg6[%c3_270] : memref<9xf32, #tpu.memory_space<smem>>
    %1052 = vector.broadcast %1051 : f32 to vector<8x1xf32>
    %1053 = arith.mulf %1052, %1011 : vector<8x1xf32>
    %1054 = vector.broadcast %1050 : f32 to vector<8x1xf32>
    %1055 = arith.addf %1054, %1053 : vector<8x1xf32>
    %c4_271 = arith.constant 4 : index
    %1056 = memref.load %arg6[%c4_271] : memref<9xf32, #tpu.memory_space<smem>>
    %1057 = vector.broadcast %1056 : f32 to vector<8x1xf32>
    %1058 = arith.mulf %1057, %1014 : vector<8x1xf32>
    %1059 = arith.addf %1055, %1058 : vector<8x1xf32>
    %c5_272 = arith.constant 5 : index
    %1060 = memref.load %arg6[%c5_272] : memref<9xf32, #tpu.memory_space<smem>>
    %1061 = vector.broadcast %1060 : f32 to vector<8x1xf32>
    %1062 = arith.mulf %1061, %1017 : vector<8x1xf32>
    %1063 = arith.addf %1059, %1062 : vector<8x1xf32>
    %c0_273 = arith.constant 0 : index
    %c1_274 = arith.constant 1 : index
    %1064 = vector.load %arg3[%c0_273, %c1_274] : memref<8x3xf32, #tpu.memory_space<vmem>>, vector<8x1xf32>
    %1065 = arith.subf %1064, %1048 : vector<8x1xf32>
    %1066 = arith.addf %1065, %1063 : vector<8x1xf32>
    %cst_275 = arith.constant 3.906250e-03 : f32
    %1067 = vector.broadcast %cst_275 : f32 to vector<8x1xf32>
    %1068 = arith.mulf %1066, %1067 : vector<8x1xf32>
    %c1_276 = arith.constant 1 : index
    %c0_277 = arith.constant 0 : index
    %1069 = vector.load %arg8[%c1_276, %c0_277] : memref<3x1000xf32, #tpu.memory_space<vmem>>, vector<1x1000xf32>
    %1070 = vector.broadcast %1068 : vector<8x1xf32> to vector<8x1000xf32>
    %1071 = vector.broadcast %1069 : vector<1x1000xf32> to vector<8x1000xf32>
    %1072 = arith.mulf %1070, %1071 : vector<8x1000xf32>
    %1073 = arith.addf %1046, %1072 : vector<8x1000xf32>
    %cst_278 = arith.constant dense<0.000000e+00> : vector<8xf32>
    %1074 = vector.multi_reduction <add>, %5, %cst_278 [1] : vector<8x64xf32> to vector<8xf32>
    %1075 = vector.shape_cast %1074 : vector<8xf32> to vector<8x1xf32>
    %c2_279 = arith.constant 2 : index
    %1076 = memref.load %arg7[%c2_279] : memref<3xf32, #tpu.memory_space<smem>>
    %cst_280 = arith.constant 6.400000e+01 : f32
    %1077 = arith.mulf %cst_280, %1076 : f32
    %c6_281 = arith.constant 6 : index
    %1078 = memref.load %arg6[%c6_281] : memref<9xf32, #tpu.memory_space<smem>>
    %1079 = vector.broadcast %1078 : f32 to vector<8x1xf32>
    %1080 = arith.mulf %1079, %1011 : vector<8x1xf32>
    %1081 = vector.broadcast %1077 : f32 to vector<8x1xf32>
    %1082 = arith.addf %1081, %1080 : vector<8x1xf32>
    %c7_282 = arith.constant 7 : index
    %1083 = memref.load %arg6[%c7_282] : memref<9xf32, #tpu.memory_space<smem>>
    %1084 = vector.broadcast %1083 : f32 to vector<8x1xf32>
    %1085 = arith.mulf %1084, %1014 : vector<8x1xf32>
    %1086 = arith.addf %1082, %1085 : vector<8x1xf32>
    %c8_283 = arith.constant 8 : index
    %1087 = memref.load %arg6[%c8_283] : memref<9xf32, #tpu.memory_space<smem>>
    %1088 = vector.broadcast %1087 : f32 to vector<8x1xf32>
    %1089 = arith.mulf %1088, %1017 : vector<8x1xf32>
    %1090 = arith.addf %1086, %1089 : vector<8x1xf32>
    %c0_284 = arith.constant 0 : index
    %c2_285 = arith.constant 2 : index
    %1091 = vector.load %arg3[%c0_284, %c2_285] : memref<8x3xf32, #tpu.memory_space<vmem>>, vector<8x1xf32>
    %1092 = arith.subf %1091, %1075 : vector<8x1xf32>
    %1093 = arith.addf %1092, %1090 : vector<8x1xf32>
    %cst_286 = arith.constant 3.906250e-03 : f32
    %1094 = vector.broadcast %cst_286 : f32 to vector<8x1xf32>
    %1095 = arith.mulf %1093, %1094 : vector<8x1xf32>
    %c2_287 = arith.constant 2 : index
    %c0_288 = arith.constant 0 : index
    %1096 = vector.load %arg8[%c2_287, %c0_288] : memref<3x1000xf32, #tpu.memory_space<vmem>>, vector<1x1000xf32>
    %1097 = vector.broadcast %1095 : vector<8x1xf32> to vector<8x1000xf32>
    %1098 = vector.broadcast %1096 : vector<1x1000xf32> to vector<8x1000xf32>
    %1099 = arith.mulf %1097, %1098 : vector<8x1000xf32>
    %1100 = arith.addf %1073, %1099 : vector<8x1000xf32>
    %1101 = arith.truncf %1100 : vector<8x1000xf32> to vector<8x1000xbf16>
    %c0_289 = arith.constant 0 : index
    %c0_290 = arith.constant 0 : index
    %1102 = vector.load %arg10[%c0_289, %c0_290] : memref<1000x128xbf16, #tpu.memory_space<vmem>>, vector<1000x128xbf16>
    %cst_291 = arith.constant dense<0.000000e+00> : vector<8x128xf32>
    %1103 = tpu.matmul %1101, %1102, %cst_291 {dimension_numbers = #tpu.dot_dimension_numbers<[1], [0], [0], [1], [0, 0, 1, 1], [], []>} : vector<8x1000xbf16>, vector<1000x128xbf16>, vector<8x128xf32> -> vector<8x128xf32>
    %c0_292 = arith.constant 0 : index
    %c0_293 = arith.constant 0 : index
    %1104 = vector.load %arg11[%c0_292, %c0_293] : memref<1x128xf32, #tpu.memory_space<vmem>>, vector<1x128xf32>
    %1105 = vector.broadcast %1104 : vector<1x128xf32> to vector<8x128xf32>
    %1106 = arith.addf %1103, %1105 : vector<8x128xf32>
    %c0_294 = arith.constant 0 : index
    %c0_295 = arith.constant 0 : index
    %1107 = vector.load %arg12[%c0_294, %c0_295] : memref<8x128xf32, #tpu.memory_space<vmem>>, vector<8x128xf32>
    tpu.vector_store %arg12[%c0_294, %c0_295], %1106 {strides = array<i32>} : memref<8x128xf32, #tpu.memory_space<vmem>>, vector<8x128xf32>,
    return
  }
  func.func @transform_0(%arg0: i32) -> (i32, i32, i32) {
    %c0_i32 = arith.constant 0 : i32
    %c0_i32_0 = arith.constant 0 : i32
    %c0_i32_1 = arith.constant 0 : i32
    return %c0_i32, %arg0, %c0_i32_0 : i32, i32, i32
  }
  func.func @transform_1(%arg0: i32) -> (i32, i32, i32) {
    %c0_i32 = arith.constant 0 : i32
    %c0_i32_0 = arith.constant 0 : i32
    %c0_i32_1 = arith.constant 0 : i32
    return %arg0, %c0_i32, %c0_i32_0 : i32, i32, i32
  }
  func.func @transform_2(%arg0: i32) -> (i32, i32) {
    %c0_i32 = arith.constant 0 : i32
    %c0_i32_0 = arith.constant 0 : i32
    return %arg0, %c0_i32 : i32, i32
  }
  func.func @transform_3(%arg0: i32) -> i32 {
    %c0_i32 = arith.constant 0 : i32
    %c0_i32_0 = arith.constant 0 : i32
    return %c0_i32 : i32
  }
  func.func @transform_4(%arg0: i32) -> i32 {
    %c0_i32 = arith.constant 0 : i32
    %c0_i32_0 = arith.constant 0 : i32
    return %c0_i32 : i32
  }
  func.func @transform_5(%arg0: i32) -> i32 {
    %c0_i32 = arith.constant 0 : i32
    %c0_i32_0 = arith.constant 0 : i32
    return %c0_i32 : i32
  }
  func.func @transform_6(%arg0: i32) -> i32 {
    %c0_i32 = arith.constant 0 : i32
    %c0_i32_0 = arith.constant 0 : i32
    return %c0_i32 : i32
  }
  func.func @transform_7(%arg0: i32) -> (i32, i32) {
    %c0_i32 = arith.constant 0 : i32
    %c0_i32_0 = arith.constant 0 : i32
    %c0_i32_1 = arith.constant 0 : i32
    return %c0_i32, %c0_i32_0 : i32, i32
  }
  func.func @transform_8(%arg0: i32) -> (i32, i32) {
    %c0_i32 = arith.constant 0 : i32
    %c0_i32_0 = arith.constant 0 : i32
    %c0_i32_1 = arith.constant 0 : i32
    return %c0_i32, %c0_i32_0 : i32, i32
  }
  func.func @transform_9(%arg0: i32) -> (i32, i32) {
    %c0_i32 = arith.constant 0 : i32
    %c0_i32_0 = arith.constant 0 : i32
    %c0_i32_1 = arith.constant 0 : i32
    return %c0_i32, %c0_i32_0 : i32, i32
  }
  func.func @transform_10(%arg0: i32) -> (i32, i32) {
    %c0_i32 = arith.constant 0 : i32
    %c0_i32_0 = arith.constant 0 : i32
    %c0_i32_1 = arith.constant 0 : i32
    return %c0_i32, %c0_i32_0 : i32, i32
  }
  func.func @transform_11(%arg0: i32) -> (i32, i32) {
    %c0_i32 = arith.constant 0 : i32
    %c0_i32_0 = arith.constant 0 : i32
    return %arg0, %c0_i32 : i32, i32
  }
}

</mosaic_0001>

<llo_original>
// kernel: roi_attention_nfnet_forward.1
$region0: #{roi_attention_nfnet_forward.1}
  #allocation0 [shape = 'u32[]', space=smem, size = 0x4, offset = 0x4, fixed_abs, tag = 'smem constant byte address 0x4 - core index']
  #allocation1 [shape = 'u32[144,128]{1,0:T(1,128)}', space=vmem, size = 0x12000, scoped, tag = 'internal scratch']
  #allocation2 [shape = 'f32[24,64]{1,0:T(8,128)}', space=vmem, size = 0x3000, scoped, tag = 'scratch operand']
  %s0 = inlined_call_operand.vmem [shape: f32[3,8,64], index: 0, kind: input, shape index: {}]
  %s1 = inlined_call_operand.vmem [shape: f32[8,64,3], index: 1, kind: input, shape index: {}]
  %s2 = inlined_call_operand.vmem [shape: f32[8,3], index: 2, kind: input, shape index: {}]
  %s3 = inlined_call_operand.vmem [shape: f32[27], index: 3, kind: input, shape index: {}]
  %s4 = inlined_call_operand.vmem [shape: f32[9], index: 4, kind: input, shape index: {}]
  %s5 = inlined_call_operand.vmem [shape: f32[9], index: 5, kind: input, shape index: {}]
  %s6 = inlined_call_operand.vmem [shape: f32[3], index: 6, kind: input, shape index: {}]
  %s7 = inlined_call_operand.vmem [shape: f32[3,1000], index: 7, kind: input, shape index: {}]
  %s8 = inlined_call_operand.vmem [shape: f32[1,1000], index: 8, kind: input, shape index: {}]
  %s9 = inlined_call_operand.vmem [shape: bf16[1000,128], index: 9, kind: input, shape index: {}]
  %s10 = inlined_call_operand.vmem [shape: f32[1,128], index: 10, kind: input, shape index: {}]
  %s11 = inlined_call_operand.vmem [shape: f32[8,128], index: 11, kind: output, shape index: {}]
  %s12 = sld [smem:[#allocation0]]
  $region70: #{roi_attention_nfnet_forward.1} parent=0
    _
  %s14 = ssub.s32 1, %s12
  %s15 = scalar_select 0, %s14, %s12
  $region1: #{roi_attention_nfnet_forward.1} parent=0
    #allocation3 [shape = 'u8[512]{0}', space=smem, size = 0x200, scoped, tag = 'input window, operand 3, single buffered']
    #allocation4 [shape = 's32[1]{0}', space=sflag, size = 0x4, scoped, tag = 'scoped memory for roi_attention_nfnet_forward.1']
    #allocation5 [shape = 'u8[512]{0}', space=smem, size = 0x200, scoped, tag = 'input window, operand 4, single buffered']
    #allocation6 [shape = 's32[1]{0}', space=sflag, size = 0x4, scoped, tag = 'scoped memory for roi_attention_nfnet_forward.1']
    #allocation7 [shape = 'u8[512]{0}', space=smem, size = 0x200, scoped, tag = 'input window, operand 5, single buffered']
    #allocation8 [shape = 'u8[512]{0}', space=smem, size = 0x200, scoped, tag = 'input window, operand 6, single buffered']
    #allocation9 [shape = 's32[1]{0}', space=sflag, size = 0x4, scoped, tag = 'scoped memory for roi_attention_nfnet_forward.1']
    %16 = vsyncpa [#allocation4], 0
    %17 = vsyncpa [#allocation6], 0
    %18 = vsyncpa [#allocation9], 0
    // Predicated region
    $region2: #{roi_attention_nfnet_forward.1} parent=1 // pred_check
      _
    $region3: #{roi_attention_nfnet_forward.1} parent=1 // pred_check_branch
      %20 = sbr.rel (0) target = $region5
    $region4: #{roi_attention_nfnet_forward.1} parent=1 // pred_region
      _
    $region5: #{roi_attention_nfnet_forward.1} parent=1 // pred_fallthru
      _
    // Predicated region
    $region6: #{roi_attention_nfnet_forward.1} parent=1 // pred_check
      _
    $region7: #{roi_attention_nfnet_forward.1} parent=1 // pred_check_branch
      %22 = sbr.rel (0) target = $region9
    $region8: #{roi_attention_nfnet_forward.1} parent=1 // pred_region
      _
    $region9: #{roi_attention_nfnet_forward.1} parent=1 // pred_fallthru
      _
    // Predicated region
    $region10: #{roi_attention_nfnet_forward.1} parent=1 // pred_check
      _
    $region11: #{roi_attention_nfnet_forward.1} parent=1 // pred_check_branch
      %24 = sbr.rel (0) target = $region13
    $region12: #{roi_attention_nfnet_forward.1} parent=1 // pred_region
      _
    $region13: #{roi_attention_nfnet_forward.1} parent=1 // pred_fallthru
      _
    // Predicated region
    $region14: #{roi_attention_nfnet_forward.1} parent=1 // pred_check
      _
    $region15: #{roi_attention_nfnet_forward.1} parent=1 // pred_check_branch
      %26 = sbr.rel (0) target = $region17
    $region16: #{roi_attention_nfnet_forward.1} parent=1 // pred_region
      %s28 = ssub.s32 16, 16
      %29 = vsyncadd [#allocation4], %s28
      %s31 = sshll.u32 %s3, 4
      %s32 = int_to_ptr.vmem [resolvable:$true] %s31
      %34 = dma.vmem_to_smem %s32, 16, [#allocation3], [#allocation4]
    $region17: #{roi_attention_nfnet_forward.1} parent=1 // pred_fallthru
      _
    // Predicated region
    $region18: #{roi_attention_nfnet_forward.1} parent=1 // pred_check
      _
    $region19: #{roi_attention_nfnet_forward.1} parent=1 // pred_check_branch
      %36 = sbr.rel (0) target = $region21
    $region20: #{roi_attention_nfnet_forward.1} parent=1 // pred_region
      %s38 = ssub.s32 16, 16
      %39 = vsyncadd [#allocation6], %s38
      %s41 = sshll.u32 %s4, 4
      %s42 = int_to_ptr.vmem [resolvable:$true] %s41
      %44 = dma.vmem_to_smem %s42, 16, [#allocation5], [#allocation6]
    $region21: #{roi_attention_nfnet_forward.1} parent=1 // pred_fallthru
      _
    // Predicated region
    $region22: #{roi_attention_nfnet_forward.1} parent=1 // pred_check
      _
    $region23: #{roi_attention_nfnet_forward.1} parent=1 // pred_check_branch
      %46 = sbr.rel (0) target = $region25
    $region24: #{roi_attention_nfnet_forward.1} parent=1 // pred_region
      %s48 = ssub.s32 16, 16
      %49 = vsyncadd [#allocation6], %s48
      %s51 = sshll.u32 %s5, 4
      %s52 = int_to_ptr.vmem [resolvable:$true] %s51
      %54 = dma.vmem_to_smem %s52, 16, [#allocation7], [#allocation6]
    $region25: #{roi_attention_nfnet_forward.1} parent=1 // pred_fallthru
      _
    // Predicated region
    $region26: #{roi_attention_nfnet_forward.1} parent=1 // pred_check
      _
    $region27: #{roi_attention_nfnet_forward.1} parent=1 // pred_check_branch
      %56 = sbr.rel (0) target = $region29
    $region28: #{roi_attention_nfnet_forward.1} parent=1 // pred_region
      %s58 = ssub.s32 16, 16
      %59 = vsyncadd [#allocation9], %s58
      %s61 = sshll.u32 %s6, 4
      %s62 = int_to_ptr.vmem [resolvable:$true] %s61
      %64 = dma.vmem_to_smem %s62, 16, [#allocation8], [#allocation9]
    $region29: #{roi_attention_nfnet_forward.1} parent=1 // pred_fallthru
      _
    // Predicated region
    $region30: #{roi_attention_nfnet_forward.1} parent=1 // pred_check
      _
    $region31: #{roi_attention_nfnet_forward.1} parent=1 // pred_check_branch
      %66 = sbr.rel (0) target = $region33
    $region32: #{roi_attention_nfnet_forward.1} parent=1 // pred_region
      _
    $region33: #{roi_attention_nfnet_forward.1} parent=1 // pred_fallthru
      _
    // Predicated region
    $region34: #{roi_attention_nfnet_forward.1} parent=1 // pred_check
      _
    $region35: #{roi_attention_nfnet_forward.1} parent=1 // pred_check_branch
      %68 = sbr.rel (0) target = $region37
    $region36: #{roi_attention_nfnet_forward.1} parent=1 // pred_region
      _
    $region37: #{roi_attention_nfnet_forward.1} parent=1 // pred_fallthru
      _
    // Predicated region
    $region38: #{roi_attention_nfnet_forward.1} parent=1 // pred_check
      _
    $region39: #{roi_attention_nfnet_forward.1} parent=1 // pred_check_branch
      %70 = sbr.rel (0) target = $region41
    $region40: #{roi_attention_nfnet_forward.1} parent=1 // pred_region
      _
    $region41: #{roi_attention_nfnet_forward.1} parent=1 // pred_fallthru
      _
    // Predicated region
    $region42: #{roi_attention_nfnet_forward.1} parent=1 // pred_check
      _
    $region43: #{roi_attention_nfnet_forward.1} parent=1 // pred_check_branch
      %72 = sbr.rel (0) target = $region45
    $region44: #{roi_attention_nfnet_forward.1} parent=1 // pred_region
      _
    $region45: #{roi_attention_nfnet_forward.1} parent=1 // pred_fallthru
      _
    // Predicated region
    $region46: #{roi_attention_nfnet_forward.1} parent=1 // pred_check
      _
    $region47: #{roi_attention_nfnet_forward.1} parent=1 // pred_check_branch
      %74 = sbr.rel (0) target = $region49
    $region48: #{roi_attention_nfnet_forward.1} parent=1 // pred_region
      %75 = dma.done [#allocation4], 16
    $region49: #{roi_attention_nfnet_forward.1} parent=1 // pred_fallthru
      _
    // Predicated region
    $region50: #{roi_attention_nfnet_forward.1} parent=1 // pred_check
      _
    $region51: #{roi_attention_nfnet_forward.1} parent=1 // pred_check_branch
      %77 = sbr.rel (0) target = $region53
    $region52: #{roi_attention_nfnet_forward.1} parent=1 // pred_region
      %78 = dma.done [#allocation6], 16
    $region53: #{roi_attention_nfnet_forward.1} parent=1 // pred_fallthru
      _
    // Predicated region
    $region54: #{roi_attention_nfnet_forward.1} parent=1 // pred_check
      _
    $region55: #{roi_attention_nfnet_forward.1} parent=1 // pred_check_branch
      %80 = sbr.rel (0) target = $region57
    $region56: #{roi_attention_nfnet_forward.1} parent=1 // pred_region
      %81 = dma.done [#allocation6], 16
    $region57: #{roi_attention_nfnet_forward.1} parent=1 // pred_fallthru
      _
    // Predicated region
    $region58: #{roi_attention_nfnet_forward.1} parent=1 // pred_check
      _
    $region59: #{roi_attention_nfnet_forward.1} parent=1 // pred_check_branch
      %83 = sbr.rel (0) target = $region61
    $region60: #{roi_attention_nfnet_forward.1} parent=1 // pred_region
      %84 = dma.done [#allocation9], 16
    $region61: #{roi_attention_nfnet_forward.1} parent=1 // pred_fallthru
      _
    %85 = sfence
    %v87 = vld [vmem:[%s0] sm:$0xff]
    %s88 = scalar_lea.vmem %s0, 8
    %v89 = vld [vmem:[%s88] sm:$0xff]
    %s90 = scalar_lea.vmem %s0, 16
    %v91 = vld [vmem:[%s90] sm:$0xff]
    %s92 = sld [smem:[#allocation5]]
    %s93 = sld [smem:[#allocation3]]
    %v94 = vstv %s93
    %v95 = vmul.f32 %v94, %v87
    %v96 = vstv %s92
    %v97 = vadd.f32 %v96, %v95
    %s98 = sld [smem:[#allocation3 + $0x1]]
    %v99 = vstv %s98
    %v100 = vmul.f32 %v99, %v89
    %v101 = vadd.f32 %v97, %v100
    %s102 = sld [smem:[#allocation3 + $0x2]]
    %v103 = vstv %s102
    %v104 = vmul.f32 %v103, %v91
    %v105 = vadd.f32 %v101, %v104
    %s106 = sld [smem:[#allocation5 + $0x1]]
    %s107 = sld [smem:[#allocation3 + $0x3]]
    %v108 = vstv %s107
    %v109 = vmul.f32 %v108, %v87
    %v110 = vstv %s106
    %v111 = vadd.f32 %v110, %v109
    %s112 = sld [smem:[#allocation3 + $0x4]]
    %v113 = vstv %s112
    %v114 = vmul.f32 %v113, %v89
    %v115 = vadd.f32 %v111, %v114
    %s116 = sld [smem:[#allocation3 + $0x5]]
    %v117 = vstv %s116
    %v118 = vmul.f32 %v117, %v91
    %v119 = vadd.f32 %v115, %v118
    %s120 = sld [smem:[#allocation5 + $0x2]]
    %s121 = sld [smem:[#allocation3 + $0x6]]
    %v122 = vstv %s121
    %v123 = vmul.f32 %v122, %v87
    %v124 = vstv %s120
    %v125 = vadd.f32 %v124, %v123
    %s126 = sld [smem:[#allocation3 + $0x7]]
    %v127 = vstv %s126
    %v128 = vmul.f32 %v127, %v89
    %v129 = vadd.f32 %v125, %v128
    %s130 = sld [smem:[#allocation3 + $0x8]]
    %v131 = vstv %s130
    %v132 = vmul.f32 %v131, %v91
    %v133 = vadd.f32 %v129, %v132
    %s134 = sld [smem:[#allocation5 + $0x3]]
    %s135 = sld [smem:[#allocation3 + $0x9]]
    %v136 = vstv %s135
    %v137 = vmul.f32 %v136, %v87
    %v138 = vstv %s134
    %v139 = vadd.f32 %v138, %v137
    %s140 = sld [smem:[#allocation3 + $0xa]]
    %v141 = vstv %s140
    %v142 = vmul.f32 %v141, %v89
    %v143 = vadd.f32 %v139, %v142
    %s144 = sld [smem:[#allocation3 + $0xb]]
    %v145 = vstv %s144
    %v146 = vmul.f32 %v145, %v91
    %v147 = vadd.f32 %v143, %v146
    %s148 = sld [smem:[#allocation5 + $0x4]]
    %s149 = sld [smem:[#allocation3 + $0xc]]
    %v150 = vstv %s149
    %v151 = vmul.f32 %v150, %v87
    %v152 = vstv %s148
    %v153 = vadd.f32 %v152, %v151
    %s154 = sld [smem:[#allocation3 + $0xd]]
    %v155 = vstv %s154
    %v156 = vmul.f32 %v155, %v89
    %v157 = vadd.f32 %v153, %v156
    %s158 = sld [smem:[#allocation3 + $0xe]]
    %v159 = vstv %s158
    %v160 = vmul.f32 %v159, %v91
    %v161 = vadd.f32 %v157, %v160
    %s162 = sld [smem:[#allocation5 + $0x5]]
    %s163 = sld [smem:[#allocation3 + $0xf]]
    %v164 = vstv %s163
    %v165 = vmul.f32 %v164, %v87
    %v166 = vstv %s162
    %v167 = vadd.f32 %v166, %v165
    %s168 = sld [smem:[#allocation3 + $0x10]]
    %v169 = vstv %s168
    %v170 = vmul.f32 %v169, %v89
    %v171 = vadd.f32 %v167, %v170
    %s172 = sld [smem:[#allocation3 + $0x11]]
    %v173 = vstv %s172
    %v174 = vmul.f32 %v173, %v91
    %v175 = vadd.f32 %v171, %v174
    %s176 = sld [smem:[#allocation5 + $0x6]]
    %s177 = sld [smem:[#allocation3 + $0x12]]
    %v178 = vstv %s177
    %v179 = vmul.f32 %v178, %v87
    %v180 = vstv %s176
    %v181 = vadd.f32 %v180, %v179
    %s182 = sld [smem:[#allocation3 + $0x13]]
    %v183 = vstv %s182
    %v184 = vmul.f32 %v183, %v89
    %v185 = vadd.f32 %v181, %v184
    %s186 = sld [smem:[#allocation3 + $0x14]]
    %v187 = vstv %s186
    %v188 = vmul.f32 %v187, %v91
    %v189 = vadd.f32 %v185, %v188
    %s190 = sld [smem:[#allocation5 + $0x7]]
    %s191 = sld [smem:[#allocation3 + $0x15]]
    %v192 = vstv %s191
    %v193 = vmul.f32 %v192, %v87
    %v194 = vstv %s190
    %v195 = vadd.f32 %v194, %v193
    %s196 = sld [smem:[#allocation3 + $0x16]]
    %v197 = vstv %s196
    %v198 = vmul.f32 %v197, %v89
    %v199 = vadd.f32 %v195, %v198
    %s200 = sld [smem:[#allocation3 + $0x17]]
    %v201 = vstv %s200
    %v202 = vmul.f32 %v201, %v91
    %v203 = vadd.f32 %v199, %v202
    %s204 = sld [smem:[#allocation5 + $0x8]]
    %s205 = sld [smem:[#allocation3 + $0x18]]
    %v206 = vstv %s205
    %v207 = vmul.f32 %v206, %v87
    %v208 = vstv %s204
    %v209 = vadd.f32 %v208, %v207
    %s210 = sld [smem:[#allocation3 + $0x19]]
    %v211 = vstv %s210
    %v212 = vmul.f32 %v211, %v89
    %v213 = vadd.f32 %v209, %v212
    %s214 = sld [smem:[#allocation3 + $0x1a]]
    %v215 = vstv %s214
    %v216 = vmul.f32 %v215, %v91
    %v217 = vadd.f32 %v213, %v216
    %vm218 = vcmask 523264
    %v219 = vsel %vm218, %v147, -inf
    %220 = vmax.xlane.f32.xlu0 %v219
    %v221 = vpop.xlane.xlu0 %220
    %v222 = vsel %vm218, %v147, inf
    %223 = vmin.xlane.f32.xlu0 %v222
    %v224 = vpop.xlane.xlu0 %223
    %vm225 = vcmp.ge.f32.partialorder %v105, 0.0
    %v226 = vsel %vm225, %v221, %v224
    %v227 = vmul.f32 %v105, %v226
    %v228 = vsel %vm218, %v161, -inf
    %229 = vmax.xlane.f32.xlu0 %v228
    %v230 = vpop.xlane.xlu0 %229
    %v231 = vsel %vm218, %v161, inf
    %232 = vmin.xlane.f32.xlu0 %v231
    %v233 = vpop.xlane.xlu0 %232
    %vm234 = vcmp.ge.f32.partialorder %v119, 0.0
    %v235 = vsel %vm234, %v230, %v233
    %v236 = vmul.f32 %v119, %v235
    %v237 = vsel %vm218, %v175, -inf
    %238 = vmax.xlane.f32.xlu0 %v237
    %v239 = vpop.xlane.xlu0 %238
    %v240 = vsel %vm218, %v175, inf
    %241 = vmin.xlane.f32.xlu0 %v240
    %v242 = vpop.xlane.xlu0 %241
    %vm243 = vcmp.ge.f32.partialorder %v133, 0.0
    %v244 = vsel %vm243, %v239, %v242
    %v245 = vmul.f32 %v133, %v244
    %v246 = vlaneseq
    %v247 = vshrl.u32 %v246, 7
    %vm248 = vcmp.eq.s32.totalorder %v247, 0
    %v249 = vld [vmem:[%s1] sm:$0xff]
    %v250 = vld [vmem:[%s1 + $0x8] sm:$0xff]
    %v251 = vld [vmem:[%s1 + $0x10] sm:$0xff]
    %v252 = vld [vmem:[%s1 + $0x18] sm:$0xff]
    %v253 = vld [vmem:[%s1 + $0x20] sm:$0xff]
    %v254 = vld [vmem:[%s1 + $0x28] sm:$0xff]
    %v255 = vld [vmem:[%s1 + $0x30] sm:$0xff]
    %v256 = vld [vmem:[%s1 + $0x38] sm:$0xff]
    %v257 = vmul.f32 %v136, %v249
    %v258 = vmul.f32 %v136, %v250
    %v259 = vmul.f32 %v136, %v251
    %v260 = vmul.f32 %v136, %v252
    %v261 = vmul.f32 %v136, %v253
    %v262 = vmul.f32 %v136, %v254
    %v263 = vmul.f32 %v136, %v255
    %v264 = vmul.f32 %v136, %v256
    %v265 = vadd.f32 %v138, %v257
    %v266 = vadd.f32 %v138, %v258
    %v267 = vadd.f32 %v138, %v259
    %v268 = vadd.f32 %v138, %v260
    %v269 = vadd.f32 %v138, %v261
    %v270 = vadd.f32 %v138, %v262
    %v271 = vadd.f32 %v138, %v263
    %v272 = vadd.f32 %v138, %v264
    %v273 = vmul.f32 %v141, %v249
    %v274 = vmul.f32 %v141, %v250
    %v275 = vmul.f32 %v141, %v251
    %v276 = vmul.f32 %v141, %v252
    %v277 = vmul.f32 %v141, %v253
    %v278 = vmul.f32 %v141, %v254
    %v279 = vmul.f32 %v141, %v255
    %v280 = vmul.f32 %v141, %v256
    %289 = vrot.lane.b32.xlu0 %v273, 127
    %v290 = vpop.permute.xlu0 %289
    %291 = vrot.lane.b32.xlu0 %v274, 127
    %v292 = vpop.permute.xlu0 %291
    %293 = vrot.lane.b32.xlu0 %v275, 127
    %v294 = vpop.permute.xlu0 %293
    %295 = vrot.lane.b32.xlu0 %v276, 127
    %v296 = vpop.permute.xlu0 %295
    %297 = vrot.lane.b32.xlu0 %v277, 127
    %v298 = vpop.permute.xlu0 %297
    %299 = vrot.lane.b32.xlu0 %v278, 127
    %v300 = vpop.permute.xlu0 %299
    %301 = vrot.lane.b32.xlu0 %v279, 127
    %v302 = vpop.permute.xlu0 %301
    %303 = vrot.lane.b32.xlu0 %v280, 127
    %v304 = vpop.permute.xlu0 %303
    %v313 = vadd.f32 %v265, %v290
    %v314 = vadd.f32 %v266, %v292
    %v315 = vadd.f32 %v267, %v294
    %v316 = vadd.f32 %v268, %v296
    %v317 = vadd.f32 %v269, %v298
    %v318 = vadd.f32 %v270, %v300
    %v319 = vadd.f32 %v271, %v302
    %v320 = vadd.f32 %v272, %v304
    %v321 = vmul.f32 %v145, %v249
    %v322 = vmul.f32 %v145, %v250
    %v323 = vmul.f32 %v145, %v251
    %v324 = vmul.f32 %v145, %v252
    %v325 = vmul.f32 %v145, %v253
    %v326 = vmul.f32 %v145, %v254
    %v327 = vmul.f32 %v145, %v255
    %v328 = vmul.f32 %v145, %v256
    %337 = vrot.lane.b32.xlu0 %v321, 126
    %v338 = vpop.permute.xlu0 %337
    %339 = vrot.lane.b32.xlu0 %v322, 126
    %v340 = vpop.permute.xlu0 %339
    %341 = vrot.lane.b32.xlu0 %v323, 126
    %v342 = vpop.permute.xlu0 %341
    %343 = vrot.lane.b32.xlu0 %v324, 126
    %v344 = vpop.permute.xlu0 %343
    %345 = vrot.lane.b32.xlu0 %v325, 126
    %v346 = vpop.permute.xlu0 %345
    %347 = vrot.lane.b32.xlu0 %v326, 126
    %v348 = vpop.permute.xlu0 %347
    %349 = vrot.lane.b32.xlu0 %v327, 126
    %v350 = vpop.permute.xlu0 %349
    %351 = vrot.lane.b32.xlu0 %v328, 126
    %v352 = vpop.permute.xlu0 %351
    %v361 = vadd.f32 %v313, %v338
    %v362 = vadd.f32 %v314, %v340
    %v363 = vadd.f32 %v315, %v342
    %v364 = vadd.f32 %v316, %v344
    %v365 = vadd.f32 %v317, %v346
    %v366 = vadd.f32 %v318, %v348
    %v367 = vadd.f32 %v319, %v350
    %v368 = vadd.f32 %v320, %v352
    %370 = vset.pattern.permute.xlu0 0
    %371 = vperm.xlu0 %370, %v361
    %v372 = vpop.permute.xlu0 %371
    %375 = vset.pattern.permute.xlu0 0
    %376 = vperm.xlu0 %375, %v362
    %v377 = vpop.permute.xlu0 %376
    %380 = vset.pattern.permute.xlu0 0
    %381 = vperm.xlu0 %380, %v363
    %v382 = vpop.permute.xlu0 %381
    %385 = vset.pattern.permute.xlu0 0
    %386 = vperm.xlu0 %385, %v364
    %v387 = vpop.permute.xlu0 %386
    %390 = vset.pattern.permute.xlu0 0
    %391 = vperm.xlu0 %390, %v365
    %v392 = vpop.permute.xlu0 %391
    %395 = vset.pattern.permute.xlu0 0
    %396 = vperm.xlu0 %395, %v366
    %v397 = vpop.permute.xlu0 %396
    %400 = vset.pattern.permute.xlu0 0
    %401 = vperm.xlu0 %400, %v367
    %v402 = vpop.permute.xlu0 %401
    %405 = vset.pattern.permute.xlu0 0
    %406 = vperm.xlu0 %405, %v368
    %v407 = vpop.permute.xlu0 %406
    %v409 = vlaneseq
    %v410 = vshrl.u32 %v409, 7
    %v411 = vsub.s32 0, %v410
    %v412 = vrot.slane %v105, %v411
    %v413 = vmul.f32 %v372, %v412
    %v414 = vmul.f32 %v377, %v412
    %v415 = vmul.f32 %v382, %v412
    %v416 = vmul.f32 %v387, %v412
    %v417 = vmul.f32 %v392, %v412
    %v418 = vmul.f32 %v397, %v412
    %v419 = vmul.f32 %v402, %v412
    %v420 = vmul.f32 %v407, %v412
    %v421 = vlaneseq
    %v422 = vshrl.u32 %v421, 7
    %v423 = vsub.s32 0, %v422
    %v424 = vrot.slane %v227, %v423
    %v425 = vsub.f32 %v413, %v424
    %v426 = vsub.f32 %v414, %v424
    %v427 = vsub.f32 %v415, %v424
    %v428 = vsub.f32 %v416, %v424
    %v429 = vsub.f32 %v417, %v424
    %v430 = vsub.f32 %v418, %v424
    %v431 = vsub.f32 %v419, %v424
    %v432 = vsub.f32 %v420, %v424
    %v433 = vmul.f32 %v425, 1.442695
    %v434 = vpow.pop %v433
    %v435 = vmul.f32 %v426, 1.442695
    %v436 = vpow.pop %v435
    %v437 = vmul.f32 %v427, 1.442695
    %v438 = vpow.pop %v437
    %v439 = vmul.f32 %v428, 1.442695
    %v440 = vpow.pop %v439
    %v441 = vmul.f32 %v429, 1.442695
    %v442 = vpow.pop %v441
    %v443 = vmul.f32 %v430, 1.442695
    %v444 = vpow.pop %v443
    %v445 = vmul.f32 %v431, 1.442695
    %v446 = vpow.pop %v445
    %v447 = vmul.f32 %v432, 1.442695
    %v448 = vpow.pop %v447
    %v449 = vlaneseq
    %v450 = vshrl.u32 %v449, 7
    %v451 = vsub.s32 0, %v450
    %v452 = vrot.slane %v189, %v451
    %v453 = vsel %vm248, %v452, 1.0
    %v455 = vsel %vm218, %v453, 0
    %457 = vmatprep.subr.mxu0 0.0
    %458 = vmatpush1.msra.mxu0 0.0
    %459 = vmatprep.subr.mxu0 0.0
    %460 = vmatpush1.msra.mxu0 0.0
    %461 = vmatprep.subr.mxu0 0.0
    %462 = vmatpush1.msra.mxu0 0.0
    %463 = vmatprep.subr.mxu0 0.0
    %464 = vmatpush1.msra.mxu0 0.0
    %465 = vmatprep.subr.mxu0 0.0
    %466 = vmatpush1.msra.mxu0 0.0
    %467 = vmatprep.subr.mxu0 0.0
    %468 = vmatpush1.msra.mxu0 0.0
    %469 = vmatprep.subr.mxu0 0.0
    %470 = vmatpush1.msra.mxu0 0.0
    %471 = vmatprep.subr.mxu0 0.0
    %472 = vmatpush1.msra.mxu0 0.0
    %473 = vmatprep.subr.mxu0 0.0
    %474 = vmatpush1.msra.mxu0 %v448
    %475 = vmatprep.subr.mxu0 0.0
    %476 = vmatpush1.msra.mxu0 %v446
    %477 = vmatprep.subr.mxu0 0.0
    %478 = vmatpush1.msra.mxu0 %v444
    %479 = vmatprep.subr.mxu0 0.0
    %480 = vmatpush1.msra.mxu0 %v442
    %481 = vmatprep.subr.mxu0 0.0
    %482 = vmatpush1.msra.mxu0 %v440
    %483 = vmatprep.subr.mxu0 0.0
    %484 = vmatpush1.msra.mxu0 %v438
    %485 = vmatprep.subr.mxu0 0.0
    %486 = vmatpush1.msra.mxu0 %v436
    %487 = vmatprep.subr.mxu0 0.0
    %488 = vmatpush1.msra.mxu0 %v434
    %489 = vmatprep.subr.mxu0 0.0
    %490 = vmatpush2.msra.mxu0 0.0
    %491 = vmatprep.subr.mxu0 0.0
    %492 = vmatpush2.msra.mxu0 0.0
    %493 = vmatprep.subr.mxu0 0.0
    %494 = vmatpush2.msra.mxu0 0.0
    %495 = vmatprep.subr.mxu0 0.0
    %496 = vmatpush2.msra.mxu0 0.0
    %497 = vmatprep.subr.mxu0 0.0
    %498 = vmatpush2.msra.mxu0 0.0
    %499 = vmatprep.subr.mxu0 0.0
    %500 = vmatpush2.msra.mxu0 0.0
    %501 = vmatprep.subr.mxu0 0.0
    %502 = vmatpush2.msra.mxu0 0.0
    %503 = vmatprep.subr.mxu0 0.0
    %504 = vmatpush2.msra.mxu0 0.0
    %505 = vmatprep.subr.mxu0 0.0
    %506 = vmatpush2.msra.mxu0 0.0
    %507 = vmatprep.subr.mxu0 0.0
    %508 = vmatpush2.msra.mxu0 0.0
    %509 = vmatprep.subr.mxu0 0.0
    %510 = vmatpush2.msra.mxu0 0.0
    %511 = vmatprep.subr.mxu0 0.0
    %512 = vmatpush2.msra.mxu0 0.0
    %513 = vmatprep.subr.mxu0 0.0
    %514 = vmatpush2.msra.mxu0 0.0
    %515 = vmatprep.subr.mxu0 0.0
    %516 = vmatpush2.msra.mxu0 0.0
    %517 = vmatprep.subr.mxu0 0.0
    %518 = vmatpush2.msra.mxu0 0.0
    %519 = vmatprep.subr.mxu0 0.0
    %520 = vmatpush2.msra.mxu0 0.0
    %521 = vmatprep.mubr.f32.mxu0 0.0
    %522 = vmatmul.mubr.f32.gmra.mxu0 %v455
    %v523 = vpop.f32.mrf.mxu0
    %v524 = vadd.f32 0.0, %v523
    %v525 = vpop.f32.mrf.mxu0
    %526 = vdwg.mxu0
    %v527 = vrcp.pop %v524
    %v529 = vrot.slane %v527, 1
    %v531 = vmul.f32 %v524, %v529
    %vm532 = vcmask 516096
    %533 = vst.msk [vmem:[#allocation2] sm:$0x1] %vm532, %v531
    %s534 = sld [smem:[#allocation5 + $0x4]]
    %s535 = sld [smem:[#allocation3 + $0xc]]
    %v536 = vstv %s535
    %v537 = vmul.f32 %v536, %v249
    %v538 = vmul.f32 %v536, %v250
    %v539 = vmul.f32 %v536, %v251
    %v540 = vmul.f32 %v536, %v252
    %v541 = vmul.f32 %v536, %v253
    %v542 = vmul.f32 %v536, %v254
    %v543 = vmul.f32 %v536, %v255
    %v544 = vmul.f32 %v536, %v256
    %v545 = vstv %s534
    %v546 = vadd.f32 %v545, %v537
    %v547 = vadd.f32 %v545, %v538
    %v548 = vadd.f32 %v545, %v539
    %v549 = vadd.f32 %v545, %v540
    %v550 = vadd.f32 %v545, %v541
    %v551 = vadd.f32 %v545, %v542
    %v552 = vadd.f32 %v545, %v543
    %v553 = vadd.f32 %v545, %v544
    %s554 = sld [smem:[#allocation3 + $0xd]]
    %v555 = vstv %s554
    %v556 = vmul.f32 %v555, %v249
    %v557 = vmul.f32 %v555, %v250
    %v558 = vmul.f32 %v555, %v251
    %v559 = vmul.f32 %v555, %v252
    %v560 = vmul.f32 %v555, %v253
    %v561 = vmul.f32 %v555, %v254
    %v562 = vmul.f32 %v555, %v255
    %v563 = vmul.f32 %v555, %v256
    %572 = vrot.lane.b32.xlu0 %v556, 127
    %v573 = vpop.permute.xlu0 %572
    %574 = vrot.lane.b32.xlu0 %v557, 127
    %v575 = vpop.permute.xlu0 %574
    %576 = vrot.lane.b32.xlu0 %v558, 127
    %v577 = vpop.permute.xlu0 %576
    %578 = vrot.lane.b32.xlu0 %v559, 127
    %v579 = vpop.permute.xlu0 %578
    %580 = vrot.lane.b32.xlu0 %v560, 127
    %v581 = vpop.permute.xlu0 %580
    %582 = vrot.lane.b32.xlu0 %v561, 127
    %v583 = vpop.permute.xlu0 %582
    %584 = vrot.lane.b32.xlu0 %v562, 127
    %v585 = vpop.permute.xlu0 %584
    %586 = vrot.lane.b32.xlu0 %v563, 127
    %v587 = vpop.permute.xlu0 %586
    %v596 = vadd.f32 %v546, %v573
    %v597 = vadd.f32 %v547, %v575
    %v598 = vadd.f32 %v548, %v577
    %v599 = vadd.f32 %v549, %v579
    %v600 = vadd.f32 %v550, %v581
    %v601 = vadd.f32 %v551, %v583
    %v602 = vadd.f32 %v552, %v585
    %v603 = vadd.f32 %v553, %v587
    %s604 = sld [smem:[#allocation3 + $0xe]]
    %v605 = vstv %s604
    %v606 = vmul.f32 %v605, %v249
    %v607 = vmul.f32 %v605, %v250
    %v608 = vmul.f32 %v605, %v251
    %v609 = vmul.f32 %v605, %v252
    %v610 = vmul.f32 %v605, %v253
    %v611 = vmul.f32 %v605, %v254
    %v612 = vmul.f32 %v605, %v255
    %v613 = vmul.f32 %v605, %v256
    %622 = vrot.lane.b32.xlu0 %v606, 126
    %v623 = vpop.permute.xlu0 %622
    %624 = vrot.lane.b32.xlu0 %v607, 126
    %v625 = vpop.permute.xlu0 %624
    %626 = vrot.lane.b32.xlu0 %v608, 126
    %v627 = vpop.permute.xlu0 %626
    %628 = vrot.lane.b32.xlu0 %v609, 126
    %v629 = vpop.permute.xlu0 %628
    %630 = vrot.lane.b32.xlu0 %v610, 126
    %v631 = vpop.permute.xlu0 %630
    %632 = vrot.lane.b32.xlu0 %v611, 126
    %v633 = vpop.permute.xlu0 %632
    %634 = vrot.lane.b32.xlu0 %v612, 126
    %v635 = vpop.permute.xlu0 %634
    %636 = vrot.lane.b32.xlu0 %v613, 126
    %v637 = vpop.permute.xlu0 %636
    %v646 = vadd.f32 %v596, %v623
    %v647 = vadd.f32 %v597, %v625
    %v648 = vadd.f32 %v598, %v627
    %v649 = vadd.f32 %v599, %v629
    %v650 = vadd.f32 %v600, %v631
    %v651 = vadd.f32 %v601, %v633
    %v652 = vadd.f32 %v602, %v635
    %v653 = vadd.f32 %v603, %v637
    %655 = vset.pattern.permute.xlu0 0
    %656 = vperm.xlu0 %655, %v646
    %v657 = vpop.permute.xlu0 %656
    %660 = vset.pattern.permute.xlu0 0
    %661 = vperm.xlu0 %660, %v647
    %v662 = vpop.permute.xlu0 %661
    %665 = vset.pattern.permute.xlu0 0
    %666 = vperm.xlu0 %665, %v648
    %v667 = vpop.permute.xlu0 %666
    %670 = vset.pattern.permute.xlu0 0
    %671 = vperm.xlu0 %670, %v649
    %v672 = vpop.permute.xlu0 %671
    %675 = vset.pattern.permute.xlu0 0
    %676 = vperm.xlu0 %675, %v650
    %v677 = vpop.permute.xlu0 %676
    %680 = vset.pattern.permute.xlu0 0
    %681 = vperm.xlu0 %680, %v651
    %v682 = vpop.permute.xlu0 %681
    %685 = vset.pattern.permute.xlu0 0
    %686 = vperm.xlu0 %685, %v652
    %v687 = vpop.permute.xlu0 %686
    %690 = vset.pattern.permute.xlu0 0
    %691 = vperm.xlu0 %690, %v653
    %v692 = vpop.permute.xlu0 %691
    %v694 = vlaneseq
    %v695 = vshrl.u32 %v694, 7
    %v696 = vsub.s32 0, %v695
    %v697 = vrot.slane %v119, %v696
    %v698 = vmul.f32 %v657, %v697
    %v699 = vmul.f32 %v662, %v697
    %v700 = vmul.f32 %v667, %v697
    %v701 = vmul.f32 %v672, %v697
    %v702 = vmul.f32 %v677, %v697
    %v703 = vmul.f32 %v682, %v697
    %v704 = vmul.f32 %v687, %v697
    %v705 = vmul.f32 %v692, %v697
    %v706 = vlaneseq
    %v707 = vshrl.u32 %v706, 7
    %v708 = vsub.s32 0, %v707
    %v709 = vrot.slane %v236, %v708
    %v710 = vsub.f32 %v698, %v709
    %v711 = vsub.f32 %v699, %v709
    %v712 = vsub.f32 %v700, %v709
    %v713 = vsub.f32 %v701, %v709
    %v714 = vsub.f32 %v702, %v709
    %v715 = vsub.f32 %v703, %v709
    %v716 = vsub.f32 %v704, %v709
    %v717 = vsub.f32 %v705, %v709
    %v718 = vmul.f32 %v710, 1.442695
    %v719 = vpow.pop %v718
    %v720 = vmul.f32 %v711, 1.442695
    %v721 = vpow.pop %v720
    %v722 = vmul.f32 %v712, 1.442695
    %v723 = vpow.pop %v722
    %v724 = vmul.f32 %v713, 1.442695
    %v725 = vpow.pop %v724
    %v726 = vmul.f32 %v714, 1.442695
    %v727 = vpow.pop %v726
    %v728 = vmul.f32 %v715, 1.442695
    %v729 = vpow.pop %v728
    %v730 = vmul.f32 %v716, 1.442695
    %v731 = vpow.pop %v730
    %v732 = vmul.f32 %v717, 1.442695
    %v733 = vpow.pop %v732
    %v734 = vlaneseq
    %v735 = vshrl.u32 %v734, 7
    %v736 = vsub.s32 0, %v735
    %v737 = vrot.slane %v203, %v736
    %v738 = vsel %vm248, %v737, 1.0
    %v740 = vsel %vm218, %v738, 0
    %742 = vmatprep.subr.mxu0 0.0
    %743 = vmatpush1.msra.mxu0 0.0
    %744 = vmatprep.subr.mxu0 0.0
    %745 = vmatpush1.msra.mxu0 0.0
    %746 = vmatprep.subr.mxu0 0.0
    %747 = vmatpush1.msra.mxu0 0.0
    %748 = vmatprep.subr.mxu0 0.0
    %749 = vmatpush1.msra.mxu0 0.0
    %750 = vmatprep.subr.mxu0 0.0
    %751 = vmatpush1.msra.mxu0 0.0
    %752 = vmatprep.subr.mxu0 0.0
    %753 = vmatpush1.msra.mxu0 0.0
    %754 = vmatprep.subr.mxu0 0.0
    %755 = vmatpush1.msra.mxu0 0.0
    %756 = vmatprep.subr.mxu0 0.0
    %757 = vmatpush1.msra.mxu0 0.0
    %758 = vmatprep.subr.mxu0 0.0
    %759 = vmatpush1.msra.mxu0 %v733
    %760 = vmatprep.subr.mxu0 0.0
    %761 = vmatpush1.msra.mxu0 %v731
    %762 = vmatprep.subr.mxu0 0.0
    %763 = vmatpush1.msra.mxu0 %v729
    %764 = vmatprep.subr.mxu0 0.0
    %765 = vmatpush1.msra.mxu0 %v727
    %766 = vmatprep.subr.mxu0 0.0
    %767 = vmatpush1.msra.mxu0 %v725
    %768 = vmatprep.subr.mxu0 0.0
    %769 = vmatpush1.msra.mxu0 %v723
    %770 = vmatprep.subr.mxu0 0.0
    %771 = vmatpush1.msra.mxu0 %v721
    %772 = vmatprep.subr.mxu0 0.0
    %773 = vmatpush1.msra.mxu0 %v719
    %774 = vmatprep.subr.mxu0 0.0
    %775 = vmatpush2.msra.mxu0 0.0
    %776 = vmatprep.subr.mxu0 0.0
    %777 = vmatpush2.msra.mxu0 0.0
    %778 = vmatprep.subr.mxu0 0.0
    %779 = vmatpush2.msra.mxu0 0.0
    %780 = vmatprep.subr.mxu0 0.0
    %781 = vmatpush2.msra.mxu0 0.0
    %782 = vmatprep.subr.mxu0 0.0
    %783 = vmatpush2.msra.mxu0 0.0
    %784 = vmatprep.subr.mxu0 0.0
    %785 = vmatpush2.msra.mxu0 0.0
    %786 = vmatprep.subr.mxu0 0.0
    %787 = vmatpush2.msra.mxu0 0.0
    %788 = vmatprep.subr.mxu0 0.0
    %789 = vmatpush2.msra.mxu0 0.0
    %790 = vmatprep.subr.mxu0 0.0
    %791 = vmatpush2.msra.mxu0 0.0
    %792 = vmatprep.subr.mxu0 0.0
    %793 = vmatpush2.msra.mxu0 0.0
    %794 = vmatprep.subr.mxu0 0.0
    %795 = vmatpush2.msra.mxu0 0.0
    %796 = vmatprep.subr.mxu0 0.0
    %797 = vmatpush2.msra.mxu0 0.0
    %798 = vmatprep.subr.mxu0 0.0
    %799 = vmatpush2.msra.mxu0 0.0
    %800 = vmatprep.subr.mxu0 0.0
    %801 = vmatpush2.msra.mxu0 0.0
    %802 = vmatprep.subr.mxu0 0.0
    %803 = vmatpush2.msra.mxu0 0.0
    %804 = vmatprep.subr.mxu0 0.0
    %805 = vmatpush2.msra.mxu0 0.0
    %806 = vmatprep.mubr.f32.mxu0 0.0
    %807 = vmatmul.mubr.f32.gmra.mxu0 %v740
    %v808 = vpop.f32.mrf.mxu0
    %v809 = vadd.f32 0.0, %v808
    %v810 = vpop.f32.mrf.mxu0
    %811 = vdwg.mxu0
    %v812 = vrcp.pop %v809
    %v814 = vrot.slane %v812, 1
    %v816 = vmul.f32 %v809, %v814
    %817 = vst.msk [vmem:[#allocation2 + $0x8] sm:$0x1] %vm532, %v816
    %s818 = sld [smem:[#allocation5 + $0x5]]
    %s819 = sld [smem:[#allocation3 + $0xf]]
    %v820 = vstv %s819
    %v821 = vmul.f32 %v820, %v249
    %v822 = vmul.f32 %v820, %v250
    %v823 = vmul.f32 %v820, %v251
    %v824 = vmul.f32 %v820, %v252
    %v825 = vmul.f32 %v820, %v253
    %v826 = vmul.f32 %v820, %v254
    %v827 = vmul.f32 %v820, %v255
    %v828 = vmul.f32 %v820, %v256
    %v829 = vstv %s818
    %v830 = vadd.f32 %v829, %v821
    %v831 = vadd.f32 %v829, %v822
    %v832 = vadd.f32 %v829, %v823
    %v833 = vadd.f32 %v829, %v824
    %v834 = vadd.f32 %v829, %v825
    %v835 = vadd.f32 %v829, %v826
    %v836 = vadd.f32 %v829, %v827
    %v837 = vadd.f32 %v829, %v828
    %s838 = sld [smem:[#allocation3 + $0x10]]
    %v839 = vstv %s838
    %v840 = vmul.f32 %v839, %v249
    %v841 = vmul.f32 %v839, %v250
    %v842 = vmul.f32 %v839, %v251
    %v843 = vmul.f32 %v839, %v252
    %v844 = vmul.f32 %v839, %v253
    %v845 = vmul.f32 %v839, %v254
    %v846 = vmul.f32 %v839, %v255
    %v847 = vmul.f32 %v839, %v256
    %856 = vrot.lane.b32.xlu0 %v840, 127
    %v857 = vpop.permute.xlu0 %856
    %858 = vrot.lane.b32.xlu0 %v841, 127
    %v859 = vpop.permute.xlu0 %858
    %860 = vrot.lane.b32.xlu0 %v842, 127
    %v861 = vpop.permute.xlu0 %860
    %862 = vrot.lane.b32.xlu0 %v843, 127
    %v863 = vpop.permute.xlu0 %862
    %864 = vrot.lane.b32.xlu0 %v844, 127
    %v865 = vpop.permute.xlu0 %864
    %866 = vrot.lane.b32.xlu0 %v845, 127
    %v867 = vpop.permute.xlu0 %866
    %868 = vrot.lane.b32.xlu0 %v846, 127
    %v869 = vpop.permute.xlu0 %868
    %870 = vrot.lane.b32.xlu0 %v847, 127
    %v871 = vpop.permute.xlu0 %870
    %v880 = vadd.f32 %v830, %v857
    %v881 = vadd.f32 %v831, %v859
    %v882 = vadd.f32 %v832, %v861
    %v883 = vadd.f32 %v833, %v863
    %v884 = vadd.f32 %v834, %v865
    %v885 = vadd.f32 %v835, %v867
    %v886 = vadd.f32 %v836, %v869
    %v887 = vadd.f32 %v837, %v871
    %s888 = sld [smem:[#allocation3 + $0x11]]
    %v889 = vstv %s888
    %v890 = vmul.f32 %v889, %v249
    %v891 = vmul.f32 %v889, %v250
    %v892 = vmul.f32 %v889, %v251
    %v893 = vmul.f32 %v889, %v252
    %v894 = vmul.f32 %v889, %v253
    %v895 = vmul.f32 %v889, %v254
    %v896 = vmul.f32 %v889, %v255
    %v897 = vmul.f32 %v889, %v256
    %906 = vrot.lane.b32.xlu0 %v890, 126
    %v907 = vpop.permute.xlu0 %906
    %908 = vrot.lane.b32.xlu0 %v891, 126
    %v909 = vpop.permute.xlu0 %908
    %910 = vrot.lane.b32.xlu0 %v892, 126
    %v911 = vpop.permute.xlu0 %910
    %912 = vrot.lane.b32.xlu0 %v893, 126
    %v913 = vpop.permute.xlu0 %912
    %914 = vrot.lane.b32.xlu0 %v894, 126
    %v915 = vpop.permute.xlu0 %914
    %916 = vrot.lane.b32.xlu0 %v895, 126
    %v917 = vpop.permute.xlu0 %916
    %918 = vrot.lane.b32.xlu0 %v896, 126
    %v919 = vpop.permute.xlu0 %918
    %920 = vrot.lane.b32.xlu0 %v897, 126
    %v921 = vpop.permute.xlu0 %920
    %v930 = vadd.f32 %v880, %v907
    %v931 = vadd.f32 %v881, %v909
    %v932 = vadd.f32 %v882, %v911
    %v933 = vadd.f32 %v883, %v913
    %v934 = vadd.f32 %v884, %v915
    %v935 = vadd.f32 %v885, %v917
    %v936 = vadd.f32 %v886, %v919
    %v937 = vadd.f32 %v887, %v921
    %939 = vset.pattern.permute.xlu0 0
    %940 = vperm.xlu0 %939, %v930
    %v941 = vpop.permute.xlu0 %940
    %944 = vset.pattern.permute.xlu0 0
    %945 = vperm.xlu0 %944, %v931
    %v946 = vpop.permute.xlu0 %945
    %949 = vset.pattern.permute.xlu0 0
    %950 = vperm.xlu0 %949, %v932
    %v951 = vpop.permute.xlu0 %950
    %954 = vset.pattern.permute.xlu0 0
    %955 = vperm.xlu0 %954, %v933
    %v956 = vpop.permute.xlu0 %955
    %959 = vset.pattern.permute.xlu0 0
    %960 = vperm.xlu0 %959, %v934
    %v961 = vpop.permute.xlu0 %960
    %964 = vset.pattern.permute.xlu0 0
    %965 = vperm.xlu0 %964, %v935
    %v966 = vpop.permute.xlu0 %965
    %969 = vset.pattern.permute.xlu0 0
    %970 = vperm.xlu0 %969, %v936
    %v971 = vpop.permute.xlu0 %970
    %974 = vset.pattern.permute.xlu0 0
    %975 = vperm.xlu0 %974, %v937
    %v976 = vpop.permute.xlu0 %975
    %v978 = vlaneseq
    %v979 = vshrl.u32 %v978, 7
    %v980 = vsub.s32 0, %v979
    %v981 = vrot.slane %v133, %v980
    %v982 = vmul.f32 %v941, %v981
    %v983 = vmul.f32 %v946, %v981
    %v984 = vmul.f32 %v951, %v981
    %v985 = vmul.f32 %v956, %v981
    %v986 = vmul.f32 %v961, %v981
    %v987 = vmul.f32 %v966, %v981
    %v988 = vmul.f32 %v971, %v981
    %v989 = vmul.f32 %v976, %v981
    %v990 = vlaneseq
    %v991 = vshrl.u32 %v990, 7
    %v992 = vsub.s32 0, %v991
    %v993 = vrot.slane %v245, %v992
    %v994 = vsub.f32 %v982, %v993
    %v995 = vsub.f32 %v983, %v993
    %v996 = vsub.f32 %v984, %v993
    %v997 = vsub.f32 %v985, %v993
    %v998 = vsub.f32 %v986, %v993
    %v999 = vsub.f32 %v987, %v993
    %v1000 = vsub.f32 %v988, %v993
    %v1001 = vsub.f32 %v989, %v993
    %v1002 = vmul.f32 %v994, 1.442695
    %v1003 = vpow.pop %v1002
    %v1004 = vmul.f32 %v995, 1.442695
    %v1005 = vpow.pop %v1004
    %v1006 = vmul.f32 %v996, 1.442695
    %v1007 = vpow.pop %v1006
    %v1008 = vmul.f32 %v997, 1.442695
    %v1009 = vpow.pop %v1008
    %v1010 = vmul.f32 %v998, 1.442695
    %v1011 = vpow.pop %v1010
    %v1012 = vmul.f32 %v999, 1.442695
    %v1013 = vpow.pop %v1012
    %v1014 = vmul.f32 %v1000, 1.442695
    %v1015 = vpow.pop %v1014
    %v1016 = vmul.f32 %v1001, 1.442695
    %v1017 = vpow.pop %v1016
    %v1018 = vlaneseq
    %v1019 = vshrl.u32 %v1018, 7
    %v1020 = vsub.s32 0, %v1019
    %v1021 = vrot.slane %v217, %v1020
    %v1022 = vsel %vm248, %v1021, 1.0
    %v1024 = vsel %vm218, %v1022, 0
    %1026 = vmatprep.subr.mxu0 0.0
    %1027 = vmatpush1.msra.mxu0 0.0
    %1028 = vmatprep.subr.mxu0 0.0
    %1029 = vmatpush1.msra.mxu0 0.0
    %1030 = vmatprep.subr.mxu0 0.0
    %1031 = vmatpush1.msra.mxu0 0.0
    %1032 = vmatprep.subr.mxu0 0.0
    %1033 = vmatpush1.msra.mxu0 0.0
    %1034 = vmatprep.subr.mxu0 0.0
    %1035 = vmatpush1.msra.mxu0 0.0
    %1036 = vmatprep.subr.mxu0 0.0
    %1037 = vmatpush1.msra.mxu0 0.0
    %1038 = vmatprep.subr.mxu0 0.0
    %1039 = vmatpush1.msra.mxu0 0.0
    %1040 = vmatprep.subr.mxu0 0.0
    %1041 = vmatpush1.msra.mxu0 0.0
    %1042 = vmatprep.subr.mxu0 0.0
    %1043 = vmatpush1.msra.mxu0 %v1017
    %1044 = vmatprep.subr.mxu0 0.0
    %1045 = vmatpush1.msra.mxu0 %v1015
    %1046 = vmatprep.subr.mxu0 0.0
    %1047 = vmatpush1.msra.mxu0 %v1013
    %1048 = vmatprep.subr.mxu0 0.0
    %1049 = vmatpush1.msra.mxu0 %v1011
    %1050 = vmatprep.subr.mxu0 0.0
    %1051 = vmatpush1.msra.mxu0 %v1009
    %1052 = vmatprep.subr.mxu0 0.0
    %1053 = vmatpush1.msra.mxu0 %v1007
    %1054 = vmatprep.subr.mxu0 0.0
    %1055 = vmatpush1.msra.mxu0 %v1005
    %1056 = vmatprep.subr.mxu0 0.0
    %1057 = vmatpush1.msra.mxu0 %v1003
    %1058 = vmatprep.subr.mxu0 0.0
    %1059 = vmatpush2.msra.mxu0 0.0
    %1060 = vmatprep.subr.mxu0 0.0
    %1061 = vmatpush2.msra.mxu0 0.0
    %1062 = vmatprep.subr.mxu0 0.0
    %1063 = vmatpush2.msra.mxu0 0.0
    %1064 = vmatprep.subr.mxu0 0.0
    %1065 = vmatpush2.msra.mxu0 0.0
    %1066 = vmatprep.subr.mxu0 0.0
    %1067 = vmatpush2.msra.mxu0 0.0
    %1068 = vmatprep.subr.mxu0 0.0
    %1069 = vmatpush2.msra.mxu0 0.0
    %1070 = vmatprep.subr.mxu0 0.0
    %1071 = vmatpush2.msra.mxu0 0.0
    %1072 = vmatprep.subr.mxu0 0.0
    %1073 = vmatpush2.msra.mxu0 0.0
    %1074 = vmatprep.subr.mxu0 0.0
    %1075 = vmatpush2.msra.mxu0 0.0
    %1076 = vmatprep.subr.mxu0 0.0
    %1077 = vmatpush2.msra.mxu0 0.0
    %1078 = vmatprep.subr.mxu0 0.0
    %1079 = vmatpush2.msra.mxu0 0.0
    %1080 = vmatprep.subr.mxu0 0.0
    %1081 = vmatpush2.msra.mxu0 0.0
    %1082 = vmatprep.subr.mxu0 0.0
    %1083 = vmatpush2.msra.mxu0 0.0
    %1084 = vmatprep.subr.mxu0 0.0
    %1085 = vmatpush2.msra.mxu0 0.0
    %1086 = vmatprep.subr.mxu0 0.0
    %1087 = vmatpush2.msra.mxu0 0.0
    %1088 = vmatprep.subr.mxu0 0.0
    %1089 = vmatpush2.msra.mxu0 0.0
    %1090 = vmatprep.mubr.f32.mxu0 0.0
    %1091 = vmatmul.mubr.f32.gmra.mxu0 %v1024
    %v1092 = vpop.f32.mrf.mxu0
    %v1093 = vadd.f32 0.0, %v1092
    %v1094 = vpop.f32.mrf.mxu0
    %1095 = vdwg.mxu0
    %v1096 = vrcp.pop %v1093
    %v1098 = vrot.slane %v1096, 1
    %v1100 = vmul.f32 %v1093, %v1098
    %1101 = vst.msk [vmem:[#allocation2 + $0x10] sm:$0x1] %vm532, %v1100
    %s1102 = scalar_lea.vmem %s1, 64
    %v1103 = vld [vmem:[%s1102] sm:$0xff]
    %v1104 = vld [vmem:[%s1102 + $0x8] sm:$0xff]
    %v1105 = vld [vmem:[%s1102 + $0x10] sm:$0xff]
    %v1106 = vld [vmem:[%s1102 + $0x18] sm:$0xff]
    %v1107 = vld [vmem:[%s1102 + $0x20] sm:$0xff]
    %v1108 = vld [vmem:[%s1102 + $0x28] sm:$0xff]
    %v1109 = vld [vmem:[%s1102 + $0x30] sm:$0xff]
    %v1110 = vld [vmem:[%s1102 + $0x38] sm:$0xff]
    %s1111 = sld [smem:[#allocation5 + $0x3]]
    %s1112 = sld [smem:[#allocation3 + $0x9]]
    %v1113 = vstv %s1112
    %v1114 = vmul.f32 %v1113, %v1103
    %v1115 = vmul.f32 %v1113, %v1104
    %v1116 = vmul.f32 %v1113, %v1105
    %v1117 = vmul.f32 %v1113, %v1106
    %v1118 = vmul.f32 %v1113, %v1107
    %v1119 = vmul.f32 %v1113, %v1108
    %v1120 = vmul.f32 %v1113, %v1109
    %v1121 = vmul.f32 %v1113, %v1110
    %v1122 = vstv %s1111
    %v1123 = vadd.f32 %v1122, %v1114
    %v1124 = vadd.f32 %v1122, %v1115
    %v1125 = vadd.f32 %v1122, %v1116
    %v1126 = vadd.f32 %v1122, %v1117
    %v1127 = vadd.f32 %v1122, %v1118
    %v1128 = vadd.f32 %v1122, %v1119
    %v1129 = vadd.f32 %v1122, %v1120
    %v1130 = vadd.f32 %v1122, %v1121
    %s1131 = sld [smem:[#allocation3 + $0xa]]
    %v1132 = vstv %s1131
    %v1133 = vmul.f32 %v1132, %v1103
    %v1134 = vmul.f32 %v1132, %v1104
    %v1135 = vmul.f32 %v1132, %v1105
    %v1136 = vmul.f32 %v1132, %v1106
    %v1137 = vmul.f32 %v1132, %v1107
    %v1138 = vmul.f32 %v1132, %v1108
    %v1139 = vmul.f32 %v1132, %v1109
    %v1140 = vmul.f32 %v1132, %v1110
    %1149 = vrot.lane.b32.xlu0 %v1133, 127
    %v1150 = vpop.permute.xlu0 %1149
    %1151 = vrot.lane.b32.xlu0 %v1134, 127
    %v1152 = vpop.permute.xlu0 %1151
    %1153 = vrot.lane.b32.xlu0 %v1135, 127
    %v1154 = vpop.permute.xlu0 %1153
    %1155 = vrot.lane.b32.xlu0 %v1136, 127
    %v1156 = vpop.permute.xlu0 %1155
    %1157 = vrot.lane.b32.xlu0 %v1137, 127
    %v1158 = vpop.permute.xlu0 %1157
    %1159 = vrot.lane.b32.xlu0 %v1138, 127
    %v1160 = vpop.permute.xlu0 %1159
    %1161 = vrot.lane.b32.xlu0 %v1139, 127
    %v1162 = vpop.permute.xlu0 %1161
    %1163 = vrot.lane.b32.xlu0 %v1140, 127
    %v1164 = vpop.permute.xlu0 %1163
    %v1173 = vadd.f32 %v1123, %v1150
    %v1174 = vadd.f32 %v1124, %v1152
    %v1175 = vadd.f32 %v1125, %v1154
    %v1176 = vadd.f32 %v1126, %v1156
    %v1177 = vadd.f32 %v1127, %v1158
    %v1178 = vadd.f32 %v1128, %v1160
    %v1179 = vadd.f32 %v1129, %v1162
    %v1180 = vadd.f32 %v1130, %v1164
    %s1181 = sld [smem:[#allocation3 + $0xb]]
    %v1182 = vstv %s1181
    %v1183 = vmul.f32 %v1182, %v1103
    %v1184 = vmul.f32 %v1182, %v1104
    %v1185 = vmul.f32 %v1182, %v1105
    %v1186 = vmul.f32 %v1182, %v1106
    %v1187 = vmul.f32 %v1182, %v1107
    %v1188 = vmul.f32 %v1182, %v1108
    %v1189 = vmul.f32 %v1182, %v1109
    %v1190 = vmul.f32 %v1182, %v1110
    %1199 = vrot.lane.b32.xlu0 %v1183, 126
    %v1200 = vpop.permute.xlu0 %1199
    %1201 = vrot.lane.b32.xlu0 %v1184, 126
    %v1202 = vpop.permute.xlu0 %1201
    %1203 = vrot.lane.b32.xlu0 %v1185, 126
    %v1204 = vpop.permute.xlu0 %1203
    %1205 = vrot.lane.b32.xlu0 %v1186, 126
    %v1206 = vpop.permute.xlu0 %1205
    %1207 = vrot.lane.b32.xlu0 %v1187, 126
    %v1208 = vpop.permute.xlu0 %1207
    %1209 = vrot.lane.b32.xlu0 %v1188, 126
    %v1210 = vpop.permute.xlu0 %1209
    %1211 = vrot.lane.b32.xlu0 %v1189, 126
    %v1212 = vpop.permute.xlu0 %1211
    %1213 = vrot.lane.b32.xlu0 %v1190, 126
    %v1214 = vpop.permute.xlu0 %1213
    %v1223 = vadd.f32 %v1173, %v1200
    %v1224 = vadd.f32 %v1174, %v1202
    %v1225 = vadd.f32 %v1175, %v1204
    %v1226 = vadd.f32 %v1176, %v1206
    %v1227 = vadd.f32 %v1177, %v1208
    %v1228 = vadd.f32 %v1178, %v1210
    %v1229 = vadd.f32 %v1179, %v1212
    %v1230 = vadd.f32 %v1180, %v1214
    %1232 = vset.pattern.permute.xlu0 0
    %1233 = vperm.xlu0 %1232, %v1223
    %v1234 = vpop.permute.xlu0 %1233
    %1237 = vset.pattern.permute.xlu0 0
    %1238 = vperm.xlu0 %1237, %v1224
    %v1239 = vpop.permute.xlu0 %1238
    %1242 = vset.pattern.permute.xlu0 0
    %1243 = vperm.xlu0 %1242, %v1225
    %v1244 = vpop.permute.xlu0 %1243
    %1247 = vset.pattern.permute.xlu0 0
    %1248 = vperm.xlu0 %1247, %v1226
    %v1249 = vpop.permute.xlu0 %1248
    %1252 = vset.pattern.permute.xlu0 0
    %1253 = vperm.xlu0 %1252, %v1227
    %v1254 = vpop.permute.xlu0 %1253
    %1257 = vset.pattern.permute.xlu0 0
    %1258 = vperm.xlu0 %1257, %v1228
    %v1259 = vpop.permute.xlu0 %1258
    %1262 = vset.pattern.permute.xlu0 0
    %1263 = vperm.xlu0 %1262, %v1229
    %v1264 = vpop.permute.xlu0 %1263
    %1267 = vset.pattern.permute.xlu0 0
    %1268 = vperm.xlu0 %1267, %v1230
    %v1269 = vpop.permute.xlu0 %1268
    %v1271 = vlaneseq
    %v1272 = vshrl.u32 %v1271, 7
    %v1273 = vsub.s32 1, %v1272
    %v1274 = vrot.slane %v105, %v1273
    %v1275 = vmul.f32 %v1234, %v1274
    %v1276 = vmul.f32 %v1239, %v1274
    %v1277 = vmul.f32 %v1244, %v1274
    %v1278 = vmul.f32 %v1249, %v1274
    %v1279 = vmul.f32 %v1254, %v1274
    %v1280 = vmul.f32 %v1259, %v1274
    %v1281 = vmul.f32 %v1264, %v1274
    %v1282 = vmul.f32 %v1269, %v1274
    %v1283 = vlaneseq
    %v1284 = vshrl.u32 %v1283, 7
    %v1285 = vsub.s32 1, %v1284
    %v1286 = vrot.slane %v227, %v1285
    %v1287 = vsub.f32 %v1275, %v1286
    %v1288 = vsub.f32 %v1276, %v1286
    %v1289 = vsub.f32 %v1277, %v1286
    %v1290 = vsub.f32 %v1278, %v1286
    %v1291 = vsub.f32 %v1279, %v1286
    %v1292 = vsub.f32 %v1280, %v1286
    %v1293 = vsub.f32 %v1281, %v1286
    %v1294 = vsub.f32 %v1282, %v1286
    %v1295 = vmul.f32 %v1287, 1.442695
    %v1296 = vpow.pop %v1295
    %v1297 = vmul.f32 %v1288, 1.442695
    %v1298 = vpow.pop %v1297
    %v1299 = vmul.f32 %v1289, 1.442695
    %v1300 = vpow.pop %v1299
    %v1301 = vmul.f32 %v1290, 1.442695
    %v1302 = vpow.pop %v1301
    %v1303 = vmul.f32 %v1291, 1.442695
    %v1304 = vpow.pop %v1303
    %v1305 = vmul.f32 %v1292, 1.442695
    %v1306 = vpow.pop %v1305
    %v1307 = vmul.f32 %v1293, 1.442695
    %v1308 = vpow.pop %v1307
    %v1309 = vmul.f32 %v1294, 1.442695
    %v1310 = vpow.pop %v1309
    %v1311 = vlaneseq
    %v1312 = vshrl.u32 %v1311, 7
    %v1313 = vsub.s32 1, %v1312
    %v1314 = vrot.slane %v189, %v1313
    %v1315 = vsel %vm248, %v1314, 1.0
    %v1317 = vsel %vm218, %v1315, 0
    %1319 = vmatprep.subr.mxu0 0.0
    %1320 = vmatpush1.msra.mxu0 0.0
    %1321 = vmatprep.subr.mxu0 0.0
    %1322 = vmatpush1.msra.mxu0 0.0
    %1323 = vmatprep.subr.mxu0 0.0
    %1324 = vmatpush1.msra.mxu0 0.0
    %1325 = vmatprep.subr.mxu0 0.0
    %1326 = vmatpush1.msra.mxu0 0.0
    %1327 = vmatprep.subr.mxu0 0.0
    %1328 = vmatpush1.msra.mxu0 0.0
    %1329 = vmatprep.subr.mxu0 0.0
    %1330 = vmatpush1.msra.mxu0 0.0
    %1331 = vmatprep.subr.mxu0 0.0
    %1332 = vmatpush1.msra.mxu0 0.0
    %1333 = vmatprep.subr.mxu0 0.0
    %1334 = vmatpush1.msra.mxu0 0.0
    %1335 = vmatprep.subr.mxu0 0.0
    %1336 = vmatpush1.msra.mxu0 %v1310
    %1337 = vmatprep.subr.mxu0 0.0
    %1338 = vmatpush1.msra.mxu0 %v1308
    %1339 = vmatprep.subr.mxu0 0.0
    %1340 = vmatpush1.msra.mxu0 %v1306
    %1341 = vmatprep.subr.mxu0 0.0
    %1342 = vmatpush1.msra.mxu0 %v1304
    %1343 = vmatprep.subr.mxu0 0.0
    %1344 = vmatpush1.msra.mxu0 %v1302
    %1345 = vmatprep.subr.mxu0 0.0
    %1346 = vmatpush1.msra.mxu0 %v1300
    %1347 = vmatprep.subr.mxu0 0.0
    %1348 = vmatpush1.msra.mxu0 %v1298
    %1349 = vmatprep.subr.mxu0 0.0
    %1350 = vmatpush1.msra.mxu0 %v1296
    %1351 = vmatprep.subr.mxu0 0.0
    %1352 = vmatpush2.msra.mxu0 0.0
    %1353 = vmatprep.subr.mxu0 0.0
    %1354 = vmatpush2.msra.mxu0 0.0
    %1355 = vmatprep.subr.mxu0 0.0
    %1356 = vmatpush2.msra.mxu0 0.0
    %1357 = vmatprep.subr.mxu0 0.0
    %1358 = vmatpush2.msra.mxu0 0.0
    %1359 = vmatprep.subr.mxu0 0.0
    %1360 = vmatpush2.msra.mxu0 0.0
    %1361 = vmatprep.subr.mxu0 0.0
    %1362 = vmatpush2.msra.mxu0 0.0
    %1363 = vmatprep.subr.mxu0 0.0
    %1364 = vmatpush2.msra.mxu0 0.0
    %1365 = vmatprep.subr.mxu0 0.0
    %1366 = vmatpush2.msra.mxu0 0.0
    %1367 = vmatprep.subr.mxu0 0.0
    %1368 = vmatpush2.msra.mxu0 0.0
    %1369 = vmatprep.subr.mxu0 0.0
    %1370 = vmatpush2.msra.mxu0 0.0
    %1371 = vmatprep.subr.mxu0 0.0
    %1372 = vmatpush2.msra.mxu0 0.0
    %1373 = vmatprep.subr.mxu0 0.0
    %1374 = vmatpush2.msra.mxu0 0.0
    %1375 = vmatprep.subr.mxu0 0.0
    %1376 = vmatpush2.msra.mxu0 0.0
    %1377 = vmatprep.subr.mxu0 0.0
    %1378 = vmatpush2.msra.mxu0 0.0
    %1379 = vmatprep.subr.mxu0 0.0
    %1380 = vmatpush2.msra.mxu0 0.0
    %1381 = vmatprep.subr.mxu0 0.0
    %1382 = vmatpush2.msra.mxu0 0.0
    %1383 = vmatprep.mubr.f32.mxu0 0.0
    %1384 = vmatmul.mubr.f32.gmra.mxu0 %v1317
    %v1385 = vpop.f32.mrf.mxu0
    %v1386 = vadd.f32 0.0, %v1385
    %v1387 = vpop.f32.mrf.mxu0
    %1388 = vdwg.mxu0
    %v1389 = vrcp.pop %v1386
    %v1391 = vrot.slane %v1389, 1
    %v1393 = vmul.f32 %v1386, %v1391
    %1394 = vst.msk [vmem:[#allocation2 + $0x1] sm:$0x1] %vm532, %v1393
    %s1395 = sld [smem:[#allocation5 + $0x4]]
    %s1396 = sld [smem:[#allocation3 + $0xc]]
    %v1397 = vstv %s1396
    %v1398 = vmul.f32 %v1397, %v1103
    %v1399 = vmul.f32 %v1397, %v1104
    %v1400 = vmul.f32 %v1397, %v1105
    %v1401 = vmul.f32 %v1397, %v1106
    %v1402 = vmul.f32 %v1397, %v1107
    %v1403 = vmul.f32 %v1397, %v1108
    %v1404 = vmul.f32 %v1397, %v1109
    %v1405 = vmul.f32 %v1397, %v1110
    %v1406 = vstv %s1395
    %v1407 = vadd.f32 %v1406, %v1398
    %v1408 = vadd.f32 %v1406, %v1399
    %v1409 = vadd.f32 %v1406, %v1400
    %v1410 = vadd.f32 %v1406, %v1401
    %v1411 = vadd.f32 %v1406, %v1402
    %v1412 = vadd.f32 %v1406, %v1403
    %v1413 = vadd.f32 %v1406, %v1404
    %v1414 = vadd.f32 %v1406, %v1405
    %s1415 = sld [smem:[#allocation3 + $0xd]]
    %v1416 = vstv %s1415
    %v1417 = vmul.f32 %v1416, %v1103
    %v1418 = vmul.f32 %v1416, %v1104
    %v1419 = vmul.f32 %v1416, %v1105
    %v1420 = vmul.f32 %v1416, %v1106
    %v1421 = vmul.f32 %v1416, %v1107
    %v1422 = vmul.f32 %v1416, %v1108
    %v1423 = vmul.f32 %v1416, %v1109
    %v1424 = vmul.f32 %v1416, %v1110
    %1433 = vrot.lane.b32.xlu0 %v1417, 127
    %v1434 = vpop.permute.xlu0 %1433
    %1435 = vrot.lane.b32.xlu0 %v1418, 127
    %v1436 = vpop.permute.xlu0 %1435
    %1437 = vrot.lane.b32.xlu0 %v1419, 127
    %v1438 = vpop.permute.xlu0 %1437
    %1439 = vrot.lane.b32.xlu0 %v1420, 127
    %v1440 = vpop.permute.xlu0 %1439
    %1441 = vrot.lane.b32.xlu0 %v1421, 127
    %v1442 = vpop.permute.xlu0 %1441
    %1443 = vrot.lane.b32.xlu0 %v1422, 127
    %v1444 = vpop.permute.xlu0 %1443
    %1445 = vrot.lane.b32.xlu0 %v1423, 127
    %v1446 = vpop.permute.xlu0 %1445
    %1447 = vrot.lane.b32.xlu0 %v1424, 127
    %v1448 = vpop.permute.xlu0 %1447
    %v1457 = vadd.f32 %v1407, %v1434
    %v1458 = vadd.f32 %v1408, %v1436
    %v1459 = vadd.f32 %v1409, %v1438
    %v1460 = vadd.f32 %v1410, %v1440
    %v1461 = vadd.f32 %v1411, %v1442
    %v1462 = vadd.f32 %v1412, %v1444
    %v1463 = vadd.f32 %v1413, %v1446
    %v1464 = vadd.f32 %v1414, %v1448
    %s1465 = sld [smem:[#allocation3 + $0xe]]
    %v1466 = vstv %s1465
    %v1467 = vmul.f32 %v1466, %v1103
    %v1468 = vmul.f32 %v1466, %v1104
    %v1469 = vmul.f32 %v1466, %v1105
    %v1470 = vmul.f32 %v1466, %v1106
    %v1471 = vmul.f32 %v1466, %v1107
    %v1472 = vmul.f32 %v1466, %v1108
    %v1473 = vmul.f32 %v1466, %v1109
    %v1474 = vmul.f32 %v1466, %v1110
    %1483 = vrot.lane.b32.xlu0 %v1467, 126
    %v1484 = vpop.permute.xlu0 %1483
    %1485 = vrot.lane.b32.xlu0 %v1468, 126
    %v1486 = vpop.permute.xlu0 %1485
    %1487 = vrot.lane.b32.xlu0 %v1469, 126
    %v1488 = vpop.permute.xlu0 %1487
    %1489 = vrot.lane.b32.xlu0 %v1470, 126
    %v1490 = vpop.permute.xlu0 %1489
    %1491 = vrot.lane.b32.xlu0 %v1471, 126
    %v1492 = vpop.permute.xlu0 %1491
    %1493 = vrot.lane.b32.xlu0 %v1472, 126
    %v1494 = vpop.permute.xlu0 %1493
    %1495 = vrot.lane.b32.xlu0 %v1473, 126
    %v1496 = vpop.permute.xlu0 %1495
    %1497 = vrot.lane.b32.xlu0 %v1474, 126
    %v1498 = vpop.permute.xlu0 %1497
    %v1507 = vadd.f32 %v1457, %v1484
    %v1508 = vadd.f32 %v1458, %v1486
    %v1509 = vadd.f32 %v1459, %v1488
    %v1510 = vadd.f32 %v1460, %v1490
    %v1511 = vadd.f32 %v1461, %v1492
    %v1512 = vadd.f32 %v1462, %v1494
    %v1513 = vadd.f32 %v1463, %v1496
    %v1514 = vadd.f32 %v1464, %v1498
    %1516 = vset.pattern.permute.xlu0 0
    %1517 = vperm.xlu0 %1516, %v1507
    %v1518 = vpop.permute.xlu0 %1517
    %1521 = vset.pattern.permute.xlu0 0
    %1522 = vperm.xlu0 %1521, %v1508
    %v1523 = vpop.permute.xlu0 %1522
    %1526 = vset.pattern.permute.xlu0 0
    %1527 = vperm.xlu0 %1526, %v1509
    %v1528 = vpop.permute.xlu0 %1527
    %1531 = vset.pattern.permute.xlu0 0
    %1532 = vperm.xlu0 %1531, %v1510
    %v1533 = vpop.permute.xlu0 %1532
    %1536 = vset.pattern.permute.xlu0 0
    %1537 = vperm.xlu0 %1536, %v1511
    %v1538 = vpop.permute.xlu0 %1537
    %1541 = vset.pattern.permute.xlu0 0
    %1542 = vperm.xlu0 %1541, %v1512
    %v1543 = vpop.permute.xlu0 %1542
    %1546 = vset.pattern.permute.xlu0 0
    %1547 = vperm.xlu0 %1546, %v1513
    %v1548 = vpop.permute.xlu0 %1547
    %1551 = vset.pattern.permute.xlu0 0
    %1552 = vperm.xlu0 %1551, %v1514
    %v1553 = vpop.permute.xlu0 %1552
    %v1555 = vlaneseq
    %v1556 = vshrl.u32 %v1555, 7
    %v1557 = vsub.s32 1, %v1556
    %v1558 = vrot.slane %v119, %v1557
    %v1559 = vmul.f32 %v1518, %v1558
    %v1560 = vmul.f32 %v1523, %v1558
    %v1561 = vmul.f32 %v1528, %v1558
    %v1562 = vmul.f32 %v1533, %v1558
    %v1563 = vmul.f32 %v1538, %v1558
    %v1564 = vmul.f32 %v1543, %v1558
    %v1565 = vmul.f32 %v1548, %v1558
    %v1566 = vmul.f32 %v1553, %v1558
    %v1567 = vlaneseq
    %v1568 = vshrl.u32 %v1567, 7
    %v1569 = vsub.s32 1, %v1568
    %v1570 = vrot.slane %v236, %v1569
    %v1571 = vsub.f32 %v1559, %v1570
    %v1572 = vsub.f32 %v1560, %v1570
    %v1573 = vsub.f32 %v1561, %v1570
    %v1574 = vsub.f32 %v1562, %v1570
    %v1575 = vsub.f32 %v1563, %v1570
    %v1576 = vsub.f32 %v1564, %v1570
    %v1577 = vsub.f32 %v1565, %v1570
    %v1578 = vsub.f32 %v1566, %v1570
    %v1579 = vmul.f32 %v1571, 1.442695
    %v1580 = vpow.pop %v1579
    %v1581 = vmul.f32 %v1572, 1.442695
    %v1582 = vpow.pop %v1581
    %v1583 = vmul.f32 %v1573, 1.442695
    %v1584 = vpow.pop %v1583
    %v1585 = vmul.f32 %v1574, 1.442695
    %v1586 = vpow.pop %v1585
    %v1587 = vmul.f32 %v1575, 1.442695
    %v1588 = vpow.pop %v1587
    %v1589 = vmul.f32 %v1576, 1.442695
    %v1590 = vpow.pop %v1589
    %v1591 = vmul.f32 %v1577, 1.442695
    %v1592 = vpow.pop %v1591
    %v1593 = vmul.f32 %v1578, 1.442695
    %v1594 = vpow.pop %v1593
    %v1595 = vlaneseq
    %v1596 = vshrl.u32 %v1595, 7
    %v1597 = vsub.s32 1, %v1596
    %v1598 = vrot.slane %v203, %v1597
    %v1599 = vsel %vm248, %v1598, 1.0
    %v1601 = vsel %vm218, %v1599, 0
    %1603 = vmatprep.subr.mxu0 0.0
    %1604 = vmatpush1.msra.mxu0 0.0
    %1605 = vmatprep.subr.mxu0 0.0
    %1606 = vmatpush1.msra.mxu0 0.0
    %1607 = vmatprep.subr.mxu0 0.0
    %1608 = vmatpush1.msra.mxu0 0.0
    %1609 = vmatprep.subr.mxu0 0.0
    %1610 = vmatpush1.msra.mxu0 0.0
    %1611 = vmatprep.subr.mxu0 0.0
    %1612 = vmatpush1.msra.mxu0 0.0
    %1613 = vmatprep.subr.mxu0 0.0
    %1614 = vmatpush1.msra.mxu0 0.0
    %1615 = vmatprep.subr.mxu0 0.0
    %1616 = vmatpush1.msra.mxu0 0.0
    %1617 = vmatprep.subr.mxu0 0.0
    %1618 = vmatpush1.msra.mxu0 0.0
    %1619 = vmatprep.subr.mxu0 0.0
    %1620 = vmatpush1.msra.mxu0 %v1594
    %1621 = vmatprep.subr.mxu0 0.0
    %1622 = vmatpush1.msra.mxu0 %v1592
    %1623 = vmatprep.subr.mxu0 0.0
    %1624 = vmatpush1.msra.mxu0 %v1590
    %1625 = vmatprep.subr.mxu0 0.0
    %1626 = vmatpush1.msra.mxu0 %v1588
    %1627 = vmatprep.subr.mxu0 0.0
    %1628 = vmatpush1.msra.mxu0 %v1586
    %1629 = vmatprep.subr.mxu0 0.0
    %1630 = vmatpush1.msra.mxu0 %v1584
    %1631 = vmatprep.subr.mxu0 0.0
    %1632 = vmatpush1.msra.mxu0 %v1582
    %1633 = vmatprep.subr.mxu0 0.0
    %1634 = vmatpush1.msra.mxu0 %v1580
    %1635 = vmatprep.subr.mxu0 0.0
    %1636 = vmatpush2.msra.mxu0 0.0
    %1637 = vmatprep.subr.mxu0 0.0
    %1638 = vmatpush2.msra.mxu0 0.0
    %1639 = vmatprep.subr.mxu0 0.0
    %1640 = vmatpush2.msra.mxu0 0.0
    %1641 = vmatprep.subr.mxu0 0.0
    %1642 = vmatpush2.msra.mxu0 0.0
    %1643 = vmatprep.subr.mxu0 0.0
    %1644 = vmatpush2.msra.mxu0 0.0
    %1645 = vmatprep.subr.mxu0 0.0
    %1646 = vmatpush2.msra.mxu0 0.0
    %1647 = vmatprep.subr.mxu0 0.0
    %1648 = vmatpush2.msra.mxu0 0.0
    %1649 = vmatprep.subr.mxu0 0.0
    %1650 = vmatpush2.msra.mxu0 0.0
    %1651 = vmatprep.subr.mxu0 0.0
    %1652 = vmatpush2.msra.mxu0 0.0
    %1653 = vmatprep.subr.mxu0 0.0
    %1654 = vmatpush2.msra.mxu0 0.0
    %1655 = vmatprep.subr.mxu0 0.0
    %1656 = vmatpush2.msra.mxu0 0.0
    %1657 = vmatprep.subr.mxu0 0.0
    %1658 = vmatpush2.msra.mxu0 0.0
    %1659 = vmatprep.subr.mxu0 0.0
    %1660 = vmatpush2.msra.mxu0 0.0
    %1661 = vmatprep.subr.mxu0 0.0
    %1662 = vmatpush2.msra.mxu0 0.0
    %1663 = vmatprep.subr.mxu0 0.0
    %1664 = vmatpush2.msra.mxu0 0.0
    %1665 = vmatprep.subr.mxu0 0.0
    %1666 = vmatpush2.msra.mxu0 0.0
    %1667 = vmatprep.mubr.f32.mxu0 0.0
    %1668 = vmatmul.mubr.f32.gmra.mxu0 %v1601
    %v1669 = vpop.f32.mrf.mxu0
    %v1670 = vadd.f32 0.0, %v1669
    %v1671 = vpop.f32.mrf.mxu0
    %1672 = vdwg.mxu0
    %v1673 = vrcp.pop %v1670
    %v1675 = vrot.slane %v1673, 1
    %v1677 = vmul.f32 %v1670, %v1675
    %1678 = vst.msk [vmem:[#allocation2 + $0x9] sm:$0x1] %vm532, %v1677
    %s1679 = sld [smem:[#allocation5 + $0x5]]
    %s1680 = sld [smem:[#allocation3 + $0xf]]
    %v1681 = vstv %s1680
    %v1682 = vmul.f32 %v1681, %v1103
    %v1683 = vmul.f32 %v1681, %v1104
    %v1684 = vmul.f32 %v1681, %v1105
    %v1685 = vmul.f32 %v1681, %v1106
    %v1686 = vmul.f32 %v1681, %v1107
    %v1687 = vmul.f32 %v1681, %v1108
    %v1688 = vmul.f32 %v1681, %v1109
    %v1689 = vmul.f32 %v1681, %v1110
    %v1690 = vstv %s1679
    %v1691 = vadd.f32 %v1690, %v1682
    %v1692 = vadd.f32 %v1690, %v1683
    %v1693 = vadd.f32 %v1690, %v1684
    %v1694 = vadd.f32 %v1690, %v1685
    %v1695 = vadd.f32 %v1690, %v1686
    %v1696 = vadd.f32 %v1690, %v1687
    %v1697 = vadd.f32 %v1690, %v1688
    %v1698 = vadd.f32 %v1690, %v1689
    %s1699 = sld [smem:[#allocation3 + $0x10]]
    %v1700 = vstv %s1699
    %v1701 = vmul.f32 %v1700, %v1103
    %v1702 = vmul.f32 %v1700, %v1104
    %v1703 = vmul.f32 %v1700, %v1105
    %v1704 = vmul.f32 %v1700, %v1106
    %v1705 = vmul.f32 %v1700, %v1107
    %v1706 = vmul.f32 %v1700, %v1108
    %v1707 = vmul.f32 %v1700, %v1109
    %v1708 = vmul.f32 %v1700, %v1110
    %1717 = vrot.lane.b32.xlu0 %v1701, 127
    %v1718 = vpop.permute.xlu0 %1717
    %1719 = vrot.lane.b32.xlu0 %v1702, 127
    %v1720 = vpop.permute.xlu0 %1719
    %1721 = vrot.lane.b32.xlu0 %v1703, 127
    %v1722 = vpop.permute.xlu0 %1721
    %1723 = vrot.lane.b32.xlu0 %v1704, 127
    %v1724 = vpop.permute.xlu0 %1723
    %1725 = vrot.lane.b32.xlu0 %v1705, 127
    %v1726 = vpop.permute.xlu0 %1725
    %1727 = vrot.lane.b32.xlu0 %v1706, 127
    %v1728 = vpop.permute.xlu0 %1727
    %1729 = vrot.lane.b32.xlu0 %v1707, 127
    %v1730 = vpop.permute.xlu0 %1729
    %1731 = vrot.lane.b32.xlu0 %v1708, 127
    %v1732 = vpop.permute.xlu0 %1731
    %v1741 = vadd.f32 %v1691, %v1718
    %v1742 = vadd.f32 %v1692, %v1720
    %v1743 = vadd.f32 %v1693, %v1722
    %v1744 = vadd.f32 %v1694, %v1724
    %v1745 = vadd.f32 %v1695, %v1726
    %v1746 = vadd.f32 %v1696, %v1728
    %v1747 = vadd.f32 %v1697, %v1730
    %v1748 = vadd.f32 %v1698, %v1732
    %s1749 = sld [smem:[#allocation3 + $0x11]]
    %v1750 = vstv %s1749
    %v1751 = vmul.f32 %v1750, %v1103
    %v1752 = vmul.f32 %v1750, %v1104
    %v1753 = vmul.f32 %v1750, %v1105
    %v1754 = vmul.f32 %v1750, %v1106
    %v1755 = vmul.f32 %v1750, %v1107
    %v1756 = vmul.f32 %v1750, %v1108
    %v1757 = vmul.f32 %v1750, %v1109
    %v1758 = vmul.f32 %v1750, %v1110
    %1767 = vrot.lane.b32.xlu0 %v1751, 126
    %v1768 = vpop.permute.xlu0 %1767
    %1769 = vrot.lane.b32.xlu0 %v1752, 126
    %v1770 = vpop.permute.xlu0 %1769
    %1771 = vrot.lane.b32.xlu0 %v1753, 126
    %v1772 = vpop.permute.xlu0 %1771
    %1773 = vrot.lane.b32.xlu0 %v1754, 126
    %v1774 = vpop.permute.xlu0 %1773
    %1775 = vrot.lane.b32.xlu0 %v1755, 126
    %v1776 = vpop.permute.xlu0 %1775
    %1777 = vrot.lane.b32.xlu0 %v1756, 126
    %v1778 = vpop.permute.xlu0 %1777
    %1779 = vrot.lane.b32.xlu0 %v1757, 126
    %v1780 = vpop.permute.xlu0 %1779
    %1781 = vrot.lane.b32.xlu0 %v1758, 126
    %v1782 = vpop.permute.xlu0 %1781
    %v1791 = vadd.f32 %v1741, %v1768
    %v1792 = vadd.f32 %v1742, %v1770
    %v1793 = vadd.f32 %v1743, %v1772
    %v1794 = vadd.f32 %v1744, %v1774
    %v1795 = vadd.f32 %v1745, %v1776
    %v1796 = vadd.f32 %v1746, %v1778
    %v1797 = vadd.f32 %v1747, %v1780
    %v1798 = vadd.f32 %v1748, %v1782
    %1800 = vset.pattern.permute.xlu0 0
    %1801 = vperm.xlu0 %1800, %v1791
    %v1802 = vpop.permute.xlu0 %1801
    %1805 = vset.pattern.permute.xlu0 0
    %1806 = vperm.xlu0 %1805, %v1792
    %v1807 = vpop.permute.xlu0 %1806
    %1810 = vset.pattern.permute.xlu0 0
    %1811 = vperm.xlu0 %1810, %v1793
    %v1812 = vpop.permute.xlu0 %1811
    %1815 = vset.pattern.permute.xlu0 0
    %1816 = vperm.xlu0 %1815, %v1794
    %v1817 = vpop.permute.xlu0 %1816
    %1820 = vset.pattern.permute.xlu0 0
    %1821 = vperm.xlu0 %1820, %v1795
    %v1822 = vpop.permute.xlu0 %1821
    %1825 = vset.pattern.permute.xlu0 0
    %1826 = vperm.xlu0 %1825, %v1796
    %v1827 = vpop.permute.xlu0 %1826
    %1830 = vset.pattern.permute.xlu0 0
    %1831 = vperm.xlu0 %1830, %v1797
    %v1832 = vpop.permute.xlu0 %1831
    %1835 = vset.pattern.permute.xlu0 0
    %1836 = vperm.xlu0 %1835, %v1798
    %v1837 = vpop.permute.xlu0 %1836
    %v1839 = vlaneseq
    %v1840 = vshrl.u32 %v1839, 7
    %v1841 = vsub.s32 1, %v1840
    %v1842 = vrot.slane %v133, %v1841
    %v1843 = vmul.f32 %v1802, %v1842
    %v1844 = vmul.f32 %v1807, %v1842
    %v1845 = vmul.f32 %v1812, %v1842
    %v1846 = vmul.f32 %v1817, %v1842
    %v1847 = vmul.f32 %v1822, %v1842
    %v1848 = vmul.f32 %v1827, %v1842
    %v1849 = vmul.f32 %v1832, %v1842
    %v1850 = vmul.f32 %v1837, %v1842
    %v1851 = vlaneseq
    %v1852 = vshrl.u32 %v1851, 7
    %v1853 = vsub.s32 1, %v1852
    %v1854 = vrot.slane %v245, %v1853
    %v1855 = vsub.f32 %v1843, %v1854
    %v1856 = vsub.f32 %v1844, %v1854
    %v1857 = vsub.f32 %v1845, %v1854
    %v1858 = vsub.f32 %v1846, %v1854
    %v1859 = vsub.f32 %v1847, %v1854
    %v1860 = vsub.f32 %v1848, %v1854
    %v1861 = vsub.f32 %v1849, %v1854
    %v1862 = vsub.f32 %v1850, %v1854
    %v1863 = vmul.f32 %v1855, 1.442695
    %v1864 = vpow.pop %v1863
    %v1865 = vmul.f32 %v1856, 1.442695
    %v1866 = vpow.pop %v1865
    %v1867 = vmul.f32 %v1857, 1.442695
    %v1868 = vpow.pop %v1867
    %v1869 = vmul.f32 %v1858, 1.442695
    %v1870 = vpow.pop %v1869
    %v1871 = vmul.f32 %v1859, 1.442695
    %v1872 = vpow.pop %v1871
    %v1873 = vmul.f32 %v1860, 1.442695
    %v1874 = vpow.pop %v1873
    %v1875 = vmul.f32 %v1861, 1.442695
    %v1876 = vpow.pop %v1875
    %v1877 = vmul.f32 %v1862, 1.442695
    %v1878 = vpow.pop %v1877
    %v1879 = vlaneseq
    %v1880 = vshrl.u32 %v1879, 7
    %v1881 = vsub.s32 1, %v1880
    %v1882 = vrot.slane %v217, %v1881
    %v1883 = vsel %vm248, %v1882, 1.0
    %v1885 = vsel %vm218, %v1883, 0
    %1887 = vmatprep.subr.mxu0 0.0
    %1888 = vmatpush1.msra.mxu0 0.0
    %1889 = vmatprep.subr.mxu0 0.0
    %1890 = vmatpush1.msra.mxu0 0.0
    %1891 = vmatprep.subr.mxu0 0.0
    %1892 = vmatpush1.msra.mxu0 0.0
    %1893 = vmatprep.subr.mxu0 0.0
    %1894 = vmatpush1.msra.mxu0 0.0
    %1895 = vmatprep.subr.mxu0 0.0
    %1896 = vmatpush1.msra.mxu0 0.0
    %1897 = vmatprep.subr.mxu0 0.0
    %1898 = vmatpush1.msra.mxu0 0.0
    %1899 = vmatprep.subr.mxu0 0.0
    %1900 = vmatpush1.msra.mxu0 0.0
    %1901 = vmatprep.subr.mxu0 0.0
    %1902 = vmatpush1.msra.mxu0 0.0
    %1903 = vmatprep.subr.mxu0 0.0
    %1904 = vmatpush1.msra.mxu0 %v1878
    %1905 = vmatprep.subr.mxu0 0.0
    %1906 = vmatpush1.msra.mxu0 %v1876
    %1907 = vmatprep.subr.mxu0 0.0
    %1908 = vmatpush1.msra.mxu0 %v1874
    %1909 = vmatprep.subr.mxu0 0.0
    %1910 = vmatpush1.msra.mxu0 %v1872
    %1911 = vmatprep.subr.mxu0 0.0
    %1912 = vmatpush1.msra.mxu0 %v1870
    %1913 = vmatprep.subr.mxu0 0.0
    %1914 = vmatpush1.msra.mxu0 %v1868
    %1915 = vmatprep.subr.mxu0 0.0
    %1916 = vmatpush1.msra.mxu0 %v1866
    %1917 = vmatprep.subr.mxu0 0.0
    %1918 = vmatpush1.msra.mxu0 %v1864
    %1919 = vmatprep.subr.mxu0 0.0
    %1920 = vmatpush2.msra.mxu0 0.0
    %1921 = vmatprep.subr.mxu0 0.0
    %1922 = vmatpush2.msra.mxu0 0.0
    %1923 = vmatprep.subr.mxu0 0.0
    %1924 = vmatpush2.msra.mxu0 0.0
    %1925 = vmatprep.subr.mxu0 0.0
    %1926 = vmatpush2.msra.mxu0 0.0
    %1927 = vmatprep.subr.mxu0 0.0
    %1928 = vmatpush2.msra.mxu0 0.0
    %1929 = vmatprep.subr.mxu0 0.0
    %1930 = vmatpush2.msra.mxu0 0.0
    %1931 = vmatprep.subr.mxu0 0.0
    %1932 = vmatpush2.msra.mxu0 0.0
    %1933 = vmatprep.subr.mxu0 0.0
    %1934 = vmatpush2.msra.mxu0 0.0
    %1935 = vmatprep.subr.mxu0 0.0
    %1936 = vmatpush2.msra.mxu0 0.0
    %1937 = vmatprep.subr.mxu0 0.0
    %1938 = vmatpush2.msra.mxu0 0.0
    %1939 = vmatprep.subr.mxu0 0.0
    %1940 = vmatpush2.msra.mxu0 0.0
    %1941 = vmatprep.subr.mxu0 0.0
    %1942 = vmatpush2.msra.mxu0 0.0
    %1943 = vmatprep.subr.mxu0 0.0
    %1944 = vmatpush2.msra.mxu0 0.0
    %1945 = vmatprep.subr.mxu0 0.0
    %1946 = vmatpush2.msra.mxu0 0.0
    %1947 = vmatprep.subr.mxu0 0.0
    %1948 = vmatpush2.msra.mxu0 0.0
    %1949 = vmatprep.subr.mxu0 0.0
    %1950 = vmatpush2.msra.mxu0 0.0
    %1951 = vmatprep.mubr.f32.mxu0 0.0
    %1952 = vmatmul.mubr.f32.gmra.mxu0 %v1885
    %v1953 = vpop.f32.mrf.mxu0
    %v1954 = vadd.f32 0.0, %v1953
    %v1955 = vpop.f32.mrf.mxu0
    %1956 = vdwg.mxu0
    %v1957 = vrcp.pop %v1954
    %v1959 = vrot.slane %v1957, 1
    %v1961 = vmul.f32 %v1954, %v1959
    %1962 = vst.msk [vmem:[#allocation2 + $0x11] sm:$0x1] %vm532, %v1961
    %s1963 = scalar_lea.vmem %s1, 128
    %v1964 = vld [vmem:[%s1963] sm:$0xff]
    %v1965 = vld [vmem:[%s1963 + $0x8] sm:$0xff]
    %v1966 = vld [vmem:[%s1963 + $0x10] sm:$0xff]
    %v1967 = vld [vmem:[%s1963 + $0x18] sm:$0xff]
    %v1968 = vld [vmem:[%s1963 + $0x20] sm:$0xff]
    %v1969 = vld [vmem:[%s1963 + $0x28] sm:$0xff]
    %v1970 = vld [vmem:[%s1963 + $0x30] sm:$0xff]
    %v1971 = vld [vmem:[%s1963 + $0x38] sm:$0xff]
    %s1972 = sld [smem:[#allocation5 + $0x3]]
    %s1973 = sld [smem:[#allocation3 + $0x9]]
    %v1974 = vstv %s1973
    %v1975 = vmul.f32 %v1974, %v1964
    %v1976 = vmul.f32 %v1974, %v1965
    %v1977 = vmul.f32 %v1974, %v1966
    %v1978 = vmul.f32 %v1974, %v1967
    %v1979 = vmul.f32 %v1974, %v1968
    %v1980 = vmul.f32 %v1974, %v1969
    %v1981 = vmul.f32 %v1974, %v1970
    %v1982 = vmul.f32 %v1974, %v1971
    %v1983 = vstv %s1972
    %v1984 = vadd.f32 %v1983, %v1975
    %v1985 = vadd.f32 %v1983, %v1976
    %v1986 = vadd.f32 %v1983, %v1977
    %v1987 = vadd.f32 %v1983, %v1978
    %v1988 = vadd.f32 %v1983, %v1979
    %v1989 = vadd.f32 %v1983, %v1980
    %v1990 = vadd.f32 %v1983, %v1981
    %v1991 = vadd.f32 %v1983, %v1982
    %s1992 = sld [smem:[#allocation3 + $0xa]]
    %v1993 = vstv %s1992
    %v1994 = vmul.f32 %v1993, %v1964
    %v1995 = vmul.f32 %v1993, %v1965
    %v1996 = vmul.f32 %v1993, %v1966
    %v1997 = vmul.f32 %v1993, %v1967
    %v1998 = vmul.f32 %v1993, %v1968
    %v1999 = vmul.f32 %v1993, %v1969
    %v2000 = vmul.f32 %v1993, %v1970
    %v2001 = vmul.f32 %v1993, %v1971
    %2010 = vrot.lane.b32.xlu0 %v1994, 127
    %v2011 = vpop.permute.xlu0 %2010
    %2012 = vrot.lane.b32.xlu0 %v1995, 127
    %v2013 = vpop.permute.xlu0 %2012
    %2014 = vrot.lane.b32.xlu0 %v1996, 127
    %v2015 = vpop.permute.xlu0 %2014
    %2016 = vrot.lane.b32.xlu0 %v1997, 127
    %v2017 = vpop.permute.xlu0 %2016
    %2018 = vrot.lane.b32.xlu0 %v1998, 127
    %v2019 = vpop.permute.xlu0 %2018
    %2020 = vrot.lane.b32.xlu0 %v1999, 127
    %v2021 = vpop.permute.xlu0 %2020
    %2022 = vrot.lane.b32.xlu0 %v2000, 127
    %v2023 = vpop.permute.xlu0 %2022
    %2024 = vrot.lane.b32.xlu0 %v2001, 127
    %v2025 = vpop.permute.xlu0 %2024
    %v2034 = vadd.f32 %v1984, %v2011
    %v2035 = vadd.f32 %v1985, %v2013
    %v2036 = vadd.f32 %v1986, %v2015
    %v2037 = vadd.f32 %v1987, %v2017
    %v2038 = vadd.f32 %v1988, %v2019
    %v2039 = vadd.f32 %v1989, %v2021
    %v2040 = vadd.f32 %v1990, %v2023
    %v2041 = vadd.f32 %v1991, %v2025
    %s2042 = sld [smem:[#allocation3 + $0xb]]
    %v2043 = vstv %s2042
    %v2044 = vmul.f32 %v2043, %v1964
    %v2045 = vmul.f32 %v2043, %v1965
    %v2046 = vmul.f32 %v2043, %v1966
    %v2047 = vmul.f32 %v2043, %v1967
    %v2048 = vmul.f32 %v2043, %v1968
    %v2049 = vmul.f32 %v2043, %v1969
    %v2050 = vmul.f32 %v2043, %v1970
    %v2051 = vmul.f32 %v2043, %v1971
    %2060 = vrot.lane.b32.xlu0 %v2044, 126
    %v2061 = vpop.permute.xlu0 %2060
    %2062 = vrot.lane.b32.xlu0 %v2045, 126
    %v2063 = vpop.permute.xlu0 %2062
    %2064 = vrot.lane.b32.xlu0 %v2046, 126
    %v2065 = vpop.permute.xlu0 %2064
    %2066 = vrot.lane.b32.xlu0 %v2047, 126
    %v2067 = vpop.permute.xlu0 %2066
    %2068 = vrot.lane.b32.xlu0 %v2048, 126
    %v2069 = vpop.permute.xlu0 %2068
    %2070 = vrot.lane.b32.xlu0 %v2049, 126
    %v2071 = vpop.permute.xlu0 %2070
    %2072 = vrot.lane.b32.xlu0 %v2050, 126
    %v2073 = vpop.permute.xlu0 %2072
    %2074 = vrot.lane.b32.xlu0 %v2051, 126
    %v2075 = vpop.permute.xlu0 %2074
    %v2084 = vadd.f32 %v2034, %v2061
    %v2085 = vadd.f32 %v2035, %v2063
    %v2086 = vadd.f32 %v2036, %v2065
    %v2087 = vadd.f32 %v2037, %v2067
    %v2088 = vadd.f32 %v2038, %v2069
    %v2089 = vadd.f32 %v2039, %v2071
    %v2090 = vadd.f32 %v2040, %v2073
    %v2091 = vadd.f32 %v2041, %v2075
    %2093 = vset.pattern.permute.xlu0 0
    %2094 = vperm.xlu0 %2093, %v2084
    %v2095 = vpop.permute.xlu0 %2094
    %2098 = vset.pattern.permute.xlu0 0
    %2099 = vperm.xlu0 %2098, %v2085
    %v2100 = vpop.permute.xlu0 %2099
    %2103 = vset.pattern.permute.xlu0 0
    %2104 = vperm.xlu0 %2103, %v2086
    %v2105 = vpop.permute.xlu0 %2104
    %2108 = vset.pattern.permute.xlu0 0
    %2109 = vperm.xlu0 %2108, %v2087
    %v2110 = vpop.permute.xlu0 %2109
    %2113 = vset.pattern.permute.xlu0 0
    %2114 = vperm.xlu0 %2113, %v2088
    %v2115 = vpop.permute.xlu0 %2114
    %2118 = vset.pattern.permute.xlu0 0
    %2119 = vperm.xlu0 %2118, %v2089
    %v2120 = vpop.permute.xlu0 %2119
    %2123 = vset.pattern.permute.xlu0 0
    %2124 = vperm.xlu0 %2123, %v2090
    %v2125 = vpop.permute.xlu0 %2124
    %2128 = vset.pattern.permute.xlu0 0
    %2129 = vperm.xlu0 %2128, %v2091
    %v2130 = vpop.permute.xlu0 %2129
    %v2132 = vlaneseq
    %v2133 = vshrl.u32 %v2132, 7
    %v2134 = vsub.s32 2, %v2133
    %v2135 = vrot.slane %v105, %v2134
    %v2136 = vmul.f32 %v2095, %v2135
    %v2137 = vmul.f32 %v2100, %v2135
    %v2138 = vmul.f32 %v2105, %v2135
    %v2139 = vmul.f32 %v2110, %v2135
    %v2140 = vmul.f32 %v2115, %v2135
    %v2141 = vmul.f32 %v2120, %v2135
    %v2142 = vmul.f32 %v2125, %v2135
    %v2143 = vmul.f32 %v2130, %v2135
    %v2144 = vlaneseq
    %v2145 = vshrl.u32 %v2144, 7
    %v2146 = vsub.s32 2, %v2145
    %v2147 = vrot.slane %v227, %v2146
    %v2148 = vsub.f32 %v2136, %v2147
    %v2149 = vsub.f32 %v2137, %v2147
    %v2150 = vsub.f32 %v2138, %v2147
    %v2151 = vsub.f32 %v2139, %v2147
    %v2152 = vsub.f32 %v2140, %v2147
    %v2153 = vsub.f32 %v2141, %v2147
    %v2154 = vsub.f32 %v2142, %v2147
    %v2155 = vsub.f32 %v2143, %v2147
    %v2156 = vmul.f32 %v2148, 1.442695
    %v2157 = vpow.pop %v2156
    %v2158 = vmul.f32 %v2149, 1.442695
    %v2159 = vpow.pop %v2158
    %v2160 = vmul.f32 %v2150, 1.442695
    %v2161 = vpow.pop %v2160
    %v2162 = vmul.f32 %v2151, 1.442695
    %v2163 = vpow.pop %v2162
    %v2164 = vmul.f32 %v2152, 1.442695
    %v2165 = vpow.pop %v2164
    %v2166 = vmul.f32 %v2153, 1.442695
    %v2167 = vpow.pop %v2166
    %v2168 = vmul.f32 %v2154, 1.442695
    %v2169 = vpow.pop %v2168
    %v2170 = vmul.f32 %v2155, 1.442695
    %v2171 = vpow.pop %v2170
    %v2172 = vlaneseq
    %v2173 = vshrl.u32 %v2172, 7
    %v2174 = vsub.s32 2, %v2173
    %v2175 = vrot.slane %v189, %v2174
    %v2176 = vsel %vm248, %v2175, 1.0
    %v2178 = vsel %vm218, %v2176, 0
    %2180 = vmatprep.subr.mxu0 0.0
    %2181 = vmatpush1.msra.mxu0 0.0
    %2182 = vmatprep.subr.mxu0 0.0
    %2183 = vmatpush1.msra.mxu0 0.0
    %2184 = vmatprep.subr.mxu0 0.0
    %2185 = vmatpush1.msra.mxu0 0.0
    %2186 = vmatprep.subr.mxu0 0.0
    %2187 = vmatpush1.msra.mxu0 0.0
    %2188 = vmatprep.subr.mxu0 0.0
    %2189 = vmatpush1.msra.mxu0 0.0
    %2190 = vmatprep.subr.mxu0 0.0
    %2191 = vmatpush1.msra.mxu0 0.0
    %2192 = vmatprep.subr.mxu0 0.0
    %2193 = vmatpush1.msra.mxu0 0.0
    %2194 = vmatprep.subr.mxu0 0.0
    %2195 = vmatpush1.msra.mxu0 0.0
    %2196 = vmatprep.subr.mxu0 0.0
    %2197 = vmatpush1.msra.mxu0 %v2171
    %2198 = vmatprep.subr.mxu0 0.0
    %2199 = vmatpush1.msra.mxu0 %v2169
    %2200 = vmatprep.subr.mxu0 0.0
    %2201 = vmatpush1.msra.mxu0 %v2167
    %2202 = vmatprep.subr.mxu0 0.0
    %2203 = vmatpush1.msra.mxu0 %v2165
    %2204 = vmatprep.subr.mxu0 0.0
    %2205 = vmatpush1.msra.mxu0 %v2163
    %2206 = vmatprep.subr.mxu0 0.0
    %2207 = vmatpush1.msra.mxu0 %v2161
    %2208 = vmatprep.subr.mxu0 0.0
    %2209 = vmatpush1.msra.mxu0 %v2159
    %2210 = vmatprep.subr.mxu0 0.0
    %2211 = vmatpush1.msra.mxu0 %v2157
    %2212 = vmatprep.subr.mxu0 0.0
    %2213 = vmatpush2.msra.mxu0 0.0
    %2214 = vmatprep.subr.mxu0 0.0
    %2215 = vmatpush2.msra.mxu0 0.0
    %2216 = vmatprep.subr.mxu0 0.0
    %2217 = vmatpush2.msra.mxu0 0.0
    %2218 = vmatprep.subr.mxu0 0.0
    %2219 = vmatpush2.msra.mxu0 0.0
    %2220 = vmatprep.subr.mxu0 0.0
    %2221 = vmatpush2.msra.mxu0 0.0
    %2222 = vmatprep.subr.mxu0 0.0
    %2223 = vmatpush2.msra.mxu0 0.0
    %2224 = vmatprep.subr.mxu0 0.0
    %2225 = vmatpush2.msra.mxu0 0.0
    %2226 = vmatprep.subr.mxu0 0.0
    %2227 = vmatpush2.msra.mxu0 0.0
    %2228 = vmatprep.subr.mxu0 0.0
    %2229 = vmatpush2.msra.mxu0 0.0
    %2230 = vmatprep.subr.mxu0 0.0
    %2231 = vmatpush2.msra.mxu0 0.0
    %2232 = vmatprep.subr.mxu0 0.0
    %2233 = vmatpush2.msra.mxu0 0.0
    %2234 = vmatprep.subr.mxu0 0.0
    %2235 = vmatpush2.msra.mxu0 0.0
    %2236 = vmatprep.subr.mxu0 0.0
    %2237 = vmatpush2.msra.mxu0 0.0
    %2238 = vmatprep.subr.mxu0 0.0
    %2239 = vmatpush2.msra.mxu0 0.0
    %2240 = vmatprep.subr.mxu0 0.0
    %2241 = vmatpush2.msra.mxu0 0.0
    %2242 = vmatprep.subr.mxu0 0.0
    %2243 = vmatpush2.msra.mxu0 0.0
    %2244 = vmatprep.mubr.f32.mxu0 0.0
    %2245 = vmatmul.mubr.f32.gmra.mxu0 %v2178
    %v2246 = vpop.f32.mrf.mxu0
    %v2247 = vadd.f32 0.0, %v2246
    %v2248 = vpop.f32.mrf.mxu0
    %2249 = vdwg.mxu0
    %v2250 = vrcp.pop %v2247
    %v2252 = vrot.slane %v2250, 1
    %v2254 = vmul.f32 %v2247, %v2252
    %2255 = vst.msk [vmem:[#allocation2 + $0x2] sm:$0x1] %vm532, %v2254
    %s2256 = sld [smem:[#allocation5 + $0x4]]
    %s2257 = sld [smem:[#allocation3 + $0xc]]
    %v2258 = vstv %s2257
    %v2259 = vmul.f32 %v2258, %v1964
    %v2260 = vmul.f32 %v2258, %v1965
    %v2261 = vmul.f32 %v2258, %v1966
    %v2262 = vmul.f32 %v2258, %v1967
    %v2263 = vmul.f32 %v2258, %v1968
    %v2264 = vmul.f32 %v2258, %v1969
    %v2265 = vmul.f32 %v2258, %v1970
    %v2266 = vmul.f32 %v2258, %v1971
    %v2267 = vstv %s2256
    %v2268 = vadd.f32 %v2267, %v2259
    %v2269 = vadd.f32 %v2267, %v2260
    %v2270 = vadd.f32 %v2267, %v2261
    %v2271 = vadd.f32 %v2267, %v2262
    %v2272 = vadd.f32 %v2267, %v2263
    %v2273 = vadd.f32 %v2267, %v2264
    %v2274 = vadd.f32 %v2267, %v2265
    %v2275 = vadd.f32 %v2267, %v2266
    %s2276 = sld [smem:[#allocation3 + $0xd]]
    %v2277 = vstv %s2276
    %v2278 = vmul.f32 %v2277, %v1964
    %v2279 = vmul.f32 %v2277, %v1965
    %v2280 = vmul.f32 %v2277, %v1966
    %v2281 = vmul.f32 %v2277, %v1967
    %v2282 = vmul.f32 %v2277, %v1968
    %v2283 = vmul.f32 %v2277, %v1969
    %v2284 = vmul.f32 %v2277, %v1970
    %v2285 = vmul.f32 %v2277, %v1971
    %2294 = vrot.lane.b32.xlu0 %v2278, 127
    %v2295 = vpop.permute.xlu0 %2294
    %2296 = vrot.lane.b32.xlu0 %v2279, 127
    %v2297 = vpop.permute.xlu0 %2296
    %2298 = vrot.lane.b32.xlu0 %v2280, 127
    %v2299 = vpop.permute.xlu0 %2298
    %2300 = vrot.lane.b32.xlu0 %v2281, 127
    %v2301 = vpop.permute.xlu0 %2300
    %2302 = vrot.lane.b32.xlu0 %v2282, 127
    %v2303 = vpop.permute.xlu0 %2302
    %2304 = vrot.lane.b32.xlu0 %v2283, 127
    %v2305 = vpop.permute.xlu0 %2304
    %2306 = vrot.lane.b32.xlu0 %v2284, 127
    %v2307 = vpop.permute.xlu0 %2306
    %2308 = vrot.lane.b32.xlu0 %v2285, 127
    %v2309 = vpop.permute.xlu0 %2308
    %v2318 = vadd.f32 %v2268, %v2295
    %v2319 = vadd.f32 %v2269, %v2297
    %v2320 = vadd.f32 %v2270, %v2299
    %v2321 = vadd.f32 %v2271, %v2301
    %v2322 = vadd.f32 %v2272, %v2303
    %v2323 = vadd.f32 %v2273, %v2305
    %v2324 = vadd.f32 %v2274, %v2307
    %v2325 = vadd.f32 %v2275, %v2309
    %s2326 = sld [smem:[#allocation3 + $0xe]]
    %v2327 = vstv %s2326
    %v2328 = vmul.f32 %v2327, %v1964
    %v2329 = vmul.f32 %v2327, %v1965
    %v2330 = vmul.f32 %v2327, %v1966
    %v2331 = vmul.f32 %v2327, %v1967
    %v2332 = vmul.f32 %v2327, %v1968
    %v2333 = vmul.f32 %v2327, %v1969
    %v2334 = vmul.f32 %v2327, %v1970
    %v2335 = vmul.f32 %v2327, %v1971
    %2344 = vrot.lane.b32.xlu0 %v2328, 126
    %v2345 = vpop.permute.xlu0 %2344
    %2346 = vrot.lane.b32.xlu0 %v2329, 126
    %v2347 = vpop.permute.xlu0 %2346
    %2348 = vrot.lane.b32.xlu0 %v2330, 126
    %v2349 = vpop.permute.xlu0 %2348
    %2350 = vrot.lane.b32.xlu0 %v2331, 126
    %v2351 = vpop.permute.xlu0 %2350
    %2352 = vrot.lane.b32.xlu0 %v2332, 126
    %v2353 = vpop.permute.xlu0 %2352
    %2354 = vrot.lane.b32.xlu0 %v2333, 126
    %v2355 = vpop.permute.xlu0 %2354
    %2356 = vrot.lane.b32.xlu0 %v2334, 126
    %v2357 = vpop.permute.xlu0 %2356
    %2358 = vrot.lane.b32.xlu0 %v2335, 126
    %v2359 = vpop.permute.xlu0 %2358
    %v2368 = vadd.f32 %v2318, %v2345
    %v2369 = vadd.f32 %v2319, %v2347
    %v2370 = vadd.f32 %v2320, %v2349
    %v2371 = vadd.f32 %v2321, %v2351
    %v2372 = vadd.f32 %v2322, %v2353
    %v2373 = vadd.f32 %v2323, %v2355
    %v2374 = vadd.f32 %v2324, %v2357
    %v2375 = vadd.f32 %v2325, %v2359
    %2377 = vset.pattern.permute.xlu0 0
    %2378 = vperm.xlu0 %2377, %v2368
    %v2379 = vpop.permute.xlu0 %2378
    %2382 = vset.pattern.permute.xlu0 0
    %2383 = vperm.xlu0 %2382, %v2369
    %v2384 = vpop.permute.xlu0 %2383
    %2387 = vset.pattern.permute.xlu0 0
    %2388 = vperm.xlu0 %2387, %v2370
    %v2389 = vpop.permute.xlu0 %2388
    %2392 = vset.pattern.permute.xlu0 0
    %2393 = vperm.xlu0 %2392, %v2371
    %v2394 = vpop.permute.xlu0 %2393
    %2397 = vset.pattern.permute.xlu0 0
    %2398 = vperm.xlu0 %2397, %v2372
    %v2399 = vpop.permute.xlu0 %2398
    %2402 = vset.pattern.permute.xlu0 0
    %2403 = vperm.xlu0 %2402, %v2373
    %v2404 = vpop.permute.xlu0 %2403
    %2407 = vset.pattern.permute.xlu0 0
    %2408 = vperm.xlu0 %2407, %v2374
    %v2409 = vpop.permute.xlu0 %2408
    %2412 = vset.pattern.permute.xlu0 0
    %2413 = vperm.xlu0 %2412, %v2375
    %v2414 = vpop.permute.xlu0 %2413
    %v2416 = vlaneseq
    %v2417 = vshrl.u32 %v2416, 7
    %v2418 = vsub.s32 2, %v2417
    %v2419 = vrot.slane %v119, %v2418
    %v2420 = vmul.f32 %v2379, %v2419
    %v2421 = vmul.f32 %v2384, %v2419
    %v2422 = vmul.f32 %v2389, %v2419
    %v2423 = vmul.f32 %v2394, %v2419
    %v2424 = vmul.f32 %v2399, %v2419
    %v2425 = vmul.f32 %v2404, %v2419
    %v2426 = vmul.f32 %v2409, %v2419
    %v2427 = vmul.f32 %v2414, %v2419
    %v2428 = vlaneseq
    %v2429 = vshrl.u32 %v2428, 7
    %v2430 = vsub.s32 2, %v2429
    %v2431 = vrot.slane %v236, %v2430
    %v2432 = vsub.f32 %v2420, %v2431
    %v2433 = vsub.f32 %v2421, %v2431
    %v2434 = vsub.f32 %v2422, %v2431
    %v2435 = vsub.f32 %v2423, %v2431
    %v2436 = vsub.f32 %v2424, %v2431
    %v2437 = vsub.f32 %v2425, %v2431
    %v2438 = vsub.f32 %v2426, %v2431
    %v2439 = vsub.f32 %v2427, %v2431
    %v2440 = vmul.f32 %v2432, 1.442695
    %v2441 = vpow.pop %v2440
    %v2442 = vmul.f32 %v2433, 1.442695
    %v2443 = vpow.pop %v2442
    %v2444 = vmul.f32 %v2434, 1.442695
    %v2445 = vpow.pop %v2444
    %v2446 = vmul.f32 %v2435, 1.442695
    %v2447 = vpow.pop %v2446
    %v2448 = vmul.f32 %v2436, 1.442695
    %v2449 = vpow.pop %v2448
    %v2450 = vmul.f32 %v2437, 1.442695
    %v2451 = vpow.pop %v2450
    %v2452 = vmul.f32 %v2438, 1.442695
    %v2453 = vpow.pop %v2452
    %v2454 = vmul.f32 %v2439, 1.442695
    %v2455 = vpow.pop %v2454
    %v2456 = vlaneseq
    %v2457 = vshrl.u32 %v2456, 7
    %v2458 = vsub.s32 2, %v2457
    %v2459 = vrot.slane %v203, %v2458
    %v2460 = vsel %vm248, %v2459, 1.0
    %v2462 = vsel %vm218, %v2460, 0
    %2464 = vmatprep.subr.mxu0 0.0
    %2465 = vmatpush1.msra.mxu0 0.0
    %2466 = vmatprep.subr.mxu0 0.0
    %2467 = vmatpush1.msra.mxu0 0.0
    %2468 = vmatprep.subr.mxu0 0.0
    %2469 = vmatpush1.msra.mxu0 0.0
    %2470 = vmatprep.subr.mxu0 0.0
    %2471 = vmatpush1.msra.mxu0 0.0
    %2472 = vmatprep.subr.mxu0 0.0
    %2473 = vmatpush1.msra.mxu0 0.0
    %2474 = vmatprep.subr.mxu0 0.0
    %2475 = vmatpush1.msra.mxu0 0.0
    %2476 = vmatprep.subr.mxu0 0.0
    %2477 = vmatpush1.msra.mxu0 0.0
    %2478 = vmatprep.subr.mxu0 0.0
    %2479 = vmatpush1.msra.mxu0 0.0
    %2480 = vmatprep.subr.mxu0 0.0
    %2481 = vmatpush1.msra.mxu0 %v2455
    %2482 = vmatprep.subr.mxu0 0.0
    %2483 = vmatpush1.msra.mxu0 %v2453
    %2484 = vmatprep.subr.mxu0 0.0
    %2485 = vmatpush1.msra.mxu0 %v2451
    %2486 = vmatprep.subr.mxu0 0.0
    %2487 = vmatpush1.msra.mxu0 %v2449
    %2488 = vmatprep.subr.mxu0 0.0
    %2489 = vmatpush1.msra.mxu0 %v2447
    %2490 = vmatprep.subr.mxu0 0.0
    %2491 = vmatpush1.msra.mxu0 %v2445
    %2492 = vmatprep.subr.mxu0 0.0
    %2493 = vmatpush1.msra.mxu0 %v2443
    %2494 = vmatprep.subr.mxu0 0.0
    %2495 = vmatpush1.msra.mxu0 %v2441
    %2496 = vmatprep.subr.mxu0 0.0
    %2497 = vmatpush2.msra.mxu0 0.0
    %2498 = vmatprep.subr.mxu0 0.0
    %2499 = vmatpush2.msra.mxu0 0.0
    %2500 = vmatprep.subr.mxu0 0.0
    %2501 = vmatpush2.msra.mxu0 0.0
    %2502 = vmatprep.subr.mxu0 0.0
    %2503 = vmatpush2.msra.mxu0 0.0
    %2504 = vmatprep.subr.mxu0 0.0
    %2505 = vmatpush2.msra.mxu0 0.0
    %2506 = vmatprep.subr.mxu0 0.0
    %2507 = vmatpush2.msra.mxu0 0.0
    %2508 = vmatprep.subr.mxu0 0.0
    %2509 = vmatpush2.msra.mxu0 0.0
    %2510 = vmatprep.subr.mxu0 0.0
    %2511 = vmatpush2.msra.mxu0 0.0
    %2512 = vmatprep.subr.mxu0 0.0
    %2513 = vmatpush2.msra.mxu0 0.0
    %2514 = vmatprep.subr.mxu0 0.0
    %2515 = vmatpush2.msra.mxu0 0.0
    %2516 = vmatprep.subr.mxu0 0.0
    %2517 = vmatpush2.msra.mxu0 0.0
    %2518 = vmatprep.subr.mxu0 0.0
    %2519 = vmatpush2.msra.mxu0 0.0
    %2520 = vmatprep.subr.mxu0 0.0
    %2521 = vmatpush2.msra.mxu0 0.0
    %2522 = vmatprep.subr.mxu0 0.0
    %2523 = vmatpush2.msra.mxu0 0.0
    %2524 = vmatprep.subr.mxu0 0.0
    %2525 = vmatpush2.msra.mxu0 0.0
    %2526 = vmatprep.subr.mxu0 0.0
    %2527 = vmatpush2.msra.mxu0 0.0
    %2528 = vmatprep.mubr.f32.mxu0 0.0
    %2529 = vmatmul.mubr.f32.gmra.mxu0 %v2462
    %v2530 = vpop.f32.mrf.mxu0
    %v2531 = vadd.f32 0.0, %v2530
    %v2532 = vpop.f32.mrf.mxu0
    %2533 = vdwg.mxu0
    %v2534 = vrcp.pop %v2531
    %v2536 = vrot.slane %v2534, 1
    %v2538 = vmul.f32 %v2531, %v2536
    %2539 = vst.msk [vmem:[#allocation2 + $0xa] sm:$0x1] %vm532, %v2538
    %s2540 = sld [smem:[#allocation5 + $0x5]]
    %s2541 = sld [smem:[#allocation3 + $0xf]]
    %v2542 = vstv %s2541
    %v2543 = vmul.f32 %v2542, %v1964
    %v2544 = vmul.f32 %v2542, %v1965
    %v2545 = vmul.f32 %v2542, %v1966
    %v2546 = vmul.f32 %v2542, %v1967
    %v2547 = vmul.f32 %v2542, %v1968
    %v2548 = vmul.f32 %v2542, %v1969
    %v2549 = vmul.f32 %v2542, %v1970
    %v2550 = vmul.f32 %v2542, %v1971
    %v2551 = vstv %s2540
    %v2552 = vadd.f32 %v2551, %v2543
    %v2553 = vadd.f32 %v2551, %v2544
    %v2554 = vadd.f32 %v2551, %v2545
    %v2555 = vadd.f32 %v2551, %v2546
    %v2556 = vadd.f32 %v2551, %v2547
    %v2557 = vadd.f32 %v2551, %v2548
    %v2558 = vadd.f32 %v2551, %v2549
    %v2559 = vadd.f32 %v2551, %v2550
    %s2560 = sld [smem:[#allocation3 + $0x10]]
    %v2561 = vstv %s2560
    %v2562 = vmul.f32 %v2561, %v1964
    %v2563 = vmul.f32 %v2561, %v1965
    %v2564 = vmul.f32 %v2561, %v1966
    %v2565 = vmul.f32 %v2561, %v1967
    %v2566 = vmul.f32 %v2561, %v1968
    %v2567 = vmul.f32 %v2561, %v1969
    %v2568 = vmul.f32 %v2561, %v1970
    %v2569 = vmul.f32 %v2561, %v1971
    %2578 = vrot.lane.b32.xlu0 %v2562, 127
    %v2579 = vpop.permute.xlu0 %2578
    %2580 = vrot.lane.b32.xlu0 %v2563, 127
    %v2581 = vpop.permute.xlu0 %2580
    %2582 = vrot.lane.b32.xlu0 %v2564, 127
    %v2583 = vpop.permute.xlu0 %2582
    %2584 = vrot.lane.b32.xlu0 %v2565, 127
    %v2585 = vpop.permute.xlu0 %2584
    %2586 = vrot.lane.b32.xlu0 %v2566, 127
    %v2587 = vpop.permute.xlu0 %2586
    %2588 = vrot.lane.b32.xlu0 %v2567, 127
    %v2589 = vpop.permute.xlu0 %2588
    %2590 = vrot.lane.b32.xlu0 %v2568, 127
    %v2591 = vpop.permute.xlu0 %2590
    %2592 = vrot.lane.b32.xlu0 %v2569, 127
    %v2593 = vpop.permute.xlu0 %2592
    %v2602 = vadd.f32 %v2552, %v2579
    %v2603 = vadd.f32 %v2553, %v2581
    %v2604 = vadd.f32 %v2554, %v2583
    %v2605 = vadd.f32 %v2555, %v2585
    %v2606 = vadd.f32 %v2556, %v2587
    %v2607 = vadd.f32 %v2557, %v2589
    %v2608 = vadd.f32 %v2558, %v2591
    %v2609 = vadd.f32 %v2559, %v2593
    %s2610 = sld [smem:[#allocation3 + $0x11]]
    %v2611 = vstv %s2610
    %v2612 = vmul.f32 %v2611, %v1964
    %v2613 = vmul.f32 %v2611, %v1965
    %v2614 = vmul.f32 %v2611, %v1966
    %v2615 = vmul.f32 %v2611, %v1967
    %v2616 = vmul.f32 %v2611, %v1968
    %v2617 = vmul.f32 %v2611, %v1969
    %v2618 = vmul.f32 %v2611, %v1970
    %v2619 = vmul.f32 %v2611, %v1971
    %2628 = vrot.lane.b32.xlu0 %v2612, 126
    %v2629 = vpop.permute.xlu0 %2628
    %2630 = vrot.lane.b32.xlu0 %v2613, 126
    %v2631 = vpop.permute.xlu0 %2630
    %2632 = vrot.lane.b32.xlu0 %v2614, 126
    %v2633 = vpop.permute.xlu0 %2632
    %2634 = vrot.lane.b32.xlu0 %v2615, 126
    %v2635 = vpop.permute.xlu0 %2634
    %2636 = vrot.lane.b32.xlu0 %v2616, 126
    %v2637 = vpop.permute.xlu0 %2636
    %2638 = vrot.lane.b32.xlu0 %v2617, 126
    %v2639 = vpop.permute.xlu0 %2638
    %2640 = vrot.lane.b32.xlu0 %v2618, 126
    %v2641 = vpop.permute.xlu0 %2640
    %2642 = vrot.lane.b32.xlu0 %v2619, 126
    %v2643 = vpop.permute.xlu0 %2642
    %v2652 = vadd.f32 %v2602, %v2629
    %v2653 = vadd.f32 %v2603, %v2631
    %v2654 = vadd.f32 %v2604, %v2633
    %v2655 = vadd.f32 %v2605, %v2635
    %v2656 = vadd.f32 %v2606, %v2637
    %v2657 = vadd.f32 %v2607, %v2639
    %v2658 = vadd.f32 %v2608, %v2641
    %v2659 = vadd.f32 %v2609, %v2643
    %2661 = vset.pattern.permute.xlu0 0
    %2662 = vperm.xlu0 %2661, %v2652
    %v2663 = vpop.permute.xlu0 %2662
    %2666 = vset.pattern.permute.xlu0 0
    %2667 = vperm.xlu0 %2666, %v2653
    %v2668 = vpop.permute.xlu0 %2667
    %2671 = vset.pattern.permute.xlu0 0
    %2672 = vperm.xlu0 %2671, %v2654
    %v2673 = vpop.permute.xlu0 %2672
    %2676 = vset.pattern.permute.xlu0 0
    %2677 = vperm.xlu0 %2676, %v2655
    %v2678 = vpop.permute.xlu0 %2677
    %2681 = vset.pattern.permute.xlu0 0
    %2682 = vperm.xlu0 %2681, %v2656
    %v2683 = vpop.permute.xlu0 %2682
    %2686 = vset.pattern.permute.xlu0 0
    %2687 = vperm.xlu0 %2686, %v2657
    %v2688 = vpop.permute.xlu0 %2687
    %2691 = vset.pattern.permute.xlu0 0
    %2692 = vperm.xlu0 %2691, %v2658
    %v2693 = vpop.permute.xlu0 %2692
    %2696 = vset.pattern.permute.xlu0 0
    %2697 = vperm.xlu0 %2696, %v2659
    %v2698 = vpop.permute.xlu0 %2697
    %v2700 = vlaneseq
    %v2701 = vshrl.u32 %v2700, 7
    %v2702 = vsub.s32 2, %v2701
    %v2703 = vrot.slane %v133, %v2702
    %v2704 = vmul.f32 %v2663, %v2703
    %v2705 = vmul.f32 %v2668, %v2703
    %v2706 = vmul.f32 %v2673, %v2703
    %v2707 = vmul.f32 %v2678, %v2703
    %v2708 = vmul.f32 %v2683, %v2703
    %v2709 = vmul.f32 %v2688, %v2703
    %v2710 = vmul.f32 %v2693, %v2703
    %v2711 = vmul.f32 %v2698, %v2703
    %v2712 = vlaneseq
    %v2713 = vshrl.u32 %v2712, 7
    %v2714 = vsub.s32 2, %v2713
    %v2715 = vrot.slane %v245, %v2714
    %v2716 = vsub.f32 %v2704, %v2715
    %v2717 = vsub.f32 %v2705, %v2715
    %v2718 = vsub.f32 %v2706, %v2715
    %v2719 = vsub.f32 %v2707, %v2715
    %v2720 = vsub.f32 %v2708, %v2715
    %v2721 = vsub.f32 %v2709, %v2715
    %v2722 = vsub.f32 %v2710, %v2715
    %v2723 = vsub.f32 %v2711, %v2715
    %v2724 = vmul.f32 %v2716, 1.442695
    %v2725 = vpow.pop %v2724
    %v2726 = vmul.f32 %v2717, 1.442695
    %v2727 = vpow.pop %v2726
    %v2728 = vmul.f32 %v2718, 1.442695
    %v2729 = vpow.pop %v2728
    %v2730 = vmul.f32 %v2719, 1.442695
    %v2731 = vpow.pop %v2730
    %v2732 = vmul.f32 %v2720, 1.442695
    %v2733 = vpow.pop %v2732
    %v2734 = vmul.f32 %v2721, 1.442695
    %v2735 = vpow.pop %v2734
    %v2736 = vmul.f32 %v2722, 1.442695
    %v2737 = vpow.pop %v2736
    %v2738 = vmul.f32 %v2723, 1.442695
    %v2739 = vpow.pop %v2738
    %v2740 = vlaneseq
    %v2741 = vshrl.u32 %v2740, 7
    %v2742 = vsub.s32 2, %v2741
    %v2743 = vrot.slane %v217, %v2742
    %v2744 = vsel %vm248, %v2743, 1.0
    %v2746 = vsel %vm218, %v2744, 0
    %2748 = vmatprep.subr.mxu0 0.0
    %2749 = vmatpush1.msra.mxu0 0.0
    %2750 = vmatprep.subr.mxu0 0.0
    %2751 = vmatpush1.msra.mxu0 0.0
    %2752 = vmatprep.subr.mxu0 0.0
    %2753 = vmatpush1.msra.mxu0 0.0
    %2754 = vmatprep.subr.mxu0 0.0
    %2755 = vmatpush1.msra.mxu0 0.0
    %2756 = vmatprep.subr.mxu0 0.0
    %2757 = vmatpush1.msra.mxu0 0.0
    %2758 = vmatprep.subr.mxu0 0.0
    %2759 = vmatpush1.msra.mxu0 0.0
    %2760 = vmatprep.subr.mxu0 0.0
    %2761 = vmatpush1.msra.mxu0 0.0
    %2762 = vmatprep.subr.mxu0 0.0
    %2763 = vmatpush1.msra.mxu0 0.0
    %2764 = vmatprep.subr.mxu0 0.0
    %2765 = vmatpush1.msra.mxu0 %v2739
    %2766 = vmatprep.subr.mxu0 0.0
    %2767 = vmatpush1.msra.mxu0 %v2737
    %2768 = vmatprep.subr.mxu0 0.0
    %2769 = vmatpush1.msra.mxu0 %v2735
    %2770 = vmatprep.subr.mxu0 0.0
    %2771 = vmatpush1.msra.mxu0 %v2733
    %2772 = vmatprep.subr.mxu0 0.0
    %2773 = vmatpush1.msra.mxu0 %v2731
    %2774 = vmatprep.subr.mxu0 0.0
    %2775 = vmatpush1.msra.mxu0 %v2729
    %2776 = vmatprep.subr.mxu0 0.0
    %2777 = vmatpush1.msra.mxu0 %v2727
    %2778 = vmatprep.subr.mxu0 0.0
    %2779 = vmatpush1.msra.mxu0 %v2725
    %2780 = vmatprep.subr.mxu0 0.0
    %2781 = vmatpush2.msra.mxu0 0.0
    %2782 = vmatprep.subr.mxu0 0.0
    %2783 = vmatpush2.msra.mxu0 0.0
    %2784 = vmatprep.subr.mxu0 0.0
    %2785 = vmatpush2.msra.mxu0 0.0
    %2786 = vmatprep.subr.mxu0 0.0
    %2787 = vmatpush2.msra.mxu0 0.0
    %2788 = vmatprep.subr.mxu0 0.0
    %2789 = vmatpush2.msra.mxu0 0.0
    %2790 = vmatprep.subr.mxu0 0.0
    %2791 = vmatpush2.msra.mxu0 0.0
    %2792 = vmatprep.subr.mxu0 0.0
    %2793 = vmatpush2.msra.mxu0 0.0
    %2794 = vmatprep.subr.mxu0 0.0
    %2795 = vmatpush2.msra.mxu0 0.0
    %2796 = vmatprep.subr.mxu0 0.0
    %2797 = vmatpush2.msra.mxu0 0.0
    %2798 = vmatprep.subr.mxu0 0.0
    %2799 = vmatpush2.msra.mxu0 0.0
    %2800 = vmatprep.subr.mxu0 0.0
    %2801 = vmatpush2.msra.mxu0 0.0
    %2802 = vmatprep.subr.mxu0 0.0
    %2803 = vmatpush2.msra.mxu0 0.0
    %2804 = vmatprep.subr.mxu0 0.0
    %2805 = vmatpush2.msra.mxu0 0.0
    %2806 = vmatprep.subr.mxu0 0.0
    %2807 = vmatpush2.msra.mxu0 0.0
    %2808 = vmatprep.subr.mxu0 0.0
    %2809 = vmatpush2.msra.mxu0 0.0
    %2810 = vmatprep.subr.mxu0 0.0
    %2811 = vmatpush2.msra.mxu0 0.0
    %2812 = vmatprep.mubr.f32.mxu0 0.0
    %2813 = vmatmul.mubr.f32.gmra.mxu0 %v2746
    %v2814 = vpop.f32.mrf.mxu0
    %v2815 = vadd.f32 0.0, %v2814
    %v2816 = vpop.f32.mrf.mxu0
    %2817 = vdwg.mxu0
    %v2818 = vrcp.pop %v2815
    %v2820 = vrot.slane %v2818, 1
    %v2822 = vmul.f32 %v2815, %v2820
    %2823 = vst.msk [vmem:[#allocation2 + $0x12] sm:$0x1] %vm532, %v2822
    %s2824 = scalar_lea.vmem %s1, 192
    %v2825 = vld [vmem:[%s2824] sm:$0xff]
    %v2826 = vld [vmem:[%s2824 + $0x8] sm:$0xff]
    %v2827 = vld [vmem:[%s2824 + $0x10] sm:$0xff]
    %v2828 = vld [vmem:[%s2824 + $0x18] sm:$0xff]
    %v2829 = vld [vmem:[%s2824 + $0x20] sm:$0xff]
    %v2830 = vld [vmem:[%s2824 + $0x28] sm:$0xff]
    %v2831 = vld [vmem:[%s2824 + $0x30] sm:$0xff]
    %v2832 = vld [vmem:[%s2824 + $0x38] sm:$0xff]
    %s2833 = sld [smem:[#allocation5 + $0x3]]
    %s2834 = sld [smem:[#allocation3 + $0x9]]
    %v2835 = vstv %s2834
    %v2836 = vmul.f32 %v2835, %v2825
    %v2837 = vmul.f32 %v2835, %v2826
    %v2838 = vmul.f32 %v2835, %v2827
    %v2839 = vmul.f32 %v2835, %v2828
    %v2840 = vmul.f32 %v2835, %v2829
    %v2841 = vmul.f32 %v2835, %v2830
    %v2842 = vmul.f32 %v2835, %v2831
    %v2843 = vmul.f32 %v2835, %v2832
    %v2844 = vstv %s2833
    %v2845 = vadd.f32 %v2844, %v2836
    %v2846 = vadd.f32 %v2844, %v2837
    %v2847 = vadd.f32 %v2844, %v2838
    %v2848 = vadd.f32 %v2844, %v2839
    %v2849 = vadd.f32 %v2844, %v2840
    %v2850 = vadd.f32 %v2844, %v2841
    %v2851 = vadd.f32 %v2844, %v2842
    %v2852 = vadd.f32 %v2844, %v2843
    %s2853 = sld [smem:[#allocation3 + $0xa]]
    %v2854 = vstv %s2853
    %v2855 = vmul.f32 %v2854, %v2825
    %v2856 = vmul.f32 %v2854, %v2826
    %v2857 = vmul.f32 %v2854, %v2827
    %v2858 = vmul.f32 %v2854, %v2828
    %v2859 = vmul.f32 %v2854, %v2829
    %v2860 = vmul.f32 %v2854, %v2830
    %v2861 = vmul.f32 %v2854, %v2831
    %v2862 = vmul.f32 %v2854, %v2832
    %2871 = vrot.lane.b32.xlu0 %v2855, 127
    %v2872 = vpop.permute.xlu0 %2871
    %2873 = vrot.lane.b32.xlu0 %v2856, 127
    %v2874 = vpop.permute.xlu0 %2873
    %2875 = vrot.lane.b32.xlu0 %v2857, 127
    %v2876 = vpop.permute.xlu0 %2875
    %2877 = vrot.lane.b32.xlu0 %v2858, 127
    %v2878 = vpop.permute.xlu0 %2877
    %2879 = vrot.lane.b32.xlu0 %v2859, 127
    %v2880 = vpop.permute.xlu0 %2879
    %2881 = vrot.lane.b32.xlu0 %v2860, 127
    %v2882 = vpop.permute.xlu0 %2881
    %2883 = vrot.lane.b32.xlu0 %v2861, 127
    %v2884 = vpop.permute.xlu0 %2883
    %2885 = vrot.lane.b32.xlu0 %v2862, 127
    %v2886 = vpop.permute.xlu0 %2885
    %v2895 = vadd.f32 %v2845, %v2872
    %v2896 = vadd.f32 %v2846, %v2874
    %v2897 = vadd.f32 %v2847, %v2876
    %v2898 = vadd.f32 %v2848, %v2878
    %v2899 = vadd.f32 %v2849, %v2880
    %v2900 = vadd.f32 %v2850, %v2882
    %v2901 = vadd.f32 %v2851, %v2884
    %v2902 = vadd.f32 %v2852, %v2886
    %s2903 = sld [smem:[#allocation3 + $0xb]]
    %v2904 = vstv %s2903
    %v2905 = vmul.f32 %v2904, %v2825
    %v2906 = vmul.f32 %v2904, %v2826
    %v2907 = vmul.f32 %v2904, %v2827
    %v2908 = vmul.f32 %v2904, %v2828
    %v2909 = vmul.f32 %v2904, %v2829
    %v2910 = vmul.f32 %v2904, %v2830
    %v2911 = vmul.f32 %v2904, %v2831
    %v2912 = vmul.f32 %v2904, %v2832
    %2921 = vrot.lane.b32.xlu0 %v2905, 126
    %v2922 = vpop.permute.xlu0 %2921
    %2923 = vrot.lane.b32.xlu0 %v2906, 126
    %v2924 = vpop.permute.xlu0 %2923
    %2925 = vrot.lane.b32.xlu0 %v2907, 126
    %v2926 = vpop.permute.xlu0 %2925
    %2927 = vrot.lane.b32.xlu0 %v2908, 126
    %v2928 = vpop.permute.xlu0 %2927
    %2929 = vrot.lane.b32.xlu0 %v2909, 126
    %v2930 = vpop.permute.xlu0 %2929
    %2931 = vrot.lane.b32.xlu0 %v2910, 126
    %v2932 = vpop.permute.xlu0 %2931
    %2933 = vrot.lane.b32.xlu0 %v2911, 126
    %v2934 = vpop.permute.xlu0 %2933
    %2935 = vrot.lane.b32.xlu0 %v2912, 126
    %v2936 = vpop.permute.xlu0 %2935
    %v2945 = vadd.f32 %v2895, %v2922
    %v2946 = vadd.f32 %v2896, %v2924
    %v2947 = vadd.f32 %v2897, %v2926
    %v2948 = vadd.f32 %v2898, %v2928
    %v2949 = vadd.f32 %v2899, %v2930
    %v2950 = vadd.f32 %v2900, %v2932
    %v2951 = vadd.f32 %v2901, %v2934
    %v2952 = vadd.f32 %v2902, %v2936
    %2954 = vset.pattern.permute.xlu0 0
    %2955 = vperm.xlu0 %2954, %v2945
    %v2956 = vpop.permute.xlu0 %2955
    %2959 = vset.pattern.permute.xlu0 0
    %2960 = vperm.xlu0 %2959, %v2946
    %v2961 = vpop.permute.xlu0 %2960
    %2964 = vset.pattern.permute.xlu0 0
    %2965 = vperm.xlu0 %2964, %v2947
    %v2966 = vpop.permute.xlu0 %2965
    %2969 = vset.pattern.permute.xlu0 0
    %2970 = vperm.xlu0 %2969, %v2948
    %v2971 = vpop.permute.xlu0 %2970
    %2974 = vset.pattern.permute.xlu0 0
    %2975 = vperm.xlu0 %2974, %v2949
    %v2976 = vpop.permute.xlu0 %2975
    %2979 = vset.pattern.permute.xlu0 0
    %2980 = vperm.xlu0 %2979, %v2950
    %v2981 = vpop.permute.xlu0 %2980
    %2984 = vset.pattern.permute.xlu0 0
    %2985 = vperm.xlu0 %2984, %v2951
    %v2986 = vpop.permute.xlu0 %2985
    %2989 = vset.pattern.permute.xlu0 0
    %2990 = vperm.xlu0 %2989, %v2952
    %v2991 = vpop.permute.xlu0 %2990
    %v2993 = vlaneseq
    %v2994 = vshrl.u32 %v2993, 7
    %v2995 = vsub.s32 3, %v2994
    %v2996 = vrot.slane %v105, %v2995
    %v2997 = vmul.f32 %v2956, %v2996
    %v2998 = vmul.f32 %v2961, %v2996
    %v2999 = vmul.f32 %v2966, %v2996
    %v3000 = vmul.f32 %v2971, %v2996
    %v3001 = vmul.f32 %v2976, %v2996
    %v3002 = vmul.f32 %v2981, %v2996
    %v3003 = vmul.f32 %v2986, %v2996
    %v3004 = vmul.f32 %v2991, %v2996
    %v3005 = vlaneseq
    %v3006 = vshrl.u32 %v3005, 7
    %v3007 = vsub.s32 3, %v3006
    %v3008 = vrot.slane %v227, %v3007
    %v3009 = vsub.f32 %v2997, %v3008
    %v3010 = vsub.f32 %v2998, %v3008
    %v3011 = vsub.f32 %v2999, %v3008
    %v3012 = vsub.f32 %v3000, %v3008
    %v3013 = vsub.f32 %v3001, %v3008
    %v3014 = vsub.f32 %v3002, %v3008
    %v3015 = vsub.f32 %v3003, %v3008
    %v3016 = vsub.f32 %v3004, %v3008
    %v3017 = vmul.f32 %v3009, 1.442695
    %v3018 = vpow.pop %v3017
    %v3019 = vmul.f32 %v3010, 1.442695
    %v3020 = vpow.pop %v3019
    %v3021 = vmul.f32 %v3011, 1.442695
    %v3022 = vpow.pop %v3021
    %v3023 = vmul.f32 %v3012, 1.442695
    %v3024 = vpow.pop %v3023
    %v3025 = vmul.f32 %v3013, 1.442695
    %v3026 = vpow.pop %v3025
    %v3027 = vmul.f32 %v3014, 1.442695
    %v3028 = vpow.pop %v3027
    %v3029 = vmul.f32 %v3015, 1.442695
    %v3030 = vpow.pop %v3029
    %v3031 = vmul.f32 %v3016, 1.442695
    %v3032 = vpow.pop %v3031
    %v3033 = vlaneseq
    %v3034 = vshrl.u32 %v3033, 7
    %v3035 = vsub.s32 3, %v3034
    %v3036 = vrot.slane %v189, %v3035
    %v3037 = vsel %vm248, %v3036, 1.0
    %v3039 = vsel %vm218, %v3037, 0
    %3041 = vmatprep.subr.mxu0 0.0
    %3042 = vmatpush1.msra.mxu0 0.0
    %3043 = vmatprep.subr.mxu0 0.0
    %3044 = vmatpush1.msra.mxu0 0.0
    %3045 = vmatprep.subr.mxu0 0.0
    %3046 = vmatpush1.msra.mxu0 0.0
    %3047 = vmatprep.subr.mxu0 0.0
    %3048 = vmatpush1.msra.mxu0 0.0
    %3049 = vmatprep.subr.mxu0 0.0
    %3050 = vmatpush1.msra.mxu0 0.0
    %3051 = vmatprep.subr.mxu0 0.0
    %3052 = vmatpush1.msra.mxu0 0.0
    %3053 = vmatprep.subr.mxu0 0.0
    %3054 = vmatpush1.msra.mxu0 0.0
    %3055 = vmatprep.subr.mxu0 0.0
    %3056 = vmatpush1.msra.mxu0 0.0
    %3057 = vmatprep.subr.mxu0 0.0
    %3058 = vmatpush1.msra.mxu0 %v3032
    %3059 = vmatprep.subr.mxu0 0.0
    %3060 = vmatpush1.msra.mxu0 %v3030
    %3061 = vmatprep.subr.mxu0 0.0
    %3062 = vmatpush1.msra.mxu0 %v3028
    %3063 = vmatprep.subr.mxu0 0.0
    %3064 = vmatpush1.msra.mxu0 %v3026
    %3065 = vmatprep.subr.mxu0 0.0
    %3066 = vmatpush1.msra.mxu0 %v3024
    %3067 = vmatprep.subr.mxu0 0.0
    %3068 = vmatpush1.msra.mxu0 %v3022
    %3069 = vmatprep.subr.mxu0 0.0
    %3070 = vmatpush1.msra.mxu0 %v3020
    %3071 = vmatprep.subr.mxu0 0.0
    %3072 = vmatpush1.msra.mxu0 %v3018
    %3073 = vmatprep.subr.mxu0 0.0
    %3074 = vmatpush2.msra.mxu0 0.0
    %3075 = vmatprep.subr.mxu0 0.0
    %3076 = vmatpush2.msra.mxu0 0.0
    %3077 = vmatprep.subr.mxu0 0.0
    %3078 = vmatpush2.msra.mxu0 0.0
    %3079 = vmatprep.subr.mxu0 0.0
    %3080 = vmatpush2.msra.mxu0 0.0
    %3081 = vmatprep.subr.mxu0 0.0
    %3082 = vmatpush2.msra.mxu0 0.0
    %3083 = vmatprep.subr.mxu0 0.0
    %3084 = vmatpush2.msra.mxu0 0.0
    %3085 = vmatprep.subr.mxu0 0.0
    %3086 = vmatpush2.msra.mxu0 0.0
    %3087 = vmatprep.subr.mxu0 0.0
    %3088 = vmatpush2.msra.mxu0 0.0
    %3089 = vmatprep.subr.mxu0 0.0
    %3090 = vmatpush2.msra.mxu0 0.0
    %3091 = vmatprep.subr.mxu0 0.0
    %3092 = vmatpush2.msra.mxu0 0.0
    %3093 = vmatprep.subr.mxu0 0.0
    %3094 = vmatpush2.msra.mxu0 0.0
    %3095 = vmatprep.subr.mxu0 0.0
    %3096 = vmatpush2.msra.mxu0 0.0
    %3097 = vmatprep.subr.mxu0 0.0
    %3098 = vmatpush2.msra.mxu0 0.0
    %3099 = vmatprep.subr.mxu0 0.0
    %3100 = vmatpush2.msra.mxu0 0.0
    %3101 = vmatprep.subr.mxu0 0.0
    %3102 = vmatpush2.msra.mxu0 0.0
    %3103 = vmatprep.subr.mxu0 0.0
    %3104 = vmatpush2.msra.mxu0 0.0
    %3105 = vmatprep.mubr.f32.mxu0 0.0
    %3106 = vmatmul.mubr.f32.gmra.mxu0 %v3039
    %v3107 = vpop.f32.mrf.mxu0
    %v3108 = vadd.f32 0.0, %v3107
    %v3109 = vpop.f32.mrf.mxu0
    %3110 = vdwg.mxu0
    %v3111 = vrcp.pop %v3108
    %v3113 = vrot.slane %v3111, 1
    %v3115 = vmul.f32 %v3108, %v3113
    %3116 = vst.msk [vmem:[#allocation2 + $0x3] sm:$0x1] %vm532, %v3115
    %s3117 = sld [smem:[#allocation5 + $0x4]]
    %s3118 = sld [smem:[#allocation3 + $0xc]]
    %v3119 = vstv %s3118
    %v3120 = vmul.f32 %v3119, %v2825
    %v3121 = vmul.f32 %v3119, %v2826
    %v3122 = vmul.f32 %v3119, %v2827
    %v3123 = vmul.f32 %v3119, %v2828
    %v3124 = vmul.f32 %v3119, %v2829
    %v3125 = vmul.f32 %v3119, %v2830
    %v3126 = vmul.f32 %v3119, %v2831
    %v3127 = vmul.f32 %v3119, %v2832
    %v3128 = vstv %s3117
    %v3129 = vadd.f32 %v3128, %v3120
    %v3130 = vadd.f32 %v3128, %v3121
    %v3131 = vadd.f32 %v3128, %v3122
    %v3132 = vadd.f32 %v3128, %v3123
    %v3133 = vadd.f32 %v3128, %v3124
    %v3134 = vadd.f32 %v3128, %v3125
    %v3135 = vadd.f32 %v3128, %v3126
    %v3136 = vadd.f32 %v3128, %v3127
    %s3137 = sld [smem:[#allocation3 + $0xd]]
    %v3138 = vstv %s3137
    %v3139 = vmul.f32 %v3138, %v2825
    %v3140 = vmul.f32 %v3138, %v2826
    %v3141 = vmul.f32 %v3138, %v2827
    %v3142 = vmul.f32 %v3138, %v2828
    %v3143 = vmul.f32 %v3138, %v2829
    %v3144 = vmul.f32 %v3138, %v2830
    %v3145 = vmul.f32 %v3138, %v2831
    %v3146 = vmul.f32 %v3138, %v2832
    %3155 = vrot.lane.b32.xlu0 %v3139, 127
    %v3156 = vpop.permute.xlu0 %3155
    %3157 = vrot.lane.b32.xlu0 %v3140, 127
    %v3158 = vpop.permute.xlu0 %3157
    %3159 = vrot.lane.b32.xlu0 %v3141, 127
    %v3160 = vpop.permute.xlu0 %3159
    %3161 = vrot.lane.b32.xlu0 %v3142, 127
    %v3162 = vpop.permute.xlu0 %3161
    %3163 = vrot.lane.b32.xlu0 %v3143, 127
    %v3164 = vpop.permute.xlu0 %3163
    %3165 = vrot.lane.b32.xlu0 %v3144, 127
    %v3166 = vpop.permute.xlu0 %3165
    %3167 = vrot.lane.b32.xlu0 %v3145, 127
    %v3168 = vpop.permute.xlu0 %3167
    %3169 = vrot.lane.b32.xlu0 %v3146, 127
    %v3170 = vpop.permute.xlu0 %3169
    %v3179 = vadd.f32 %v3129, %v3156
    %v3180 = vadd.f32 %v3130, %v3158
    %v3181 = vadd.f32 %v3131, %v3160
    %v3182 = vadd.f32 %v3132, %v3162
    %v3183 = vadd.f32 %v3133, %v3164
    %v3184 = vadd.f32 %v3134, %v3166
    %v3185 = vadd.f32 %v3135, %v3168
    %v3186 = vadd.f32 %v3136, %v3170
    %s3187 = sld [smem:[#allocation3 + $0xe]]
    %v3188 = vstv %s3187
    %v3189 = vmul.f32 %v3188, %v2825
    %v3190 = vmul.f32 %v3188, %v2826
    %v3191 = vmul.f32 %v3188, %v2827
    %v3192 = vmul.f32 %v3188, %v2828
    %v3193 = vmul.f32 %v3188, %v2829
    %v3194 = vmul.f32 %v3188, %v2830
    %v3195 = vmul.f32 %v3188, %v2831
    %v3196 = vmul.f32 %v3188, %v2832
    %3205 = vrot.lane.b32.xlu0 %v3189, 126
    %v3206 = vpop.permute.xlu0 %3205
    %3207 = vrot.lane.b32.xlu0 %v3190, 126
    %v3208 = vpop.permute.xlu0 %3207
    %3209 = vrot.lane.b32.xlu0 %v3191, 126
    %v3210 = vpop.permute.xlu0 %3209
    %3211 = vrot.lane.b32.xlu0 %v3192, 126
    %v3212 = vpop.permute.xlu0 %3211
    %3213 = vrot.lane.b32.xlu0 %v3193, 126
    %v3214 = vpop.permute.xlu0 %3213
    %3215 = vrot.lane.b32.xlu0 %v3194, 126
    %v3216 = vpop.permute.xlu0 %3215
    %3217 = vrot.lane.b32.xlu0 %v3195, 126
    %v3218 = vpop.permute.xlu0 %3217
    %3219 = vrot.lane.b32.xlu0 %v3196, 126
    %v3220 = vpop.permute.xlu0 %3219
    %v3229 = vadd.f32 %v3179, %v3206
    %v3230 = vadd.f32 %v3180, %v3208
    %v3231 = vadd.f32 %v3181, %v3210
    %v3232 = vadd.f32 %v3182, %v3212
    %v3233 = vadd.f32 %v3183, %v3214
    %v3234 = vadd.f32 %v3184, %v3216
    %v3235 = vadd.f32 %v3185, %v3218
    %v3236 = vadd.f32 %v3186, %v3220
    %3238 = vset.pattern.permute.xlu0 0
    %3239 = vperm.xlu0 %3238, %v3229
    %v3240 = vpop.permute.xlu0 %3239
    %3243 = vset.pattern.permute.xlu0 0
    %3244 = vperm.xlu0 %3243, %v3230
    %v3245 = vpop.permute.xlu0 %3244
    %3248 = vset.pattern.permute.xlu0 0
    %3249 = vperm.xlu0 %3248, %v3231
    %v3250 = vpop.permute.xlu0 %3249
    %3253 = vset.pattern.permute.xlu0 0
    %3254 = vperm.xlu0 %3253, %v3232
    %v3255 = vpop.permute.xlu0 %3254
    %3258 = vset.pattern.permute.xlu0 0
    %3259 = vperm.xlu0 %3258, %v3233
    %v3260 = vpop.permute.xlu0 %3259
    %3263 = vset.pattern.permute.xlu0 0
    %3264 = vperm.xlu0 %3263, %v3234
    %v3265 = vpop.permute.xlu0 %3264
    %3268 = vset.pattern.permute.xlu0 0
    %3269 = vperm.xlu0 %3268, %v3235
    %v3270 = vpop.permute.xlu0 %3269
    %3273 = vset.pattern.permute.xlu0 0
    %3274 = vperm.xlu0 %3273, %v3236
    %v3275 = vpop.permute.xlu0 %3274
    %v3277 = vlaneseq
    %v3278 = vshrl.u32 %v3277, 7
    %v3279 = vsub.s32 3, %v3278
    %v3280 = vrot.slane %v119, %v3279
    %v3281 = vmul.f32 %v3240, %v3280
    %v3282 = vmul.f32 %v3245, %v3280
    %v3283 = vmul.f32 %v3250, %v3280
    %v3284 = vmul.f32 %v3255, %v3280
    %v3285 = vmul.f32 %v3260, %v3280
    %v3286 = vmul.f32 %v3265, %v3280
    %v3287 = vmul.f32 %v3270, %v3280
    %v3288 = vmul.f32 %v3275, %v3280
    %v3289 = vlaneseq
    %v3290 = vshrl.u32 %v3289, 7
    %v3291 = vsub.s32 3, %v3290
    %v3292 = vrot.slane %v236, %v3291
    %v3293 = vsub.f32 %v3281, %v3292
    %v3294 = vsub.f32 %v3282, %v3292
    %v3295 = vsub.f32 %v3283, %v3292
    %v3296 = vsub.f32 %v3284, %v3292
    %v3297 = vsub.f32 %v3285, %v3292
    %v3298 = vsub.f32 %v3286, %v3292
    %v3299 = vsub.f32 %v3287, %v3292
    %v3300 = vsub.f32 %v3288, %v3292
    %v3301 = vmul.f32 %v3293, 1.442695
    %v3302 = vpow.pop %v3301
    %v3303 = vmul.f32 %v3294, 1.442695
    %v3304 = vpow.pop %v3303
    %v3305 = vmul.f32 %v3295, 1.442695
    %v3306 = vpow.pop %v3305
    %v3307 = vmul.f32 %v3296, 1.442695
    %v3308 = vpow.pop %v3307
    %v3309 = vmul.f32 %v3297, 1.442695
    %v3310 = vpow.pop %v3309
    %v3311 = vmul.f32 %v3298, 1.442695
    %v3312 = vpow.pop %v3311
    %v3313 = vmul.f32 %v3299, 1.442695
    %v3314 = vpow.pop %v3313
    %v3315 = vmul.f32 %v3300, 1.442695
    %v3316 = vpow.pop %v3315
    %v3317 = vlaneseq
    %v3318 = vshrl.u32 %v3317, 7
    %v3319 = vsub.s32 3, %v3318
    %v3320 = vrot.slane %v203, %v3319
    %v3321 = vsel %vm248, %v3320, 1.0
    %v3323 = vsel %vm218, %v3321, 0
    %3325 = vmatprep.subr.mxu0 0.0
    %3326 = vmatpush1.msra.mxu0 0.0
    %3327 = vmatprep.subr.mxu0 0.0
    %3328 = vmatpush1.msra.mxu0 0.0
    %3329 = vmatprep.subr.mxu0 0.0
    %3330 = vmatpush1.msra.mxu0 0.0
    %3331 = vmatprep.subr.mxu0 0.0
    %3332 = vmatpush1.msra.mxu0 0.0
    %3333 = vmatprep.subr.mxu0 0.0
    %3334 = vmatpush1.msra.mxu0 0.0
    %3335 = vmatprep.subr.mxu0 0.0
    %3336 = vmatpush1.msra.mxu0 0.0
    %3337 = vmatprep.subr.mxu0 0.0
    %3338 = vmatpush1.msra.mxu0 0.0
    %3339 = vmatprep.subr.mxu0 0.0
    %3340 = vmatpush1.msra.mxu0 0.0
    %3341 = vmatprep.subr.mxu0 0.0
    %3342 = vmatpush1.msra.mxu0 %v3316
    %3343 = vmatprep.subr.mxu0 0.0
    %3344 = vmatpush1.msra.mxu0 %v3314
    %3345 = vmatprep.subr.mxu0 0.0
    %3346 = vmatpush1.msra.mxu0 %v3312
    %3347 = vmatprep.subr.mxu0 0.0
    %3348 = vmatpush1.msra.mxu0 %v3310
    %3349 = vmatprep.subr.mxu0 0.0
    %3350 = vmatpush1.msra.mxu0 %v3308
    %3351 = vmatprep.subr.mxu0 0.0
    %3352 = vmatpush1.msra.mxu0 %v3306
    %3353 = vmatprep.subr.mxu0 0.0
    %3354 = vmatpush1.msra.mxu0 %v3304
    %3355 = vmatprep.subr.mxu0 0.0
    %3356 = vmatpush1.msra.mxu0 %v3302
    %3357 = vmatprep.subr.mxu0 0.0
    %3358 = vmatpush2.msra.mxu0 0.0
    %3359 = vmatprep.subr.mxu0 0.0
    %3360 = vmatpush2.msra.mxu0 0.0
    %3361 = vmatprep.subr.mxu0 0.0
    %3362 = vmatpush2.msra.mxu0 0.0
    %3363 = vmatprep.subr.mxu0 0.0
    %3364 = vmatpush2.msra.mxu0 0.0
    %3365 = vmatprep.subr.mxu0 0.0
    %3366 = vmatpush2.msra.mxu0 0.0
    %3367 = vmatprep.subr.mxu0 0.0
    %3368 = vmatpush2.msra.mxu0 0.0
    %3369 = vmatprep.subr.mxu0 0.0
    %3370 = vmatpush2.msra.mxu0 0.0
    %3371 = vmatprep.subr.mxu0 0.0
    %3372 = vmatpush2.msra.mxu0 0.0
    %3373 = vmatprep.subr.mxu0 0.0
    %3374 = vmatpush2.msra.mxu0 0.0
    %3375 = vmatprep.subr.mxu0 0.0
    %3376 = vmatpush2.msra.mxu0 0.0
    %3377 = vmatprep.subr.mxu0 0.0
    %3378 = vmatpush2.msra.mxu0 0.0
    %3379 = vmatprep.subr.mxu0 0.0
    %3380 = vmatpush2.msra.mxu0 0.0
    %3381 = vmatprep.subr.mxu0 0.0
    %3382 = vmatpush2.msra.mxu0 0.0
    %3383 = vmatprep.subr.mxu0 0.0
    %3384 = vmatpush2.msra.mxu0 0.0
    %3385 = vmatprep.subr.mxu0 0.0
    %3386 = vmatpush2.msra.mxu0 0.0
    %3387 = vmatprep.subr.mxu0 0.0
    %3388 = vmatpush2.msra.mxu0 0.0
    %3389 = vmatprep.mubr.f32.mxu0 0.0
    %3390 = vmatmul.mubr.f32.gmra.mxu0 %v3323
    %v3391 = vpop.f32.mrf.mxu0
    %v3392 = vadd.f32 0.0, %v3391
    %v3393 = vpop.f32.mrf.mxu0
    %3394 = vdwg.mxu0
    %v3395 = vrcp.pop %v3392
    %v3397 = vrot.slane %v3395, 1
    %v3399 = vmul.f32 %v3392, %v3397
    %3400 = vst.msk [vmem:[#allocation2 + $0xb] sm:$0x1] %vm532, %v3399
    %s3401 = sld [smem:[#allocation5 + $0x5]]
    %s3402 = sld [smem:[#allocation3 + $0xf]]
    %v3403 = vstv %s3402
    %v3404 = vmul.f32 %v3403, %v2825
    %v3405 = vmul.f32 %v3403, %v2826
    %v3406 = vmul.f32 %v3403, %v2827
    %v3407 = vmul.f32 %v3403, %v2828
    %v3408 = vmul.f32 %v3403, %v2829
    %v3409 = vmul.f32 %v3403, %v2830
    %v3410 = vmul.f32 %v3403, %v2831
    %v3411 = vmul.f32 %v3403, %v2832
    %v3412 = vstv %s3401
    %v3413 = vadd.f32 %v3412, %v3404
    %v3414 = vadd.f32 %v3412, %v3405
    %v3415 = vadd.f32 %v3412, %v3406
    %v3416 = vadd.f32 %v3412, %v3407
    %v3417 = vadd.f32 %v3412, %v3408
    %v3418 = vadd.f32 %v3412, %v3409
    %v3419 = vadd.f32 %v3412, %v3410
    %v3420 = vadd.f32 %v3412, %v3411
    %s3421 = sld [smem:[#allocation3 + $0x10]]
    %v3422 = vstv %s3421
    %v3423 = vmul.f32 %v3422, %v2825
    %v3424 = vmul.f32 %v3422, %v2826
    %v3425 = vmul.f32 %v3422, %v2827
    %v3426 = vmul.f32 %v3422, %v2828
    %v3427 = vmul.f32 %v3422, %v2829
    %v3428 = vmul.f32 %v3422, %v2830
    %v3429 = vmul.f32 %v3422, %v2831
    %v3430 = vmul.f32 %v3422, %v2832
    %3439 = vrot.lane.b32.xlu0 %v3423, 127
    %v3440 = vpop.permute.xlu0 %3439
    %3441 = vrot.lane.b32.xlu0 %v3424, 127
    %v3442 = vpop.permute.xlu0 %3441
    %3443 = vrot.lane.b32.xlu0 %v3425, 127
    %v3444 = vpop.permute.xlu0 %3443
    %3445 = vrot.lane.b32.xlu0 %v3426, 127
    %v3446 = vpop.permute.xlu0 %3445
    %3447 = vrot.lane.b32.xlu0 %v3427, 127
    %v3448 = vpop.permute.xlu0 %3447
    %3449 = vrot.lane.b32.xlu0 %v3428, 127
    %v3450 = vpop.permute.xlu0 %3449
    %3451 = vrot.lane.b32.xlu0 %v3429, 127
    %v3452 = vpop.permute.xlu0 %3451
    %3453 = vrot.lane.b32.xlu0 %v3430, 127
    %v3454 = vpop.permute.xlu0 %3453
    %v3463 = vadd.f32 %v3413, %v3440
    %v3464 = vadd.f32 %v3414, %v3442
    %v3465 = vadd.f32 %v3415, %v3444
    %v3466 = vadd.f32 %v3416, %v3446
    %v3467 = vadd.f32 %v3417, %v3448
    %v3468 = vadd.f32 %v3418, %v3450
    %v3469 = vadd.f32 %v3419, %v3452
    %v3470 = vadd.f32 %v3420, %v3454
    %s3471 = sld [smem:[#allocation3 + $0x11]]
    %v3472 = vstv %s3471
    %v3473 = vmul.f32 %v3472, %v2825
    %v3474 = vmul.f32 %v3472, %v2826
    %v3475 = vmul.f32 %v3472, %v2827
    %v3476 = vmul.f32 %v3472, %v2828
    %v3477 = vmul.f32 %v3472, %v2829
    %v3478 = vmul.f32 %v3472, %v2830
    %v3479 = vmul.f32 %v3472, %v2831
    %v3480 = vmul.f32 %v3472, %v2832
    %3489 = vrot.lane.b32.xlu0 %v3473, 126
    %v3490 = vpop.permute.xlu0 %3489
    %3491 = vrot.lane.b32.xlu0 %v3474, 126
    %v3492 = vpop.permute.xlu0 %3491
    %3493 = vrot.lane.b32.xlu0 %v3475, 126
    %v3494 = vpop.permute.xlu0 %3493
    %3495 = vrot.lane.b32.xlu0 %v3476, 126
    %v3496 = vpop.permute.xlu0 %3495
    %3497 = vrot.lane.b32.xlu0 %v3477, 126
    %v3498 = vpop.permute.xlu0 %3497
    %3499 = vrot.lane.b32.xlu0 %v3478, 126
    %v3500 = vpop.permute.xlu0 %3499
    %3501 = vrot.lane.b32.xlu0 %v3479, 126
    %v3502 = vpop.permute.xlu0 %3501
    %3503 = vrot.lane.b32.xlu0 %v3480, 126
    %v3504 = vpop.permute.xlu0 %3503
    %v3513 = vadd.f32 %v3463, %v3490
    %v3514 = vadd.f32 %v3464, %v3492
    %v3515 = vadd.f32 %v3465, %v3494
    %v3516 = vadd.f32 %v3466, %v3496
    %v3517 = vadd.f32 %v3467, %v3498
    %v3518 = vadd.f32 %v3468, %v3500
    %v3519 = vadd.f32 %v3469, %v3502
    %v3520 = vadd.f32 %v3470, %v3504
    %3522 = vset.pattern.permute.xlu0 0
    %3523 = vperm.xlu0 %3522, %v3513
    %v3524 = vpop.permute.xlu0 %3523
    %3527 = vset.pattern.permute.xlu0 0
    %3528 = vperm.xlu0 %3527, %v3514
    %v3529 = vpop.permute.xlu0 %3528
    %3532 = vset.pattern.permute.xlu0 0
    %3533 = vperm.xlu0 %3532, %v3515
    %v3534 = vpop.permute.xlu0 %3533
    %3537 = vset.pattern.permute.xlu0 0
    %3538 = vperm.xlu0 %3537, %v3516
    %v3539 = vpop.permute.xlu0 %3538
    %3542 = vset.pattern.permute.xlu0 0
    %3543 = vperm.xlu0 %3542, %v3517
    %v3544 = vpop.permute.xlu0 %3543
    %3547 = vset.pattern.permute.xlu0 0
    %3548 = vperm.xlu0 %3547, %v3518
    %v3549 = vpop.permute.xlu0 %3548
    %3552 = vset.pattern.permute.xlu0 0
    %3553 = vperm.xlu0 %3552, %v3519
    %v3554 = vpop.permute.xlu0 %3553
    %3557 = vset.pattern.permute.xlu0 0
    %3558 = vperm.xlu0 %3557, %v3520
    %v3559 = vpop.permute.xlu0 %3558
    %v3561 = vlaneseq
    %v3562 = vshrl.u32 %v3561, 7
    %v3563 = vsub.s32 3, %v3562
    %v3564 = vrot.slane %v133, %v3563
    %v3565 = vmul.f32 %v3524, %v3564
    %v3566 = vmul.f32 %v3529, %v3564
    %v3567 = vmul.f32 %v3534, %v3564
    %v3568 = vmul.f32 %v3539, %v3564
    %v3569 = vmul.f32 %v3544, %v3564
    %v3570 = vmul.f32 %v3549, %v3564
    %v3571 = vmul.f32 %v3554, %v3564
    %v3572 = vmul.f32 %v3559, %v3564
    %v3573 = vlaneseq
    %v3574 = vshrl.u32 %v3573, 7
    %v3575 = vsub.s32 3, %v3574
    %v3576 = vrot.slane %v245, %v3575
    %v3577 = vsub.f32 %v3565, %v3576
    %v3578 = vsub.f32 %v3566, %v3576
    %v3579 = vsub.f32 %v3567, %v3576
    %v3580 = vsub.f32 %v3568, %v3576
    %v3581 = vsub.f32 %v3569, %v3576
    %v3582 = vsub.f32 %v3570, %v3576
    %v3583 = vsub.f32 %v3571, %v3576
    %v3584 = vsub.f32 %v3572, %v3576
    %v3585 = vmul.f32 %v3577, 1.442695
    %v3586 = vpow.pop %v3585
    %v3587 = vmul.f32 %v3578, 1.442695
    %v3588 = vpow.pop %v3587
    %v3589 = vmul.f32 %v3579, 1.442695
    %v3590 = vpow.pop %v3589
    %v3591 = vmul.f32 %v3580, 1.442695
    %v3592 = vpow.pop %v3591
    %v3593 = vmul.f32 %v3581, 1.442695
    %v3594 = vpow.pop %v3593
    %v3595 = vmul.f32 %v3582, 1.442695
    %v3596 = vpow.pop %v3595
    %v3597 = vmul.f32 %v3583, 1.442695
    %v3598 = vpow.pop %v3597
    %v3599 = vmul.f32 %v3584, 1.442695
    %v3600 = vpow.pop %v3599
    %v3601 = vlaneseq
    %v3602 = vshrl.u32 %v3601, 7
    %v3603 = vsub.s32 3, %v3602
    %v3604 = vrot.slane %v217, %v3603
    %v3605 = vsel %vm248, %v3604, 1.0
    %v3607 = vsel %vm218, %v3605, 0
    %3609 = vmatprep.subr.mxu0 0.0
    %3610 = vmatpush1.msra.mxu0 0.0
    %3611 = vmatprep.subr.mxu0 0.0
    %3612 = vmatpush1.msra.mxu0 0.0
    %3613 = vmatprep.subr.mxu0 0.0
    %3614 = vmatpush1.msra.mxu0 0.0
    %3615 = vmatprep.subr.mxu0 0.0
    %3616 = vmatpush1.msra.mxu0 0.0
    %3617 = vmatprep.subr.mxu0 0.0
    %3618 = vmatpush1.msra.mxu0 0.0
    %3619 = vmatprep.subr.mxu0 0.0
    %3620 = vmatpush1.msra.mxu0 0.0
    %3621 = vmatprep.subr.mxu0 0.0
    %3622 = vmatpush1.msra.mxu0 0.0
    %3623 = vmatprep.subr.mxu0 0.0
    %3624 = vmatpush1.msra.mxu0 0.0
    %3625 = vmatprep.subr.mxu0 0.0
    %3626 = vmatpush1.msra.mxu0 %v3600
    %3627 = vmatprep.subr.mxu0 0.0
    %3628 = vmatpush1.msra.mxu0 %v3598
    %3629 = vmatprep.subr.mxu0 0.0
    %3630 = vmatpush1.msra.mxu0 %v3596
    %3631 = vmatprep.subr.mxu0 0.0
    %3632 = vmatpush1.msra.mxu0 %v3594
    %3633 = vmatprep.subr.mxu0 0.0
    %3634 = vmatpush1.msra.mxu0 %v3592
    %3635 = vmatprep.subr.mxu0 0.0
    %3636 = vmatpush1.msra.mxu0 %v3590
    %3637 = vmatprep.subr.mxu0 0.0
    %3638 = vmatpush1.msra.mxu0 %v3588
    %3639 = vmatprep.subr.mxu0 0.0
    %3640 = vmatpush1.msra.mxu0 %v3586
    %3641 = vmatprep.subr.mxu0 0.0
    %3642 = vmatpush2.msra.mxu0 0.0
    %3643 = vmatprep.subr.mxu0 0.0
    %3644 = vmatpush2.msra.mxu0 0.0
    %3645 = vmatprep.subr.mxu0 0.0
    %3646 = vmatpush2.msra.mxu0 0.0
    %3647 = vmatprep.subr.mxu0 0.0
    %3648 = vmatpush2.msra.mxu0 0.0
    %3649 = vmatprep.subr.mxu0 0.0
    %3650 = vmatpush2.msra.mxu0 0.0
    %3651 = vmatprep.subr.mxu0 0.0
    %3652 = vmatpush2.msra.mxu0 0.0
    %3653 = vmatprep.subr.mxu0 0.0
    %3654 = vmatpush2.msra.mxu0 0.0
    %3655 = vmatprep.subr.mxu0 0.0
    %3656 = vmatpush2.msra.mxu0 0.0
    %3657 = vmatprep.subr.mxu0 0.0
    %3658 = vmatpush2.msra.mxu0 0.0
    %3659 = vmatprep.subr.mxu0 0.0
    %3660 = vmatpush2.msra.mxu0 0.0
    %3661 = vmatprep.subr.mxu0 0.0
    %3662 = vmatpush2.msra.mxu0 0.0
    %3663 = vmatprep.subr.mxu0 0.0
    %3664 = vmatpush2.msra.mxu0 0.0
    %3665 = vmatprep.subr.mxu0 0.0
    %3666 = vmatpush2.msra.mxu0 0.0
    %3667 = vmatprep.subr.mxu0 0.0
    %3668 = vmatpush2.msra.mxu0 0.0
    %3669 = vmatprep.subr.mxu0 0.0
    %3670 = vmatpush2.msra.mxu0 0.0
    %3671 = vmatprep.subr.mxu0 0.0
    %3672 = vmatpush2.msra.mxu0 0.0
    %3673 = vmatprep.mubr.f32.mxu0 0.0
    %3674 = vmatmul.mubr.f32.gmra.mxu0 %v3607
    %v3675 = vpop.f32.mrf.mxu0
    %v3676 = vadd.f32 0.0, %v3675
    %v3677 = vpop.f32.mrf.mxu0
    %3678 = vdwg.mxu0
    %v3679 = vrcp.pop %v3676
    %v3681 = vrot.slane %v3679, 1
    %v3683 = vmul.f32 %v3676, %v3681
    %3684 = vst.msk [vmem:[#allocation2 + $0x13] sm:$0x1] %vm532, %v3683
    %s3685 = scalar_lea.vmem %s1, 256
    %v3686 = vld [vmem:[%s3685] sm:$0xff]
    %v3687 = vld [vmem:[%s3685 + $0x8] sm:$0xff]
    %v3688 = vld [vmem:[%s3685 + $0x10] sm:$0xff]
    %v3689 = vld [vmem:[%s3685 + $0x18] sm:$0xff]
    %v3690 = vld [vmem:[%s3685 + $0x20] sm:$0xff]
    %v3691 = vld [vmem:[%s3685 + $0x28] sm:$0xff]
    %v3692 = vld [vmem:[%s3685 + $0x30] sm:$0xff]
    %v3693 = vld [vmem:[%s3685 + $0x38] sm:$0xff]
    %s3694 = sld [smem:[#allocation5 + $0x3]]
    %s3695 = sld [smem:[#allocation3 + $0x9]]
    %v3696 = vstv %s3695
    %v3697 = vmul.f32 %v3696, %v3686
    %v3698 = vmul.f32 %v3696, %v3687
    %v3699 = vmul.f32 %v3696, %v3688
    %v3700 = vmul.f32 %v3696, %v3689
    %v3701 = vmul.f32 %v3696, %v3690
    %v3702 = vmul.f32 %v3696, %v3691
    %v3703 = vmul.f32 %v3696, %v3692
    %v3704 = vmul.f32 %v3696, %v3693
    %v3705 = vstv %s3694
    %v3706 = vadd.f32 %v3705, %v3697
    %v3707 = vadd.f32 %v3705, %v3698
    %v3708 = vadd.f32 %v3705, %v3699
    %v3709 = vadd.f32 %v3705, %v3700
    %v3710 = vadd.f32 %v3705, %v3701
    %v3711 = vadd.f32 %v3705, %v3702
    %v3712 = vadd.f32 %v3705, %v3703
    %v3713 = vadd.f32 %v3705, %v3704
    %s3714 = sld [smem:[#allocation3 + $0xa]]
    %v3715 = vstv %s3714
    %v3716 = vmul.f32 %v3715, %v3686
    %v3717 = vmul.f32 %v3715, %v3687
    %v3718 = vmul.f32 %v3715, %v3688
    %v3719 = vmul.f32 %v3715, %v3689
    %v3720 = vmul.f32 %v3715, %v3690
    %v3721 = vmul.f32 %v3715, %v3691
    %v3722 = vmul.f32 %v3715, %v3692
    %v3723 = vmul.f32 %v3715, %v3693
    %3732 = vrot.lane.b32.xlu0 %v3716, 127
    %v3733 = vpop.permute.xlu0 %3732
    %3734 = vrot.lane.b32.xlu0 %v3717, 127
    %v3735 = vpop.permute.xlu0 %3734
    %3736 = vrot.lane.b32.xlu0 %v3718, 127
    %v3737 = vpop.permute.xlu0 %3736
    %3738 = vrot.lane.b32.xlu0 %v3719, 127
    %v3739 = vpop.permute.xlu0 %3738
    %3740 = vrot.lane.b32.xlu0 %v3720, 127
    %v3741 = vpop.permute.xlu0 %3740
    %3742 = vrot.lane.b32.xlu0 %v3721, 127
    %v3743 = vpop.permute.xlu0 %3742
    %3744 = vrot.lane.b32.xlu0 %v3722, 127
    %v3745 = vpop.permute.xlu0 %3744
    %3746 = vrot.lane.b32.xlu0 %v3723, 127
    %v3747 = vpop.permute.xlu0 %3746
    %v3756 = vadd.f32 %v3706, %v3733
    %v3757 = vadd.f32 %v3707, %v3735
    %v3758 = vadd.f32 %v3708, %v3737
    %v3759 = vadd.f32 %v3709, %v3739
    %v3760 = vadd.f32 %v3710, %v3741
    %v3761 = vadd.f32 %v3711, %v3743
    %v3762 = vadd.f32 %v3712, %v3745
    %v3763 = vadd.f32 %v3713, %v3747
    %s3764 = sld [smem:[#allocation3 + $0xb]]
    %v3765 = vstv %s3764
    %v3766 = vmul.f32 %v3765, %v3686
    %v3767 = vmul.f32 %v3765, %v3687
    %v3768 = vmul.f32 %v3765, %v3688
    %v3769 = vmul.f32 %v3765, %v3689
    %v3770 = vmul.f32 %v3765, %v3690
    %v3771 = vmul.f32 %v3765, %v3691
    %v3772 = vmul.f32 %v3765, %v3692
    %v3773 = vmul.f32 %v3765, %v3693
    %3782 = vrot.lane.b32.xlu0 %v3766, 126
    %v3783 = vpop.permute.xlu0 %3782
    %3784 = vrot.lane.b32.xlu0 %v3767, 126
    %v3785 = vpop.permute.xlu0 %3784
    %3786 = vrot.lane.b32.xlu0 %v3768, 126
    %v3787 = vpop.permute.xlu0 %3786
    %3788 = vrot.lane.b32.xlu0 %v3769, 126
    %v3789 = vpop.permute.xlu0 %3788
    %3790 = vrot.lane.b32.xlu0 %v3770, 126
    %v3791 = vpop.permute.xlu0 %3790
    %3792 = vrot.lane.b32.xlu0 %v3771, 126
    %v3793 = vpop.permute.xlu0 %3792
    %3794 = vrot.lane.b32.xlu0 %v3772, 126
    %v3795 = vpop.permute.xlu0 %3794
    %3796 = vrot.lane.b32.xlu0 %v3773, 126
    %v3797 = vpop.permute.xlu0 %3796
    %v3806 = vadd.f32 %v3756, %v3783
    %v3807 = vadd.f32 %v3757, %v3785
    %v3808 = vadd.f32 %v3758, %v3787
    %v3809 = vadd.f32 %v3759, %v3789
    %v3810 = vadd.f32 %v3760, %v3791
    %v3811 = vadd.f32 %v3761, %v3793
    %v3812 = vadd.f32 %v3762, %v3795
    %v3813 = vadd.f32 %v3763, %v3797
    %3815 = vset.pattern.permute.xlu0 0
    %3816 = vperm.xlu0 %3815, %v3806
    %v3817 = vpop.permute.xlu0 %3816
    %3820 = vset.pattern.permute.xlu0 0
    %3821 = vperm.xlu0 %3820, %v3807
    %v3822 = vpop.permute.xlu0 %3821
    %3825 = vset.pattern.permute.xlu0 0
    %3826 = vperm.xlu0 %3825, %v3808
    %v3827 = vpop.permute.xlu0 %3826
    %3830 = vset.pattern.permute.xlu0 0
    %3831 = vperm.xlu0 %3830, %v3809
    %v3832 = vpop.permute.xlu0 %3831
    %3835 = vset.pattern.permute.xlu0 0
    %3836 = vperm.xlu0 %3835, %v3810
    %v3837 = vpop.permute.xlu0 %3836
    %3840 = vset.pattern.permute.xlu0 0
    %3841 = vperm.xlu0 %3840, %v3811
    %v3842 = vpop.permute.xlu0 %3841
    %3845 = vset.pattern.permute.xlu0 0
    %3846 = vperm.xlu0 %3845, %v3812
    %v3847 = vpop.permute.xlu0 %3846
    %3850 = vset.pattern.permute.xlu0 0
    %3851 = vperm.xlu0 %3850, %v3813
    %v3852 = vpop.permute.xlu0 %3851
    %v3854 = vlaneseq
    %v3855 = vshrl.u32 %v3854, 7
    %v3856 = vsub.s32 4, %v3855
    %v3857 = vrot.slane %v105, %v3856
    %v3858 = vmul.f32 %v3817, %v3857
    %v3859 = vmul.f32 %v3822, %v3857
    %v3860 = vmul.f32 %v3827, %v3857
    %v3861 = vmul.f32 %v3832, %v3857
    %v3862 = vmul.f32 %v3837, %v3857
    %v3863 = vmul.f32 %v3842, %v3857
    %v3864 = vmul.f32 %v3847, %v3857
    %v3865 = vmul.f32 %v3852, %v3857
    %v3866 = vlaneseq
    %v3867 = vshrl.u32 %v3866, 7
    %v3868 = vsub.s32 4, %v3867
    %v3869 = vrot.slane %v227, %v3868
    %v3870 = vsub.f32 %v3858, %v3869
    %v3871 = vsub.f32 %v3859, %v3869
    %v3872 = vsub.f32 %v3860, %v3869
    %v3873 = vsub.f32 %v3861, %v3869
    %v3874 = vsub.f32 %v3862, %v3869
    %v3875 = vsub.f32 %v3863, %v3869
    %v3876 = vsub.f32 %v3864, %v3869
    %v3877 = vsub.f32 %v3865, %v3869
    %v3878 = vmul.f32 %v3870, 1.442695
    %v3879 = vpow.pop %v3878
    %v3880 = vmul.f32 %v3871, 1.442695
    %v3881 = vpow.pop %v3880
    %v3882 = vmul.f32 %v3872, 1.442695
    %v3883 = vpow.pop %v3882
    %v3884 = vmul.f32 %v3873, 1.442695
    %v3885 = vpow.pop %v3884
    %v3886 = vmul.f32 %v3874, 1.442695
    %v3887 = vpow.pop %v3886
    %v3888 = vmul.f32 %v3875, 1.442695
    %v3889 = vpow.pop %v3888
    %v3890 = vmul.f32 %v3876, 1.442695
    %v3891 = vpow.pop %v3890
    %v3892 = vmul.f32 %v3877, 1.442695
    %v3893 = vpow.pop %v3892
    %v3894 = vlaneseq
    %v3895 = vshrl.u32 %v3894, 7
    %v3896 = vsub.s32 4, %v3895
    %v3897 = vrot.slane %v189, %v3896
    %v3898 = vsel %vm248, %v3897, 1.0
    %v3900 = vsel %vm218, %v3898, 0
    %3902 = vmatprep.subr.mxu0 0.0
    %3903 = vmatpush1.msra.mxu0 0.0
    %3904 = vmatprep.subr.mxu0 0.0
    %3905 = vmatpush1.msra.mxu0 0.0
    %3906 = vmatprep.subr.mxu0 0.0
    %3907 = vmatpush1.msra.mxu0 0.0
    %3908 = vmatprep.subr.mxu0 0.0
    %3909 = vmatpush1.msra.mxu0 0.0
    %3910 = vmatprep.subr.mxu0 0.0
    %3911 = vmatpush1.msra.mxu0 0.0
    %3912 = vmatprep.subr.mxu0 0.0
    %3913 = vmatpush1.msra.mxu0 0.0
    %3914 = vmatprep.subr.mxu0 0.0
    %3915 = vmatpush1.msra.mxu0 0.0
    %3916 = vmatprep.subr.mxu0 0.0
    %3917 = vmatpush1.msra.mxu0 0.0
    %3918 = vmatprep.subr.mxu0 0.0
    %3919 = vmatpush1.msra.mxu0 %v3893
    %3920 = vmatprep.subr.mxu0 0.0
    %3921 = vmatpush1.msra.mxu0 %v3891
    %3922 = vmatprep.subr.mxu0 0.0
    %3923 = vmatpush1.msra.mxu0 %v3889
    %3924 = vmatprep.subr.mxu0 0.0
    %3925 = vmatpush1.msra.mxu0 %v3887
    %3926 = vmatprep.subr.mxu0 0.0
    %3927 = vmatpush1.msra.mxu0 %v3885
    %3928 = vmatprep.subr.mxu0 0.0
    %3929 = vmatpush1.msra.mxu0 %v3883
    %3930 = vmatprep.subr.mxu0 0.0
    %3931 = vmatpush1.msra.mxu0 %v3881
    %3932 = vmatprep.subr.mxu0 0.0
    %3933 = vmatpush1.msra.mxu0 %v3879
    %3934 = vmatprep.subr.mxu0 0.0
    %3935 = vmatpush2.msra.mxu0 0.0
    %3936 = vmatprep.subr.mxu0 0.0
    %3937 = vmatpush2.msra.mxu0 0.0
    %3938 = vmatprep.subr.mxu0 0.0
    %3939 = vmatpush2.msra.mxu0 0.0
    %3940 = vmatprep.subr.mxu0 0.0
    %3941 = vmatpush2.msra.mxu0 0.0
    %3942 = vmatprep.subr.mxu0 0.0
    %3943 = vmatpush2.msra.mxu0 0.0
    %3944 = vmatprep.subr.mxu0 0.0
    %3945 = vmatpush2.msra.mxu0 0.0
    %3946 = vmatprep.subr.mxu0 0.0
    %3947 = vmatpush2.msra.mxu0 0.0
    %3948 = vmatprep.subr.mxu0 0.0
    %3949 = vmatpush2.msra.mxu0 0.0
    %3950 = vmatprep.subr.mxu0 0.0
    %3951 = vmatpush2.msra.mxu0 0.0
    %3952 = vmatprep.subr.mxu0 0.0
    %3953 = vmatpush2.msra.mxu0 0.0
    %3954 = vmatprep.subr.mxu0 0.0
    %3955 = vmatpush2.msra.mxu0 0.0
    %3956 = vmatprep.subr.mxu0 0.0
    %3957 = vmatpush2.msra.mxu0 0.0
    %3958 = vmatprep.subr.mxu0 0.0
    %3959 = vmatpush2.msra.mxu0 0.0
    %3960 = vmatprep.subr.mxu0 0.0
    %3961 = vmatpush2.msra.mxu0 0.0
    %3962 = vmatprep.subr.mxu0 0.0
    %3963 = vmatpush2.msra.mxu0 0.0
    %3964 = vmatprep.subr.mxu0 0.0
    %3965 = vmatpush2.msra.mxu0 0.0
    %3966 = vmatprep.mubr.f32.mxu0 0.0
    %3967 = vmatmul.mubr.f32.gmra.mxu0 %v3900
    %v3968 = vpop.f32.mrf.mxu0
    %v3969 = vadd.f32 0.0, %v3968
    %v3970 = vpop.f32.mrf.mxu0
    %3971 = vdwg.mxu0
    %v3972 = vrcp.pop %v3969
    %v3974 = vrot.slane %v3972, 1
    %v3976 = vmul.f32 %v3969, %v3974
    %3977 = vst.msk [vmem:[#allocation2 + $0x4] sm:$0x1] %vm532, %v3976
    %s3978 = sld [smem:[#allocation5 + $0x4]]
    %s3979 = sld [smem:[#allocation3 + $0xc]]
    %v3980 = vstv %s3979
    %v3981 = vmul.f32 %v3980, %v3686
    %v3982 = vmul.f32 %v3980, %v3687
    %v3983 = vmul.f32 %v3980, %v3688
    %v3984 = vmul.f32 %v3980, %v3689
    %v3985 = vmul.f32 %v3980, %v3690
    %v3986 = vmul.f32 %v3980, %v3691
    %v3987 = vmul.f32 %v3980, %v3692
    %v3988 = vmul.f32 %v3980, %v3693
    %v3989 = vstv %s3978
    %v3990 = vadd.f32 %v3989, %v3981
    %v3991 = vadd.f32 %v3989, %v3982
    %v3992 = vadd.f32 %v3989, %v3983
    %v3993 = vadd.f32 %v3989, %v3984
    %v3994 = vadd.f32 %v3989, %v3985
    %v3995 = vadd.f32 %v3989, %v3986
    %v3996 = vadd.f32 %v3989, %v3987
    %v3997 = vadd.f32 %v3989, %v3988
    %s3998 = sld [smem:[#allocation3 + $0xd]]
    %v3999 = vstv %s3998
    %v4000 = vmul.f32 %v3999, %v3686
    %v4001 = vmul.f32 %v3999, %v3687
    %v4002 = vmul.f32 %v3999, %v3688
    %v4003 = vmul.f32 %v3999, %v3689
    %v4004 = vmul.f32 %v3999, %v3690
    %v4005 = vmul.f32 %v3999, %v3691
    %v4006 = vmul.f32 %v3999, %v3692
    %v4007 = vmul.f32 %v3999, %v3693
    %4016 = vrot.lane.b32.xlu0 %v4000, 127
    %v4017 = vpop.permute.xlu0 %4016
    %4018 = vrot.lane.b32.xlu0 %v4001, 127
    %v4019 = vpop.permute.xlu0 %4018
    %4020 = vrot.lane.b32.xlu0 %v4002, 127
    %v4021 = vpop.permute.xlu0 %4020
    %4022 = vrot.lane.b32.xlu0 %v4003, 127
    %v4023 = vpop.permute.xlu0 %4022
    %4024 = vrot.lane.b32.xlu0 %v4004, 127
    %v4025 = vpop.permute.xlu0 %4024
    %4026 = vrot.lane.b32.xlu0 %v4005, 127
    %v4027 = vpop.permute.xlu0 %4026
    %4028 = vrot.lane.b32.xlu0 %v4006, 127
    %v4029 = vpop.permute.xlu0 %4028
    %4030 = vrot.lane.b32.xlu0 %v4007, 127
    %v4031 = vpop.permute.xlu0 %4030
    %v4040 = vadd.f32 %v3990, %v4017
    %v4041 = vadd.f32 %v3991, %v4019
    %v4042 = vadd.f32 %v3992, %v4021
    %v4043 = vadd.f32 %v3993, %v4023
    %v4044 = vadd.f32 %v3994, %v4025
    %v4045 = vadd.f32 %v3995, %v4027
    %v4046 = vadd.f32 %v3996, %v4029
    %v4047 = vadd.f32 %v3997, %v4031
    %s4048 = sld [smem:[#allocation3 + $0xe]]
    %v4049 = vstv %s4048
    %v4050 = vmul.f32 %v4049, %v3686
    %v4051 = vmul.f32 %v4049, %v3687
    %v4052 = vmul.f32 %v4049, %v3688
    %v4053 = vmul.f32 %v4049, %v3689
    %v4054 = vmul.f32 %v4049, %v3690
    %v4055 = vmul.f32 %v4049, %v3691
    %v4056 = vmul.f32 %v4049, %v3692
    %v4057 = vmul.f32 %v4049, %v3693
    %4066 = vrot.lane.b32.xlu0 %v4050, 126
    %v4067 = vpop.permute.xlu0 %4066
    %4068 = vrot.lane.b32.xlu0 %v4051, 126
    %v4069 = vpop.permute.xlu0 %4068
    %4070 = vrot.lane.b32.xlu0 %v4052, 126
    %v4071 = vpop.permute.xlu0 %4070
    %4072 = vrot.lane.b32.xlu0 %v4053, 126
    %v4073 = vpop.permute.xlu0 %4072
    %4074 = vrot.lane.b32.xlu0 %v4054, 126
    %v4075 = vpop.permute.xlu0 %4074
    %4076 = vrot.lane.b32.xlu0 %v4055, 126
    %v4077 = vpop.permute.xlu0 %4076
    %4078 = vrot.lane.b32.xlu0 %v4056, 126
    %v4079 = vpop.permute.xlu0 %4078
    %4080 = vrot.lane.b32.xlu0 %v4057, 126
    %v4081 = vpop.permute.xlu0 %4080
    %v4090 = vadd.f32 %v4040, %v4067
    %v4091 = vadd.f32 %v4041, %v4069
    %v4092 = vadd.f32 %v4042, %v4071
    %v4093 = vadd.f32 %v4043, %v4073
    %v4094 = vadd.f32 %v4044, %v4075
    %v4095 = vadd.f32 %v4045, %v4077
    %v4096 = vadd.f32 %v4046, %v4079
    %v4097 = vadd.f32 %v4047, %v4081
    %4099 = vset.pattern.permute.xlu0 0
    %4100 = vperm.xlu0 %4099, %v4090
    %v4101 = vpop.permute.xlu0 %4100
    %4104 = vset.pattern.permute.xlu0 0
    %4105 = vperm.xlu0 %4104, %v4091
    %v4106 = vpop.permute.xlu0 %4105
    %4109 = vset.pattern.permute.xlu0 0
    %4110 = vperm.xlu0 %4109, %v4092
    %v4111 = vpop.permute.xlu0 %4110
    %4114 = vset.pattern.permute.xlu0 0
    %4115 = vperm.xlu0 %4114, %v4093
    %v4116 = vpop.permute.xlu0 %4115
    %4119 = vset.pattern.permute.xlu0 0
    %4120 = vperm.xlu0 %4119, %v4094
    %v4121 = vpop.permute.xlu0 %4120
    %4124 = vset.pattern.permute.xlu0 0
    %4125 = vperm.xlu0 %4124, %v4095
    %v4126 = vpop.permute.xlu0 %4125
    %4129 = vset.pattern.permute.xlu0 0
    %4130 = vperm.xlu0 %4129, %v4096
    %v4131 = vpop.permute.xlu0 %4130
    %4134 = vset.pattern.permute.xlu0 0
    %4135 = vperm.xlu0 %4134, %v4097
    %v4136 = vpop.permute.xlu0 %4135
    %v4138 = vlaneseq
    %v4139 = vshrl.u32 %v4138, 7
    %v4140 = vsub.s32 4, %v4139
    %v4141 = vrot.slane %v119, %v4140
    %v4142 = vmul.f32 %v4101, %v4141
    %v4143 = vmul.f32 %v4106, %v4141
    %v4144 = vmul.f32 %v4111, %v4141
    %v4145 = vmul.f32 %v4116, %v4141
    %v4146 = vmul.f32 %v4121, %v4141
    %v4147 = vmul.f32 %v4126, %v4141
    %v4148 = vmul.f32 %v4131, %v4141
    %v4149 = vmul.f32 %v4136, %v4141
    %v4150 = vlaneseq
    %v4151 = vshrl.u32 %v4150, 7
    %v4152 = vsub.s32 4, %v4151
    %v4153 = vrot.slane %v236, %v4152
    %v4154 = vsub.f32 %v4142, %v4153
    %v4155 = vsub.f32 %v4143, %v4153
    %v4156 = vsub.f32 %v4144, %v4153
    %v4157 = vsub.f32 %v4145, %v4153
    %v4158 = vsub.f32 %v4146, %v4153
    %v4159 = vsub.f32 %v4147, %v4153
    %v4160 = vsub.f32 %v4148, %v4153
    %v4161 = vsub.f32 %v4149, %v4153
    %v4162 = vmul.f32 %v4154, 1.442695
    %v4163 = vpow.pop %v4162
    %v4164 = vmul.f32 %v4155, 1.442695
    %v4165 = vpow.pop %v4164
    %v4166 = vmul.f32 %v4156, 1.442695
    %v4167 = vpow.pop %v4166
    %v4168 = vmul.f32 %v4157, 1.442695
    %v4169 = vpow.pop %v4168
    %v4170 = vmul.f32 %v4158, 1.442695
    %v4171 = vpow.pop %v4170
    %v4172 = vmul.f32 %v4159, 1.442695
    %v4173 = vpow.pop %v4172
    %v4174 = vmul.f32 %v4160, 1.442695
    %v4175 = vpow.pop %v4174
    %v4176 = vmul.f32 %v4161, 1.442695
    %v4177 = vpow.pop %v4176
    %v4178 = vlaneseq
    %v4179 = vshrl.u32 %v4178, 7
    %v4180 = vsub.s32 4, %v4179
    %v4181 = vrot.slane %v203, %v4180
    %v4182 = vsel %vm248, %v4181, 1.0
    %v4184 = vsel %vm218, %v4182, 0
    %4186 = vmatprep.subr.mxu0 0.0
    %4187 = vmatpush1.msra.mxu0 0.0
    %4188 = vmatprep.subr.mxu0 0.0
    %4189 = vmatpush1.msra.mxu0 0.0
    %4190 = vmatprep.subr.mxu0 0.0
    %4191 = vmatpush1.msra.mxu0 0.0
    %4192 = vmatprep.subr.mxu0 0.0
    %4193 = vmatpush1.msra.mxu0 0.0
    %4194 = vmatprep.subr.mxu0 0.0
    %4195 = vmatpush1.msra.mxu0 0.0
    %4196 = vmatprep.subr.mxu0 0.0
    %4197 = vmatpush1.msra.mxu0 0.0
    %4198 = vmatprep.subr.mxu0 0.0
    %4199 = vmatpush1.msra.mxu0 0.0
    %4200 = vmatprep.subr.mxu0 0.0
    %4201 = vmatpush1.msra.mxu0 0.0
    %4202 = vmatprep.subr.mxu0 0.0
    %4203 = vmatpush1.msra.mxu0 %v4177
    %4204 = vmatprep.subr.mxu0 0.0
    %4205 = vmatpush1.msra.mxu0 %v4175
    %4206 = vmatprep.subr.mxu0 0.0
    %4207 = vmatpush1.msra.mxu0 %v4173
    %4208 = vmatprep.subr.mxu0 0.0
    %4209 = vmatpush1.msra.mxu0 %v4171
    %4210 = vmatprep.subr.mxu0 0.0
    %4211 = vmatpush1.msra.mxu0 %v4169
    %4212 = vmatprep.subr.mxu0 0.0
    %4213 = vmatpush1.msra.mxu0 %v4167
    %4214 = vmatprep.subr.mxu0 0.0
    %4215 = vmatpush1.msra.mxu0 %v4165
    %4216 = vmatprep.subr.mxu0 0.0
    %4217 = vmatpush1.msra.mxu0 %v4163
    %4218 = vmatprep.subr.mxu0 0.0
    %4219 = vmatpush2.msra.mxu0 0.0
    %4220 = vmatprep.subr.mxu0 0.0
    %4221 = vmatpush2.msra.mxu0 0.0
    %4222 = vmatprep.subr.mxu0 0.0
    %4223 = vmatpush2.msra.mxu0 0.0
    %4224 = vmatprep.subr.mxu0 0.0
    %4225 = vmatpush2.msra.mxu0 0.0
    %4226 = vmatprep.subr.mxu0 0.0
    %4227 = vmatpush2.msra.mxu0 0.0
    %4228 = vmatprep.subr.mxu0 0.0
    %4229 = vmatpush2.msra.mxu0 0.0
    %4230 = vmatprep.subr.mxu0 0.0
    %4231 = vmatpush2.msra.mxu0 0.0
    %4232 = vmatprep.subr.mxu0 0.0
    %4233 = vmatpush2.msra.mxu0 0.0
    %4234 = vmatprep.subr.mxu0 0.0
    %4235 = vmatpush2.msra.mxu0 0.0
    %4236 = vmatprep.subr.mxu0 0.0
    %4237 = vmatpush2.msra.mxu0 0.0
    %4238 = vmatprep.subr.mxu0 0.0
    %4239 = vmatpush2.msra.mxu0 0.0
    %4240 = vmatprep.subr.mxu0 0.0
    %4241 = vmatpush2.msra.mxu0 0.0
    %4242 = vmatprep.subr.mxu0 0.0
    %4243 = vmatpush2.msra.mxu0 0.0
    %4244 = vmatprep.subr.mxu0 0.0
    %4245 = vmatpush2.msra.mxu0 0.0
    %4246 = vmatprep.subr.mxu0 0.0
    %4247 = vmatpush2.msra.mxu0 0.0
    %4248 = vmatprep.subr.mxu0 0.0
    %4249 = vmatpush2.msra.mxu0 0.0
    %4250 = vmatprep.mubr.f32.mxu0 0.0
    %4251 = vmatmul.mubr.f32.gmra.mxu0 %v4184
    %v4252 = vpop.f32.mrf.mxu0
    %v4253 = vadd.f32 0.0, %v4252
    %v4254 = vpop.f32.mrf.mxu0
    %4255 = vdwg.mxu0
    %v4256 = vrcp.pop %v4253
    %v4258 = vrot.slane %v4256, 1
    %v4260 = vmul.f32 %v4253, %v4258
    %4261 = vst.msk [vmem:[#allocation2 + $0xc] sm:$0x1] %vm532, %v4260
    %s4262 = sld [smem:[#allocation5 + $0x5]]
    %s4263 = sld [smem:[#allocation3 + $0xf]]
    %v4264 = vstv %s4263
    %v4265 = vmul.f32 %v4264, %v3686
    %v4266 = vmul.f32 %v4264, %v3687
    %v4267 = vmul.f32 %v4264, %v3688
    %v4268 = vmul.f32 %v4264, %v3689
    %v4269 = vmul.f32 %v4264, %v3690
    %v4270 = vmul.f32 %v4264, %v3691
    %v4271 = vmul.f32 %v4264, %v3692
    %v4272 = vmul.f32 %v4264, %v3693
    %v4273 = vstv %s4262
    %v4274 = vadd.f32 %v4273, %v4265
    %v4275 = vadd.f32 %v4273, %v4266
    %v4276 = vadd.f32 %v4273, %v4267
    %v4277 = vadd.f32 %v4273, %v4268
    %v4278 = vadd.f32 %v4273, %v4269
    %v4279 = vadd.f32 %v4273, %v4270
    %v4280 = vadd.f32 %v4273, %v4271
    %v4281 = vadd.f32 %v4273, %v4272
    %s4282 = sld [smem:[#allocation3 + $0x10]]
    %v4283 = vstv %s4282
    %v4284 = vmul.f32 %v4283, %v3686
    %v4285 = vmul.f32 %v4283, %v3687
    %v4286 = vmul.f32 %v4283, %v3688
    %v4287 = vmul.f32 %v4283, %v3689
    %v4288 = vmul.f32 %v4283, %v3690
    %v4289 = vmul.f32 %v4283, %v3691
    %v4290 = vmul.f32 %v4283, %v3692
    %v4291 = vmul.f32 %v4283, %v3693
    %4300 = vrot.lane.b32.xlu0 %v4284, 127
    %v4301 = vpop.permute.xlu0 %4300
    %4302 = vrot.lane.b32.xlu0 %v4285, 127
    %v4303 = vpop.permute.xlu0 %4302
    %4304 = vrot.lane.b32.xlu0 %v4286, 127
    %v4305 = vpop.permute.xlu0 %4304
    %4306 = vrot.lane.b32.xlu0 %v4287, 127
    %v4307 = vpop.permute.xlu0 %4306
    %4308 = vrot.lane.b32.xlu0 %v4288, 127
    %v4309 = vpop.permute.xlu0 %4308
    %4310 = vrot.lane.b32.xlu0 %v4289, 127
    %v4311 = vpop.permute.xlu0 %4310
    %4312 = vrot.lane.b32.xlu0 %v4290, 127
    %v4313 = vpop.permute.xlu0 %4312
    %4314 = vrot.lane.b32.xlu0 %v4291, 127
    %v4315 = vpop.permute.xlu0 %4314
    %v4324 = vadd.f32 %v4274, %v4301
    %v4325 = vadd.f32 %v4275, %v4303
    %v4326 = vadd.f32 %v4276, %v4305
    %v4327 = vadd.f32 %v4277, %v4307
    %v4328 = vadd.f32 %v4278, %v4309
    %v4329 = vadd.f32 %v4279, %v4311
    %v4330 = vadd.f32 %v4280, %v4313
    %v4331 = vadd.f32 %v4281, %v4315
    %s4332 = sld [smem:[#allocation3 + $0x11]]
    %v4333 = vstv %s4332
    %v4334 = vmul.f32 %v4333, %v3686
    %v4335 = vmul.f32 %v4333, %v3687
    %v4336 = vmul.f32 %v4333, %v3688
    %v4337 = vmul.f32 %v4333, %v3689
    %v4338 = vmul.f32 %v4333, %v3690
    %v4339 = vmul.f32 %v4333, %v3691
    %v4340 = vmul.f32 %v4333, %v3692
    %v4341 = vmul.f32 %v4333, %v3693
    %4350 = vrot.lane.b32.xlu0 %v4334, 126
    %v4351 = vpop.permute.xlu0 %4350
    %4352 = vrot.lane.b32.xlu0 %v4335, 126
    %v4353 = vpop.permute.xlu0 %4352
    %4354 = vrot.lane.b32.xlu0 %v4336, 126
    %v4355 = vpop.permute.xlu0 %4354
    %4356 = vrot.lane.b32.xlu0 %v4337, 126
    %v4357 = vpop.permute.xlu0 %4356
    %4358 = vrot.lane.b32.xlu0 %v4338, 126
    %v4359 = vpop.permute.xlu0 %4358
    %4360 = vrot.lane.b32.xlu0 %v4339, 126
    %v4361 = vpop.permute.xlu0 %4360
    %4362 = vrot.lane.b32.xlu0 %v4340, 126
    %v4363 = vpop.permute.xlu0 %4362
    %4364 = vrot.lane.b32.xlu0 %v4341, 126
    %v4365 = vpop.permute.xlu0 %4364
    %v4374 = vadd.f32 %v4324, %v4351
    %v4375 = vadd.f32 %v4325, %v4353
    %v4376 = vadd.f32 %v4326, %v4355
    %v4377 = vadd.f32 %v4327, %v4357
    %v4378 = vadd.f32 %v4328, %v4359
    %v4379 = vadd.f32 %v4329, %v4361
    %v4380 = vadd.f32 %v4330, %v4363
    %v4381 = vadd.f32 %v4331, %v4365
    %4383 = vset.pattern.permute.xlu0 0
    %4384 = vperm.xlu0 %4383, %v4374
    %v4385 = vpop.permute.xlu0 %4384
    %4388 = vset.pattern.permute.xlu0 0
    %4389 = vperm.xlu0 %4388, %v4375
    %v4390 = vpop.permute.xlu0 %4389
    %4393 = vset.pattern.permute.xlu0 0
    %4394 = vperm.xlu0 %4393, %v4376
    %v4395 = vpop.permute.xlu0 %4394
    %4398 = vset.pattern.permute.xlu0 0
    %4399 = vperm.xlu0 %4398, %v4377
    %v4400 = vpop.permute.xlu0 %4399
    %4403 = vset.pattern.permute.xlu0 0
    %4404 = vperm.xlu0 %4403, %v4378
    %v4405 = vpop.permute.xlu0 %4404
    %4408 = vset.pattern.permute.xlu0 0
    %4409 = vperm.xlu0 %4408, %v4379
    %v4410 = vpop.permute.xlu0 %4409
    %4413 = vset.pattern.permute.xlu0 0
    %4414 = vperm.xlu0 %4413, %v4380
    %v4415 = vpop.permute.xlu0 %4414
    %4418 = vset.pattern.permute.xlu0 0
    %4419 = vperm.xlu0 %4418, %v4381
    %v4420 = vpop.permute.xlu0 %4419
    %v4422 = vlaneseq
    %v4423 = vshrl.u32 %v4422, 7
    %v4424 = vsub.s32 4, %v4423
    %v4425 = vrot.slane %v133, %v4424
    %v4426 = vmul.f32 %v4385, %v4425
    %v4427 = vmul.f32 %v4390, %v4425
    %v4428 = vmul.f32 %v4395, %v4425
    %v4429 = vmul.f32 %v4400, %v4425
    %v4430 = vmul.f32 %v4405, %v4425
    %v4431 = vmul.f32 %v4410, %v4425
    %v4432 = vmul.f32 %v4415, %v4425
    %v4433 = vmul.f32 %v4420, %v4425
    %v4434 = vlaneseq
    %v4435 = vshrl.u32 %v4434, 7
    %v4436 = vsub.s32 4, %v4435
    %v4437 = vrot.slane %v245, %v4436
    %v4438 = vsub.f32 %v4426, %v4437
    %v4439 = vsub.f32 %v4427, %v4437
    %v4440 = vsub.f32 %v4428, %v4437
    %v4441 = vsub.f32 %v4429, %v4437
    %v4442 = vsub.f32 %v4430, %v4437
    %v4443 = vsub.f32 %v4431, %v4437
    %v4444 = vsub.f32 %v4432, %v4437
    %v4445 = vsub.f32 %v4433, %v4437
    %v4446 = vmul.f32 %v4438, 1.442695
    %v4447 = vpow.pop %v4446
    %v4448 = vmul.f32 %v4439, 1.442695
    %v4449 = vpow.pop %v4448
    %v4450 = vmul.f32 %v4440, 1.442695
    %v4451 = vpow.pop %v4450
    %v4452 = vmul.f32 %v4441, 1.442695
    %v4453 = vpow.pop %v4452
    %v4454 = vmul.f32 %v4442, 1.442695
    %v4455 = vpow.pop %v4454
    %v4456 = vmul.f32 %v4443, 1.442695
    %v4457 = vpow.pop %v4456
    %v4458 = vmul.f32 %v4444, 1.442695
    %v4459 = vpow.pop %v4458
    %v4460 = vmul.f32 %v4445, 1.442695
    %v4461 = vpow.pop %v4460
    %v4462 = vlaneseq
    %v4463 = vshrl.u32 %v4462, 7
    %v4464 = vsub.s32 4, %v4463
    %v4465 = vrot.slane %v217, %v4464
    %v4466 = vsel %vm248, %v4465, 1.0
    %v4468 = vsel %vm218, %v4466, 0
    %4470 = vmatprep.subr.mxu0 0.0
    %4471 = vmatpush1.msra.mxu0 0.0
    %4472 = vmatprep.subr.mxu0 0.0
    %4473 = vmatpush1.msra.mxu0 0.0
    %4474 = vmatprep.subr.mxu0 0.0
    %4475 = vmatpush1.msra.mxu0 0.0
    %4476 = vmatprep.subr.mxu0 0.0
    %4477 = vmatpush1.msra.mxu0 0.0
    %4478 = vmatprep.subr.mxu0 0.0
    %4479 = vmatpush1.msra.mxu0 0.0
    %4480 = vmatprep.subr.mxu0 0.0
    %4481 = vmatpush1.msra.mxu0 0.0
    %4482 = vmatprep.subr.mxu0 0.0
    %4483 = vmatpush1.msra.mxu0 0.0
    %4484 = vmatprep.subr.mxu0 0.0
    %4485 = vmatpush1.msra.mxu0 0.0
    %4486 = vmatprep.subr.mxu0 0.0
    %4487 = vmatpush1.msra.mxu0 %v4461
    %4488 = vmatprep.subr.mxu0 0.0
    %4489 = vmatpush1.msra.mxu0 %v4459
    %4490 = vmatprep.subr.mxu0 0.0
    %4491 = vmatpush1.msra.mxu0 %v4457
    %4492 = vmatprep.subr.mxu0 0.0
    %4493 = vmatpush1.msra.mxu0 %v4455
    %4494 = vmatprep.subr.mxu0 0.0
    %4495 = vmatpush1.msra.mxu0 %v4453
    %4496 = vmatprep.subr.mxu0 0.0
    %4497 = vmatpush1.msra.mxu0 %v4451
    %4498 = vmatprep.subr.mxu0 0.0
    %4499 = vmatpush1.msra.mxu0 %v4449
    %4500 = vmatprep.subr.mxu0 0.0
    %4501 = vmatpush1.msra.mxu0 %v4447
    %4502 = vmatprep.subr.mxu0 0.0
    %4503 = vmatpush2.msra.mxu0 0.0
    %4504 = vmatprep.subr.mxu0 0.0
    %4505 = vmatpush2.msra.mxu0 0.0
    %4506 = vmatprep.subr.mxu0 0.0
    %4507 = vmatpush2.msra.mxu0 0.0
    %4508 = vmatprep.subr.mxu0 0.0
    %4509 = vmatpush2.msra.mxu0 0.0
    %4510 = vmatprep.subr.mxu0 0.0
    %4511 = vmatpush2.msra.mxu0 0.0
    %4512 = vmatprep.subr.mxu0 0.0
    %4513 = vmatpush2.msra.mxu0 0.0
    %4514 = vmatprep.subr.mxu0 0.0
    %4515 = vmatpush2.msra.mxu0 0.0
    %4516 = vmatprep.subr.mxu0 0.0
    %4517 = vmatpush2.msra.mxu0 0.0
    %4518 = vmatprep.subr.mxu0 0.0
    %4519 = vmatpush2.msra.mxu0 0.0
    %4520 = vmatprep.subr.mxu0 0.0
    %4521 = vmatpush2.msra.mxu0 0.0
    %4522 = vmatprep.subr.mxu0 0.0
    %4523 = vmatpush2.msra.mxu0 0.0
    %4524 = vmatprep.subr.mxu0 0.0
    %4525 = vmatpush2.msra.mxu0 0.0
    %4526 = vmatprep.subr.mxu0 0.0
    %4527 = vmatpush2.msra.mxu0 0.0
    %4528 = vmatprep.subr.mxu0 0.0
    %4529 = vmatpush2.msra.mxu0 0.0
    %4530 = vmatprep.subr.mxu0 0.0
    %4531 = vmatpush2.msra.mxu0 0.0
    %4532 = vmatprep.subr.mxu0 0.0
    %4533 = vmatpush2.msra.mxu0 0.0
    %4534 = vmatprep.mubr.f32.mxu0 0.0
    %4535 = vmatmul.mubr.f32.gmra.mxu0 %v4468
    %v4536 = vpop.f32.mrf.mxu0
    %v4537 = vadd.f32 0.0, %v4536
    %v4538 = vpop.f32.mrf.mxu0
    %4539 = vdwg.mxu0
    %v4540 = vrcp.pop %v4537
    %v4542 = vrot.slane %v4540, 1
    %v4544 = vmul.f32 %v4537, %v4542
    %4545 = vst.msk [vmem:[#allocation2 + $0x14] sm:$0x1] %vm532, %v4544
    %s4546 = scalar_lea.vmem %s1, 320
    %v4547 = vld [vmem:[%s4546] sm:$0xff]
    %v4548 = vld [vmem:[%s4546 + $0x8] sm:$0xff]
    %v4549 = vld [vmem:[%s4546 + $0x10] sm:$0xff]
    %v4550 = vld [vmem:[%s4546 + $0x18] sm:$0xff]
    %v4551 = vld [vmem:[%s4546 + $0x20] sm:$0xff]
    %v4552 = vld [vmem:[%s4546 + $0x28] sm:$0xff]
    %v4553 = vld [vmem:[%s4546 + $0x30] sm:$0xff]
    %v4554 = vld [vmem:[%s4546 + $0x38] sm:$0xff]
    %s4555 = sld [smem:[#allocation5 + $0x3]]
    %s4556 = sld [smem:[#allocation3 + $0x9]]
    %v4557 = vstv %s4556
    %v4558 = vmul.f32 %v4557, %v4547
    %v4559 = vmul.f32 %v4557, %v4548
    %v4560 = vmul.f32 %v4557, %v4549
    %v4561 = vmul.f32 %v4557, %v4550
    %v4562 = vmul.f32 %v4557, %v4551
    %v4563 = vmul.f32 %v4557, %v4552
    %v4564 = vmul.f32 %v4557, %v4553
    %v4565 = vmul.f32 %v4557, %v4554
    %v4566 = vstv %s4555
    %v4567 = vadd.f32 %v4566, %v4558
    %v4568 = vadd.f32 %v4566, %v4559
    %v4569 = vadd.f32 %v4566, %v4560
    %v4570 = vadd.f32 %v4566, %v4561
    %v4571 = vadd.f32 %v4566, %v4562
    %v4572 = vadd.f32 %v4566, %v4563
    %v4573 = vadd.f32 %v4566, %v4564
    %v4574 = vadd.f32 %v4566, %v4565
    %s4575 = sld [smem:[#allocation3 + $0xa]]
    %v4576 = vstv %s4575
    %v4577 = vmul.f32 %v4576, %v4547
    %v4578 = vmul.f32 %v4576, %v4548
    %v4579 = vmul.f32 %v4576, %v4549
    %v4580 = vmul.f32 %v4576, %v4550
    %v4581 = vmul.f32 %v4576, %v4551
    %v4582 = vmul.f32 %v4576, %v4552
    %v4583 = vmul.f32 %v4576, %v4553
    %v4584 = vmul.f32 %v4576, %v4554
    %4593 = vrot.lane.b32.xlu0 %v4577, 127
    %v4594 = vpop.permute.xlu0 %4593
    %4595 = vrot.lane.b32.xlu0 %v4578, 127
    %v4596 = vpop.permute.xlu0 %4595
    %4597 = vrot.lane.b32.xlu0 %v4579, 127
    %v4598 = vpop.permute.xlu0 %4597
    %4599 = vrot.lane.b32.xlu0 %v4580, 127
    %v4600 = vpop.permute.xlu0 %4599
    %4601 = vrot.lane.b32.xlu0 %v4581, 127
    %v4602 = vpop.permute.xlu0 %4601
    %4603 = vrot.lane.b32.xlu0 %v4582, 127
    %v4604 = vpop.permute.xlu0 %4603
    %4605 = vrot.lane.b32.xlu0 %v4583, 127
    %v4606 = vpop.permute.xlu0 %4605
    %4607 = vrot.lane.b32.xlu0 %v4584, 127
    %v4608 = vpop.permute.xlu0 %4607
    %v4617 = vadd.f32 %v4567, %v4594
    %v4618 = vadd.f32 %v4568, %v4596
    %v4619 = vadd.f32 %v4569, %v4598
    %v4620 = vadd.f32 %v4570, %v4600
    %v4621 = vadd.f32 %v4571, %v4602
    %v4622 = vadd.f32 %v4572, %v4604
    %v4623 = vadd.f32 %v4573, %v4606
    %v4624 = vadd.f32 %v4574, %v4608
    %s4625 = sld [smem:[#allocation3 + $0xb]]
    %v4626 = vstv %s4625
    %v4627 = vmul.f32 %v4626, %v4547
    %v4628 = vmul.f32 %v4626, %v4548
    %v4629 = vmul.f32 %v4626, %v4549
    %v4630 = vmul.f32 %v4626, %v4550
    %v4631 = vmul.f32 %v4626, %v4551
    %v4632 = vmul.f32 %v4626, %v4552
    %v4633 = vmul.f32 %v4626, %v4553
    %v4634 = vmul.f32 %v4626, %v4554
    %4643 = vrot.lane.b32.xlu0 %v4627, 126
    %v4644 = vpop.permute.xlu0 %4643
    %4645 = vrot.lane.b32.xlu0 %v4628, 126
    %v4646 = vpop.permute.xlu0 %4645
    %4647 = vrot.lane.b32.xlu0 %v4629, 126
    %v4648 = vpop.permute.xlu0 %4647
    %4649 = vrot.lane.b32.xlu0 %v4630, 126
    %v4650 = vpop.permute.xlu0 %4649
    %4651 = vrot.lane.b32.xlu0 %v4631, 126
    %v4652 = vpop.permute.xlu0 %4651
    %4653 = vrot.lane.b32.xlu0 %v4632, 126
    %v4654 = vpop.permute.xlu0 %4653
    %4655 = vrot.lane.b32.xlu0 %v4633, 126
    %v4656 = vpop.permute.xlu0 %4655
    %4657 = vrot.lane.b32.xlu0 %v4634, 126
    %v4658 = vpop.permute.xlu0 %4657
    %v4667 = vadd.f32 %v4617, %v4644
    %v4668 = vadd.f32 %v4618, %v4646
    %v4669 = vadd.f32 %v4619, %v4648
    %v4670 = vadd.f32 %v4620, %v4650
    %v4671 = vadd.f32 %v4621, %v4652
    %v4672 = vadd.f32 %v4622, %v4654
    %v4673 = vadd.f32 %v4623, %v4656
    %v4674 = vadd.f32 %v4624, %v4658
    %4676 = vset.pattern.permute.xlu0 0
    %4677 = vperm.xlu0 %4676, %v4667
    %v4678 = vpop.permute.xlu0 %4677
    %4681 = vset.pattern.permute.xlu0 0
    %4682 = vperm.xlu0 %4681, %v4668
    %v4683 = vpop.permute.xlu0 %4682
    %4686 = vset.pattern.permute.xlu0 0
    %4687 = vperm.xlu0 %4686, %v4669
    %v4688 = vpop.permute.xlu0 %4687
    %4691 = vset.pattern.permute.xlu0 0
    %4692 = vperm.xlu0 %4691, %v4670
    %v4693 = vpop.permute.xlu0 %4692
    %4696 = vset.pattern.permute.xlu0 0
    %4697 = vperm.xlu0 %4696, %v4671
    %v4698 = vpop.permute.xlu0 %4697
    %4701 = vset.pattern.permute.xlu0 0
    %4702 = vperm.xlu0 %4701, %v4672
    %v4703 = vpop.permute.xlu0 %4702
    %4706 = vset.pattern.permute.xlu0 0
    %4707 = vperm.xlu0 %4706, %v4673
    %v4708 = vpop.permute.xlu0 %4707
    %4711 = vset.pattern.permute.xlu0 0
    %4712 = vperm.xlu0 %4711, %v4674
    %v4713 = vpop.permute.xlu0 %4712
    %v4715 = vlaneseq
    %v4716 = vshrl.u32 %v4715, 7
    %v4717 = vsub.s32 5, %v4716
    %v4718 = vrot.slane %v105, %v4717
    %v4719 = vmul.f32 %v4678, %v4718
    %v4720 = vmul.f32 %v4683, %v4718
    %v4721 = vmul.f32 %v4688, %v4718
    %v4722 = vmul.f32 %v4693, %v4718
    %v4723 = vmul.f32 %v4698, %v4718
    %v4724 = vmul.f32 %v4703, %v4718
    %v4725 = vmul.f32 %v4708, %v4718
    %v4726 = vmul.f32 %v4713, %v4718
    %v4727 = vlaneseq
    %v4728 = vshrl.u32 %v4727, 7
    %v4729 = vsub.s32 5, %v4728
    %v4730 = vrot.slane %v227, %v4729
    %v4731 = vsub.f32 %v4719, %v4730
    %v4732 = vsub.f32 %v4720, %v4730
    %v4733 = vsub.f32 %v4721, %v4730
    %v4734 = vsub.f32 %v4722, %v4730
    %v4735 = vsub.f32 %v4723, %v4730
    %v4736 = vsub.f32 %v4724, %v4730
    %v4737 = vsub.f32 %v4725, %v4730
    %v4738 = vsub.f32 %v4726, %v4730
    %v4739 = vmul.f32 %v4731, 1.442695
    %v4740 = vpow.pop %v4739
    %v4741 = vmul.f32 %v4732, 1.442695
    %v4742 = vpow.pop %v4741
    %v4743 = vmul.f32 %v4733, 1.442695
    %v4744 = vpow.pop %v4743
    %v4745 = vmul.f32 %v4734, 1.442695
    %v4746 = vpow.pop %v4745
    %v4747 = vmul.f32 %v4735, 1.442695
    %v4748 = vpow.pop %v4747
    %v4749 = vmul.f32 %v4736, 1.442695
    %v4750 = vpow.pop %v4749
    %v4751 = vmul.f32 %v4737, 1.442695
    %v4752 = vpow.pop %v4751
    %v4753 = vmul.f32 %v4738, 1.442695
    %v4754 = vpow.pop %v4753
    %v4755 = vlaneseq
    %v4756 = vshrl.u32 %v4755, 7
    %v4757 = vsub.s32 5, %v4756
    %v4758 = vrot.slane %v189, %v4757
    %v4759 = vsel %vm248, %v4758, 1.0
    %v4761 = vsel %vm218, %v4759, 0
    %4763 = vmatprep.subr.mxu0 0.0
    %4764 = vmatpush1.msra.mxu0 0.0
    %4765 = vmatprep.subr.mxu0 0.0
    %4766 = vmatpush1.msra.mxu0 0.0
    %4767 = vmatprep.subr.mxu0 0.0
    %4768 = vmatpush1.msra.mxu0 0.0
    %4769 = vmatprep.subr.mxu0 0.0
    %4770 = vmatpush1.msra.mxu0 0.0
    %4771 = vmatprep.subr.mxu0 0.0
    %4772 = vmatpush1.msra.mxu0 0.0
    %4773 = vmatprep.subr.mxu0 0.0
    %4774 = vmatpush1.msra.mxu0 0.0
    %4775 = vmatprep.subr.mxu0 0.0
    %4776 = vmatpush1.msra.mxu0 0.0
    %4777 = vmatprep.subr.mxu0 0.0
    %4778 = vmatpush1.msra.mxu0 0.0
    %4779 = vmatprep.subr.mxu0 0.0
    %4780 = vmatpush1.msra.mxu0 %v4754
    %4781 = vmatprep.subr.mxu0 0.0
    %4782 = vmatpush1.msra.mxu0 %v4752
    %4783 = vmatprep.subr.mxu0 0.0
    %4784 = vmatpush1.msra.mxu0 %v4750
    %4785 = vmatprep.subr.mxu0 0.0
    %4786 = vmatpush1.msra.mxu0 %v4748
    %4787 = vmatprep.subr.mxu0 0.0
    %4788 = vmatpush1.msra.mxu0 %v4746
    %4789 = vmatprep.subr.mxu0 0.0
    %4790 = vmatpush1.msra.mxu0 %v4744
    %4791 = vmatprep.subr.mxu0 0.0
    %4792 = vmatpush1.msra.mxu0 %v4742
    %4793 = vmatprep.subr.mxu0 0.0
    %4794 = vmatpush1.msra.mxu0 %v4740
    %4795 = vmatprep.subr.mxu0 0.0
    %4796 = vmatpush2.msra.mxu0 0.0
    %4797 = vmatprep.subr.mxu0 0.0
    %4798 = vmatpush2.msra.mxu0 0.0
    %4799 = vmatprep.subr.mxu0 0.0
    %4800 = vmatpush2.msra.mxu0 0.0
    %4801 = vmatprep.subr.mxu0 0.0
    %4802 = vmatpush2.msra.mxu0 0.0
    %4803 = vmatprep.subr.mxu0 0.0
    %4804 = vmatpush2.msra.mxu0 0.0
    %4805 = vmatprep.subr.mxu0 0.0
    %4806 = vmatpush2.msra.mxu0 0.0
    %4807 = vmatprep.subr.mxu0 0.0
    %4808 = vmatpush2.msra.mxu0 0.0
    %4809 = vmatprep.subr.mxu0 0.0
    %4810 = vmatpush2.msra.mxu0 0.0
    %4811 = vmatprep.subr.mxu0 0.0
    %4812 = vmatpush2.msra.mxu0 0.0
    %4813 = vmatprep.subr.mxu0 0.0
    %4814 = vmatpush2.msra.mxu0 0.0
    %4815 = vmatprep.subr.mxu0 0.0
    %4816 = vmatpush2.msra.mxu0 0.0
    %4817 = vmatprep.subr.mxu0 0.0
    %4818 = vmatpush2.msra.mxu0 0.0
    %4819 = vmatprep.subr.mxu0 0.0
    %4820 = vmatpush2.msra.mxu0 0.0
    %4821 = vmatprep.subr.mxu0 0.0
    %4822 = vmatpush2.msra.mxu0 0.0
    %4823 = vmatprep.subr.mxu0 0.0
    %4824 = vmatpush2.msra.mxu0 0.0
    %4825 = vmatprep.subr.mxu0 0.0
    %4826 = vmatpush2.msra.mxu0 0.0
    %4827 = vmatprep.mubr.f32.mxu0 0.0
    %4828 = vmatmul.mubr.f32.gmra.mxu0 %v4761
    %v4829 = vpop.f32.mrf.mxu0
    %v4830 = vadd.f32 0.0, %v4829
    %v4831 = vpop.f32.mrf.mxu0
    %4832 = vdwg.mxu0
    %v4833 = vrcp.pop %v4830
    %v4835 = vrot.slane %v4833, 1
    %v4837 = vmul.f32 %v4830, %v4835
    %4838 = vst.msk [vmem:[#allocation2 + $0x5] sm:$0x1] %vm532, %v4837
    %s4839 = sld [smem:[#allocation5 + $0x4]]
    %s4840 = sld [smem:[#allocation3 + $0xc]]
    %v4841 = vstv %s4840
    %v4842 = vmul.f32 %v4841, %v4547
    %v4843 = vmul.f32 %v4841, %v4548
    %v4844 = vmul.f32 %v4841, %v4549
    %v4845 = vmul.f32 %v4841, %v4550
    %v4846 = vmul.f32 %v4841, %v4551
    %v4847 = vmul.f32 %v4841, %v4552
    %v4848 = vmul.f32 %v4841, %v4553
    %v4849 = vmul.f32 %v4841, %v4554
    %v4850 = vstv %s4839
    %v4851 = vadd.f32 %v4850, %v4842
    %v4852 = vadd.f32 %v4850, %v4843
    %v4853 = vadd.f32 %v4850, %v4844
    %v4854 = vadd.f32 %v4850, %v4845
    %v4855 = vadd.f32 %v4850, %v4846
    %v4856 = vadd.f32 %v4850, %v4847
    %v4857 = vadd.f32 %v4850, %v4848
    %v4858 = vadd.f32 %v4850, %v4849
    %s4859 = sld [smem:[#allocation3 + $0xd]]
    %v4860 = vstv %s4859
    %v4861 = vmul.f32 %v4860, %v4547
    %v4862 = vmul.f32 %v4860, %v4548
    %v4863 = vmul.f32 %v4860, %v4549
    %v4864 = vmul.f32 %v4860, %v4550
    %v4865 = vmul.f32 %v4860, %v4551
    %v4866 = vmul.f32 %v4860, %v4552
    %v4867 = vmul.f32 %v4860, %v4553
    %v4868 = vmul.f32 %v4860, %v4554
    %4877 = vrot.lane.b32.xlu0 %v4861, 127
    %v4878 = vpop.permute.xlu0 %4877
    %4879 = vrot.lane.b32.xlu0 %v4862, 127
    %v4880 = vpop.permute.xlu0 %4879
    %4881 = vrot.lane.b32.xlu0 %v4863, 127
    %v4882 = vpop.permute.xlu0 %4881
    %4883 = vrot.lane.b32.xlu0 %v4864, 127
    %v4884 = vpop.permute.xlu0 %4883
    %4885 = vrot.lane.b32.xlu0 %v4865, 127
    %v4886 = vpop.permute.xlu0 %4885
    %4887 = vrot.lane.b32.xlu0 %v4866, 127
    %v4888 = vpop.permute.xlu0 %4887
    %4889 = vrot.lane.b32.xlu0 %v4867, 127
    %v4890 = vpop.permute.xlu0 %4889
    %4891 = vrot.lane.b32.xlu0 %v4868, 127
    %v4892 = vpop.permute.xlu0 %4891
    %v4901 = vadd.f32 %v4851, %v4878
    %v4902 = vadd.f32 %v4852, %v4880
    %v4903 = vadd.f32 %v4853, %v4882
    %v4904 = vadd.f32 %v4854, %v4884
    %v4905 = vadd.f32 %v4855, %v4886
    %v4906 = vadd.f32 %v4856, %v4888
    %v4907 = vadd.f32 %v4857, %v4890
    %v4908 = vadd.f32 %v4858, %v4892
    %s4909 = sld [smem:[#allocation3 + $0xe]]
    %v4910 = vstv %s4909
    %v4911 = vmul.f32 %v4910, %v4547
    %v4912 = vmul.f32 %v4910, %v4548
    %v4913 = vmul.f32 %v4910, %v4549
    %v4914 = vmul.f32 %v4910, %v4550
    %v4915 = vmul.f32 %v4910, %v4551
    %v4916 = vmul.f32 %v4910, %v4552
    %v4917 = vmul.f32 %v4910, %v4553
    %v4918 = vmul.f32 %v4910, %v4554
    %4927 = vrot.lane.b32.xlu0 %v4911, 126
    %v4928 = vpop.permute.xlu0 %4927
    %4929 = vrot.lane.b32.xlu0 %v4912, 126
    %v4930 = vpop.permute.xlu0 %4929
    %4931 = vrot.lane.b32.xlu0 %v4913, 126
    %v4932 = vpop.permute.xlu0 %4931
    %4933 = vrot.lane.b32.xlu0 %v4914, 126
    %v4934 = vpop.permute.xlu0 %4933
    %4935 = vrot.lane.b32.xlu0 %v4915, 126
    %v4936 = vpop.permute.xlu0 %4935
    %4937 = vrot.lane.b32.xlu0 %v4916, 126
    %v4938 = vpop.permute.xlu0 %4937
    %4939 = vrot.lane.b32.xlu0 %v4917, 126
    %v4940 = vpop.permute.xlu0 %4939
    %4941 = vrot.lane.b32.xlu0 %v4918, 126
    %v4942 = vpop.permute.xlu0 %4941
    %v4951 = vadd.f32 %v4901, %v4928
    %v4952 = vadd.f32 %v4902, %v4930
    %v4953 = vadd.f32 %v4903, %v4932
    %v4954 = vadd.f32 %v4904, %v4934
    %v4955 = vadd.f32 %v4905, %v4936
    %v4956 = vadd.f32 %v4906, %v4938
    %v4957 = vadd.f32 %v4907, %v4940
    %v4958 = vadd.f32 %v4908, %v4942
    %4960 = vset.pattern.permute.xlu0 0
    %4961 = vperm.xlu0 %4960, %v4951
    %v4962 = vpop.permute.xlu0 %4961
    %4965 = vset.pattern.permute.xlu0 0
    %4966 = vperm.xlu0 %4965, %v4952
    %v4967 = vpop.permute.xlu0 %4966
    %4970 = vset.pattern.permute.xlu0 0
    %4971 = vperm.xlu0 %4970, %v4953
    %v4972 = vpop.permute.xlu0 %4971
    %4975 = vset.pattern.permute.xlu0 0
    %4976 = vperm.xlu0 %4975, %v4954
    %v4977 = vpop.permute.xlu0 %4976
    %4980 = vset.pattern.permute.xlu0 0
    %4981 = vperm.xlu0 %4980, %v4955
    %v4982 = vpop.permute.xlu0 %4981
    %4985 = vset.pattern.permute.xlu0 0
    %4986 = vperm.xlu0 %4985, %v4956
    %v4987 = vpop.permute.xlu0 %4986
    %4990 = vset.pattern.permute.xlu0 0
    %4991 = vperm.xlu0 %4990, %v4957
    %v4992 = vpop.permute.xlu0 %4991
    %4995 = vset.pattern.permute.xlu0 0
    %4996 = vperm.xlu0 %4995, %v4958
    %v4997 = vpop.permute.xlu0 %4996
    %v4999 = vlaneseq
    %v5000 = vshrl.u32 %v4999, 7
    %v5001 = vsub.s32 5, %v5000
    %v5002 = vrot.slane %v119, %v5001
    %v5003 = vmul.f32 %v4962, %v5002
    %v5004 = vmul.f32 %v4967, %v5002
    %v5005 = vmul.f32 %v4972, %v5002
    %v5006 = vmul.f32 %v4977, %v5002
    %v5007 = vmul.f32 %v4982, %v5002
    %v5008 = vmul.f32 %v4987, %v5002
    %v5009 = vmul.f32 %v4992, %v5002
    %v5010 = vmul.f32 %v4997, %v5002
    %v5011 = vlaneseq
    %v5012 = vshrl.u32 %v5011, 7
    %v5013 = vsub.s32 5, %v5012
    %v5014 = vrot.slane %v236, %v5013
    %v5015 = vsub.f32 %v5003, %v5014
    %v5016 = vsub.f32 %v5004, %v5014
    %v5017 = vsub.f32 %v5005, %v5014
    %v5018 = vsub.f32 %v5006, %v5014
    %v5019 = vsub.f32 %v5007, %v5014
    %v5020 = vsub.f32 %v5008, %v5014
    %v5021 = vsub.f32 %v5009, %v5014
    %v5022 = vsub.f32 %v5010, %v5014
    %v5023 = vmul.f32 %v5015, 1.442695
    %v5024 = vpow.pop %v5023
    %v5025 = vmul.f32 %v5016, 1.442695
    %v5026 = vpow.pop %v5025
    %v5027 = vmul.f32 %v5017, 1.442695
    %v5028 = vpow.pop %v5027
    %v5029 = vmul.f32 %v5018, 1.442695
    %v5030 = vpow.pop %v5029
    %v5031 = vmul.f32 %v5019, 1.442695
    %v5032 = vpow.pop %v5031
    %v5033 = vmul.f32 %v5020, 1.442695
    %v5034 = vpow.pop %v5033
    %v5035 = vmul.f32 %v5021, 1.442695
    %v5036 = vpow.pop %v5035
    %v5037 = vmul.f32 %v5022, 1.442695
    %v5038 = vpow.pop %v5037
    %v5039 = vlaneseq
    %v5040 = vshrl.u32 %v5039, 7
    %v5041 = vsub.s32 5, %v5040
    %v5042 = vrot.slane %v203, %v5041
    %v5043 = vsel %vm248, %v5042, 1.0
    %v5045 = vsel %vm218, %v5043, 0
    %5047 = vmatprep.subr.mxu0 0.0
    %5048 = vmatpush1.msra.mxu0 0.0
    %5049 = vmatprep.subr.mxu0 0.0
    %5050 = vmatpush1.msra.mxu0 0.0
    %5051 = vmatprep.subr.mxu0 0.0
    %5052 = vmatpush1.msra.mxu0 0.0
    %5053 = vmatprep.subr.mxu0 0.0
    %5054 = vmatpush1.msra.mxu0 0.0
    %5055 = vmatprep.subr.mxu0 0.0
    %5056 = vmatpush1.msra.mxu0 0.0
    %5057 = vmatprep.subr.mxu0 0.0
    %5058 = vmatpush1.msra.mxu0 0.0
    %5059 = vmatprep.subr.mxu0 0.0
    %5060 = vmatpush1.msra.mxu0 0.0
    %5061 = vmatprep.subr.mxu0 0.0
    %5062 = vmatpush1.msra.mxu0 0.0
    %5063 = vmatprep.subr.mxu0 0.0
    %5064 = vmatpush1.msra.mxu0 %v5038
    %5065 = vmatprep.subr.mxu0 0.0
    %5066 = vmatpush1.msra.mxu0 %v5036
    %5067 = vmatprep.subr.mxu0 0.0
    %5068 = vmatpush1.msra.mxu0 %v5034
    %5069 = vmatprep.subr.mxu0 0.0
    %5070 = vmatpush1.msra.mxu0 %v5032
    %5071 = vmatprep.subr.mxu0 0.0
    %5072 = vmatpush1.msra.mxu0 %v5030
    %5073 = vmatprep.subr.mxu0 0.0
    %5074 = vmatpush1.msra.mxu0 %v5028
    %5075 = vmatprep.subr.mxu0 0.0
    %5076 = vmatpush1.msra.mxu0 %v5026
    %5077 = vmatprep.subr.mxu0 0.0
    %5078 = vmatpush1.msra.mxu0 %v5024
    %5079 = vmatprep.subr.mxu0 0.0
    %5080 = vmatpush2.msra.mxu0 0.0
    %5081 = vmatprep.subr.mxu0 0.0
    %5082 = vmatpush2.msra.mxu0 0.0
    %5083 = vmatprep.subr.mxu0 0.0
    %5084 = vmatpush2.msra.mxu0 0.0
    %5085 = vmatprep.subr.mxu0 0.0
    %5086 = vmatpush2.msra.mxu0 0.0
    %5087 = vmatprep.subr.mxu0 0.0
    %5088 = vmatpush2.msra.mxu0 0.0
    %5089 = vmatprep.subr.mxu0 0.0
    %5090 = vmatpush2.msra.mxu0 0.0
    %5091 = vmatprep.subr.mxu0 0.0
    %5092 = vmatpush2.msra.mxu0 0.0
    %5093 = vmatprep.subr.mxu0 0.0
    %5094 = vmatpush2.msra.mxu0 0.0
    %5095 = vmatprep.subr.mxu0 0.0
    %5096 = vmatpush2.msra.mxu0 0.0
    %5097 = vmatprep.subr.mxu0 0.0
    %5098 = vmatpush2.msra.mxu0 0.0
    %5099 = vmatprep.subr.mxu0 0.0
    %5100 = vmatpush2.msra.mxu0 0.0
    %5101 = vmatprep.subr.mxu0 0.0
    %5102 = vmatpush2.msra.mxu0 0.0
    %5103 = vmatprep.subr.mxu0 0.0
    %5104 = vmatpush2.msra.mxu0 0.0
    %5105 = vmatprep.subr.mxu0 0.0
    %5106 = vmatpush2.msra.mxu0 0.0
    %5107 = vmatprep.subr.mxu0 0.0
    %5108 = vmatpush2.msra.mxu0 0.0
    %5109 = vmatprep.subr.mxu0 0.0
    %5110 = vmatpush2.msra.mxu0 0.0
    %5111 = vmatprep.mubr.f32.mxu0 0.0
    %5112 = vmatmul.mubr.f32.gmra.mxu0 %v5045
    %v5113 = vpop.f32.mrf.mxu0
    %v5114 = vadd.f32 0.0, %v5113
    %v5115 = vpop.f32.mrf.mxu0
    %5116 = vdwg.mxu0
    %v5117 = vrcp.pop %v5114
    %v5119 = vrot.slane %v5117, 1
    %v5121 = vmul.f32 %v5114, %v5119
    %5122 = vst.msk [vmem:[#allocation2 + $0xd] sm:$0x1] %vm532, %v5121
    %s5123 = sld [smem:[#allocation5 + $0x5]]
    %s5124 = sld [smem:[#allocation3 + $0xf]]
    %v5125 = vstv %s5124
    %v5126 = vmul.f32 %v5125, %v4547
    %v5127 = vmul.f32 %v5125, %v4548
    %v5128 = vmul.f32 %v5125, %v4549
    %v5129 = vmul.f32 %v5125, %v4550
    %v5130 = vmul.f32 %v5125, %v4551
    %v5131 = vmul.f32 %v5125, %v4552
    %v5132 = vmul.f32 %v5125, %v4553
    %v5133 = vmul.f32 %v5125, %v4554
    %v5134 = vstv %s5123
    %v5135 = vadd.f32 %v5134, %v5126
    %v5136 = vadd.f32 %v5134, %v5127
    %v5137 = vadd.f32 %v5134, %v5128
    %v5138 = vadd.f32 %v5134, %v5129
    %v5139 = vadd.f32 %v5134, %v5130
    %v5140 = vadd.f32 %v5134, %v5131
    %v5141 = vadd.f32 %v5134, %v5132
    %v5142 = vadd.f32 %v5134, %v5133
    %s5143 = sld [smem:[#allocation3 + $0x10]]
    %v5144 = vstv %s5143
    %v5145 = vmul.f32 %v5144, %v4547
    %v5146 = vmul.f32 %v5144, %v4548
    %v5147 = vmul.f32 %v5144, %v4549
    %v5148 = vmul.f32 %v5144, %v4550
    %v5149 = vmul.f32 %v5144, %v4551
    %v5150 = vmul.f32 %v5144, %v4552
    %v5151 = vmul.f32 %v5144, %v4553
    %v5152 = vmul.f32 %v5144, %v4554
    %5161 = vrot.lane.b32.xlu0 %v5145, 127
    %v5162 = vpop.permute.xlu0 %5161
    %5163 = vrot.lane.b32.xlu0 %v5146, 127
    %v5164 = vpop.permute.xlu0 %5163
    %5165 = vrot.lane.b32.xlu0 %v5147, 127
    %v5166 = vpop.permute.xlu0 %5165
    %5167 = vrot.lane.b32.xlu0 %v5148, 127
    %v5168 = vpop.permute.xlu0 %5167
    %5169 = vrot.lane.b32.xlu0 %v5149, 127
    %v5170 = vpop.permute.xlu0 %5169
    %5171 = vrot.lane.b32.xlu0 %v5150, 127
    %v5172 = vpop.permute.xlu0 %5171
    %5173 = vrot.lane.b32.xlu0 %v5151, 127
    %v5174 = vpop.permute.xlu0 %5173
    %5175 = vrot.lane.b32.xlu0 %v5152, 127
    %v5176 = vpop.permute.xlu0 %5175
    %v5185 = vadd.f32 %v5135, %v5162
    %v5186 = vadd.f32 %v5136, %v5164
    %v5187 = vadd.f32 %v5137, %v5166
    %v5188 = vadd.f32 %v5138, %v5168
    %v5189 = vadd.f32 %v5139, %v5170
    %v5190 = vadd.f32 %v5140, %v5172
    %v5191 = vadd.f32 %v5141, %v5174
    %v5192 = vadd.f32 %v5142, %v5176
    %s5193 = sld [smem:[#allocation3 + $0x11]]
    %v5194 = vstv %s5193
    %v5195 = vmul.f32 %v5194, %v4547
    %v5196 = vmul.f32 %v5194, %v4548
    %v5197 = vmul.f32 %v5194, %v4549
    %v5198 = vmul.f32 %v5194, %v4550
    %v5199 = vmul.f32 %v5194, %v4551
    %v5200 = vmul.f32 %v5194, %v4552
    %v5201 = vmul.f32 %v5194, %v4553
    %v5202 = vmul.f32 %v5194, %v4554
    %5211 = vrot.lane.b32.xlu0 %v5195, 126
    %v5212 = vpop.permute.xlu0 %5211
    %5213 = vrot.lane.b32.xlu0 %v5196, 126
    %v5214 = vpop.permute.xlu0 %5213
    %5215 = vrot.lane.b32.xlu0 %v5197, 126
    %v5216 = vpop.permute.xlu0 %5215
    %5217 = vrot.lane.b32.xlu0 %v5198, 126
    %v5218 = vpop.permute.xlu0 %5217
    %5219 = vrot.lane.b32.xlu0 %v5199, 126
    %v5220 = vpop.permute.xlu0 %5219
    %5221 = vrot.lane.b32.xlu0 %v5200, 126
    %v5222 = vpop.permute.xlu0 %5221
    %5223 = vrot.lane.b32.xlu0 %v5201, 126
    %v5224 = vpop.permute.xlu0 %5223
    %5225 = vrot.lane.b32.xlu0 %v5202, 126
    %v5226 = vpop.permute.xlu0 %5225
    %v5235 = vadd.f32 %v5185, %v5212
    %v5236 = vadd.f32 %v5186, %v5214
    %v5237 = vadd.f32 %v5187, %v5216
    %v5238 = vadd.f32 %v5188, %v5218
    %v5239 = vadd.f32 %v5189, %v5220
    %v5240 = vadd.f32 %v5190, %v5222
    %v5241 = vadd.f32 %v5191, %v5224
    %v5242 = vadd.f32 %v5192, %v5226
    %5244 = vset.pattern.permute.xlu0 0
    %5245 = vperm.xlu0 %5244, %v5235
    %v5246 = vpop.permute.xlu0 %5245
    %5249 = vset.pattern.permute.xlu0 0
    %5250 = vperm.xlu0 %5249, %v5236
    %v5251 = vpop.permute.xlu0 %5250
    %5254 = vset.pattern.permute.xlu0 0
    %5255 = vperm.xlu0 %5254, %v5237
    %v5256 = vpop.permute.xlu0 %5255
    %5259 = vset.pattern.permute.xlu0 0
    %5260 = vperm.xlu0 %5259, %v5238
    %v5261 = vpop.permute.xlu0 %5260
    %5264 = vset.pattern.permute.xlu0 0
    %5265 = vperm.xlu0 %5264, %v5239
    %v5266 = vpop.permute.xlu0 %5265
    %5269 = vset.pattern.permute.xlu0 0
    %5270 = vperm.xlu0 %5269, %v5240
    %v5271 = vpop.permute.xlu0 %5270
    %5274 = vset.pattern.permute.xlu0 0
    %5275 = vperm.xlu0 %5274, %v5241
    %v5276 = vpop.permute.xlu0 %5275
    %5279 = vset.pattern.permute.xlu0 0
    %5280 = vperm.xlu0 %5279, %v5242
    %v5281 = vpop.permute.xlu0 %5280
    %v5283 = vlaneseq
    %v5284 = vshrl.u32 %v5283, 7
    %v5285 = vsub.s32 5, %v5284
    %v5286 = vrot.slane %v133, %v5285
    %v5287 = vmul.f32 %v5246, %v5286
    %v5288 = vmul.f32 %v5251, %v5286
    %v5289 = vmul.f32 %v5256, %v5286
    %v5290 = vmul.f32 %v5261, %v5286
    %v5291 = vmul.f32 %v5266, %v5286
    %v5292 = vmul.f32 %v5271, %v5286
    %v5293 = vmul.f32 %v5276, %v5286
    %v5294 = vmul.f32 %v5281, %v5286
    %v5295 = vlaneseq
    %v5296 = vshrl.u32 %v5295, 7
    %v5297 = vsub.s32 5, %v5296
    %v5298 = vrot.slane %v245, %v5297
    %v5299 = vsub.f32 %v5287, %v5298
    %v5300 = vsub.f32 %v5288, %v5298
    %v5301 = vsub.f32 %v5289, %v5298
    %v5302 = vsub.f32 %v5290, %v5298
    %v5303 = vsub.f32 %v5291, %v5298
    %v5304 = vsub.f32 %v5292, %v5298
    %v5305 = vsub.f32 %v5293, %v5298
    %v5306 = vsub.f32 %v5294, %v5298
    %v5307 = vmul.f32 %v5299, 1.442695
    %v5308 = vpow.pop %v5307
    %v5309 = vmul.f32 %v5300, 1.442695
    %v5310 = vpow.pop %v5309
    %v5311 = vmul.f32 %v5301, 1.442695
    %v5312 = vpow.pop %v5311
    %v5313 = vmul.f32 %v5302, 1.442695
    %v5314 = vpow.pop %v5313
    %v5315 = vmul.f32 %v5303, 1.442695
    %v5316 = vpow.pop %v5315
    %v5317 = vmul.f32 %v5304, 1.442695
    %v5318 = vpow.pop %v5317
    %v5319 = vmul.f32 %v5305, 1.442695
    %v5320 = vpow.pop %v5319
    %v5321 = vmul.f32 %v5306, 1.442695
    %v5322 = vpow.pop %v5321
    %v5323 = vlaneseq
    %v5324 = vshrl.u32 %v5323, 7
    %v5325 = vsub.s32 5, %v5324
    %v5326 = vrot.slane %v217, %v5325
    %v5327 = vsel %vm248, %v5326, 1.0
    %v5329 = vsel %vm218, %v5327, 0
    %5331 = vmatprep.subr.mxu0 0.0
    %5332 = vmatpush1.msra.mxu0 0.0
    %5333 = vmatprep.subr.mxu0 0.0
    %5334 = vmatpush1.msra.mxu0 0.0
    %5335 = vmatprep.subr.mxu0 0.0
    %5336 = vmatpush1.msra.mxu0 0.0
    %5337 = vmatprep.subr.mxu0 0.0
    %5338 = vmatpush1.msra.mxu0 0.0
    %5339 = vmatprep.subr.mxu0 0.0
    %5340 = vmatpush1.msra.mxu0 0.0
    %5341 = vmatprep.subr.mxu0 0.0
    %5342 = vmatpush1.msra.mxu0 0.0
    %5343 = vmatprep.subr.mxu0 0.0
    %5344 = vmatpush1.msra.mxu0 0.0
    %5345 = vmatprep.subr.mxu0 0.0
    %5346 = vmatpush1.msra.mxu0 0.0
    %5347 = vmatprep.subr.mxu0 0.0
    %5348 = vmatpush1.msra.mxu0 %v5322
    %5349 = vmatprep.subr.mxu0 0.0
    %5350 = vmatpush1.msra.mxu0 %v5320
    %5351 = vmatprep.subr.mxu0 0.0
    %5352 = vmatpush1.msra.mxu0 %v5318
    %5353 = vmatprep.subr.mxu0 0.0
    %5354 = vmatpush1.msra.mxu0 %v5316
    %5355 = vmatprep.subr.mxu0 0.0
    %5356 = vmatpush1.msra.mxu0 %v5314
    %5357 = vmatprep.subr.mxu0 0.0
    %5358 = vmatpush1.msra.mxu0 %v5312
    %5359 = vmatprep.subr.mxu0 0.0
    %5360 = vmatpush1.msra.mxu0 %v5310
    %5361 = vmatprep.subr.mxu0 0.0
    %5362 = vmatpush1.msra.mxu0 %v5308
    %5363 = vmatprep.subr.mxu0 0.0
    %5364 = vmatpush2.msra.mxu0 0.0
    %5365 = vmatprep.subr.mxu0 0.0
    %5366 = vmatpush2.msra.mxu0 0.0
    %5367 = vmatprep.subr.mxu0 0.0
    %5368 = vmatpush2.msra.mxu0 0.0
    %5369 = vmatprep.subr.mxu0 0.0
    %5370 = vmatpush2.msra.mxu0 0.0
    %5371 = vmatprep.subr.mxu0 0.0
    %5372 = vmatpush2.msra.mxu0 0.0
    %5373 = vmatprep.subr.mxu0 0.0
    %5374 = vmatpush2.msra.mxu0 0.0
    %5375 = vmatprep.subr.mxu0 0.0
    %5376 = vmatpush2.msra.mxu0 0.0
    %5377 = vmatprep.subr.mxu0 0.0
    %5378 = vmatpush2.msra.mxu0 0.0
    %5379 = vmatprep.subr.mxu0 0.0
    %5380 = vmatpush2.msra.mxu0 0.0
    %5381 = vmatprep.subr.mxu0 0.0
    %5382 = vmatpush2.msra.mxu0 0.0
    %5383 = vmatprep.subr.mxu0 0.0
    %5384 = vmatpush2.msra.mxu0 0.0
    %5385 = vmatprep.subr.mxu0 0.0
    %5386 = vmatpush2.msra.mxu0 0.0
    %5387 = vmatprep.subr.mxu0 0.0
    %5388 = vmatpush2.msra.mxu0 0.0
    %5389 = vmatprep.subr.mxu0 0.0
    %5390 = vmatpush2.msra.mxu0 0.0
    %5391 = vmatprep.subr.mxu0 0.0
    %5392 = vmatpush2.msra.mxu0 0.0
    %5393 = vmatprep.subr.mxu0 0.0
    %5394 = vmatpush2.msra.mxu0 0.0
    %5395 = vmatprep.mubr.f32.mxu0 0.0
    %5396 = vmatmul.mubr.f32.gmra.mxu0 %v5329
    %v5397 = vpop.f32.mrf.mxu0
    %v5398 = vadd.f32 0.0, %v5397
    %v5399 = vpop.f32.mrf.mxu0
    %5400 = vdwg.mxu0
    %v5401 = vrcp.pop %v5398
    %v5403 = vrot.slane %v5401, 1
    %v5405 = vmul.f32 %v5398, %v5403
    %5406 = vst.msk [vmem:[#allocation2 + $0x15] sm:$0x1] %vm532, %v5405
    %s5407 = scalar_lea.vmem %s1, 384
    %v5408 = vld [vmem:[%s5407] sm:$0xff]
    %v5409 = vld [vmem:[%s5407 + $0x8] sm:$0xff]
    %v5410 = vld [vmem:[%s5407 + $0x10] sm:$0xff]
    %v5411 = vld [vmem:[%s5407 + $0x18] sm:$0xff]
    %v5412 = vld [vmem:[%s5407 + $0x20] sm:$0xff]
    %v5413 = vld [vmem:[%s5407 + $0x28] sm:$0xff]
    %v5414 = vld [vmem:[%s5407 + $0x30] sm:$0xff]
    %v5415 = vld [vmem:[%s5407 + $0x38] sm:$0xff]
    %s5416 = sld [smem:[#allocation5 + $0x3]]
    %s5417 = sld [smem:[#allocation3 + $0x9]]
    %v5418 = vstv %s5417
    %v5419 = vmul.f32 %v5418, %v5408
    %v5420 = vmul.f32 %v5418, %v5409
    %v5421 = vmul.f32 %v5418, %v5410
    %v5422 = vmul.f32 %v5418, %v5411
    %v5423 = vmul.f32 %v5418, %v5412
    %v5424 = vmul.f32 %v5418, %v5413
    %v5425 = vmul.f32 %v5418, %v5414
    %v5426 = vmul.f32 %v5418, %v5415
    %v5427 = vstv %s5416
    %v5428 = vadd.f32 %v5427, %v5419
    %v5429 = vadd.f32 %v5427, %v5420
    %v5430 = vadd.f32 %v5427, %v5421
    %v5431 = vadd.f32 %v5427, %v5422
    %v5432 = vadd.f32 %v5427, %v5423
    %v5433 = vadd.f32 %v5427, %v5424
    %v5434 = vadd.f32 %v5427, %v5425
    %v5435 = vadd.f32 %v5427, %v5426
    %s5436 = sld [smem:[#allocation3 + $0xa]]
    %v5437 = vstv %s5436
    %v5438 = vmul.f32 %v5437, %v5408
    %v5439 = vmul.f32 %v5437, %v5409
    %v5440 = vmul.f32 %v5437, %v5410
    %v5441 = vmul.f32 %v5437, %v5411
    %v5442 = vmul.f32 %v5437, %v5412
    %v5443 = vmul.f32 %v5437, %v5413
    %v5444 = vmul.f32 %v5437, %v5414
    %v5445 = vmul.f32 %v5437, %v5415
    %5454 = vrot.lane.b32.xlu0 %v5438, 127
    %v5455 = vpop.permute.xlu0 %5454
    %5456 = vrot.lane.b32.xlu0 %v5439, 127
    %v5457 = vpop.permute.xlu0 %5456
    %5458 = vrot.lane.b32.xlu0 %v5440, 127
    %v5459 = vpop.permute.xlu0 %5458
    %5460 = vrot.lane.b32.xlu0 %v5441, 127
    %v5461 = vpop.permute.xlu0 %5460
    %5462 = vrot.lane.b32.xlu0 %v5442, 127
    %v5463 = vpop.permute.xlu0 %5462
    %5464 = vrot.lane.b32.xlu0 %v5443, 127
    %v5465 = vpop.permute.xlu0 %5464
    %5466 = vrot.lane.b32.xlu0 %v5444, 127
    %v5467 = vpop.permute.xlu0 %5466
    %5468 = vrot.lane.b32.xlu0 %v5445, 127
    %v5469 = vpop.permute.xlu0 %5468
    %v5478 = vadd.f32 %v5428, %v5455
    %v5479 = vadd.f32 %v5429, %v5457
    %v5480 = vadd.f32 %v5430, %v5459
    %v5481 = vadd.f32 %v5431, %v5461
    %v5482 = vadd.f32 %v5432, %v5463
    %v5483 = vadd.f32 %v5433, %v5465
    %v5484 = vadd.f32 %v5434, %v5467
    %v5485 = vadd.f32 %v5435, %v5469
    %s5486 = sld [smem:[#allocation3 + $0xb]]
    %v5487 = vstv %s5486
    %v5488 = vmul.f32 %v5487, %v5408
    %v5489 = vmul.f32 %v5487, %v5409
    %v5490 = vmul.f32 %v5487, %v5410
    %v5491 = vmul.f32 %v5487, %v5411
    %v5492 = vmul.f32 %v5487, %v5412
    %v5493 = vmul.f32 %v5487, %v5413
    %v5494 = vmul.f32 %v5487, %v5414
    %v5495 = vmul.f32 %v5487, %v5415
    %5504 = vrot.lane.b32.xlu0 %v5488, 126
    %v5505 = vpop.permute.xlu0 %5504
    %5506 = vrot.lane.b32.xlu0 %v5489, 126
    %v5507 = vpop.permute.xlu0 %5506
    %5508 = vrot.lane.b32.xlu0 %v5490, 126
    %v5509 = vpop.permute.xlu0 %5508
    %5510 = vrot.lane.b32.xlu0 %v5491, 126
    %v5511 = vpop.permute.xlu0 %5510
    %5512 = vrot.lane.b32.xlu0 %v5492, 126
    %v5513 = vpop.permute.xlu0 %5512
    %5514 = vrot.lane.b32.xlu0 %v5493, 126
    %v5515 = vpop.permute.xlu0 %5514
    %5516 = vrot.lane.b32.xlu0 %v5494, 126
    %v5517 = vpop.permute.xlu0 %5516
    %5518 = vrot.lane.b32.xlu0 %v5495, 126
    %v5519 = vpop.permute.xlu0 %5518
    %v5528 = vadd.f32 %v5478, %v5505
    %v5529 = vadd.f32 %v5479, %v5507
    %v5530 = vadd.f32 %v5480, %v5509
    %v5531 = vadd.f32 %v5481, %v5511
    %v5532 = vadd.f32 %v5482, %v5513
    %v5533 = vadd.f32 %v5483, %v5515
    %v5534 = vadd.f32 %v5484, %v5517
    %v5535 = vadd.f32 %v5485, %v5519
    %5537 = vset.pattern.permute.xlu0 0
    %5538 = vperm.xlu0 %5537, %v5528
    %v5539 = vpop.permute.xlu0 %5538
    %5542 = vset.pattern.permute.xlu0 0
    %5543 = vperm.xlu0 %5542, %v5529
    %v5544 = vpop.permute.xlu0 %5543
    %5547 = vset.pattern.permute.xlu0 0
    %5548 = vperm.xlu0 %5547, %v5530
    %v5549 = vpop.permute.xlu0 %5548
    %5552 = vset.pattern.permute.xlu0 0
    %5553 = vperm.xlu0 %5552, %v5531
    %v5554 = vpop.permute.xlu0 %5553
    %5557 = vset.pattern.permute.xlu0 0
    %5558 = vperm.xlu0 %5557, %v5532
    %v5559 = vpop.permute.xlu0 %5558
    %5562 = vset.pattern.permute.xlu0 0
    %5563 = vperm.xlu0 %5562, %v5533
    %v5564 = vpop.permute.xlu0 %5563
    %5567 = vset.pattern.permute.xlu0 0
    %5568 = vperm.xlu0 %5567, %v5534
    %v5569 = vpop.permute.xlu0 %5568
    %5572 = vset.pattern.permute.xlu0 0
    %5573 = vperm.xlu0 %5572, %v5535
    %v5574 = vpop.permute.xlu0 %5573
    %v5576 = vlaneseq
    %v5577 = vshrl.u32 %v5576, 7
    %v5578 = vsub.s32 6, %v5577
    %v5579 = vrot.slane %v105, %v5578
    %v5580 = vmul.f32 %v5539, %v5579
    %v5581 = vmul.f32 %v5544, %v5579
    %v5582 = vmul.f32 %v5549, %v5579
    %v5583 = vmul.f32 %v5554, %v5579
    %v5584 = vmul.f32 %v5559, %v5579
    %v5585 = vmul.f32 %v5564, %v5579
    %v5586 = vmul.f32 %v5569, %v5579
    %v5587 = vmul.f32 %v5574, %v5579
    %v5588 = vlaneseq
    %v5589 = vshrl.u32 %v5588, 7
    %v5590 = vsub.s32 6, %v5589
    %v5591 = vrot.slane %v227, %v5590
    %v5592 = vsub.f32 %v5580, %v5591
    %v5593 = vsub.f32 %v5581, %v5591
    %v5594 = vsub.f32 %v5582, %v5591
    %v5595 = vsub.f32 %v5583, %v5591
    %v5596 = vsub.f32 %v5584, %v5591
    %v5597 = vsub.f32 %v5585, %v5591
    %v5598 = vsub.f32 %v5586, %v5591
    %v5599 = vsub.f32 %v5587, %v5591
    %v5600 = vmul.f32 %v5592, 1.442695
    %v5601 = vpow.pop %v5600
    %v5602 = vmul.f32 %v5593, 1.442695
    %v5603 = vpow.pop %v5602
    %v5604 = vmul.f32 %v5594, 1.442695
    %v5605 = vpow.pop %v5604
    %v5606 = vmul.f32 %v5595, 1.442695
    %v5607 = vpow.pop %v5606
    %v5608 = vmul.f32 %v5596, 1.442695
    %v5609 = vpow.pop %v5608
    %v5610 = vmul.f32 %v5597, 1.442695
    %v5611 = vpow.pop %v5610
    %v5612 = vmul.f32 %v5598, 1.442695
    %v5613 = vpow.pop %v5612
    %v5614 = vmul.f32 %v5599, 1.442695
    %v5615 = vpow.pop %v5614
    %v5616 = vlaneseq
    %v5617 = vshrl.u32 %v5616, 7
    %v5618 = vsub.s32 6, %v5617
    %v5619 = vrot.slane %v189, %v5618
    %v5620 = vsel %vm248, %v5619, 1.0
    %v5622 = vsel %vm218, %v5620, 0
    %5624 = vmatprep.subr.mxu0 0.0
    %5625 = vmatpush1.msra.mxu0 0.0
    %5626 = vmatprep.subr.mxu0 0.0
    %5627 = vmatpush1.msra.mxu0 0.0
    %5628 = vmatprep.subr.mxu0 0.0
    %5629 = vmatpush1.msra.mxu0 0.0
    %5630 = vmatprep.subr.mxu0 0.0
    %5631 = vmatpush1.msra.mxu0 0.0
    %5632 = vmatprep.subr.mxu0 0.0
    %5633 = vmatpush1.msra.mxu0 0.0
    %5634 = vmatprep.subr.mxu0 0.0
    %5635 = vmatpush1.msra.mxu0 0.0
    %5636 = vmatprep.subr.mxu0 0.0
    %5637 = vmatpush1.msra.mxu0 0.0
    %5638 = vmatprep.subr.mxu0 0.0
    %5639 = vmatpush1.msra.mxu0 0.0
    %5640 = vmatprep.subr.mxu0 0.0
    %5641 = vmatpush1.msra.mxu0 %v5615
    %5642 = vmatprep.subr.mxu0 0.0
    %5643 = vmatpush1.msra.mxu0 %v5613
    %5644 = vmatprep.subr.mxu0 0.0
    %5645 = vmatpush1.msra.mxu0 %v5611
    %5646 = vmatprep.subr.mxu0 0.0
    %5647 = vmatpush1.msra.mxu0 %v5609
    %5648 = vmatprep.subr.mxu0 0.0
    %5649 = vmatpush1.msra.mxu0 %v5607
    %5650 = vmatprep.subr.mxu0 0.0
    %5651 = vmatpush1.msra.mxu0 %v5605
    %5652 = vmatprep.subr.mxu0 0.0
    %5653 = vmatpush1.msra.mxu0 %v5603
    %5654 = vmatprep.subr.mxu0 0.0
    %5655 = vmatpush1.msra.mxu0 %v5601
    %5656 = vmatprep.subr.mxu0 0.0
    %5657 = vmatpush2.msra.mxu0 0.0
    %5658 = vmatprep.subr.mxu0 0.0
    %5659 = vmatpush2.msra.mxu0 0.0
    %5660 = vmatprep.subr.mxu0 0.0
    %5661 = vmatpush2.msra.mxu0 0.0
    %5662 = vmatprep.subr.mxu0 0.0
    %5663 = vmatpush2.msra.mxu0 0.0
    %5664 = vmatprep.subr.mxu0 0.0
    %5665 = vmatpush2.msra.mxu0 0.0
    %5666 = vmatprep.subr.mxu0 0.0
    %5667 = vmatpush2.msra.mxu0 0.0
    %5668 = vmatprep.subr.mxu0 0.0
    %5669 = vmatpush2.msra.mxu0 0.0
    %5670 = vmatprep.subr.mxu0 0.0
    %5671 = vmatpush2.msra.mxu0 0.0
    %5672 = vmatprep.subr.mxu0 0.0
    %5673 = vmatpush2.msra.mxu0 0.0
    %5674 = vmatprep.subr.mxu0 0.0
    %5675 = vmatpush2.msra.mxu0 0.0
    %5676 = vmatprep.subr.mxu0 0.0
    %5677 = vmatpush2.msra.mxu0 0.0
    %5678 = vmatprep.subr.mxu0 0.0
    %5679 = vmatpush2.msra.mxu0 0.0
    %5680 = vmatprep.subr.mxu0 0.0
    %5681 = vmatpush2.msra.mxu0 0.0
    %5682 = vmatprep.subr.mxu0 0.0
    %5683 = vmatpush2.msra.mxu0 0.0
    %5684 = vmatprep.subr.mxu0 0.0
    %5685 = vmatpush2.msra.mxu0 0.0
    %5686 = vmatprep.subr.mxu0 0.0
    %5687 = vmatpush2.msra.mxu0 0.0
    %5688 = vmatprep.mubr.f32.mxu0 0.0
    %5689 = vmatmul.mubr.f32.gmra.mxu0 %v5622
    %v5690 = vpop.f32.mrf.mxu0
    %v5691 = vadd.f32 0.0, %v5690
    %v5692 = vpop.f32.mrf.mxu0
    %5693 = vdwg.mxu0
    %v5694 = vrcp.pop %v5691
    %v5696 = vrot.slane %v5694, 1
    %v5698 = vmul.f32 %v5691, %v5696
    %5699 = vst.msk [vmem:[#allocation2 + $0x6] sm:$0x1] %vm532, %v5698
    %s5700 = sld [smem:[#allocation5 + $0x4]]
    %s5701 = sld [smem:[#allocation3 + $0xc]]
    %v5702 = vstv %s5701
    %v5703 = vmul.f32 %v5702, %v5408
    %v5704 = vmul.f32 %v5702, %v5409
    %v5705 = vmul.f32 %v5702, %v5410
    %v5706 = vmul.f32 %v5702, %v5411
    %v5707 = vmul.f32 %v5702, %v5412
    %v5708 = vmul.f32 %v5702, %v5413
    %v5709 = vmul.f32 %v5702, %v5414
    %v5710 = vmul.f32 %v5702, %v5415
    %v5711 = vstv %s5700
    %v5712 = vadd.f32 %v5711, %v5703
    %v5713 = vadd.f32 %v5711, %v5704
    %v5714 = vadd.f32 %v5711, %v5705
    %v5715 = vadd.f32 %v5711, %v5706
    %v5716 = vadd.f32 %v5711, %v5707
    %v5717 = vadd.f32 %v5711, %v5708
    %v5718 = vadd.f32 %v5711, %v5709
    %v5719 = vadd.f32 %v5711, %v5710
    %s5720 = sld [smem:[#allocation3 + $0xd]]
    %v5721 = vstv %s5720
    %v5722 = vmul.f32 %v5721, %v5408
    %v5723 = vmul.f32 %v5721, %v5409
    %v5724 = vmul.f32 %v5721, %v5410
    %v5725 = vmul.f32 %v5721, %v5411
    %v5726 = vmul.f32 %v5721, %v5412
    %v5727 = vmul.f32 %v5721, %v5413
    %v5728 = vmul.f32 %v5721, %v5414
    %v5729 = vmul.f32 %v5721, %v5415
    %5738 = vrot.lane.b32.xlu0 %v5722, 127
    %v5739 = vpop.permute.xlu0 %5738
    %5740 = vrot.lane.b32.xlu0 %v5723, 127
    %v5741 = vpop.permute.xlu0 %5740
    %5742 = vrot.lane.b32.xlu0 %v5724, 127
    %v5743 = vpop.permute.xlu0 %5742
    %5744 = vrot.lane.b32.xlu0 %v5725, 127
    %v5745 = vpop.permute.xlu0 %5744
    %5746 = vrot.lane.b32.xlu0 %v5726, 127
    %v5747 = vpop.permute.xlu0 %5746
    %5748 = vrot.lane.b32.xlu0 %v5727, 127
    %v5749 = vpop.permute.xlu0 %5748
    %5750 = vrot.lane.b32.xlu0 %v5728, 127
    %v5751 = vpop.permute.xlu0 %5750
    %5752 = vrot.lane.b32.xlu0 %v5729, 127
    %v5753 = vpop.permute.xlu0 %5752
    %v5762 = vadd.f32 %v5712, %v5739
    %v5763 = vadd.f32 %v5713, %v5741
    %v5764 = vadd.f32 %v5714, %v5743
    %v5765 = vadd.f32 %v5715, %v5745
    %v5766 = vadd.f32 %v5716, %v5747
    %v5767 = vadd.f32 %v5717, %v5749
    %v5768 = vadd.f32 %v5718, %v5751
    %v5769 = vadd.f32 %v5719, %v5753
    %s5770 = sld [smem:[#allocation3 + $0xe]]
    %v5771 = vstv %s5770
    %v5772 = vmul.f32 %v5771, %v5408
    %v5773 = vmul.f32 %v5771, %v5409
    %v5774 = vmul.f32 %v5771, %v5410
    %v5775 = vmul.f32 %v5771, %v5411
    %v5776 = vmul.f32 %v5771, %v5412
    %v5777 = vmul.f32 %v5771, %v5413
    %v5778 = vmul.f32 %v5771, %v5414
    %v5779 = vmul.f32 %v5771, %v5415
    %5788 = vrot.lane.b32.xlu0 %v5772, 126
    %v5789 = vpop.permute.xlu0 %5788
    %5790 = vrot.lane.b32.xlu0 %v5773, 126
    %v5791 = vpop.permute.xlu0 %5790
    %5792 = vrot.lane.b32.xlu0 %v5774, 126
    %v5793 = vpop.permute.xlu0 %5792
    %5794 = vrot.lane.b32.xlu0 %v5775, 126
    %v5795 = vpop.permute.xlu0 %5794
    %5796 = vrot.lane.b32.xlu0 %v5776, 126
    %v5797 = vpop.permute.xlu0 %5796
    %5798 = vrot.lane.b32.xlu0 %v5777, 126
    %v5799 = vpop.permute.xlu0 %5798
    %5800 = vrot.lane.b32.xlu0 %v5778, 126
    %v5801 = vpop.permute.xlu0 %5800
    %5802 = vrot.lane.b32.xlu0 %v5779, 126
    %v5803 = vpop.permute.xlu0 %5802
    %v5812 = vadd.f32 %v5762, %v5789
    %v5813 = vadd.f32 %v5763, %v5791
    %v5814 = vadd.f32 %v5764, %v5793
    %v5815 = vadd.f32 %v5765, %v5795
    %v5816 = vadd.f32 %v5766, %v5797
    %v5817 = vadd.f32 %v5767, %v5799
    %v5818 = vadd.f32 %v5768, %v5801
    %v5819 = vadd.f32 %v5769, %v5803
    %5821 = vset.pattern.permute.xlu0 0
    %5822 = vperm.xlu0 %5821, %v5812
    %v5823 = vpop.permute.xlu0 %5822
    %5826 = vset.pattern.permute.xlu0 0
    %5827 = vperm.xlu0 %5826, %v5813
    %v5828 = vpop.permute.xlu0 %5827
    %5831 = vset.pattern.permute.xlu0 0
    %5832 = vperm.xlu0 %5831, %v5814
    %v5833 = vpop.permute.xlu0 %5832
    %5836 = vset.pattern.permute.xlu0 0
    %5837 = vperm.xlu0 %5836, %v5815
    %v5838 = vpop.permute.xlu0 %5837
    %5841 = vset.pattern.permute.xlu0 0
    %5842 = vperm.xlu0 %5841, %v5816
    %v5843 = vpop.permute.xlu0 %5842
    %5846 = vset.pattern.permute.xlu0 0
    %5847 = vperm.xlu0 %5846, %v5817
    %v5848 = vpop.permute.xlu0 %5847
    %5851 = vset.pattern.permute.xlu0 0
    %5852 = vperm.xlu0 %5851, %v5818
    %v5853 = vpop.permute.xlu0 %5852
    %5856 = vset.pattern.permute.xlu0 0
    %5857 = vperm.xlu0 %5856, %v5819
    %v5858 = vpop.permute.xlu0 %5857
    %v5860 = vlaneseq
    %v5861 = vshrl.u32 %v5860, 7
    %v5862 = vsub.s32 6, %v5861
    %v5863 = vrot.slane %v119, %v5862
    %v5864 = vmul.f32 %v5823, %v5863
    %v5865 = vmul.f32 %v5828, %v5863
    %v5866 = vmul.f32 %v5833, %v5863
    %v5867 = vmul.f32 %v5838, %v5863
    %v5868 = vmul.f32 %v5843, %v5863
    %v5869 = vmul.f32 %v5848, %v5863
    %v5870 = vmul.f32 %v5853, %v5863
    %v5871 = vmul.f32 %v5858, %v5863
    %v5872 = vlaneseq
    %v5873 = vshrl.u32 %v5872, 7
    %v5874 = vsub.s32 6, %v5873
    %v5875 = vrot.slane %v236, %v5874
    %v5876 = vsub.f32 %v5864, %v5875
    %v5877 = vsub.f32 %v5865, %v5875
    %v5878 = vsub.f32 %v5866, %v5875
    %v5879 = vsub.f32 %v5867, %v5875
    %v5880 = vsub.f32 %v5868, %v5875
    %v5881 = vsub.f32 %v5869, %v5875
    %v5882 = vsub.f32 %v5870, %v5875
    %v5883 = vsub.f32 %v5871, %v5875
    %v5884 = vmul.f32 %v5876, 1.442695
    %v5885 = vpow.pop %v5884
    %v5886 = vmul.f32 %v5877, 1.442695
    %v5887 = vpow.pop %v5886
    %v5888 = vmul.f32 %v5878, 1.442695
    %v5889 = vpow.pop %v5888
    %v5890 = vmul.f32 %v5879, 1.442695
    %v5891 = vpow.pop %v5890
    %v5892 = vmul.f32 %v5880, 1.442695
    %v5893 = vpow.pop %v5892
    %v5894 = vmul.f32 %v5881, 1.442695
    %v5895 = vpow.pop %v5894
    %v5896 = vmul.f32 %v5882, 1.442695
    %v5897 = vpow.pop %v5896
    %v5898 = vmul.f32 %v5883, 1.442695
    %v5899 = vpow.pop %v5898
    %v5900 = vlaneseq
    %v5901 = vshrl.u32 %v5900, 7
    %v5902 = vsub.s32 6, %v5901
    %v5903 = vrot.slane %v203, %v5902
    %v5904 = vsel %vm248, %v5903, 1.0
    %v5906 = vsel %vm218, %v5904, 0
    %5908 = vmatprep.subr.mxu0 0.0
    %5909 = vmatpush1.msra.mxu0 0.0
    %5910 = vmatprep.subr.mxu0 0.0
    %5911 = vmatpush1.msra.mxu0 0.0
    %5912 = vmatprep.subr.mxu0 0.0
    %5913 = vmatpush1.msra.mxu0 0.0
    %5914 = vmatprep.subr.mxu0 0.0
    %5915 = vmatpush1.msra.mxu0 0.0
    %5916 = vmatprep.subr.mxu0 0.0
    %5917 = vmatpush1.msra.mxu0 0.0
    %5918 = vmatprep.subr.mxu0 0.0
    %5919 = vmatpush1.msra.mxu0 0.0
    %5920 = vmatprep.subr.mxu0 0.0
    %5921 = vmatpush1.msra.mxu0 0.0
    %5922 = vmatprep.subr.mxu0 0.0
    %5923 = vmatpush1.msra.mxu0 0.0
    %5924 = vmatprep.subr.mxu0 0.0
    %5925 = vmatpush1.msra.mxu0 %v5899
    %5926 = vmatprep.subr.mxu0 0.0
    %5927 = vmatpush1.msra.mxu0 %v5897
    %5928 = vmatprep.subr.mxu0 0.0
    %5929 = vmatpush1.msra.mxu0 %v5895
    %5930 = vmatprep.subr.mxu0 0.0
    %5931 = vmatpush1.msra.mxu0 %v5893
    %5932 = vmatprep.subr.mxu0 0.0
    %5933 = vmatpush1.msra.mxu0 %v5891
    %5934 = vmatprep.subr.mxu0 0.0
    %5935 = vmatpush1.msra.mxu0 %v5889
    %5936 = vmatprep.subr.mxu0 0.0
    %5937 = vmatpush1.msra.mxu0 %v5887
    %5938 = vmatprep.subr.mxu0 0.0
    %5939 = vmatpush1.msra.mxu0 %v5885
    %5940 = vmatprep.subr.mxu0 0.0
    %5941 = vmatpush2.msra.mxu0 0.0
    %5942 = vmatprep.subr.mxu0 0.0
    %5943 = vmatpush2.msra.mxu0 0.0
    %5944 = vmatprep.subr.mxu0 0.0
    %5945 = vmatpush2.msra.mxu0 0.0
    %5946 = vmatprep.subr.mxu0 0.0
    %5947 = vmatpush2.msra.mxu0 0.0
    %5948 = vmatprep.subr.mxu0 0.0
    %5949 = vmatpush2.msra.mxu0 0.0
    %5950 = vmatprep.subr.mxu0 0.0
    %5951 = vmatpush2.msra.mxu0 0.0
    %5952 = vmatprep.subr.mxu0 0.0
    %5953 = vmatpush2.msra.mxu0 0.0
    %5954 = vmatprep.subr.mxu0 0.0
    %5955 = vmatpush2.msra.mxu0 0.0
    %5956 = vmatprep.subr.mxu0 0.0
    %5957 = vmatpush2.msra.mxu0 0.0
    %5958 = vmatprep.subr.mxu0 0.0
    %5959 = vmatpush2.msra.mxu0 0.0
    %5960 = vmatprep.subr.mxu0 0.0
    %5961 = vmatpush2.msra.mxu0 0.0
    %5962 = vmatprep.subr.mxu0 0.0
    %5963 = vmatpush2.msra.mxu0 0.0
    %5964 = vmatprep.subr.mxu0 0.0
    %5965 = vmatpush2.msra.mxu0 0.0
    %5966 = vmatprep.subr.mxu0 0.0
    %5967 = vmatpush2.msra.mxu0 0.0
    %5968 = vmatprep.subr.mxu0 0.0
    %5969 = vmatpush2.msra.mxu0 0.0
    %5970 = vmatprep.subr.mxu0 0.0
    %5971 = vmatpush2.msra.mxu0 0.0
    %5972 = vmatprep.mubr.f32.mxu0 0.0
    %5973 = vmatmul.mubr.f32.gmra.mxu0 %v5906
    %v5974 = vpop.f32.mrf.mxu0
    %v5975 = vadd.f32 0.0, %v5974
    %v5976 = vpop.f32.mrf.mxu0
    %5977 = vdwg.mxu0
    %v5978 = vrcp.pop %v5975
    %v5980 = vrot.slane %v5978, 1
    %v5982 = vmul.f32 %v5975, %v5980
    %5983 = vst.msk [vmem:[#allocation2 + $0xe] sm:$0x1] %vm532, %v5982
    %s5984 = sld [smem:[#allocation5 + $0x5]]
    %s5985 = sld [smem:[#allocation3 + $0xf]]
    %v5986 = vstv %s5985
    %v5987 = vmul.f32 %v5986, %v5408
    %v5988 = vmul.f32 %v5986, %v5409
    %v5989 = vmul.f32 %v5986, %v5410
    %v5990 = vmul.f32 %v5986, %v5411
    %v5991 = vmul.f32 %v5986, %v5412
    %v5992 = vmul.f32 %v5986, %v5413
    %v5993 = vmul.f32 %v5986, %v5414
    %v5994 = vmul.f32 %v5986, %v5415
    %v5995 = vstv %s5984
    %v5996 = vadd.f32 %v5995, %v5987
    %v5997 = vadd.f32 %v5995, %v5988
    %v5998 = vadd.f32 %v5995, %v5989
    %v5999 = vadd.f32 %v5995, %v5990
    %v6000 = vadd.f32 %v5995, %v5991
    %v6001 = vadd.f32 %v5995, %v5992
    %v6002 = vadd.f32 %v5995, %v5993
    %v6003 = vadd.f32 %v5995, %v5994
    %s6004 = sld [smem:[#allocation3 + $0x10]]
    %v6005 = vstv %s6004
    %v6006 = vmul.f32 %v6005, %v5408
    %v6007 = vmul.f32 %v6005, %v5409
    %v6008 = vmul.f32 %v6005, %v5410
    %v6009 = vmul.f32 %v6005, %v5411
    %v6010 = vmul.f32 %v6005, %v5412
    %v6011 = vmul.f32 %v6005, %v5413
    %v6012 = vmul.f32 %v6005, %v5414
    %v6013 = vmul.f32 %v6005, %v5415
    %6022 = vrot.lane.b32.xlu0 %v6006, 127
    %v6023 = vpop.permute.xlu0 %6022
    %6024 = vrot.lane.b32.xlu0 %v6007, 127
    %v6025 = vpop.permute.xlu0 %6024
    %6026 = vrot.lane.b32.xlu0 %v6008, 127
    %v6027 = vpop.permute.xlu0 %6026
    %6028 = vrot.lane.b32.xlu0 %v6009, 127
    %v6029 = vpop.permute.xlu0 %6028
    %6030 = vrot.lane.b32.xlu0 %v6010, 127
    %v6031 = vpop.permute.xlu0 %6030
    %6032 = vrot.lane.b32.xlu0 %v6011, 127
    %v6033 = vpop.permute.xlu0 %6032
    %6034 = vrot.lane.b32.xlu0 %v6012, 127
    %v6035 = vpop.permute.xlu0 %6034
    %6036 = vrot.lane.b32.xlu0 %v6013, 127
    %v6037 = vpop.permute.xlu0 %6036
    %v6046 = vadd.f32 %v5996, %v6023
    %v6047 = vadd.f32 %v5997, %v6025
    %v6048 = vadd.f32 %v5998, %v6027
    %v6049 = vadd.f32 %v5999, %v6029
    %v6050 = vadd.f32 %v6000, %v6031
    %v6051 = vadd.f32 %v6001, %v6033
    %v6052 = vadd.f32 %v6002, %v6035
    %v6053 = vadd.f32 %v6003, %v6037
    %s6054 = sld [smem:[#allocation3 + $0x11]]
    %v6055 = vstv %s6054
    %v6056 = vmul.f32 %v6055, %v5408
    %v6057 = vmul.f32 %v6055, %v5409
    %v6058 = vmul.f32 %v6055, %v5410
    %v6059 = vmul.f32 %v6055, %v5411
    %v6060 = vmul.f32 %v6055, %v5412
    %v6061 = vmul.f32 %v6055, %v5413
    %v6062 = vmul.f32 %v6055, %v5414
    %v6063 = vmul.f32 %v6055, %v5415
    %6072 = vrot.lane.b32.xlu0 %v6056, 126
    %v6073 = vpop.permute.xlu0 %6072
    %6074 = vrot.lane.b32.xlu0 %v6057, 126
    %v6075 = vpop.permute.xlu0 %6074
    %6076 = vrot.lane.b32.xlu0 %v6058, 126
    %v6077 = vpop.permute.xlu0 %6076
    %6078 = vrot.lane.b32.xlu0 %v6059, 126
    %v6079 = vpop.permute.xlu0 %6078
    %6080 = vrot.lane.b32.xlu0 %v6060, 126
    %v6081 = vpop.permute.xlu0 %6080
    %6082 = vrot.lane.b32.xlu0 %v6061, 126
    %v6083 = vpop.permute.xlu0 %6082
    %6084 = vrot.lane.b32.xlu0 %v6062, 126
    %v6085 = vpop.permute.xlu0 %6084
    %6086 = vrot.lane.b32.xlu0 %v6063, 126
    %v6087 = vpop.permute.xlu0 %6086
    %v6096 = vadd.f32 %v6046, %v6073
    %v6097 = vadd.f32 %v6047, %v6075
    %v6098 = vadd.f32 %v6048, %v6077
    %v6099 = vadd.f32 %v6049, %v6079
    %v6100 = vadd.f32 %v6050, %v6081
    %v6101 = vadd.f32 %v6051, %v6083
    %v6102 = vadd.f32 %v6052, %v6085
    %v6103 = vadd.f32 %v6053, %v6087
    %6105 = vset.pattern.permute.xlu0 0
    %6106 = vperm.xlu0 %6105, %v6096
    %v6107 = vpop.permute.xlu0 %6106
    %6110 = vset.pattern.permute.xlu0 0
    %6111 = vperm.xlu0 %6110, %v6097
    %v6112 = vpop.permute.xlu0 %6111
    %6115 = vset.pattern.permute.xlu0 0
    %6116 = vperm.xlu0 %6115, %v6098
    %v6117 = vpop.permute.xlu0 %6116
    %6120 = vset.pattern.permute.xlu0 0
    %6121 = vperm.xlu0 %6120, %v6099
    %v6122 = vpop.permute.xlu0 %6121
    %6125 = vset.pattern.permute.xlu0 0
    %6126 = vperm.xlu0 %6125, %v6100
    %v6127 = vpop.permute.xlu0 %6126
    %6130 = vset.pattern.permute.xlu0 0
    %6131 = vperm.xlu0 %6130, %v6101
    %v6132 = vpop.permute.xlu0 %6131
    %6135 = vset.pattern.permute.xlu0 0
    %6136 = vperm.xlu0 %6135, %v6102
    %v6137 = vpop.permute.xlu0 %6136
    %6140 = vset.pattern.permute.xlu0 0
    %6141 = vperm.xlu0 %6140, %v6103
    %v6142 = vpop.permute.xlu0 %6141
    %v6144 = vlaneseq
    %v6145 = vshrl.u32 %v6144, 7
    %v6146 = vsub.s32 6, %v6145
    %v6147 = vrot.slane %v133, %v6146
    %v6148 = vmul.f32 %v6107, %v6147
    %v6149 = vmul.f32 %v6112, %v6147
    %v6150 = vmul.f32 %v6117, %v6147
    %v6151 = vmul.f32 %v6122, %v6147
    %v6152 = vmul.f32 %v6127, %v6147
    %v6153 = vmul.f32 %v6132, %v6147
    %v6154 = vmul.f32 %v6137, %v6147
    %v6155 = vmul.f32 %v6142, %v6147
    %v6156 = vlaneseq
    %v6157 = vshrl.u32 %v6156, 7
    %v6158 = vsub.s32 6, %v6157
    %v6159 = vrot.slane %v245, %v6158
    %v6160 = vsub.f32 %v6148, %v6159
    %v6161 = vsub.f32 %v6149, %v6159
    %v6162 = vsub.f32 %v6150, %v6159
    %v6163 = vsub.f32 %v6151, %v6159
    %v6164 = vsub.f32 %v6152, %v6159
    %v6165 = vsub.f32 %v6153, %v6159
    %v6166 = vsub.f32 %v6154, %v6159
    %v6167 = vsub.f32 %v6155, %v6159
    %v6168 = vmul.f32 %v6160, 1.442695
    %v6169 = vpow.pop %v6168
    %v6170 = vmul.f32 %v6161, 1.442695
    %v6171 = vpow.pop %v6170
    %v6172 = vmul.f32 %v6162, 1.442695
    %v6173 = vpow.pop %v6172
    %v6174 = vmul.f32 %v6163, 1.442695
    %v6175 = vpow.pop %v6174
    %v6176 = vmul.f32 %v6164, 1.442695
    %v6177 = vpow.pop %v6176
    %v6178 = vmul.f32 %v6165, 1.442695
    %v6179 = vpow.pop %v6178
    %v6180 = vmul.f32 %v6166, 1.442695
    %v6181 = vpow.pop %v6180
    %v6182 = vmul.f32 %v6167, 1.442695
    %v6183 = vpow.pop %v6182
    %v6184 = vlaneseq
    %v6185 = vshrl.u32 %v6184, 7
    %v6186 = vsub.s32 6, %v6185
    %v6187 = vrot.slane %v217, %v6186
    %v6188 = vsel %vm248, %v6187, 1.0
    %v6190 = vsel %vm218, %v6188, 0
    %6192 = vmatprep.subr.mxu0 0.0
    %6193 = vmatpush1.msra.mxu0 0.0
    %6194 = vmatprep.subr.mxu0 0.0
    %6195 = vmatpush1.msra.mxu0 0.0
    %6196 = vmatprep.subr.mxu0 0.0
    %6197 = vmatpush1.msra.mxu0 0.0
    %6198 = vmatprep.subr.mxu0 0.0
    %6199 = vmatpush1.msra.mxu0 0.0
    %6200 = vmatprep.subr.mxu0 0.0
    %6201 = vmatpush1.msra.mxu0 0.0
    %6202 = vmatprep.subr.mxu0 0.0
    %6203 = vmatpush1.msra.mxu0 0.0
    %6204 = vmatprep.subr.mxu0 0.0
    %6205 = vmatpush1.msra.mxu0 0.0
    %6206 = vmatprep.subr.mxu0 0.0
    %6207 = vmatpush1.msra.mxu0 0.0
    %6208 = vmatprep.subr.mxu0 0.0
    %6209 = vmatpush1.msra.mxu0 %v6183
    %6210 = vmatprep.subr.mxu0 0.0
    %6211 = vmatpush1.msra.mxu0 %v6181
    %6212 = vmatprep.subr.mxu0 0.0
    %6213 = vmatpush1.msra.mxu0 %v6179
    %6214 = vmatprep.subr.mxu0 0.0
    %6215 = vmatpush1.msra.mxu0 %v6177
    %6216 = vmatprep.subr.mxu0 0.0
    %6217 = vmatpush1.msra.mxu0 %v6175
    %6218 = vmatprep.subr.mxu0 0.0
    %6219 = vmatpush1.msra.mxu0 %v6173
    %6220 = vmatprep.subr.mxu0 0.0
    %6221 = vmatpush1.msra.mxu0 %v6171
    %6222 = vmatprep.subr.mxu0 0.0
    %6223 = vmatpush1.msra.mxu0 %v6169
    %6224 = vmatprep.subr.mxu0 0.0
    %6225 = vmatpush2.msra.mxu0 0.0
    %6226 = vmatprep.subr.mxu0 0.0
    %6227 = vmatpush2.msra.mxu0 0.0
    %6228 = vmatprep.subr.mxu0 0.0
    %6229 = vmatpush2.msra.mxu0 0.0
    %6230 = vmatprep.subr.mxu0 0.0
    %6231 = vmatpush2.msra.mxu0 0.0
    %6232 = vmatprep.subr.mxu0 0.0
    %6233 = vmatpush2.msra.mxu0 0.0
    %6234 = vmatprep.subr.mxu0 0.0
    %6235 = vmatpush2.msra.mxu0 0.0
    %6236 = vmatprep.subr.mxu0 0.0
    %6237 = vmatpush2.msra.mxu0 0.0
    %6238 = vmatprep.subr.mxu0 0.0
    %6239 = vmatpush2.msra.mxu0 0.0
    %6240 = vmatprep.subr.mxu0 0.0
    %6241 = vmatpush2.msra.mxu0 0.0
    %6242 = vmatprep.subr.mxu0 0.0
    %6243 = vmatpush2.msra.mxu0 0.0
    %6244 = vmatprep.subr.mxu0 0.0
    %6245 = vmatpush2.msra.mxu0 0.0
    %6246 = vmatprep.subr.mxu0 0.0
    %6247 = vmatpush2.msra.mxu0 0.0
    %6248 = vmatprep.subr.mxu0 0.0
    %6249 = vmatpush2.msra.mxu0 0.0
    %6250 = vmatprep.subr.mxu0 0.0
    %6251 = vmatpush2.msra.mxu0 0.0
    %6252 = vmatprep.subr.mxu0 0.0
    %6253 = vmatpush2.msra.mxu0 0.0
    %6254 = vmatprep.subr.mxu0 0.0
    %6255 = vmatpush2.msra.mxu0 0.0
    %6256 = vmatprep.mubr.f32.mxu0 0.0
    %6257 = vmatmul.mubr.f32.gmra.mxu0 %v6190
    %v6258 = vpop.f32.mrf.mxu0
    %v6259 = vadd.f32 0.0, %v6258
    %v6260 = vpop.f32.mrf.mxu0
    %6261 = vdwg.mxu0
    %v6262 = vrcp.pop %v6259
    %v6264 = vrot.slane %v6262, 1
    %v6266 = vmul.f32 %v6259, %v6264
    %6267 = vst.msk [vmem:[#allocation2 + $0x16] sm:$0x1] %vm532, %v6266
    %s6268 = scalar_lea.vmem %s1, 448
    %v6269 = vld [vmem:[%s6268] sm:$0xff]
    %v6270 = vld [vmem:[%s6268 + $0x8] sm:$0xff]
    %v6271 = vld [vmem:[%s6268 + $0x10] sm:$0xff]
    %v6272 = vld [vmem:[%s6268 + $0x18] sm:$0xff]
    %v6273 = vld [vmem:[%s6268 + $0x20] sm:$0xff]
    %v6274 = vld [vmem:[%s6268 + $0x28] sm:$0xff]
    %v6275 = vld [vmem:[%s6268 + $0x30] sm:$0xff]
    %v6276 = vld [vmem:[%s6268 + $0x38] sm:$0xff]
    %s6277 = sld [smem:[#allocation5 + $0x3]]
    %s6278 = sld [smem:[#allocation3 + $0x9]]
    %v6279 = vstv %s6278
    %v6280 = vmul.f32 %v6279, %v6269
    %v6281 = vmul.f32 %v6279, %v6270
    %v6282 = vmul.f32 %v6279, %v6271
    %v6283 = vmul.f32 %v6279, %v6272
    %v6284 = vmul.f32 %v6279, %v6273
    %v6285 = vmul.f32 %v6279, %v6274
    %v6286 = vmul.f32 %v6279, %v6275
    %v6287 = vmul.f32 %v6279, %v6276
    %v6288 = vstv %s6277
    %v6289 = vadd.f32 %v6288, %v6280
    %v6290 = vadd.f32 %v6288, %v6281
    %v6291 = vadd.f32 %v6288, %v6282
    %v6292 = vadd.f32 %v6288, %v6283
    %v6293 = vadd.f32 %v6288, %v6284
    %v6294 = vadd.f32 %v6288, %v6285
    %v6295 = vadd.f32 %v6288, %v6286
    %v6296 = vadd.f32 %v6288, %v6287
    %s6297 = sld [smem:[#allocation3 + $0xa]]
    %v6298 = vstv %s6297
    %v6299 = vmul.f32 %v6298, %v6269
    %v6300 = vmul.f32 %v6298, %v6270
    %v6301 = vmul.f32 %v6298, %v6271
    %v6302 = vmul.f32 %v6298, %v6272
    %v6303 = vmul.f32 %v6298, %v6273
    %v6304 = vmul.f32 %v6298, %v6274
    %v6305 = vmul.f32 %v6298, %v6275
    %v6306 = vmul.f32 %v6298, %v6276
    %6315 = vrot.lane.b32.xlu0 %v6299, 127
    %v6316 = vpop.permute.xlu0 %6315
    %6317 = vrot.lane.b32.xlu0 %v6300, 127
    %v6318 = vpop.permute.xlu0 %6317
    %6319 = vrot.lane.b32.xlu0 %v6301, 127
    %v6320 = vpop.permute.xlu0 %6319
    %6321 = vrot.lane.b32.xlu0 %v6302, 127
    %v6322 = vpop.permute.xlu0 %6321
    %6323 = vrot.lane.b32.xlu0 %v6303, 127
    %v6324 = vpop.permute.xlu0 %6323
    %6325 = vrot.lane.b32.xlu0 %v6304, 127
    %v6326 = vpop.permute.xlu0 %6325
    %6327 = vrot.lane.b32.xlu0 %v6305, 127
    %v6328 = vpop.permute.xlu0 %6327
    %6329 = vrot.lane.b32.xlu0 %v6306, 127
    %v6330 = vpop.permute.xlu0 %6329
    %v6339 = vadd.f32 %v6289, %v6316
    %v6340 = vadd.f32 %v6290, %v6318
    %v6341 = vadd.f32 %v6291, %v6320
    %v6342 = vadd.f32 %v6292, %v6322
    %v6343 = vadd.f32 %v6293, %v6324
    %v6344 = vadd.f32 %v6294, %v6326
    %v6345 = vadd.f32 %v6295, %v6328
    %v6346 = vadd.f32 %v6296, %v6330
    %s6347 = sld [smem:[#allocation3 + $0xb]]
    %v6348 = vstv %s6347
    %v6349 = vmul.f32 %v6348, %v6269
    %v6350 = vmul.f32 %v6348, %v6270
    %v6351 = vmul.f32 %v6348, %v6271
    %v6352 = vmul.f32 %v6348, %v6272
    %v6353 = vmul.f32 %v6348, %v6273
    %v6354 = vmul.f32 %v6348, %v6274
    %v6355 = vmul.f32 %v6348, %v6275
    %v6356 = vmul.f32 %v6348, %v6276
    %6365 = vrot.lane.b32.xlu0 %v6349, 126
    %v6366 = vpop.permute.xlu0 %6365
    %6367 = vrot.lane.b32.xlu0 %v6350, 126
    %v6368 = vpop.permute.xlu0 %6367
    %6369 = vrot.lane.b32.xlu0 %v6351, 126
    %v6370 = vpop.permute.xlu0 %6369
    %6371 = vrot.lane.b32.xlu0 %v6352, 126
    %v6372 = vpop.permute.xlu0 %6371
    %6373 = vrot.lane.b32.xlu0 %v6353, 126
    %v6374 = vpop.permute.xlu0 %6373
    %6375 = vrot.lane.b32.xlu0 %v6354, 126
    %v6376 = vpop.permute.xlu0 %6375
    %6377 = vrot.lane.b32.xlu0 %v6355, 126
    %v6378 = vpop.permute.xlu0 %6377
    %6379 = vrot.lane.b32.xlu0 %v6356, 126
    %v6380 = vpop.permute.xlu0 %6379
    %v6389 = vadd.f32 %v6339, %v6366
    %v6390 = vadd.f32 %v6340, %v6368
    %v6391 = vadd.f32 %v6341, %v6370
    %v6392 = vadd.f32 %v6342, %v6372
    %v6393 = vadd.f32 %v6343, %v6374
    %v6394 = vadd.f32 %v6344, %v6376
    %v6395 = vadd.f32 %v6345, %v6378
    %v6396 = vadd.f32 %v6346, %v6380
    %6398 = vset.pattern.permute.xlu0 0
    %6399 = vperm.xlu0 %6398, %v6389
    %v6400 = vpop.permute.xlu0 %6399
    %6403 = vset.pattern.permute.xlu0 0
    %6404 = vperm.xlu0 %6403, %v6390
    %v6405 = vpop.permute.xlu0 %6404
    %6408 = vset.pattern.permute.xlu0 0
    %6409 = vperm.xlu0 %6408, %v6391
    %v6410 = vpop.permute.xlu0 %6409
    %6413 = vset.pattern.permute.xlu0 0
    %6414 = vperm.xlu0 %6413, %v6392
    %v6415 = vpop.permute.xlu0 %6414
    %6418 = vset.pattern.permute.xlu0 0
    %6419 = vperm.xlu0 %6418, %v6393
    %v6420 = vpop.permute.xlu0 %6419
    %6423 = vset.pattern.permute.xlu0 0
    %6424 = vperm.xlu0 %6423, %v6394
    %v6425 = vpop.permute.xlu0 %6424
    %6428 = vset.pattern.permute.xlu0 0
    %6429 = vperm.xlu0 %6428, %v6395
    %v6430 = vpop.permute.xlu0 %6429
    %6433 = vset.pattern.permute.xlu0 0
    %6434 = vperm.xlu0 %6433, %v6396
    %v6435 = vpop.permute.xlu0 %6434
    %v6437 = vlaneseq
    %v6438 = vshrl.u32 %v6437, 7
    %v6439 = vsub.s32 7, %v6438
    %v6440 = vrot.slane %v105, %v6439
    %v6441 = vmul.f32 %v6400, %v6440
    %v6442 = vmul.f32 %v6405, %v6440
    %v6443 = vmul.f32 %v6410, %v6440
    %v6444 = vmul.f32 %v6415, %v6440
    %v6445 = vmul.f32 %v6420, %v6440
    %v6446 = vmul.f32 %v6425, %v6440
    %v6447 = vmul.f32 %v6430, %v6440
    %v6448 = vmul.f32 %v6435, %v6440
    %v6449 = vlaneseq
    %v6450 = vshrl.u32 %v6449, 7
    %v6451 = vsub.s32 7, %v6450
    %v6452 = vrot.slane %v227, %v6451
    %v6453 = vsub.f32 %v6441, %v6452
    %v6454 = vsub.f32 %v6442, %v6452
    %v6455 = vsub.f32 %v6443, %v6452
    %v6456 = vsub.f32 %v6444, %v6452
    %v6457 = vsub.f32 %v6445, %v6452
    %v6458 = vsub.f32 %v6446, %v6452
    %v6459 = vsub.f32 %v6447, %v6452
    %v6460 = vsub.f32 %v6448, %v6452
    %v6461 = vmul.f32 %v6453, 1.442695
    %v6462 = vpow.pop %v6461
    %v6463 = vmul.f32 %v6454, 1.442695
    %v6464 = vpow.pop %v6463
    %v6465 = vmul.f32 %v6455, 1.442695
    %v6466 = vpow.pop %v6465
    %v6467 = vmul.f32 %v6456, 1.442695
    %v6468 = vpow.pop %v6467
    %v6469 = vmul.f32 %v6457, 1.442695
    %v6470 = vpow.pop %v6469
    %v6471 = vmul.f32 %v6458, 1.442695
    %v6472 = vpow.pop %v6471
    %v6473 = vmul.f32 %v6459, 1.442695
    %v6474 = vpow.pop %v6473
    %v6475 = vmul.f32 %v6460, 1.442695
    %v6476 = vpow.pop %v6475
    %v6477 = vlaneseq
    %v6478 = vshrl.u32 %v6477, 7
    %v6479 = vsub.s32 7, %v6478
    %v6480 = vrot.slane %v189, %v6479
    %v6481 = vsel %vm248, %v6480, 1.0
    %v6483 = vsel %vm218, %v6481, 0
    %6485 = vmatprep.subr.mxu0 0.0
    %6486 = vmatpush1.msra.mxu0 0.0
    %6487 = vmatprep.subr.mxu0 0.0
    %6488 = vmatpush1.msra.mxu0 0.0
    %6489 = vmatprep.subr.mxu0 0.0
    %6490 = vmatpush1.msra.mxu0 0.0
    %6491 = vmatprep.subr.mxu0 0.0
    %6492 = vmatpush1.msra.mxu0 0.0
    %6493 = vmatprep.subr.mxu0 0.0
    %6494 = vmatpush1.msra.mxu0 0.0
    %6495 = vmatprep.subr.mxu0 0.0
    %6496 = vmatpush1.msra.mxu0 0.0
    %6497 = vmatprep.subr.mxu0 0.0
    %6498 = vmatpush1.msra.mxu0 0.0
    %6499 = vmatprep.subr.mxu0 0.0
    %6500 = vmatpush1.msra.mxu0 0.0
    %6501 = vmatprep.subr.mxu0 0.0
    %6502 = vmatpush1.msra.mxu0 %v6476
    %6503 = vmatprep.subr.mxu0 0.0
    %6504 = vmatpush1.msra.mxu0 %v6474
    %6505 = vmatprep.subr.mxu0 0.0
    %6506 = vmatpush1.msra.mxu0 %v6472
    %6507 = vmatprep.subr.mxu0 0.0
    %6508 = vmatpush1.msra.mxu0 %v6470
    %6509 = vmatprep.subr.mxu0 0.0
    %6510 = vmatpush1.msra.mxu0 %v6468
    %6511 = vmatprep.subr.mxu0 0.0
    %6512 = vmatpush1.msra.mxu0 %v6466
    %6513 = vmatprep.subr.mxu0 0.0
    %6514 = vmatpush1.msra.mxu0 %v6464
    %6515 = vmatprep.subr.mxu0 0.0
    %6516 = vmatpush1.msra.mxu0 %v6462
    %6517 = vmatprep.subr.mxu0 0.0
    %6518 = vmatpush2.msra.mxu0 0.0
    %6519 = vmatprep.subr.mxu0 0.0
    %6520 = vmatpush2.msra.mxu0 0.0
    %6521 = vmatprep.subr.mxu0 0.0
    %6522 = vmatpush2.msra.mxu0 0.0
    %6523 = vmatprep.subr.mxu0 0.0
    %6524 = vmatpush2.msra.mxu0 0.0
    %6525 = vmatprep.subr.mxu0 0.0
    %6526 = vmatpush2.msra.mxu0 0.0
    %6527 = vmatprep.subr.mxu0 0.0
    %6528 = vmatpush2.msra.mxu0 0.0
    %6529 = vmatprep.subr.mxu0 0.0
    %6530 = vmatpush2.msra.mxu0 0.0
    %6531 = vmatprep.subr.mxu0 0.0
    %6532 = vmatpush2.msra.mxu0 0.0
    %6533 = vmatprep.subr.mxu0 0.0
    %6534 = vmatpush2.msra.mxu0 0.0
    %6535 = vmatprep.subr.mxu0 0.0
    %6536 = vmatpush2.msra.mxu0 0.0
    %6537 = vmatprep.subr.mxu0 0.0
    %6538 = vmatpush2.msra.mxu0 0.0
    %6539 = vmatprep.subr.mxu0 0.0
    %6540 = vmatpush2.msra.mxu0 0.0
    %6541 = vmatprep.subr.mxu0 0.0
    %6542 = vmatpush2.msra.mxu0 0.0
    %6543 = vmatprep.subr.mxu0 0.0
    %6544 = vmatpush2.msra.mxu0 0.0
    %6545 = vmatprep.subr.mxu0 0.0
    %6546 = vmatpush2.msra.mxu0 0.0
    %6547 = vmatprep.subr.mxu0 0.0
    %6548 = vmatpush2.msra.mxu0 0.0
    %6549 = vmatprep.mubr.f32.mxu0 0.0
    %6550 = vmatmul.mubr.f32.gmra.mxu0 %v6483
    %v6551 = vpop.f32.mrf.mxu0
    %v6552 = vadd.f32 0.0, %v6551
    %v6553 = vpop.f32.mrf.mxu0
    %6554 = vdwg.mxu0
    %v6555 = vrcp.pop %v6552
    %v6557 = vrot.slane %v6555, 1
    %v6559 = vmul.f32 %v6552, %v6557
    %6560 = vst.msk [vmem:[#allocation2 + $0x7] sm:$0x1] %vm532, %v6559
    %s6561 = sld [smem:[#allocation5 + $0x4]]
    %s6562 = sld [smem:[#allocation3 + $0xc]]
    %v6563 = vstv %s6562
    %v6564 = vmul.f32 %v6563, %v6269
    %v6565 = vmul.f32 %v6563, %v6270
    %v6566 = vmul.f32 %v6563, %v6271
    %v6567 = vmul.f32 %v6563, %v6272
    %v6568 = vmul.f32 %v6563, %v6273
    %v6569 = vmul.f32 %v6563, %v6274
    %v6570 = vmul.f32 %v6563, %v6275
    %v6571 = vmul.f32 %v6563, %v6276
    %v6572 = vstv %s6561
    %v6573 = vadd.f32 %v6572, %v6564
    %v6574 = vadd.f32 %v6572, %v6565
    %v6575 = vadd.f32 %v6572, %v6566
    %v6576 = vadd.f32 %v6572, %v6567
    %v6577 = vadd.f32 %v6572, %v6568
    %v6578 = vadd.f32 %v6572, %v6569
    %v6579 = vadd.f32 %v6572, %v6570
    %v6580 = vadd.f32 %v6572, %v6571
    %s6581 = sld [smem:[#allocation3 + $0xd]]
    %v6582 = vstv %s6581
    %v6583 = vmul.f32 %v6582, %v6269
    %v6584 = vmul.f32 %v6582, %v6270
    %v6585 = vmul.f32 %v6582, %v6271
    %v6586 = vmul.f32 %v6582, %v6272
    %v6587 = vmul.f32 %v6582, %v6273
    %v6588 = vmul.f32 %v6582, %v6274
    %v6589 = vmul.f32 %v6582, %v6275
    %v6590 = vmul.f32 %v6582, %v6276
    %6599 = vrot.lane.b32.xlu0 %v6583, 127
    %v6600 = vpop.permute.xlu0 %6599
    %6601 = vrot.lane.b32.xlu0 %v6584, 127
    %v6602 = vpop.permute.xlu0 %6601
    %6603 = vrot.lane.b32.xlu0 %v6585, 127
    %v6604 = vpop.permute.xlu0 %6603
    %6605 = vrot.lane.b32.xlu0 %v6586, 127
    %v6606 = vpop.permute.xlu0 %6605
    %6607 = vrot.lane.b32.xlu0 %v6587, 127
    %v6608 = vpop.permute.xlu0 %6607
    %6609 = vrot.lane.b32.xlu0 %v6588, 127
    %v6610 = vpop.permute.xlu0 %6609
    %6611 = vrot.lane.b32.xlu0 %v6589, 127
    %v6612 = vpop.permute.xlu0 %6611
    %6613 = vrot.lane.b32.xlu0 %v6590, 127
    %v6614 = vpop.permute.xlu0 %6613
    %v6623 = vadd.f32 %v6573, %v6600
    %v6624 = vadd.f32 %v6574, %v6602
    %v6625 = vadd.f32 %v6575, %v6604
    %v6626 = vadd.f32 %v6576, %v6606
    %v6627 = vadd.f32 %v6577, %v6608
    %v6628 = vadd.f32 %v6578, %v6610
    %v6629 = vadd.f32 %v6579, %v6612
    %v6630 = vadd.f32 %v6580, %v6614
    %s6631 = sld [smem:[#allocation3 + $0xe]]
    %v6632 = vstv %s6631
    %v6633 = vmul.f32 %v6632, %v6269
    %v6634 = vmul.f32 %v6632, %v6270
    %v6635 = vmul.f32 %v6632, %v6271
    %v6636 = vmul.f32 %v6632, %v6272
    %v6637 = vmul.f32 %v6632, %v6273
    %v6638 = vmul.f32 %v6632, %v6274
    %v6639 = vmul.f32 %v6632, %v6275
    %v6640 = vmul.f32 %v6632, %v6276
    %6649 = vrot.lane.b32.xlu0 %v6633, 126
    %v6650 = vpop.permute.xlu0 %6649
    %6651 = vrot.lane.b32.xlu0 %v6634, 126
    %v6652 = vpop.permute.xlu0 %6651
    %6653 = vrot.lane.b32.xlu0 %v6635, 126
    %v6654 = vpop.permute.xlu0 %6653
    %6655 = vrot.lane.b32.xlu0 %v6636, 126
    %v6656 = vpop.permute.xlu0 %6655
    %6657 = vrot.lane.b32.xlu0 %v6637, 126
    %v6658 = vpop.permute.xlu0 %6657
    %6659 = vrot.lane.b32.xlu0 %v6638, 126
    %v6660 = vpop.permute.xlu0 %6659
    %6661 = vrot.lane.b32.xlu0 %v6639, 126
    %v6662 = vpop.permute.xlu0 %6661
    %6663 = vrot.lane.b32.xlu0 %v6640, 126
    %v6664 = vpop.permute.xlu0 %6663
    %v6673 = vadd.f32 %v6623, %v6650
    %v6674 = vadd.f32 %v6624, %v6652
    %v6675 = vadd.f32 %v6625, %v6654
    %v6676 = vadd.f32 %v6626, %v6656
    %v6677 = vadd.f32 %v6627, %v6658
    %v6678 = vadd.f32 %v6628, %v6660
    %v6679 = vadd.f32 %v6629, %v6662
    %v6680 = vadd.f32 %v6630, %v6664
    %6682 = vset.pattern.permute.xlu0 0
    %6683 = vperm.xlu0 %6682, %v6673
    %v6684 = vpop.permute.xlu0 %6683
    %6687 = vset.pattern.permute.xlu0 0
    %6688 = vperm.xlu0 %6687, %v6674
    %v6689 = vpop.permute.xlu0 %6688
    %6692 = vset.pattern.permute.xlu0 0
    %6693 = vperm.xlu0 %6692, %v6675
    %v6694 = vpop.permute.xlu0 %6693
    %6697 = vset.pattern.permute.xlu0 0
    %6698 = vperm.xlu0 %6697, %v6676
    %v6699 = vpop.permute.xlu0 %6698
    %6702 = vset.pattern.permute.xlu0 0
    %6703 = vperm.xlu0 %6702, %v6677
    %v6704 = vpop.permute.xlu0 %6703
    %6707 = vset.pattern.permute.xlu0 0
    %6708 = vperm.xlu0 %6707, %v6678
    %v6709 = vpop.permute.xlu0 %6708
    %6712 = vset.pattern.permute.xlu0 0
    %6713 = vperm.xlu0 %6712, %v6679
    %v6714 = vpop.permute.xlu0 %6713
    %6717 = vset.pattern.permute.xlu0 0
    %6718 = vperm.xlu0 %6717, %v6680
    %v6719 = vpop.permute.xlu0 %6718
    %v6721 = vlaneseq
    %v6722 = vshrl.u32 %v6721, 7
    %v6723 = vsub.s32 7, %v6722
    %v6724 = vrot.slane %v119, %v6723
    %v6725 = vmul.f32 %v6684, %v6724
    %v6726 = vmul.f32 %v6689, %v6724
    %v6727 = vmul.f32 %v6694, %v6724
    %v6728 = vmul.f32 %v6699, %v6724
    %v6729 = vmul.f32 %v6704, %v6724
    %v6730 = vmul.f32 %v6709, %v6724
    %v6731 = vmul.f32 %v6714, %v6724
    %v6732 = vmul.f32 %v6719, %v6724
    %v6733 = vlaneseq
    %v6734 = vshrl.u32 %v6733, 7
    %v6735 = vsub.s32 7, %v6734
    %v6736 = vrot.slane %v236, %v6735
    %v6737 = vsub.f32 %v6725, %v6736
    %v6738 = vsub.f32 %v6726, %v6736
    %v6739 = vsub.f32 %v6727, %v6736
    %v6740 = vsub.f32 %v6728, %v6736
    %v6741 = vsub.f32 %v6729, %v6736
    %v6742 = vsub.f32 %v6730, %v6736
    %v6743 = vsub.f32 %v6731, %v6736
    %v6744 = vsub.f32 %v6732, %v6736
    %v6745 = vmul.f32 %v6737, 1.442695
    %v6746 = vpow.pop %v6745
    %v6747 = vmul.f32 %v6738, 1.442695
    %v6748 = vpow.pop %v6747
    %v6749 = vmul.f32 %v6739, 1.442695
    %v6750 = vpow.pop %v6749
    %v6751 = vmul.f32 %v6740, 1.442695
    %v6752 = vpow.pop %v6751
    %v6753 = vmul.f32 %v6741, 1.442695
    %v6754 = vpow.pop %v6753
    %v6755 = vmul.f32 %v6742, 1.442695
    %v6756 = vpow.pop %v6755
    %v6757 = vmul.f32 %v6743, 1.442695
    %v6758 = vpow.pop %v6757
    %v6759 = vmul.f32 %v6744, 1.442695
    %v6760 = vpow.pop %v6759
    %v6761 = vlaneseq
    %v6762 = vshrl.u32 %v6761, 7
    %v6763 = vsub.s32 7, %v6762
    %v6764 = vrot.slane %v203, %v6763
    %v6765 = vsel %vm248, %v6764, 1.0
    %v6767 = vsel %vm218, %v6765, 0
    %6769 = vmatprep.subr.mxu0 0.0
    %6770 = vmatpush1.msra.mxu0 0.0
    %6771 = vmatprep.subr.mxu0 0.0
    %6772 = vmatpush1.msra.mxu0 0.0
    %6773 = vmatprep.subr.mxu0 0.0
    %6774 = vmatpush1.msra.mxu0 0.0
    %6775 = vmatprep.subr.mxu0 0.0
    %6776 = vmatpush1.msra.mxu0 0.0
    %6777 = vmatprep.subr.mxu0 0.0
    %6778 = vmatpush1.msra.mxu0 0.0
    %6779 = vmatprep.subr.mxu0 0.0
    %6780 = vmatpush1.msra.mxu0 0.0
    %6781 = vmatprep.subr.mxu0 0.0
    %6782 = vmatpush1.msra.mxu0 0.0
    %6783 = vmatprep.subr.mxu0 0.0
    %6784 = vmatpush1.msra.mxu0 0.0
    %6785 = vmatprep.subr.mxu0 0.0
    %6786 = vmatpush1.msra.mxu0 %v6760
    %6787 = vmatprep.subr.mxu0 0.0
    %6788 = vmatpush1.msra.mxu0 %v6758
    %6789 = vmatprep.subr.mxu0 0.0
    %6790 = vmatpush1.msra.mxu0 %v6756
    %6791 = vmatprep.subr.mxu0 0.0
    %6792 = vmatpush1.msra.mxu0 %v6754
    %6793 = vmatprep.subr.mxu0 0.0
    %6794 = vmatpush1.msra.mxu0 %v6752
    %6795 = vmatprep.subr.mxu0 0.0
    %6796 = vmatpush1.msra.mxu0 %v6750
    %6797 = vmatprep.subr.mxu0 0.0
    %6798 = vmatpush1.msra.mxu0 %v6748
    %6799 = vmatprep.subr.mxu0 0.0
    %6800 = vmatpush1.msra.mxu0 %v6746
    %6801 = vmatprep.subr.mxu0 0.0
    %6802 = vmatpush2.msra.mxu0 0.0
    %6803 = vmatprep.subr.mxu0 0.0
    %6804 = vmatpush2.msra.mxu0 0.0
    %6805 = vmatprep.subr.mxu0 0.0
    %6806 = vmatpush2.msra.mxu0 0.0
    %6807 = vmatprep.subr.mxu0 0.0
    %6808 = vmatpush2.msra.mxu0 0.0
    %6809 = vmatprep.subr.mxu0 0.0
    %6810 = vmatpush2.msra.mxu0 0.0
    %6811 = vmatprep.subr.mxu0 0.0
    %6812 = vmatpush2.msra.mxu0 0.0
    %6813 = vmatprep.subr.mxu0 0.0
    %6814 = vmatpush2.msra.mxu0 0.0
    %6815 = vmatprep.subr.mxu0 0.0
    %6816 = vmatpush2.msra.mxu0 0.0
    %6817 = vmatprep.subr.mxu0 0.0
    %6818 = vmatpush2.msra.mxu0 0.0
    %6819 = vmatprep.subr.mxu0 0.0
    %6820 = vmatpush2.msra.mxu0 0.0
    %6821 = vmatprep.subr.mxu0 0.0
    %6822 = vmatpush2.msra.mxu0 0.0
    %6823 = vmatprep.subr.mxu0 0.0
    %6824 = vmatpush2.msra.mxu0 0.0
    %6825 = vmatprep.subr.mxu0 0.0
    %6826 = vmatpush2.msra.mxu0 0.0
    %6827 = vmatprep.subr.mxu0 0.0
    %6828 = vmatpush2.msra.mxu0 0.0
    %6829 = vmatprep.subr.mxu0 0.0
    %6830 = vmatpush2.msra.mxu0 0.0
    %6831 = vmatprep.subr.mxu0 0.0
    %6832 = vmatpush2.msra.mxu0 0.0
    %6833 = vmatprep.mubr.f32.mxu0 0.0
    %6834 = vmatmul.mubr.f32.gmra.mxu0 %v6767
    %v6835 = vpop.f32.mrf.mxu0
    %v6836 = vadd.f32 0.0, %v6835
    %v6837 = vpop.f32.mrf.mxu0
    %6838 = vdwg.mxu0
    %v6839 = vrcp.pop %v6836
    %v6841 = vrot.slane %v6839, 1
    %v6843 = vmul.f32 %v6836, %v6841
    %6844 = vst.msk [vmem:[#allocation2 + $0xf] sm:$0x1] %vm532, %v6843
    %s6845 = sld [smem:[#allocation5 + $0x5]]
    %s6846 = sld [smem:[#allocation3 + $0xf]]
    %v6847 = vstv %s6846
    %v6848 = vmul.f32 %v6847, %v6269
    %v6849 = vmul.f32 %v6847, %v6270
    %v6850 = vmul.f32 %v6847, %v6271
    %v6851 = vmul.f32 %v6847, %v6272
    %v6852 = vmul.f32 %v6847, %v6273
    %v6853 = vmul.f32 %v6847, %v6274
    %v6854 = vmul.f32 %v6847, %v6275
    %v6855 = vmul.f32 %v6847, %v6276
    %v6856 = vstv %s6845
    %v6857 = vadd.f32 %v6856, %v6848
    %v6858 = vadd.f32 %v6856, %v6849
    %v6859 = vadd.f32 %v6856, %v6850
    %v6860 = vadd.f32 %v6856, %v6851
    %v6861 = vadd.f32 %v6856, %v6852
    %v6862 = vadd.f32 %v6856, %v6853
    %v6863 = vadd.f32 %v6856, %v6854
    %v6864 = vadd.f32 %v6856, %v6855
    %s6865 = sld [smem:[#allocation3 + $0x10]]
    %v6866 = vstv %s6865
    %v6867 = vmul.f32 %v6866, %v6269
    %v6868 = vmul.f32 %v6866, %v6270
    %v6869 = vmul.f32 %v6866, %v6271
    %v6870 = vmul.f32 %v6866, %v6272
    %v6871 = vmul.f32 %v6866, %v6273
    %v6872 = vmul.f32 %v6866, %v6274
    %v6873 = vmul.f32 %v6866, %v6275
    %v6874 = vmul.f32 %v6866, %v6276
    %6883 = vrot.lane.b32.xlu0 %v6867, 127
    %v6884 = vpop.permute.xlu0 %6883
    %6885 = vrot.lane.b32.xlu0 %v6868, 127
    %v6886 = vpop.permute.xlu0 %6885
    %6887 = vrot.lane.b32.xlu0 %v6869, 127
    %v6888 = vpop.permute.xlu0 %6887
    %6889 = vrot.lane.b32.xlu0 %v6870, 127
    %v6890 = vpop.permute.xlu0 %6889
    %6891 = vrot.lane.b32.xlu0 %v6871, 127
    %v6892 = vpop.permute.xlu0 %6891
    %6893 = vrot.lane.b32.xlu0 %v6872, 127
    %v6894 = vpop.permute.xlu0 %6893
    %6895 = vrot.lane.b32.xlu0 %v6873, 127
    %v6896 = vpop.permute.xlu0 %6895
    %6897 = vrot.lane.b32.xlu0 %v6874, 127
    %v6898 = vpop.permute.xlu0 %6897
    %v6907 = vadd.f32 %v6857, %v6884
    %v6908 = vadd.f32 %v6858, %v6886
    %v6909 = vadd.f32 %v6859, %v6888
    %v6910 = vadd.f32 %v6860, %v6890
    %v6911 = vadd.f32 %v6861, %v6892
    %v6912 = vadd.f32 %v6862, %v6894
    %v6913 = vadd.f32 %v6863, %v6896
    %v6914 = vadd.f32 %v6864, %v6898
    %s6915 = sld [smem:[#allocation3 + $0x11]]
    %v6916 = vstv %s6915
    %v6917 = vmul.f32 %v6916, %v6269
    %v6918 = vmul.f32 %v6916, %v6270
    %v6919 = vmul.f32 %v6916, %v6271
    %v6920 = vmul.f32 %v6916, %v6272
    %v6921 = vmul.f32 %v6916, %v6273
    %v6922 = vmul.f32 %v6916, %v6274
    %v6923 = vmul.f32 %v6916, %v6275
    %v6924 = vmul.f32 %v6916, %v6276
    %6933 = vrot.lane.b32.xlu0 %v6917, 126
    %v6934 = vpop.permute.xlu0 %6933
    %6935 = vrot.lane.b32.xlu0 %v6918, 126
    %v6936 = vpop.permute.xlu0 %6935
    %6937 = vrot.lane.b32.xlu0 %v6919, 126
    %v6938 = vpop.permute.xlu0 %6937
    %6939 = vrot.lane.b32.xlu0 %v6920, 126
    %v6940 = vpop.permute.xlu0 %6939
    %6941 = vrot.lane.b32.xlu0 %v6921, 126
    %v6942 = vpop.permute.xlu0 %6941
    %6943 = vrot.lane.b32.xlu0 %v6922, 126
    %v6944 = vpop.permute.xlu0 %6943
    %6945 = vrot.lane.b32.xlu0 %v6923, 126
    %v6946 = vpop.permute.xlu0 %6945
    %6947 = vrot.lane.b32.xlu0 %v6924, 126
    %v6948 = vpop.permute.xlu0 %6947
    %v6957 = vadd.f32 %v6907, %v6934
    %v6958 = vadd.f32 %v6908, %v6936
    %v6959 = vadd.f32 %v6909, %v6938
    %v6960 = vadd.f32 %v6910, %v6940
    %v6961 = vadd.f32 %v6911, %v6942
    %v6962 = vadd.f32 %v6912, %v6944
    %v6963 = vadd.f32 %v6913, %v6946
    %v6964 = vadd.f32 %v6914, %v6948
    %6966 = vset.pattern.permute.xlu0 0
    %6967 = vperm.xlu0 %6966, %v6957
    %v6968 = vpop.permute.xlu0 %6967
    %6971 = vset.pattern.permute.xlu0 0
    %6972 = vperm.xlu0 %6971, %v6958
    %v6973 = vpop.permute.xlu0 %6972
    %6976 = vset.pattern.permute.xlu0 0
    %6977 = vperm.xlu0 %6976, %v6959
    %v6978 = vpop.permute.xlu0 %6977
    %6981 = vset.pattern.permute.xlu0 0
    %6982 = vperm.xlu0 %6981, %v6960
    %v6983 = vpop.permute.xlu0 %6982
    %6986 = vset.pattern.permute.xlu0 0
    %6987 = vperm.xlu0 %6986, %v6961
    %v6988 = vpop.permute.xlu0 %6987
    %6991 = vset.pattern.permute.xlu0 0
    %6992 = vperm.xlu0 %6991, %v6962
    %v6993 = vpop.permute.xlu0 %6992
    %6996 = vset.pattern.permute.xlu0 0
    %6997 = vperm.xlu0 %6996, %v6963
    %v6998 = vpop.permute.xlu0 %6997
    %7001 = vset.pattern.permute.xlu0 0
    %7002 = vperm.xlu0 %7001, %v6964
    %v7003 = vpop.permute.xlu0 %7002
    %v7005 = vlaneseq
    %v7006 = vshrl.u32 %v7005, 7
    %v7007 = vsub.s32 7, %v7006
    %v7008 = vrot.slane %v133, %v7007
    %v7009 = vmul.f32 %v6968, %v7008
    %v7010 = vmul.f32 %v6973, %v7008
    %v7011 = vmul.f32 %v6978, %v7008
    %v7012 = vmul.f32 %v6983, %v7008
    %v7013 = vmul.f32 %v6988, %v7008
    %v7014 = vmul.f32 %v6993, %v7008
    %v7015 = vmul.f32 %v6998, %v7008
    %v7016 = vmul.f32 %v7003, %v7008
    %v7017 = vlaneseq
    %v7018 = vshrl.u32 %v7017, 7
    %v7019 = vsub.s32 7, %v7018
    %v7020 = vrot.slane %v245, %v7019
    %v7021 = vsub.f32 %v7009, %v7020
    %v7022 = vsub.f32 %v7010, %v7020
    %v7023 = vsub.f32 %v7011, %v7020
    %v7024 = vsub.f32 %v7012, %v7020
    %v7025 = vsub.f32 %v7013, %v7020
    %v7026 = vsub.f32 %v7014, %v7020
    %v7027 = vsub.f32 %v7015, %v7020
    %v7028 = vsub.f32 %v7016, %v7020
    %v7029 = vmul.f32 %v7021, 1.442695
    %v7030 = vpow.pop %v7029
    %v7031 = vmul.f32 %v7022, 1.442695
    %v7032 = vpow.pop %v7031
    %v7033 = vmul.f32 %v7023, 1.442695
    %v7034 = vpow.pop %v7033
    %v7035 = vmul.f32 %v7024, 1.442695
    %v7036 = vpow.pop %v7035
    %v7037 = vmul.f32 %v7025, 1.442695
    %v7038 = vpow.pop %v7037
    %v7039 = vmul.f32 %v7026, 1.442695
    %v7040 = vpow.pop %v7039
    %v7041 = vmul.f32 %v7027, 1.442695
    %v7042 = vpow.pop %v7041
    %v7043 = vmul.f32 %v7028, 1.442695
    %v7044 = vpow.pop %v7043
    %v7045 = vlaneseq
    %v7046 = vshrl.u32 %v7045, 7
    %v7047 = vsub.s32 7, %v7046
    %v7048 = vrot.slane %v217, %v7047
    %v7049 = vsel %vm248, %v7048, 1.0
    %v7051 = vsel %vm218, %v7049, 0
    %7053 = vmatprep.subr.mxu0 0.0
    %7054 = vmatpush1.msra.mxu0 0.0
    %7055 = vmatprep.subr.mxu0 0.0
    %7056 = vmatpush1.msra.mxu0 0.0
    %7057 = vmatprep.subr.mxu0 0.0
    %7058 = vmatpush1.msra.mxu0 0.0
    %7059 = vmatprep.subr.mxu0 0.0
    %7060 = vmatpush1.msra.mxu0 0.0
    %7061 = vmatprep.subr.mxu0 0.0
    %7062 = vmatpush1.msra.mxu0 0.0
    %7063 = vmatprep.subr.mxu0 0.0
    %7064 = vmatpush1.msra.mxu0 0.0
    %7065 = vmatprep.subr.mxu0 0.0
    %7066 = vmatpush1.msra.mxu0 0.0
    %7067 = vmatprep.subr.mxu0 0.0
    %7068 = vmatpush1.msra.mxu0 0.0
    %7069 = vmatprep.subr.mxu0 0.0
    %7070 = vmatpush1.msra.mxu0 %v7044
    %7071 = vmatprep.subr.mxu0 0.0
    %7072 = vmatpush1.msra.mxu0 %v7042
    %7073 = vmatprep.subr.mxu0 0.0
    %7074 = vmatpush1.msra.mxu0 %v7040
    %7075 = vmatprep.subr.mxu0 0.0
    %7076 = vmatpush1.msra.mxu0 %v7038
    %7077 = vmatprep.subr.mxu0 0.0
    %7078 = vmatpush1.msra.mxu0 %v7036
    %7079 = vmatprep.subr.mxu0 0.0
    %7080 = vmatpush1.msra.mxu0 %v7034
    %7081 = vmatprep.subr.mxu0 0.0
    %7082 = vmatpush1.msra.mxu0 %v7032
    %7083 = vmatprep.subr.mxu0 0.0
    %7084 = vmatpush1.msra.mxu0 %v7030
    %7085 = vmatprep.subr.mxu0 0.0
    %7086 = vmatpush2.msra.mxu0 0.0
    %7087 = vmatprep.subr.mxu0 0.0
    %7088 = vmatpush2.msra.mxu0 0.0
    %7089 = vmatprep.subr.mxu0 0.0
    %7090 = vmatpush2.msra.mxu0 0.0
    %7091 = vmatprep.subr.mxu0 0.0
    %7092 = vmatpush2.msra.mxu0 0.0
    %7093 = vmatprep.subr.mxu0 0.0
    %7094 = vmatpush2.msra.mxu0 0.0
    %7095 = vmatprep.subr.mxu0 0.0
    %7096 = vmatpush2.msra.mxu0 0.0
    %7097 = vmatprep.subr.mxu0 0.0
    %7098 = vmatpush2.msra.mxu0 0.0
    %7099 = vmatprep.subr.mxu0 0.0
    %7100 = vmatpush2.msra.mxu0 0.0
    %7101 = vmatprep.subr.mxu0 0.0
    %7102 = vmatpush2.msra.mxu0 0.0
    %7103 = vmatprep.subr.mxu0 0.0
    %7104 = vmatpush2.msra.mxu0 0.0
    %7105 = vmatprep.subr.mxu0 0.0
    %7106 = vmatpush2.msra.mxu0 0.0
    %7107 = vmatprep.subr.mxu0 0.0
    %7108 = vmatpush2.msra.mxu0 0.0
    %7109 = vmatprep.subr.mxu0 0.0
    %7110 = vmatpush2.msra.mxu0 0.0
    %7111 = vmatprep.subr.mxu0 0.0
    %7112 = vmatpush2.msra.mxu0 0.0
    %7113 = vmatprep.subr.mxu0 0.0
    %7114 = vmatpush2.msra.mxu0 0.0
    %7115 = vmatprep.subr.mxu0 0.0
    %7116 = vmatpush2.msra.mxu0 0.0
    %7117 = vmatprep.mubr.f32.mxu0 0.0
    %7118 = vmatmul.mubr.f32.gmra.mxu0 %v7051
    %v7119 = vpop.f32.mrf.mxu0
    %v7120 = vadd.f32 0.0, %v7119
    %v7121 = vpop.f32.mrf.mxu0
    %7122 = vdwg.mxu0
    %v7123 = vrcp.pop %v7120
    %v7125 = vrot.slane %v7123, 1
    %v7127 = vmul.f32 %v7120, %v7125
    %7128 = vst.msk [vmem:[#allocation2 + $0x17] sm:$0x1] %vm532, %v7127
    %v7129 = vld [vmem:[#allocation2] sm:$0xff]
    %v7130 = vsel %vm218, %v7129, 0.0
    %7131 = vadd.xlane.f32.xlu0 %v7130
    %v7132 = vpop.xlane.xlu0 %7131
    %v7133 = vld [vmem:[#allocation2 + $0x8] sm:$0xff]
    %v7134 = vsel %vm218, %v7133, 0.0
    %7135 = vadd.xlane.f32.xlu0 %v7134
    %v7136 = vpop.xlane.xlu0 %7135
    %v7137 = vld [vmem:[#allocation2 + $0x10] sm:$0xff]
    %v7138 = vsel %vm218, %v7137, 0.0
    %7139 = vadd.xlane.f32.xlu0 %v7138
    %v7140 = vpop.xlane.xlu0 %7139
    %v7141 = vld [vmem:[%s8] sm:$0xff]
    %v7142 = vsel %vm218, %v87, 0.0
    %7143 = vadd.xlane.f32.xlu0 %v7142
    %v7144 = vpop.xlane.xlu0 %7143
    %s7145 = sld [smem:[#allocation8]]
    %s7146 = smul.f32 %s7145, 64.0
    %s7147 = sld [smem:[#allocation7]]
    %v7148 = vstv %s7147
    %v7149 = vmul.f32 %v7148, %v7132
    %v7150 = vstv %s7146
    %v7151 = vadd.f32 %v7150, %v7149
    %s7152 = sld [smem:[#allocation7 + $0x1]]
    %v7153 = vstv %s7152
    %v7154 = vmul.f32 %v7153, %v7136
    %v7155 = vadd.f32 %v7151, %v7154
    %s7156 = sld [smem:[#allocation7 + $0x2]]
    %v7157 = vstv %s7156
    %v7158 = vmul.f32 %v7157, %v7140
    %v7159 = vadd.f32 %v7155, %v7158
    %v7160 = vld [vmem:[%s2] sm:$0xff]
    %v7161 = vsub.f32 %v7160, %v7144
    %v7162 = vadd.f32 %v7161, %v7159
    %v7163 = vmul.f32 %v7162, 0.00390625
    %v7164 = vld [vmem:[%s7] ss:$4 sm:$0xff]
    %7166 = vset.pattern.permute.xlu0 0
    %7167 = vperm.xlu0 %7166, %v7163
    %v7168 = vpop.permute.xlu0 %7167
    %v7171 = vlaneseq
    %v7172 = vshrl.u32 %v7171, 7
    %v7173 = vsub.s32 0, %v7172
    %v7174 = vrot.slane %v7164, %v7173
    %v7175 = vlaneseq
    %v7176 = vshrl.u32 %v7175, 7
    %v7177 = vsub.s32 1, %v7176
    %v7178 = vrot.slane %v7164, %v7177
    %v7179 = vlaneseq
    %v7180 = vshrl.u32 %v7179, 7
    %v7181 = vsub.s32 2, %v7180
    %v7182 = vrot.slane %v7164, %v7181
    %v7183 = vlaneseq
    %v7184 = vshrl.u32 %v7183, 7
    %v7185 = vsub.s32 3, %v7184
    %v7186 = vrot.slane %v7164, %v7185
    %v7187 = vlaneseq
    %v7188 = vshrl.u32 %v7187, 7
    %v7189 = vsub.s32 4, %v7188
    %v7190 = vrot.slane %v7164, %v7189
    %v7191 = vlaneseq
    %v7192 = vshrl.u32 %v7191, 7
    %v7193 = vsub.s32 5, %v7192
    %v7194 = vrot.slane %v7164, %v7193
    %v7195 = vlaneseq
    %v7196 = vshrl.u32 %v7195, 7
    %v7197 = vsub.s32 6, %v7196
    %v7198 = vrot.slane %v7164, %v7197
    %v7199 = vlaneseq
    %v7200 = vshrl.u32 %v7199, 7
    %v7201 = vsub.s32 7, %v7200
    %v7202 = vrot.slane %v7164, %v7201
    %v7211 = vmul.f32 %v7168, %v7174
    %v7212 = vmul.f32 %v7168, %v7178
    %v7213 = vmul.f32 %v7168, %v7182
    %v7214 = vmul.f32 %v7168, %v7186
    %v7215 = vmul.f32 %v7168, %v7190
    %v7216 = vmul.f32 %v7168, %v7194
    %v7217 = vmul.f32 %v7168, %v7198
    %v7218 = vmul.f32 %v7168, %v7202
    %v7220 = vlaneseq
    %v7221 = vshrl.u32 %v7220, 7
    %v7222 = vsub.s32 0, %v7221
    %v7223 = vrot.slane %v7141, %v7222
    %v7224 = vlaneseq
    %v7225 = vshrl.u32 %v7224, 7
    %v7226 = vsub.s32 1, %v7225
    %v7227 = vrot.slane %v7141, %v7226
    %v7228 = vlaneseq
    %v7229 = vshrl.u32 %v7228, 7
    %v7230 = vsub.s32 2, %v7229
    %v7231 = vrot.slane %v7141, %v7230
    %v7232 = vlaneseq
    %v7233 = vshrl.u32 %v7232, 7
    %v7234 = vsub.s32 3, %v7233
    %v7235 = vrot.slane %v7141, %v7234
    %v7236 = vlaneseq
    %v7237 = vshrl.u32 %v7236, 7
    %v7238 = vsub.s32 4, %v7237
    %v7239 = vrot.slane %v7141, %v7238
    %v7240 = vlaneseq
    %v7241 = vshrl.u32 %v7240, 7
    %v7242 = vsub.s32 5, %v7241
    %v7243 = vrot.slane %v7141, %v7242
    %v7244 = vlaneseq
    %v7245 = vshrl.u32 %v7244, 7
    %v7246 = vsub.s32 6, %v7245
    %v7247 = vrot.slane %v7141, %v7246
    %v7248 = vlaneseq
    %v7249 = vshrl.u32 %v7248, 7
    %v7250 = vsub.s32 7, %v7249
    %v7251 = vrot.slane %v7141, %v7250
    %v7260 = vadd.f32 %v7223, %v7211
    %v7261 = vadd.f32 %v7227, %v7212
    %v7262 = vadd.f32 %v7231, %v7213
    %v7263 = vadd.f32 %v7235, %v7214
    %v7264 = vadd.f32 %v7239, %v7215
    %v7265 = vadd.f32 %v7243, %v7216
    %v7266 = vadd.f32 %v7247, %v7217
    %v7267 = vadd.f32 %v7251, %v7218
    %v7268 = vsel %vm218, %v89, 0.0
    %7269 = vadd.xlane.f32.xlu0 %v7268
    %v7270 = vpop.xlane.xlu0 %7269
    %s7271 = sld [smem:[#allocation8 + $0x1]]
    %s7272 = smul.f32 %s7271, 64.0
    %s7273 = sld [smem:[#allocation7 + $0x3]]
    %v7274 = vstv %s7273
    %v7275 = vmul.f32 %v7274, %v7132
    %v7276 = vstv %s7272
    %v7277 = vadd.f32 %v7276, %v7275
    %s7278 = sld [smem:[#allocation7 + $0x4]]
    %v7279 = vstv %s7278
    %v7280 = vmul.f32 %v7279, %v7136
    %v7281 = vadd.f32 %v7277, %v7280
    %s7282 = sld [smem:[#allocation7 + $0x5]]
    %v7283 = vstv %s7282
    %v7284 = vmul.f32 %v7283, %v7140
    %v7285 = vadd.f32 %v7281, %v7284
    %v7286 = vsub.f32 %v7160, %v7270
    %v7287 = vadd.f32 %v7286, %v7285
    %v7288 = vmul.f32 %v7287, 0.00390625
    %s7289 = scalar_lea.vmem %s7, 1
    %v7290 = vld [vmem:[%s7289] ss:$4 sm:$0xff]
    %7292 = vset.pattern.permute.xlu0 1
    %7293 = vperm.xlu0 %7292, %v7288
    %v7294 = vpop.permute.xlu0 %7293
    %v7297 = vlaneseq
    %v7298 = vshrl.u32 %v7297, 7
    %v7299 = vsub.s32 0, %v7298
    %v7300 = vrot.slane %v7290, %v7299
    %v7301 = vlaneseq
    %v7302 = vshrl.u32 %v7301, 7
    %v7303 = vsub.s32 1, %v7302
    %v7304 = vrot.slane %v7290, %v7303
    %v7305 = vlaneseq
    %v7306 = vshrl.u32 %v7305, 7
    %v7307 = vsub.s32 2, %v7306
    %v7308 = vrot.slane %v7290, %v7307
    %v7309 = vlaneseq
    %v7310 = vshrl.u32 %v7309, 7
    %v7311 = vsub.s32 3, %v7310
    %v7312 = vrot.slane %v7290, %v7311
    %v7313 = vlaneseq
    %v7314 = vshrl.u32 %v7313, 7
    %v7315 = vsub.s32 4, %v7314
    %v7316 = vrot.slane %v7290, %v7315
    %v7317 = vlaneseq
    %v7318 = vshrl.u32 %v7317, 7
    %v7319 = vsub.s32 5, %v7318
    %v7320 = vrot.slane %v7290, %v7319
    %v7321 = vlaneseq
    %v7322 = vshrl.u32 %v7321, 7
    %v7323 = vsub.s32 6, %v7322
    %v7324 = vrot.slane %v7290, %v7323
    %v7325 = vlaneseq
    %v7326 = vshrl.u32 %v7325, 7
    %v7327 = vsub.s32 7, %v7326
    %v7328 = vrot.slane %v7290, %v7327
    %v7337 = vmul.f32 %v7294, %v7300
    %v7338 = vmul.f32 %v7294, %v7304
    %v7339 = vmul.f32 %v7294, %v7308
    %v7340 = vmul.f32 %v7294, %v7312
    %v7341 = vmul.f32 %v7294, %v7316
    %v7342 = vmul.f32 %v7294, %v7320
    %v7343 = vmul.f32 %v7294, %v7324
    %v7344 = vmul.f32 %v7294, %v7328
    %v7345 = vadd.f32 %v7260, %v7337
    %v7346 = vadd.f32 %v7261, %v7338
    %v7347 = vadd.f32 %v7262, %v7339
    %v7348 = vadd.f32 %v7263, %v7340
    %v7349 = vadd.f32 %v7264, %v7341
    %v7350 = vadd.f32 %v7265, %v7342
    %v7351 = vadd.f32 %v7266, %v7343
    %v7352 = vadd.f32 %v7267, %v7344
    %v7353 = vsel %vm218, %v91, 0.0
    %7354 = vadd.xlane.f32.xlu0 %v7353
    %v7355 = vpop.xlane.xlu0 %7354
    %s7356 = sld [smem:[#allocation8 + $0x2]]
    %s7357 = smul.f32 %s7356, 64.0
    %s7358 = sld [smem:[#allocation7 + $0x6]]
    %v7359 = vstv %s7358
    %v7360 = vmul.f32 %v7359, %v7132
    %v7361 = vstv %s7357
    %v7362 = vadd.f32 %v7361, %v7360
    %s7363 = sld [smem:[#allocation7 + $0x7]]
    %v7364 = vstv %s7363
    %v7365 = vmul.f32 %v7364, %v7136
    %v7366 = vadd.f32 %v7362, %v7365
    %s7367 = sld [smem:[#allocation7 + $0x8]]
    %v7368 = vstv %s7367
    %v7369 = vmul.f32 %v7368, %v7140
    %v7370 = vadd.f32 %v7366, %v7369
    %v7371 = vsub.f32 %v7160, %v7355
    %v7372 = vadd.f32 %v7371, %v7370
    %v7373 = vmul.f32 %v7372, 0.00390625
    %s7374 = scalar_lea.vmem %s7, 2
    %v7375 = vld [vmem:[%s7374] ss:$4 sm:$0xff]
    %7377 = vset.pattern.permute.xlu0 2
    %7378 = vperm.xlu0 %7377, %v7373
    %v7379 = vpop.permute.xlu0 %7378
    %v7382 = vlaneseq
    %v7383 = vshrl.u32 %v7382, 7
    %v7384 = vsub.s32 0, %v7383
    %v7385 = vrot.slane %v7375, %v7384
    %v7386 = vlaneseq
    %v7387 = vshrl.u32 %v7386, 7
    %v7388 = vsub.s32 1, %v7387
    %v7389 = vrot.slane %v7375, %v7388
    %v7390 = vlaneseq
    %v7391 = vshrl.u32 %v7390, 7
    %v7392 = vsub.s32 2, %v7391
    %v7393 = vrot.slane %v7375, %v7392
    %v7394 = vlaneseq
    %v7395 = vshrl.u32 %v7394, 7
    %v7396 = vsub.s32 3, %v7395
    %v7397 = vrot.slane %v7375, %v7396
    %v7398 = vlaneseq
    %v7399 = vshrl.u32 %v7398, 7
    %v7400 = vsub.s32 4, %v7399
    %v7401 = vrot.slane %v7375, %v7400
    %v7402 = vlaneseq
    %v7403 = vshrl.u32 %v7402, 7
    %v7404 = vsub.s32 5, %v7403
    %v7405 = vrot.slane %v7375, %v7404
    %v7406 = vlaneseq
    %v7407 = vshrl.u32 %v7406, 7
    %v7408 = vsub.s32 6, %v7407
    %v7409 = vrot.slane %v7375, %v7408
    %v7410 = vlaneseq
    %v7411 = vshrl.u32 %v7410, 7
    %v7412 = vsub.s32 7, %v7411
    %v7413 = vrot.slane %v7375, %v7412
    %v7422 = vmul.f32 %v7379, %v7385
    %v7423 = vmul.f32 %v7379, %v7389
    %v7424 = vmul.f32 %v7379, %v7393
    %v7425 = vmul.f32 %v7379, %v7397
    %v7426 = vmul.f32 %v7379, %v7401
    %v7427 = vmul.f32 %v7379, %v7405
    %v7428 = vmul.f32 %v7379, %v7409
    %v7429 = vmul.f32 %v7379, %v7413
    %v7430 = vadd.f32 %v7345, %v7422
    %v7431 = vadd.f32 %v7346, %v7423
    %v7432 = vadd.f32 %v7347, %v7424
    %v7433 = vadd.f32 %v7348, %v7425
    %v7434 = vadd.f32 %v7349, %v7426
    %v7435 = vadd.f32 %v7350, %v7427
    %v7436 = vadd.f32 %v7351, %v7428
    %v7437 = vadd.f32 %v7352, %v7429
    %v7438 = vpack.c.bf16 %v7430, %v7430
    %v7439 = vpack.c.bf16 %v7431, %v7431
    %v7440 = vpack.c.bf16 %v7432, %v7432
    %v7441 = vpack.c.bf16 %v7433, %v7433
    %v7442 = vpack.c.bf16 %v7434, %v7434
    %v7443 = vpack.c.bf16 %v7435, %v7435
    %v7444 = vpack.c.bf16 %v7436, %v7436
    %v7445 = vpack.c.bf16 %v7437, %v7437
    %v7446 = vld [vmem:[%s9] sm:$0xf]
    %v7447 = vld [vmem:[%s9 + $0x4] sm:$0xf]
    %v7448 = vld [vmem:[%s9 + $0x8] sm:$0xf]
    %v7449 = vld [vmem:[%s9 + $0xc] sm:$0xf]
    %v7450 = vld [vmem:[%s9 + $0x10] sm:$0xf]
    %v7451 = vld [vmem:[%s9 + $0x14] sm:$0xf]
    %v7452 = vld [vmem:[%s9 + $0x18] sm:$0xf]
    %v7453 = vld [vmem:[%s9 + $0x1c] sm:$0xf]
    %v7454 = vld [vmem:[%s9 + $0x20] sm:$0xf]
    %v7455 = vld [vmem:[%s9 + $0x24] sm:$0xf]
    %v7456 = vld [vmem:[%s9 + $0x28] sm:$0xf]
    %v7457 = vld [vmem:[%s9 + $0x2c] sm:$0xf]
    %v7458 = vld [vmem:[%s9 + $0x30] sm:$0xf]
    %v7459 = vld [vmem:[%s9 + $0x34] sm:$0xf]
    %v7460 = vld [vmem:[%s9 + $0x38] sm:$0xf]
    %v7461 = vld [vmem:[%s9 + $0x3c] sm:$0xf]
    %v7462 = vld [vmem:[%s9 + $0x40] sm:$0xf]
    %v7463 = vld [vmem:[%s9 + $0x44] sm:$0xf]
    %v7464 = vld [vmem:[%s9 + $0x48] sm:$0xf]
    %v7465 = vld [vmem:[%s9 + $0x4c] sm:$0xf]
    %v7466 = vld [vmem:[%s9 + $0x50] sm:$0xf]
    %v7467 = vld [vmem:[%s9 + $0x54] sm:$0xf]
    %v7468 = vld [vmem:[%s9 + $0x58] sm:$0xf]
    %v7469 = vld [vmem:[%s9 + $0x5c] sm:$0xf]
    %v7470 = vld [vmem:[%s9 + $0x60] sm:$0xf]
    %v7471 = vld [vmem:[%s9 + $0x64] sm:$0xf]
    %v7472 = vld [vmem:[%s9 + $0x68] sm:$0xf]
    %v7473 = vld [vmem:[%s9 + $0x6c] sm:$0xf]
    %v7474 = vld [vmem:[%s9 + $0x70] sm:$0xf]
    %v7475 = vld [vmem:[%s9 + $0x74] sm:$0xf]
    %v7476 = vld [vmem:[%s9 + $0x78] sm:$0xf]
    %v7477 = vld [vmem:[%s9 + $0x7c] sm:$0xf]
    %v7478 = vld [vmem:[%s9 + $0x80] sm:$0xf]
    %v7479 = vld [vmem:[%s9 + $0x84] sm:$0xf]
    %v7480 = vld [vmem:[%s9 + $0x88] sm:$0xf]
    %v7481 = vld [vmem:[%s9 + $0x8c] sm:$0xf]
    %v7482 = vld [vmem:[%s9 + $0x90] sm:$0xf]
    %v7483 = vld [vmem:[%s9 + $0x94] sm:$0xf]
    %v7484 = vld [vmem:[%s9 + $0x98] sm:$0xf]
    %v7485 = vld [vmem:[%s9 + $0x9c] sm:$0xf]
    %v7486 = vld [vmem:[%s9 + $0xa0] sm:$0xf]
    %v7487 = vld [vmem:[%s9 + $0xa4] sm:$0xf]
    %v7488 = vld [vmem:[%s9 + $0xa8] sm:$0xf]
    %v7489 = vld [vmem:[%s9 + $0xac] sm:$0xf]
    %v7490 = vld [vmem:[%s9 + $0xb0] sm:$0xf]
    %v7491 = vld [vmem:[%s9 + $0xb4] sm:$0xf]
    %v7492 = vld [vmem:[%s9 + $0xb8] sm:$0xf]
    %v7493 = vld [vmem:[%s9 + $0xbc] sm:$0xf]
    %v7494 = vld [vmem:[%s9 + $0xc0] sm:$0xf]
    %v7495 = vld [vmem:[%s9 + $0xc4] sm:$0xf]
    %v7496 = vld [vmem:[%s9 + $0xc8] sm:$0xf]
    %v7497 = vld [vmem:[%s9 + $0xcc] sm:$0xf]
    %v7498 = vld [vmem:[%s9 + $0xd0] sm:$0xf]
    %v7499 = vld [vmem:[%s9 + $0xd4] sm:$0xf]
    %v7500 = vld [vmem:[%s9 + $0xd8] sm:$0xf]
    %v7501 = vld [vmem:[%s9 + $0xdc] sm:$0xf]
    %v7502 = vld [vmem:[%s9 + $0xe0] sm:$0xf]
    %v7503 = vld [vmem:[%s9 + $0xe4] sm:$0xf]
    %v7504 = vld [vmem:[%s9 + $0xe8] sm:$0xf]
    %v7505 = vld [vmem:[%s9 + $0xec] sm:$0xf]
    %v7506 = vld [vmem:[%s9 + $0xf0] sm:$0xf]
    %v7507 = vld [vmem:[%s9 + $0xf4] sm:$0xf]
    %v7508 = vld [vmem:[%s9 + $0xf8] sm:$0xf]
    %v7509 = vld [vmem:[%s9 + $0xfc] sm:$0xf]
    %v7510 = vld [vmem:[%s9 + $0x100] sm:$0xf]
    %v7511 = vld [vmem:[%s9 + $0x104] sm:$0xf]
    %v7512 = vld [vmem:[%s9 + $0x108] sm:$0xf]
    %v7513 = vld [vmem:[%s9 + $0x10c] sm:$0xf]
    %v7514 = vld [vmem:[%s9 + $0x110] sm:$0xf]
    %v7515 = vld [vmem:[%s9 + $0x114] sm:$0xf]
    %v7516 = vld [vmem:[%s9 + $0x118] sm:$0xf]
    %v7517 = vld [vmem:[%s9 + $0x11c] sm:$0xf]
    %v7518 = vld [vmem:[%s9 + $0x120] sm:$0xf]
    %v7519 = vld [vmem:[%s9 + $0x124] sm:$0xf]
    %v7520 = vld [vmem:[%s9 + $0x128] sm:$0xf]
    %v7521 = vld [vmem:[%s9 + $0x12c] sm:$0xf]
    %v7522 = vld [vmem:[%s9 + $0x130] sm:$0xf]
    %v7523 = vld [vmem:[%s9 + $0x134] sm:$0xf]
    %v7524 = vld [vmem:[%s9 + $0x138] sm:$0xf]
    %v7525 = vld [vmem:[%s9 + $0x13c] sm:$0xf]
    %v7526 = vld [vmem:[%s9 + $0x140] sm:$0xf]
    %v7527 = vld [vmem:[%s9 + $0x144] sm:$0xf]
    %v7528 = vld [vmem:[%s9 + $0x148] sm:$0xf]
    %v7529 = vld [vmem:[%s9 + $0x14c] sm:$0xf]
    %v7530 = vld [vmem:[%s9 + $0x150] sm:$0xf]
    %v7531 = vld [vmem:[%s9 + $0x154] sm:$0xf]
    %v7532 = vld [vmem:[%s9 + $0x158] sm:$0xf]
    %v7533 = vld [vmem:[%s9 + $0x15c] sm:$0xf]
    %v7534 = vld [vmem:[%s9 + $0x160] sm:$0xf]
    %v7535 = vld [vmem:[%s9 + $0x164] sm:$0xf]
    %v7536 = vld [vmem:[%s9 + $0x168] sm:$0xf]
    %v7537 = vld [vmem:[%s9 + $0x16c] sm:$0xf]
    %v7538 = vld [vmem:[%s9 + $0x170] sm:$0xf]
    %v7539 = vld [vmem:[%s9 + $0x174] sm:$0xf]
    %v7540 = vld [vmem:[%s9 + $0x178] sm:$0xf]
    %v7541 = vld [vmem:[%s9 + $0x17c] sm:$0xf]
    %v7542 = vld [vmem:[%s9 + $0x180] sm:$0xf]
    %v7543 = vld [vmem:[%s9 + $0x184] sm:$0xf]
    %v7544 = vld [vmem:[%s9 + $0x188] sm:$0xf]
    %v7545 = vld [vmem:[%s9 + $0x18c] sm:$0xf]
    %v7546 = vld [vmem:[%s9 + $0x190] sm:$0xf]
    %v7547 = vld [vmem:[%s9 + $0x194] sm:$0xf]
    %v7548 = vld [vmem:[%s9 + $0x198] sm:$0xf]
    %v7549 = vld [vmem:[%s9 + $0x19c] sm:$0xf]
    %v7550 = vld [vmem:[%s9 + $0x1a0] sm:$0xf]
    %v7551 = vld [vmem:[%s9 + $0x1a4] sm:$0xf]
    %v7552 = vld [vmem:[%s9 + $0x1a8] sm:$0xf]
    %v7553 = vld [vmem:[%s9 + $0x1ac] sm:$0xf]
    %v7554 = vld [vmem:[%s9 + $0x1b0] sm:$0xf]
    %v7555 = vld [vmem:[%s9 + $0x1b4] sm:$0xf]
    %v7556 = vld [vmem:[%s9 + $0x1b8] sm:$0xf]
    %v7557 = vld [vmem:[%s9 + $0x1bc] sm:$0xf]
    %v7558 = vld [vmem:[%s9 + $0x1c0] sm:$0xf]
    %v7559 = vld [vmem:[%s9 + $0x1c4] sm:$0xf]
    %v7560 = vld [vmem:[%s9 + $0x1c8] sm:$0xf]
    %v7561 = vld [vmem:[%s9 + $0x1cc] sm:$0xf]
    %v7562 = vld [vmem:[%s9 + $0x1d0] sm:$0xf]
    %v7563 = vld [vmem:[%s9 + $0x1d4] sm:$0xf]
    %v7564 = vld [vmem:[%s9 + $0x1d8] sm:$0xf]
    %v7565 = vld [vmem:[%s9 + $0x1dc] sm:$0xf]
    %v7566 = vld [vmem:[%s9 + $0x1e0] sm:$0xf]
    %v7567 = vld [vmem:[%s9 + $0x1e4] sm:$0xf]
    %v7568 = vld [vmem:[%s9 + $0x1e8] sm:$0xf]
    %v7569 = vld [vmem:[%s9 + $0x1ec] sm:$0xf]
    %v7570 = vld [vmem:[%s9 + $0x1f0] sm:$0xf]
    %v7571 = vld [vmem:[%s10] sm:$0x1]
    %v7573 = vlaneseq
    %v7574 = vshrl.u32 %v7573, 7
    %v7575 = vsub.s32 0, %v7574
    %v7576 = vrot.slane %v7571, %v7575
    %v7703 = vunpack.c.l.b16 %v7446
    %v7704 = vunpack.c.l.b16 %v7447
    %v7705 = vunpack.c.l.b16 %v7448
    %v7706 = vunpack.c.l.b16 %v7449
    %v7707 = vunpack.c.l.b16 %v7450
    %v7708 = vunpack.c.l.b16 %v7451
    %v7709 = vunpack.c.l.b16 %v7452
    %v7710 = vunpack.c.l.b16 %v7453
    %v7711 = vunpack.c.l.b16 %v7454
    %v7712 = vunpack.c.l.b16 %v7455
    %v7713 = vunpack.c.l.b16 %v7456
    %v7714 = vunpack.c.l.b16 %v7457
    %v7715 = vunpack.c.l.b16 %v7458
    %v7716 = vunpack.c.l.b16 %v7459
    %v7717 = vunpack.c.l.b16 %v7460
    %v7718 = vunpack.c.l.b16 %v7461
    %v7719 = vunpack.c.l.b16 %v7462
    %v7720 = vunpack.c.l.b16 %v7463
    %v7721 = vunpack.c.l.b16 %v7464
    %v7722 = vunpack.c.l.b16 %v7465
    %v7723 = vunpack.c.l.b16 %v7466
    %v7724 = vunpack.c.l.b16 %v7467
    %v7725 = vunpack.c.l.b16 %v7468
    %v7726 = vunpack.c.l.b16 %v7469
    %v7727 = vunpack.c.l.b16 %v7470
    %v7728 = vunpack.c.l.b16 %v7471
    %v7729 = vunpack.c.l.b16 %v7472
    %v7730 = vunpack.c.l.b16 %v7473
    %v7731 = vunpack.c.l.b16 %v7474
    %v7732 = vunpack.c.l.b16 %v7475
    %v7733 = vunpack.c.l.b16 %v7476
    %v7734 = vunpack.c.l.b16 %v7477
    %v7735 = vunpack.c.l.b16 %v7478
    %v7736 = vunpack.c.l.b16 %v7479
    %v7737 = vunpack.c.l.b16 %v7480
    %v7738 = vunpack.c.l.b16 %v7481
    %v7739 = vunpack.c.l.b16 %v7482
    %v7740 = vunpack.c.l.b16 %v7483
    %v7741 = vunpack.c.l.b16 %v7484
    %v7742 = vunpack.c.l.b16 %v7485
    %v7743 = vunpack.c.l.b16 %v7486
    %v7744 = vunpack.c.l.b16 %v7487
    %v7745 = vunpack.c.l.b16 %v7488
    %v7746 = vunpack.c.l.b16 %v7489
    %v7747 = vunpack.c.l.b16 %v7490
    %v7748 = vunpack.c.l.b16 %v7491
    %v7749 = vunpack.c.l.b16 %v7492
    %v7750 = vunpack.c.l.b16 %v7493
    %v7751 = vunpack.c.l.b16 %v7494
    %v7752 = vunpack.c.l.b16 %v7495
    %v7753 = vunpack.c.l.b16 %v7496
    %v7754 = vunpack.c.l.b16 %v7497
    %v7755 = vunpack.c.l.b16 %v7498
    %v7756 = vunpack.c.l.b16 %v7499
    %v7757 = vunpack.c.l.b16 %v7500
    %v7758 = vunpack.c.l.b16 %v7501
    %v7759 = vunpack.c.l.b16 %v7502
    %v7760 = vunpack.c.l.b16 %v7503
    %v7761 = vunpack.c.l.b16 %v7504
    %v7762 = vunpack.c.l.b16 %v7505
    %v7763 = vunpack.c.l.b16 %v7506
    %v7764 = vunpack.c.l.b16 %v7507
    %v7765 = vunpack.c.l.b16 %v7508
    %v7766 = vunpack.c.l.b16 %v7509
    %v7767 = vunpack.c.l.b16 %v7510
    %v7768 = vunpack.c.l.b16 %v7511
    %v7769 = vunpack.c.l.b16 %v7512
    %v7770 = vunpack.c.l.b16 %v7513
    %v7771 = vunpack.c.l.b16 %v7514
    %v7772 = vunpack.c.l.b16 %v7515
    %v7773 = vunpack.c.l.b16 %v7516
    %v7774 = vunpack.c.l.b16 %v7517
    %v7775 = vunpack.c.l.b16 %v7518
    %v7776 = vunpack.c.l.b16 %v7519
    %v7777 = vunpack.c.l.b16 %v7520
    %v7778 = vunpack.c.l.b16 %v7521
    %v7779 = vunpack.c.l.b16 %v7522
    %v7780 = vunpack.c.l.b16 %v7523
    %v7781 = vunpack.c.l.b16 %v7524
    %v7782 = vunpack.c.l.b16 %v7525
    %v7783 = vunpack.c.l.b16 %v7526
    %v7784 = vunpack.c.l.b16 %v7527
    %v7785 = vunpack.c.l.b16 %v7528
    %v7786 = vunpack.c.l.b16 %v7529
    %v7787 = vunpack.c.l.b16 %v7530
    %v7788 = vunpack.c.l.b16 %v7531
    %v7789 = vunpack.c.l.b16 %v7532
    %v7790 = vunpack.c.l.b16 %v7533
    %v7791 = vunpack.c.l.b16 %v7534
    %v7792 = vunpack.c.l.b16 %v7535
    %v7793 = vunpack.c.l.b16 %v7536
    %v7794 = vunpack.c.l.b16 %v7537
    %v7795 = vunpack.c.l.b16 %v7538
    %v7796 = vunpack.c.l.b16 %v7539
    %v7797 = vunpack.c.l.b16 %v7540
    %v7798 = vunpack.c.l.b16 %v7541
    %v7799 = vunpack.c.l.b16 %v7542
    %v7800 = vunpack.c.l.b16 %v7543
    %v7801 = vunpack.c.l.b16 %v7544
    %v7802 = vunpack.c.l.b16 %v7545
    %v7803 = vunpack.c.l.b16 %v7546
    %v7804 = vunpack.c.l.b16 %v7547
    %v7805 = vunpack.c.l.b16 %v7548
    %v7806 = vunpack.c.l.b16 %v7549
    %v7807 = vunpack.c.l.b16 %v7550
    %v7808 = vunpack.c.l.b16 %v7551
    %v7809 = vunpack.c.l.b16 %v7552
    %v7810 = vunpack.c.l.b16 %v7553
    %v7811 = vunpack.c.l.b16 %v7554
    %v7812 = vunpack.c.l.b16 %v7555
    %v7813 = vunpack.c.l.b16 %v7556
    %v7814 = vunpack.c.l.b16 %v7557
    %v7815 = vunpack.c.l.b16 %v7558
    %v7816 = vunpack.c.l.b16 %v7559
    %v7817 = vunpack.c.l.b16 %v7560
    %v7818 = vunpack.c.l.b16 %v7561
    %v7819 = vunpack.c.l.b16 %v7562
    %v7820 = vunpack.c.l.b16 %v7563
    %v7821 = vunpack.c.l.b16 %v7564
    %v7822 = vunpack.c.l.b16 %v7565
    %v7823 = vunpack.c.l.b16 %v7566
    %v7824 = vunpack.c.l.b16 %v7567
    %v7825 = vunpack.c.l.b16 %v7568
    %v7826 = vunpack.c.l.b16 %v7569
    %v7827 = vunpack.c.l.b16 %v7570
    %v7828 = vpack.c.b16 %v7704, %v7703
    %v7829 = vpack.c.b16 %v7706, %v7705
    %v7830 = vpack.c.b16 %v7708, %v7707
    %v7831 = vpack.c.b16 %v7710, %v7709
    %v7832 = vpack.c.b16 %v7712, %v7711
    %v7833 = vpack.c.b16 %v7714, %v7713
    %v7834 = vpack.c.b16 %v7716, %v7715
    %v7835 = vpack.c.b16 %v7718, %v7717
    %v7836 = vpack.c.b16 %v7720, %v7719
    %v7837 = vpack.c.b16 %v7722, %v7721
    %v7838 = vpack.c.b16 %v7724, %v7723
    %v7839 = vpack.c.b16 %v7726, %v7725
    %v7840 = vpack.c.b16 %v7728, %v7727
    %v7841 = vpack.c.b16 %v7730, %v7729
    %v7842 = vpack.c.b16 %v7732, %v7731
    %v7843 = vpack.c.b16 %v7734, %v7733
    %v7844 = vpack.c.b16 %v7736, %v7735
    %v7845 = vpack.c.b16 %v7738, %v7737
    %v7846 = vpack.c.b16 %v7740, %v7739
    %v7847 = vpack.c.b16 %v7742, %v7741
    %v7848 = vpack.c.b16 %v7744, %v7743
    %v7849 = vpack.c.b16 %v7746, %v7745
    %v7850 = vpack.c.b16 %v7748, %v7747
    %v7851 = vpack.c.b16 %v7750, %v7749
    %v7852 = vpack.c.b16 %v7752, %v7751
    %v7853 = vpack.c.b16 %v7754, %v7753
    %v7854 = vpack.c.b16 %v7756, %v7755
    %v7855 = vpack.c.b16 %v7758, %v7757
    %v7856 = vpack.c.b16 %v7760, %v7759
    %v7857 = vpack.c.b16 %v7762, %v7761
    %v7858 = vpack.c.b16 %v7764, %v7763
    %v7859 = vpack.c.b16 %v7766, %v7765
    %v7860 = vpack.c.b16 %v7768, %v7767
    %v7861 = vpack.c.b16 %v7770, %v7769
    %v7862 = vpack.c.b16 %v7772, %v7771
    %v7863 = vpack.c.b16 %v7774, %v7773
    %v7864 = vpack.c.b16 %v7776, %v7775
    %v7865 = vpack.c.b16 %v7778, %v7777
    %v7866 = vpack.c.b16 %v7780, %v7779
    %v7867 = vpack.c.b16 %v7782, %v7781
    %v7868 = vpack.c.b16 %v7784, %v7783
    %v7869 = vpack.c.b16 %v7786, %v7785
    %v7870 = vpack.c.b16 %v7788, %v7787
    %v7871 = vpack.c.b16 %v7790, %v7789
    %v7872 = vpack.c.b16 %v7792, %v7791
    %v7873 = vpack.c.b16 %v7794, %v7793
    %v7874 = vpack.c.b16 %v7796, %v7795
    %v7875 = vpack.c.b16 %v7798, %v7797
    %v7876 = vpack.c.b16 %v7800, %v7799
    %v7877 = vpack.c.b16 %v7802, %v7801
    %v7878 = vpack.c.b16 %v7804, %v7803
    %v7879 = vpack.c.b16 %v7806, %v7805
    %v7880 = vpack.c.b16 %v7808, %v7807
    %v7881 = vpack.c.b16 %v7810, %v7809
    %v7882 = vpack.c.b16 %v7812, %v7811
    %v7883 = vpack.c.b16 %v7814, %v7813
    %v7884 = vpack.c.b16 %v7816, %v7815
    %v7885 = vpack.c.b16 %v7818, %v7817
    %v7886 = vpack.c.b16 %v7820, %v7819
    %v7887 = vpack.c.b16 %v7822, %v7821
    %v7888 = vpack.c.b16 %v7824, %v7823
    %v7889 = vpack.c.b16 %v7826, %v7825
    %v7890 = vpack.c.b16 %v7827, %v7827
    %vm7953 = vcmask 850944
    %v7955 = vsel %vm7953, %v7445, 0
    %vm7957 = vcmask 1043456
    %v7959 = vsel %vm7957, %v7890, 0
    %7961 = vmatprep.subr.bf16.mxu0 0
    %7962 = vmatpush1.bf16.msra.mxu0 %v7835
    %7963 = vmatprep.subr.bf16.mxu0 0
    %7964 = vmatpush1.bf16.msra.mxu0 %v7834
    %7965 = vmatprep.subr.bf16.mxu0 0
    %7966 = vmatpush1.bf16.msra.mxu0 %v7833
    %7967 = vmatprep.subr.bf16.mxu0 0
    %7968 = vmatpush1.bf16.msra.mxu0 %v7832
    %7969 = vmatprep.subr.bf16.mxu0 0
    %7970 = vmatpush1.bf16.msra.mxu0 %v7831
    %7971 = vmatprep.subr.bf16.mxu0 0
    %7972 = vmatpush1.bf16.msra.mxu0 %v7830
    %7973 = vmatprep.subr.bf16.mxu0 0
    %7974 = vmatpush1.bf16.msra.mxu0 %v7829
    %7975 = vmatprep.subr.bf16.mxu0 0
    %7976 = vmatpush1.bf16.msra.mxu0 %v7828
    %7977 = vmatprep.subr.bf16.mxu0 0
    %7978 = vmatpush2.bf16.msra.mxu0 %v7843
    %7979 = vmatprep.subr.bf16.mxu0 0
    %7980 = vmatpush2.bf16.msra.mxu0 %v7842
    %7981 = vmatprep.subr.bf16.mxu0 0
    %7982 = vmatpush2.bf16.msra.mxu0 %v7841
    %7983 = vmatprep.subr.bf16.mxu0 0
    %7984 = vmatpush2.bf16.msra.mxu0 %v7840
    %7985 = vmatprep.subr.bf16.mxu0 0
    %7986 = vmatpush2.bf16.msra.mxu0 %v7839
    %7987 = vmatprep.subr.bf16.mxu0 0
    %7988 = vmatpush2.bf16.msra.mxu0 %v7838
    %7989 = vmatprep.subr.bf16.mxu0 0
    %7990 = vmatpush2.bf16.msra.mxu0 %v7837
    %7991 = vmatprep.subr.bf16.mxu0 0
    %7992 = vmatpush2.bf16.msra.mxu0 %v7836
    %7993 = vmatprep.mubr.bf16.mxu0 %v7439
    %7994 = vmatmul.mubr.bf16.gmra.mxu0 %v7438
    %v7995 = vpop.f32.mrf.mxu0
    %v7996 = vadd.f32 %v7576, %v7995
    %v7997 = vpop.f32.mrf.mxu0
    %v7998 = vpop.f32.mrf.mxu0
    %v7999 = vpop.f32.mrf.mxu0
    %8000 = vdwg.mxu0
    %8001 = vmatprep.subr.bf16.mxu0 0
    %8002 = vmatpush1.bf16.msra.mxu0 %v7851
    %8003 = vmatprep.subr.bf16.mxu0 0
    %8004 = vmatpush1.bf16.msra.mxu0 %v7850
    %8005 = vmatprep.subr.bf16.mxu0 0
    %8006 = vmatpush1.bf16.msra.mxu0 %v7849
    %8007 = vmatprep.subr.bf16.mxu0 0
    %8008 = vmatpush1.bf16.msra.mxu0 %v7848
    %8009 = vmatprep.subr.bf16.mxu0 0
    %8010 = vmatpush1.bf16.msra.mxu0 %v7847
    %8011 = vmatprep.subr.bf16.mxu0 0
    %8012 = vmatpush1.bf16.msra.mxu0 %v7846
    %8013 = vmatprep.subr.bf16.mxu0 0
    %8014 = vmatpush1.bf16.msra.mxu0 %v7845
    %8015 = vmatprep.subr.bf16.mxu0 0
    %8016 = vmatpush1.bf16.msra.mxu0 %v7844
    %8017 = vmatprep.subr.bf16.mxu0 0
    %8018 = vmatpush2.bf16.msra.mxu0 %v7859
    %8019 = vmatprep.subr.bf16.mxu0 0
    %8020 = vmatpush2.bf16.msra.mxu0 %v7858
    %8021 = vmatprep.subr.bf16.mxu0 0
    %8022 = vmatpush2.bf16.msra.mxu0 %v7857
    %8023 = vmatprep.subr.bf16.mxu0 0
    %8024 = vmatpush2.bf16.msra.mxu0 %v7856
    %8025 = vmatprep.subr.bf16.mxu0 0
    %8026 = vmatpush2.bf16.msra.mxu0 %v7855
    %8027 = vmatprep.subr.bf16.mxu0 0
    %8028 = vmatpush2.bf16.msra.mxu0 %v7854
    %8029 = vmatprep.subr.bf16.mxu0 0
    %8030 = vmatpush2.bf16.msra.mxu0 %v7853
    %8031 = vmatprep.subr.bf16.mxu0 0
    %8032 = vmatpush2.bf16.msra.mxu0 %v7852
    %8033 = vmatprep.mubr.bf16.mxu0 %v7441
    %8034 = vmatmul.mubr.bf16.gmra.mxu0 %v7440
    %v8035 = vpop.f32.mrf.mxu0
    %v8036 = vadd.f32 %v7996, %v8035
    %v8037 = vpop.f32.mrf.mxu0
    %v8038 = vpop.f32.mrf.mxu0
    %v8039 = vpop.f32.mrf.mxu0
    %8040 = vdwg.mxu0
    %8041 = vmatprep.subr.bf16.mxu0 0
    %8042 = vmatpush1.bf16.msra.mxu0 %v7867
    %8043 = vmatprep.subr.bf16.mxu0 0
    %8044 = vmatpush1.bf16.msra.mxu0 %v7866
    %8045 = vmatprep.subr.bf16.mxu0 0
    %8046 = vmatpush1.bf16.msra.mxu0 %v7865
    %8047 = vmatprep.subr.bf16.mxu0 0
    %8048 = vmatpush1.bf16.msra.mxu0 %v7864
    %8049 = vmatprep.subr.bf16.mxu0 0
    %8050 = vmatpush1.bf16.msra.mxu0 %v7863
    %8051 = vmatprep.subr.bf16.mxu0 0
    %8052 = vmatpush1.bf16.msra.mxu0 %v7862
    %8053 = vmatprep.subr.bf16.mxu0 0
    %8054 = vmatpush1.bf16.msra.mxu0 %v7861
    %8055 = vmatprep.subr.bf16.mxu0 0
    %8056 = vmatpush1.bf16.msra.mxu0 %v7860
    %8057 = vmatprep.subr.bf16.mxu0 0
    %8058 = vmatpush2.bf16.msra.mxu0 %v7875
    %8059 = vmatprep.subr.bf16.mxu0 0
    %8060 = vmatpush2.bf16.msra.mxu0 %v7874
    %8061 = vmatprep.subr.bf16.mxu0 0
    %8062 = vmatpush2.bf16.msra.mxu0 %v7873
    %8063 = vmatprep.subr.bf16.mxu0 0
    %8064 = vmatpush2.bf16.msra.mxu0 %v7872
    %8065 = vmatprep.subr.bf16.mxu0 0
    %8066 = vmatpush2.bf16.msra.mxu0 %v7871
    %8067 = vmatprep.subr.bf16.mxu0 0
    %8068 = vmatpush2.bf16.msra.mxu0 %v7870
    %8069 = vmatprep.subr.bf16.mxu0 0
    %8070 = vmatpush2.bf16.msra.mxu0 %v7869
    %8071 = vmatprep.subr.bf16.mxu0 0
    %8072 = vmatpush2.bf16.msra.mxu0 %v7868
    %8073 = vmatprep.mubr.bf16.mxu0 %v7443
    %8074 = vmatmul.mubr.bf16.gmra.mxu0 %v7442
    %v8075 = vpop.f32.mrf.mxu0
    %v8076 = vadd.f32 %v8036, %v8075
    %v8077 = vpop.f32.mrf.mxu0
    %v8078 = vpop.f32.mrf.mxu0
    %v8079 = vpop.f32.mrf.mxu0
    %8080 = vdwg.mxu0
    %8081 = vmatprep.subr.bf16.mxu0 0
    %8082 = vmatpush1.bf16.msra.mxu0 %v7883
    %8083 = vmatprep.subr.bf16.mxu0 0
    %8084 = vmatpush1.bf16.msra.mxu0 %v7882
    %8085 = vmatprep.subr.bf16.mxu0 0
    %8086 = vmatpush1.bf16.msra.mxu0 %v7881
    %8087 = vmatprep.subr.bf16.mxu0 0
    %8088 = vmatpush1.bf16.msra.mxu0 %v7880
    %8089 = vmatprep.subr.bf16.mxu0 0
    %8090 = vmatpush1.bf16.msra.mxu0 %v7879
    %8091 = vmatprep.subr.bf16.mxu0 0
    %8092 = vmatpush1.bf16.msra.mxu0 %v7878
    %8093 = vmatprep.subr.bf16.mxu0 0
    %8094 = vmatpush1.bf16.msra.mxu0 %v7877
    %8095 = vmatprep.subr.bf16.mxu0 0
    %8096 = vmatpush1.bf16.msra.mxu0 %v7876
    %8097 = vmatprep.subr.bf16.mxu0 0
    %8098 = vmatpush2.bf16.msra.mxu0 0
    %8099 = vmatprep.subr.bf16.mxu0 0
    %8100 = vmatpush2.bf16.msra.mxu0 %v7959
    %8101 = vmatprep.subr.bf16.mxu0 0
    %8102 = vmatpush2.bf16.msra.mxu0 %v7889
    %8103 = vmatprep.subr.bf16.mxu0 0
    %8104 = vmatpush2.bf16.msra.mxu0 %v7888
    %8105 = vmatprep.subr.bf16.mxu0 0
    %8106 = vmatpush2.bf16.msra.mxu0 %v7887
    %8107 = vmatprep.subr.bf16.mxu0 0
    %8108 = vmatpush2.bf16.msra.mxu0 %v7886
    %8109 = vmatprep.subr.bf16.mxu0 0
    %8110 = vmatpush2.bf16.msra.mxu0 %v7885
    %8111 = vmatprep.subr.bf16.mxu0 0
    %8112 = vmatpush2.bf16.msra.mxu0 %v7884
    %8113 = vmatprep.mubr.bf16.mxu0 %v7955
    %8114 = vmatmul.mubr.bf16.gmra.mxu0 %v7444
    %v8115 = vpop.f32.mrf.mxu0
    %v8116 = vadd.f32 %v8076, %v8115
    %v8117 = vpop.f32.mrf.mxu0
    %v8118 = vpop.f32.mrf.mxu0
    %v8119 = vpop.f32.mrf.mxu0
    %8120 = vdwg.mxu0
    %8121 = vst [vmem:[%s11] sm:$0xff] %v8116
    // Predicated region
    $region62: #{roi_attention_nfnet_forward.1} parent=1 // pred_check
      _
    $region63: #{roi_attention_nfnet_forward.1} parent=1 // pred_check_branch
      %8123 = sbr.rel (0) target = $region65
    $region64: #{roi_attention_nfnet_forward.1} parent=1 // pred_region
      _
    $region65: #{roi_attention_nfnet_forward.1} parent=1 // pred_fallthru
      _
    // Predicated region
    $region66: #{roi_attention_nfnet_forward.1} parent=1 // pred_check
      _
    $region67: #{roi_attention_nfnet_forward.1} parent=1 // pred_check_branch
      %8125 = sbr.rel (0) target = $region69
    $region68: #{roi_attention_nfnet_forward.1} parent=1 // pred_region
      _
    $region69: #{roi_attention_nfnet_forward.1} parent=1 // pred_fallthru
      _
    %8126 = vsyncpa [#allocation4], 1
    %8127 = vsyncpa [#allocation6], 1
    %8128 = vsyncpa [#allocation9], 1

</llo_original>
